<compile_context>
chip_gen: v6e
topology: v6e:2x2x1
jax: 0.10.0
libtpu: 0.0.40
codegen_flags: <defaults>
</compile_context>

<pallas_src>
import functools

import jax
import jax.numpy as jnp
from jax import lax
from jax.experimental import pallas as pl
from jax.experimental.pallas import tpu as pltpu


_VMEM_LIMIT = 48 * 1024 * 1024          # safe on v5e/v6e (128 MiB) and v7x (64 MiB)
_TILE_BUDGET = 24 * 1024 * 1024         # double-buffered working set target


# --------------------------------------------------------------------------
# Pallas kernel 1: fused conv GEMM
#   out = act(A @ B + bias), plus per-column sum / sum-of-squares of the
#   pre-activation output (masked to the valid M rows) for BatchNorm.
# --------------------------------------------------------------------------
def _gemm_kernel(a_ref, b_ref, bias_ref, o_ref, stats_ref, *, act, valid_m):
    acc = jnp.dot(a_ref[...], b_ref[...], preferred_element_type=jnp.float32)
    acc = acc + bias_ref[...]

    # BatchNorm statistics on the pre-activation conv output.
    tm = o_ref.shape[0]
    row = lax.broadcasted_iota(jnp.int32, acc.shape, 0) + pl.program_id(0) * tm
    vals = jnp.where(row < valid_m, acc, 0.0)
    s1 = jnp.sum(vals, axis=0, keepdims=True)
    s2 = jnp.sum(vals * vals, axis=0, keepdims=True)
    stats_ref[...] = jnp.concatenate([s1, s2], axis=0)[None]

    if act == "relu":
        acc = jnp.maximum(acc, 0.0)
    elif act == "tanh":
        acc = jnp.tanh(acc)
    o_ref[...] = acc.astype(o_ref.dtype)


def _pick_gemm_tiles(M, K, N):
    """Large VMEM-budgeted tiles; K stays a single full-extent block."""
    if N <= 512:
        tn = N                                  # full extent (always legal)
    else:
        tn = 512                                # multiple of 128
        while tn > 128 and 2 * K * tn * 2 > _TILE_BUDGET // 2:
            tn //= 2
    tm = 512
    while tm > 64 and (2 * tm * K * 2 + 2 * K * tn * 2 + 2 * tm * tn * 4) > _TILE_BUDGET:
        tm //= 2
    if M <= tm:
        tm = M                                  # full extent (always legal)
    return tm, tn


def matmul_bias_act(a, b, bias, act="none"):
    """(M,K) @ (K,N) + bias[N] with fused activation and per-column stats.

    Returns (out fp32 (M,N), (col_sum, col_sumsq) each fp32 (N,)) where the
    stats are taken over the pre-activation output.
    """
    M, K = a.shape
    K2, N = b.shape
    assert K == K2
    a = a.astype(jnp.bfloat16)
    b = b.astype(jnp.bfloat16)

    tm, tn = _pick_gemm_tiles(M, K, N)
    gm, gn = pl.cdiv(M, tm), pl.cdiv(N, tn)
    Np = gn * tn
    if Np == N:
        bias_p = bias.reshape(1, N).astype(jnp.float32)
    else:
        bias_p = jnp.zeros((1, Np), jnp.float32).at[0, :N].set(bias)

    out, stats = pl.pallas_call(
        functools.partial(_gemm_kernel, act=act, valid_m=M),
        out_shape=(jax.ShapeDtypeStruct((M, N), jnp.float32),
                   jax.ShapeDtypeStruct((gm, 2, Np), jnp.float32)),
        grid_spec=pltpu.PrefetchScalarGridSpec(
            num_scalar_prefetch=0,
            grid=(gm, gn),
            in_specs=[
                pl.BlockSpec((tm, K), lambda i, j: (i, 0)),
                pl.BlockSpec((K, tn), lambda i, j: (0, j)),
                pl.BlockSpec((1, tn), lambda i, j: (0, j)),
            ],
            out_specs=[
                pl.BlockSpec((tm, tn), lambda i, j: (i, j)),
                pl.BlockSpec((1, 2, tn), lambda i, j: (i, 0, j)),
            ],
        ),
        compiler_params=pltpu.CompilerParams(
            dimension_semantics=("parallel", "parallel"),
            vmem_limit_bytes=_VMEM_LIMIT),
    )(a, b, bias_p)

    s = jnp.sum(stats, axis=0)[:, :N]           # (2, N) partial-block reduce
    return out, (s[0], s[1])


# --------------------------------------------------------------------------
# Pallas kernel 2: tiled per-channel affine (BatchNorm) + activation,
# optionally fused with the ResnetBlock residual add.
# --------------------------------------------------------------------------
def _affine_kernel(x_ref, scale_ref, shift_ref, o_ref, *, act):
    y = x_ref[...] * scale_ref[...] + shift_ref[...]
    if act == "relu":
        y = jnp.maximum(y, 0.0)
    elif act == "tanh":
        y = jnp.tanh(y)
    o_ref[...] = y


def _affine_res_kernel(x_ref, res_ref, scale_ref, shift_ref, o_ref):
    o_ref[...] = res_ref[...] + (x_ref[...] * scale_ref[...] + shift_ref[...])


def affine_act(x_flat, scale, shift, act="none", residual=None):
    """x_flat: (M, C) fp32; y = x*scale + shift (+ residual), then act."""
    M, C = x_flat.shape
    TM = 1024
    while TM > 128 and TM * C * 4 > (4 << 20):
        TM //= 2
    if M <= TM:
        TM = M
    gm = pl.cdiv(M, TM)

    scale2 = scale.reshape(1, C).astype(jnp.float32)
    shift2 = shift.reshape(1, C).astype(jnp.float32)
    xspec = pl.BlockSpec((TM, C), lambda i: (i, 0))
    cspec = pl.BlockSpec((1, C), lambda i: (0, 0))

    if residual is None:
        kern = functools.partial(_affine_kernel, act=act)
        in_specs = [xspec, cspec, cspec]
        args = (x_flat, scale2, shift2)
    else:
        kern = _affine_res_kernel
        in_specs = [xspec, xspec, cspec, cspec]
        args = (x_flat, residual, scale2, shift2)

    return pl.pallas_call(
        kern,
        out_shape=jax.ShapeDtypeStruct((M, C), jnp.float32),
        grid_spec=pltpu.PrefetchScalarGridSpec(
            num_scalar_prefetch=0,
            grid=(gm,),
            in_specs=in_specs,
            out_specs=xspec,
        ),
        compiler_params=pltpu.CompilerParams(
            dimension_semantics=("parallel",),
            vmem_limit_bytes=_VMEM_LIMIT),
    )(*args)


# --------------------------------------------------------------------------
# Conv / ConvTranspose / BatchNorm built on the Pallas kernels
# --------------------------------------------------------------------------
def _im2col(x, kh, kw, stride):
    N, H, W, C = x.shape
    Ho = (H - kh) // stride + 1
    Wo = (W - kw) // stride + 1
    cols = []
    for i in range(kh):
        for j in range(kw):
            cols.append(x[:, i:i + stride * Ho:stride,
                          j:j + stride * Wo:stride, :])
    cols = jnp.stack(cols, axis=3)                 # (N, Ho, Wo, kh*kw, C)
    return cols.reshape(N * Ho * Wo, kh * kw * C), (N, Ho, Wo)


def conv2d(x, w, b, stride=1, padding=0, pad_mode="constant", act="none"):
    """x: NHWC fp32 ; w: (C_out, C_in, kh, kw) ; b: (C_out,).

    Returns (out NHWC fp32, (col_sum, col_sumsq, count)) where the stats are
    per-channel over the pre-activation conv output (for BatchNorm).
    """
    C_out, C_in, kh, kw = w.shape
    if padding > 0:
        x = jnp.pad(x, ((0, 0), (padding, padding), (padding, padding), (0, 0)),
                    mode=pad_mode)
    # TODO(synk): fuse im2col into the GEMM (implicit GEMM) to avoid the kh*kw
    # HBM blow-up of the patch matrix, especially for the 7x7 head/tail convs.
    a, (N, Ho, Wo) = _im2col(x.astype(jnp.bfloat16), kh, kw, stride)
    w_mat = jnp.transpose(w, (2, 3, 1, 0)).reshape(kh * kw * C_in, C_out)
    out, (s1, s2) = matmul_bias_act(a, w_mat, b, act=act)
    return out.reshape(N, Ho, Wo, C_out), (s1, s2, N * Ho * Wo)


def conv_transpose2d(x, w, b):
    """PyTorch ConvTranspose2d(k=3, stride=2, padding=1, output_padding=1).

    Sub-pixel decomposition: the four output phases (r,s) in {0,1}^2 are
    stride-1 convolutions of the *un-dilated* input with the corresponding
    kernel taps, interleaved afterwards (pixel shuffle) -> ~4x less MXU work
    and HBM traffic than dilate-then-conv.
    x: NHWC fp32 ; w: (C_in, C_out, 3, 3) (PyTorch layout) ; b: (C_out,).
    """
    N, H, W, C_in = x.shape
    C_in2, C_out, kh, kw = w.shape
    assert C_in == C_in2 and kh == 3 and kw == 3

    xb = x.astype(jnp.bfloat16)
    # shifted copies (zero at the far edge): x[j+1,k], x[j,k+1], x[j+1,k+1]
    x_h = jnp.pad(xb, ((0, 0), (0, 1), (0, 0), (0, 0)))[:, 1:, :, :]
    x_w = jnp.pad(xb, ((0, 0), (0, 0), (0, 1), (0, 0)))[:, :, 1:, :]
    x_hw = jnp.pad(xb, ((0, 0), (0, 1), (0, 1), (0, 0)))[:, 1:, 1:, :]

    M = N * H * W
    flat = lambda t: t.reshape(M, C_in)
    wcol = lambda i, j: w[:, :, i, j]              # (C_in, C_out)

    # y[2j  ,2k  ] = x[j  ,k  ] w[1,1]
    a00, b00 = flat(xb), wcol(1, 1)
    # y[2j  ,2k+1] = x[j  ,k+1] w[1,0] + x[j,k] w[1,2]
    a01 = jnp.concatenate([flat(x_w), flat(xb)], axis=1)
    b01 = jnp.concatenate([wcol(1, 0), wcol(1, 2)], axis=0)
    # y[2j+1,2k  ] = x[j+1,k  ] w[0,1] + x[j,k] w[2,1]
    a10 = jnp.concatenate([flat(x_h), flat(xb)], axis=1)
    b10 = jnp.concatenate([wcol(0, 1), wcol(2, 1)], axis=0)
    # y[2j+1,2k+1] = x[j+1,k+1] w[0,0] + x[j+1,k] w[0,2] + x[j,k+1] w[2,0] + x[j,k] w[2,2]
    a11 = jnp.concatenate([flat(x_hw), flat(x_h), flat(x_w), flat(xb)], axis=1)
    b11 = jnp.concatenate([wcol(0, 0), wcol(0, 2), wcol(2, 0), wcol(2, 2)], axis=0)

    outs = []
    s1_tot = jnp.zeros((C_out,), jnp.float32)
    s2_tot = jnp.zeros((C_out,), jnp.float32)
    for a_m, b_m in ((a00, b00), (a01, b01), (a10, b10), (a11, b11)):
        o, (s1, s2) = matmul_bias_act(a_m, b_m, b)
        outs.append(o.reshape(N, H, W, C_out))
        s1_tot = s1_tot + s1
        s2_tot = s2_tot + s2

    # interleave: out[n, 2j+r, 2k+s, c] = phase[r*2+s][n, j, k, c]
    stacked = jnp.stack(outs, axis=3).reshape(N, H, W, 2, 2, C_out)
    full = jnp.transpose(stacked, (0, 1, 3, 2, 4, 5)).reshape(N, 2 * H, 2 * W, C_out)
    return full, (s1_tot, s2_tot, N * (2 * H) * (2 * W))


def bn_scale_shift(stats, gamma, beta, eps=1e-5):
    """Training-mode BatchNorm2d (batch stats, biased var) from fused sums."""
    s1, s2, count = stats
    mean = s1 / count
    var = jnp.maximum(s2 / count - mean * mean, 0.0)
    scale = gamma / jnp.sqrt(var + eps)
    shift = beta - mean * scale
    return scale, shift


# --------------------------------------------------------------------------
# Parameter init (deterministic, synthetic — matches the nn.Module shapes)
# --------------------------------------------------------------------------
def _conv_params(key, c_out, c_in, k):
    kw_, kb_ = jax.random.split(key)
    w = 0.05 * jax.random.normal(kw_, (c_out, c_in, k, k), jnp.float32)
    b = 0.05 * jax.random.normal(kb_, (c_out,), jnp.float32)
    return w, b


def _convT_params(key, c_in, c_out, k):
    kw_, kb_ = jax.random.split(key)
    w = 0.05 * jax.random.normal(kw_, (c_in, c_out, k, k), jnp.float32)
    b = 0.05 * jax.random.normal(kb_, (c_out,), jnp.float32)
    return w, b


def _bn_params(key, c):
    k1, k2 = jax.random.split(key)
    gamma = 1.0 + 0.1 * jax.random.normal(k1, (c,), jnp.float32)
    beta = 0.1 * jax.random.normal(k2, (c,), jnp.float32)
    return gamma, beta


def init_global_generator(key, input_nc, output_nc, ngf, n_downsampling, n_blocks):
    keys = iter(jax.random.split(key, 8 + 4 * n_downsampling + 8 * n_blocks))
    params = {}
    params["head_conv"] = _conv_params(next(keys), ngf, input_nc, 7)
    params["head_bn"] = _bn_params(next(keys), ngf)
    params["down"] = []
    for i in range(n_downsampling):
        mult = 2 ** i
        params["down"].append((_conv_params(next(keys), ngf * mult * 2, ngf * mult, 3),
                               _bn_params(next(keys), ngf * mult * 2)))
    dim = ngf * (2 ** n_downsampling)
    params["blocks"] = []
    for _ in range(n_blocks):
        params["blocks"].append((_conv_params(next(keys), dim, dim, 3),
                                 _bn_params(next(keys), dim),
                                 _conv_params(next(keys), dim, dim, 3),
                                 _bn_params(next(keys), dim)))
    params["up"] = []
    for i in range(n_downsampling):
        mult = 2 ** (n_downsampling - i)
        params["up"].append((_convT_params(next(keys), ngf * mult, ngf * mult // 2, 3),
                             _bn_params(next(keys), ngf * mult // 2)))
    params["tail_conv"] = _conv_params(next(keys), output_nc, ngf, 7)
    return params


# --------------------------------------------------------------------------
# GlobalGenerator forward
# --------------------------------------------------------------------------
def global_generator_forward(params, x_nchw):
    x = jnp.transpose(x_nchw, (0, 2, 3, 1)).astype(jnp.float32)   # NCHW -> NHWC

    # ReflectionPad2d(3) + Conv7x7 + BN + ReLU
    (w, b), (g, be) = params["head_conv"], params["head_bn"]
    y, st = conv2d(x, w, b, stride=1, padding=3, pad_mode="reflect")
    N_, H_, W_, C_ = y.shape
    sc, sh = bn_scale_shift(st, g, be)
    y = affine_act(y.reshape(-1, C_), sc, sh, act="relu").reshape(N_, H_, W_, C_)

    # downsampling: Conv3x3 stride 2 (zero pad 1) + BN + ReLU
    for (w, b), (g, be) in params["down"]:
        y, st = conv2d(y, w, b, stride=2, padding=1, pad_mode="constant")
        N_, H_, W_, C_ = y.shape
        sc, sh = bn_scale_shift(st, g, be)
        y = affine_act(y.reshape(-1, C_), sc, sh, act="relu").reshape(N_, H_, W_, C_)

    # ResnetBlocks (padding_type='reflect', no dropout); residual add fused
    # into the second BN/affine kernel.
    for (w1, b1), (g1, be1), (w2, b2), (g2, be2) in params["blocks"]:
        r, st1 = conv2d(y, w1, b1, stride=1, padding=1, pad_mode="reflect")
        N_, H_, W_, C_ = r.shape
        sc1, sh1 = bn_scale_shift(st1, g1, be1)
        r = affine_act(r.reshape(-1, C_), sc1, sh1, act="relu").reshape(N_, H_, W_, C_)
        r, st2 = conv2d(r, w2, b2, stride=1, padding=1, pad_mode="reflect")
        sc2, sh2 = bn_scale_shift(st2, g2, be2)
        y = affine_act(r.reshape(-1, C_), sc2, sh2, act="none",
                       residual=y.reshape(-1, C_)).reshape(N_, H_, W_, C_)

    # upsampling: ConvTranspose 3x3, stride 2, pad 1, out_pad 1 + BN + ReLU
    for (w, b), (g, be) in params["up"]:
        y, st = conv_transpose2d(y, w, b)
        N_, H_, W_, C_ = y.shape
        sc, sh = bn_scale_shift(st, g, be)
        y = affine_act(y.reshape(-1, C_), sc, sh, act="relu").reshape(N_, H_, W_, C_)

    # ReflectionPad2d(3) + Conv7x7 + Tanh (tanh fused into the GEMM epilogue)
    w, b = params["tail_conv"]
    y, _ = conv2d(y, w, b, stride=1, padding=3, pad_mode="reflect", act="tanh")

    return jnp.transpose(y, (0, 3, 1, 2))             # NHWC -> NCHW


if __name__ == "__main__":
    key = jax.random.PRNGKey(0)
    kx, kp = jax.random.split(key)

    # small config consistent with the module:
    # GlobalGenerator(input_nc=3, output_nc=3, ngf=8, n_downsampling=2, n_blocks=2)
    B, input_nc, output_nc, H, W = 2, 3, 3, 16, 16
    ngf, n_downsampling, n_blocks = 8, 2, 2

    x = jax.random.normal(kx, (B, input_nc, H, W), jnp.float32)
    params = init_global_generator(kp, input_nc, output_nc, ngf,
                                   n_downsampling, n_blocks)

    fwd = jax.jit(global_generator_forward)
    out = fwd(params, x)
    jax.block_until_ready(out)

    assert out.shape == (B, output_nc, H, W), out.shape
    assert bool(jnp.all(jnp.isfinite(out)))
    assert bool(jnp.all(jnp.abs(out) <= 1.0 + 1e-6))   # tanh output range
    print("KERNEL_OK")
</pallas_src>

<mosaic_0001>
module attributes {stable_mosaic.version = 11 : i64} {
  func.func @_gemm_kernel(%arg0: i32, %arg1: i32, %arg2: memref<512x147xbf16, #tpu.memory_space<vmem>>, %arg3: memref<147x8xbf16, #tpu.memory_space<vmem>>, %arg4: memref<1x8xf32, #tpu.memory_space<vmem>>, %arg5: memref<512x8xf32, #tpu.memory_space<vmem>>, %arg6: memref<1x2x8xf32, #tpu.memory_space<vmem>>) attributes {dimension_semantics = [#tpu.dimension_semantics<parallel>, #tpu.dimension_semantics<parallel>], iteration_bounds = array<i64: 1, 1>, scalar_prefetch = 0 : i64, scratch_operands = 0 : i64, tpu.core_type = #tpu.core_type<tc>, window_params = [{transform_indices = @transform_0, window_bounds = array<i64: 512, 147>}, {transform_indices = @transform_1, window_bounds = array<i64: 147, 8>}, {transform_indices = @transform_2, window_bounds = array<i64: 1, 8>}, {transform_indices = @transform_3, window_bounds = array<i64: 512, 8>}, {transform_indices = @transform_4, window_bounds = array<i64: 1, 2, 8>}]} {
    %c0 = arith.constant 0 : index
    %c0_0 = arith.constant 0 : index
    %0 = vector.load %arg2[%c0, %c0_0] : memref<512x147xbf16, #tpu.memory_space<vmem>>, vector<512x147xbf16>
    %c0_1 = arith.constant 0 : index
    %c0_2 = arith.constant 0 : index
    %1 = vector.load %arg3[%c0_1, %c0_2] : memref<147x8xbf16, #tpu.memory_space<vmem>>, vector<147x8xbf16>
    %cst = arith.constant dense<0.000000e+00> : vector<512x8xf32>
    %2 = tpu.matmul %0, %1, %cst {dimension_numbers = #tpu.dot_dimension_numbers<[1], [0], [0], [1], [0, 0, 1, 1], [], []>} : vector<512x147xbf16>, vector<147x8xbf16>, vector<512x8xf32> -> vector<512x8xf32>
    %c0_3 = arith.constant 0 : index
    %c0_4 = arith.constant 0 : index
    %3 = vector.load %arg4[%c0_3, %c0_4] : memref<1x8xf32, #tpu.memory_space<vmem>>, vector<1x8xf32>
    %4 = vector.broadcast %3 : vector<1x8xf32> to vector<512x8xf32>
    %5 = arith.addf %2, %4 : vector<512x8xf32>
    %6 = tpu.iota {dimensions = array<i32: 0>} : vector<512x8xi32>
    %c512_i32 = arith.constant 512 : i32
    %7 = arith.muli %arg0, %c512_i32 : i32
    %8 = vector.broadcast %7 : i32 to vector<512x8xi32>
    %9 = arith.addi %6, %8 : vector<512x8xi32>
    %c512_i32_5 = arith.constant 512 : i32
    %10 = vector.broadcast %c512_i32_5 : i32 to vector<512x8xi32>
    %11 = arith.cmpi slt, %9, %10 : vector<512x8xi32>
    %cst_6 = arith.constant 0.000000e+00 : f32
    %12 = vector.broadcast %cst_6 : f32 to vector<512x8xf32>
    %13 = arith.select %11, %5, %12 : vector<512x8xi1>, vector<512x8xf32>
    %cst_7 = arith.constant dense<0.000000e+00> : vector<8xf32>
    %14 = vector.multi_reduction <add>, %13, %cst_7 [0] : vector<512x8xf32> to vector<8xf32>
    %15 = vector.shape_cast %14 : vector<8xf32> to vector<1x8xf32>
    %16 = arith.mulf %13, %13 : vector<512x8xf32>
    %cst_8 = arith.constant dense<0.000000e+00> : vector<8xf32>
    %17 = vector.multi_reduction <add>, %16, %cst_8 [0] : vector<512x8xf32> to vector<8xf32>
    %18 = vector.shape_cast %17 : vector<8xf32> to vector<1x8xf32>
    %19 = tpu.concatenate %15, %18 in 0 : vector<1x8xf32>, vector<1x8xf32> -> vector<2x8xf32>
    %20 = vector.shape_cast %19 : vector<2x8xf32> to vector<1x2x8xf32>
    %c0_9 = arith.constant 0 : index
    %c0_10 = arith.constant 0 : index
    %c0_11 = arith.constant 0 : index
    %21 = vector.load %arg6[%c0_9, %c0_10, %c0_11] : memref<1x2x8xf32, #tpu.memory_space<vmem>>, vector<1x2x8xf32>
    tpu.vector_store %arg6[%c0_9, %c0_10, %c0_11], %20 {strides = array<i32>} : memref<1x2x8xf32, #tpu.memory_space<vmem>>, vector<1x2x8xf32>,
    %c0_12 = arith.constant 0 : index
    %c0_13 = arith.constant 0 : index
    %22 = vector.load %arg5[%c0_12, %c0_13] : memref<512x8xf32, #tpu.memory_space<vmem>>, vector<512x8xf32>
    tpu.vector_store %arg5[%c0_12, %c0_13], %5 {strides = array<i32>} : memref<512x8xf32, #tpu.memory_space<vmem>>, vector<512x8xf32>,
    return
  }
  func.func @transform_0(%arg0: i32, %arg1: i32) -> (i32, i32) {
    %c0_i32 = arith.constant 0 : i32
    %c0_i32_0 = arith.constant 0 : i32
    return %arg0, %c0_i32 : i32, i32
  }
  func.func @transform_1(%arg0: i32, %arg1: i32) -> (i32, i32) {
    %c0_i32 = arith.constant 0 : i32
    %c0_i32_0 = arith.constant 0 : i32
    return %c0_i32, %arg1 : i32, i32
  }
  func.func @transform_2(%arg0: i32, %arg1: i32) -> (i32, i32) {
    %c0_i32 = arith.constant 0 : i32
    %c0_i32_0 = arith.constant 0 : i32
    return %c0_i32, %arg1 : i32, i32
  }
  func.func @transform_3(%arg0: i32, %arg1: i32) -> (i32, i32) {
    %c0_i32 = arith.constant 0 : i32
    return %arg0, %arg1 : i32, i32
  }
  func.func @transform_4(%arg0: i32, %arg1: i32) -> (i32, i32, i32) {
    %c0_i32 = arith.constant 0 : i32
    %c0_i32_0 = arith.constant 0 : i32
    return %arg0, %c0_i32, %arg1 : i32, i32, i32
  }
}

module attributes {stable_mosaic.version = 11 : i64} {
  func.func @_affine_kernel(%arg0: i32, %arg1: memref<512x8xf32, #tpu.memory_space<vmem>>, %arg2: memref<1x8xf32, #tpu.memory_space<vmem>>, %arg3: memref<1x8xf32, #tpu.memory_space<vmem>>, %arg4: memref<512x8xf32, #tpu.memory_space<vmem>>) attributes {dimension_semantics = [#tpu.dimension_semantics<parallel>], iteration_bounds = array<i64: 1>, scalar_prefetch = 0 : i64, scratch_operands = 0 : i64, tpu.core_type = #tpu.core_type<tc>, window_params = [{transform_indices = @transform_0, window_bounds = array<i64: 512, 8>}, {pipeline_mode = #tpu.pipeline_mode<synchronous>, transform_indices = @transform_1, window_bounds = array<i64: 1, 8>}, {pipeline_mode = #tpu.pipeline_mode<synchronous>, transform_indices = @transform_2, window_bounds = array<i64: 1, 8>}, {transform_indices = @transform_3, window_bounds = array<i64: 512, 8>}]} {
    %c0 = arith.constant 0 : index
    %c0_0 = arith.constant 0 : index
    %0 = vector.load %arg1[%c0, %c0_0] : memref<512x8xf32, #tpu.memory_space<vmem>>, vector<512x8xf32>
    %c0_1 = arith.constant 0 : index
    %c0_2 = arith.constant 0 : index
    %1 = vector.load %arg2[%c0_1, %c0_2] : memref<1x8xf32, #tpu.memory_space<vmem>>, vector<1x8xf32>
    %2 = vector.broadcast %1 : vector<1x8xf32> to vector<512x8xf32>
    %3 = arith.mulf %0, %2 : vector<512x8xf32>
    %c0_3 = arith.constant 0 : index
    %c0_4 = arith.constant 0 : index
    %4 = vector.load %arg3[%c0_3, %c0_4] : memref<1x8xf32, #tpu.memory_space<vmem>>, vector<1x8xf32>
    %5 = vector.broadcast %4 : vector<1x8xf32> to vector<512x8xf32>
    %6 = arith.addf %3, %5 : vector<512x8xf32>
    %cst = arith.constant 0.000000e+00 : f32
    %7 = vector.broadcast %cst : f32 to vector<512x8xf32>
    %8 = arith.maximumf %6, %7 : vector<512x8xf32>
    %c0_5 = arith.constant 0 : index
    %c0_6 = arith.constant 0 : index
    %9 = vector.load %arg4[%c0_5, %c0_6] : memref<512x8xf32, #tpu.memory_space<vmem>>, vector<512x8xf32>
    tpu.vector_store %arg4[%c0_5, %c0_6], %8 {strides = array<i32>} : memref<512x8xf32, #tpu.memory_space<vmem>>, vector<512x8xf32>,
    return
  }
  func.func @transform_0(%arg0: i32) -> (i32, i32) {
    %c0_i32 = arith.constant 0 : i32
    %c0_i32_0 = arith.constant 0 : i32
    return %arg0, %c0_i32 : i32, i32
  }
  func.func @transform_1(%arg0: i32) -> (i32, i32) {
    %c0_i32 = arith.constant 0 : i32
    %c0_i32_0 = arith.constant 0 : i32
    %c0_i32_1 = arith.constant 0 : i32
    return %c0_i32, %c0_i32_0 : i32, i32
  }
  func.func @transform_2(%arg0: i32) -> (i32, i32) {
    %c0_i32 = arith.constant 0 : i32
    %c0_i32_0 = arith.constant 0 : i32
    %c0_i32_1 = arith.constant 0 : i32
    return %c0_i32, %c0_i32_0 : i32, i32
  }
  func.func @transform_3(%arg0: i32) -> (i32, i32) {
    %c0_i32 = arith.constant 0 : i32
    %c0_i32_0 = arith.constant 0 : i32
    return %arg0, %c0_i32 : i32, i32
  }
}

module attributes {stable_mosaic.version = 11 : i64} {
  func.func @_gemm_kernel(%arg0: i32, %arg1: i32, %arg2: memref<128x72xbf16, #tpu.memory_space<vmem>>, %arg3: memref<72x16xbf16, #tpu.memory_space<vmem>>, %arg4: memref<1x16xf32, #tpu.memory_space<vmem>>, %arg5: memref<128x16xf32, #tpu.memory_space<vmem>>, %arg6: memref<1x2x16xf32, #tpu.memory_space<vmem>>) attributes {dimension_semantics = [#tpu.dimension_semantics<parallel>, #tpu.dimension_semantics<parallel>], iteration_bounds = array<i64: 1, 1>, scalar_prefetch = 0 : i64, scratch_operands = 0 : i64, tpu.core_type = #tpu.core_type<tc>, window_params = [{transform_indices = @transform_0, window_bounds = array<i64: 128, 72>}, {transform_indices = @transform_1, window_bounds = array<i64: 72, 16>}, {transform_indices = @transform_2, window_bounds = array<i64: 1, 16>}, {transform_indices = @transform_3, window_bounds = array<i64: 128, 16>}, {transform_indices = @transform_4, window_bounds = array<i64: 1, 2, 16>}]} {
    %c0 = arith.constant 0 : index
    %c0_0 = arith.constant 0 : index
    %0 = vector.load %arg2[%c0, %c0_0] : memref<128x72xbf16, #tpu.memory_space<vmem>>, vector<128x72xbf16>
    %c0_1 = arith.constant 0 : index
    %c0_2 = arith.constant 0 : index
    %1 = vector.load %arg3[%c0_1, %c0_2] : memref<72x16xbf16, #tpu.memory_space<vmem>>, vector<72x16xbf16>
    %cst = arith.constant dense<0.000000e+00> : vector<128x16xf32>
    %2 = tpu.matmul %0, %1, %cst {dimension_numbers = #tpu.dot_dimension_numbers<[1], [0], [0], [1], [0, 0, 1, 1], [], []>} : vector<128x72xbf16>, vector<72x16xbf16>, vector<128x16xf32> -> vector<128x16xf32>
    %c0_3 = arith.constant 0 : index
    %c0_4 = arith.constant 0 : index
    %3 = vector.load %arg4[%c0_3, %c0_4] : memref<1x16xf32, #tpu.memory_space<vmem>>, vector<1x16xf32>
    %4 = vector.broadcast %3 : vector<1x16xf32> to vector<128x16xf32>
    %5 = arith.addf %2, %4 : vector<128x16xf32>
    %6 = tpu.iota {dimensions = array<i32: 0>} : vector<128x16xi32>
    %c128_i32 = arith.constant 128 : i32
    %7 = arith.muli %arg0, %c128_i32 : i32
    %8 = vector.broadcast %7 : i32 to vector<128x16xi32>
    %9 = arith.addi %6, %8 : vector<128x16xi32>
    %c128_i32_5 = arith.constant 128 : i32
    %10 = vector.broadcast %c128_i32_5 : i32 to vector<128x16xi32>
    %11 = arith.cmpi slt, %9, %10 : vector<128x16xi32>
    %cst_6 = arith.constant 0.000000e+00 : f32
    %12 = vector.broadcast %cst_6 : f32 to vector<128x16xf32>
    %13 = arith.select %11, %5, %12 : vector<128x16xi1>, vector<128x16xf32>
    %cst_7 = arith.constant dense<0.000000e+00> : vector<16xf32>
    %14 = vector.multi_reduction <add>, %13, %cst_7 [0] : vector<128x16xf32> to vector<16xf32>
    %15 = vector.shape_cast %14 : vector<16xf32> to vector<1x16xf32>
    %16 = arith.mulf %13, %13 : vector<128x16xf32>
    %cst_8 = arith.constant dense<0.000000e+00> : vector<16xf32>
    %17 = vector.multi_reduction <add>, %16, %cst_8 [0] : vector<128x16xf32> to vector<16xf32>
    %18 = vector.shape_cast %17 : vector<16xf32> to vector<1x16xf32>
    %19 = tpu.concatenate %15, %18 in 0 : vector<1x16xf32>, vector<1x16xf32> -> vector<2x16xf32>
    %20 = vector.shape_cast %19 : vector<2x16xf32> to vector<1x2x16xf32>
    %c0_9 = arith.constant 0 : index
    %c0_10 = arith.constant 0 : index
    %c0_11 = arith.constant 0 : index
    %21 = vector.load %arg6[%c0_9, %c0_10, %c0_11] : memref<1x2x16xf32, #tpu.memory_space<vmem>>, vector<1x2x16xf32>
    tpu.vector_store %arg6[%c0_9, %c0_10, %c0_11], %20 {strides = array<i32>} : memref<1x2x16xf32, #tpu.memory_space<vmem>>, vector<1x2x16xf32>,
    %c0_12 = arith.constant 0 : index
    %c0_13 = arith.constant 0 : index
    %22 = vector.load %arg5[%c0_12, %c0_13] : memref<128x16xf32, #tpu.memory_space<vmem>>, vector<128x16xf32>
    tpu.vector_store %arg5[%c0_12, %c0_13], %5 {strides = array<i32>} : memref<128x16xf32, #tpu.memory_space<vmem>>, vector<128x16xf32>,
    return
  }
  func.func @transform_0(%arg0: i32, %arg1: i32) -> (i32, i32) {
    %c0_i32 = arith.constant 0 : i32
    %c0_i32_0 = arith.constant 0 : i32
    return %arg0, %c0_i32 : i32, i32
  }
  func.func @transform_1(%arg0: i32, %arg1: i32) -> (i32, i32) {
    %c0_i32 = arith.constant 0 : i32
    %c0_i32_0 = arith.constant 0 : i32
    return %c0_i32, %arg1 : i32, i32
  }
  func.func @transform_2(%arg0: i32, %arg1: i32) -> (i32, i32) {
    %c0_i32 = arith.constant 0 : i32
    %c0_i32_0 = arith.constant 0 : i32
    return %c0_i32, %arg1 : i32, i32
  }
  func.func @transform_3(%arg0: i32, %arg1: i32) -> (i32, i32) {
    %c0_i32 = arith.constant 0 : i32
    return %arg0, %arg1 : i32, i32
  }
  func.func @transform_4(%arg0: i32, %arg1: i32) -> (i32, i32, i32) {
    %c0_i32 = arith.constant 0 : i32
    %c0_i32_0 = arith.constant 0 : i32
    return %arg0, %c0_i32, %arg1 : i32, i32, i32
  }
}

module attributes {stable_mosaic.version = 11 : i64} {
  func.func @_affine_kernel(%arg0: i32, %arg1: memref<128x16xf32, #tpu.memory_space<vmem>>, %arg2: memref<1x16xf32, #tpu.memory_space<vmem>>, %arg3: memref<1x16xf32, #tpu.memory_space<vmem>>, %arg4: memref<128x16xf32, #tpu.memory_space<vmem>>) attributes {dimension_semantics = [#tpu.dimension_semantics<parallel>], iteration_bounds = array<i64: 1>, scalar_prefetch = 0 : i64, scratch_operands = 0 : i64, tpu.core_type = #tpu.core_type<tc>, window_params = [{transform_indices = @transform_0, window_bounds = array<i64: 128, 16>}, {pipeline_mode = #tpu.pipeline_mode<synchronous>, transform_indices = @transform_1, window_bounds = array<i64: 1, 16>}, {pipeline_mode = #tpu.pipeline_mode<synchronous>, transform_indices = @transform_2, window_bounds = array<i64: 1, 16>}, {transform_indices = @transform_3, window_bounds = array<i64: 128, 16>}]} {
    %c0 = arith.constant 0 : index
    %c0_0 = arith.constant 0 : index
    %0 = vector.load %arg1[%c0, %c0_0] : memref<128x16xf32, #tpu.memory_space<vmem>>, vector<128x16xf32>
    %c0_1 = arith.constant 0 : index
    %c0_2 = arith.constant 0 : index
    %1 = vector.load %arg2[%c0_1, %c0_2] : memref<1x16xf32, #tpu.memory_space<vmem>>, vector<1x16xf32>
    %2 = vector.broadcast %1 : vector<1x16xf32> to vector<128x16xf32>
    %3 = arith.mulf %0, %2 : vector<128x16xf32>
    %c0_3 = arith.constant 0 : index
    %c0_4 = arith.constant 0 : index
    %4 = vector.load %arg3[%c0_3, %c0_4] : memref<1x16xf32, #tpu.memory_space<vmem>>, vector<1x16xf32>
    %5 = vector.broadcast %4 : vector<1x16xf32> to vector<128x16xf32>
    %6 = arith.addf %3, %5 : vector<128x16xf32>
    %cst = arith.constant 0.000000e+00 : f32
    %7 = vector.broadcast %cst : f32 to vector<128x16xf32>
    %8 = arith.maximumf %6, %7 : vector<128x16xf32>
    %c0_5 = arith.constant 0 : index
    %c0_6 = arith.constant 0 : index
    %9 = vector.load %arg4[%c0_5, %c0_6] : memref<128x16xf32, #tpu.memory_space<vmem>>, vector<128x16xf32>
    tpu.vector_store %arg4[%c0_5, %c0_6], %8 {strides = array<i32>} : memref<128x16xf32, #tpu.memory_space<vmem>>, vector<128x16xf32>,
    return
  }
  func.func @transform_0(%arg0: i32) -> (i32, i32) {
    %c0_i32 = arith.constant 0 : i32
    %c0_i32_0 = arith.constant 0 : i32
    return %arg0, %c0_i32 : i32, i32
  }
  func.func @transform_1(%arg0: i32) -> (i32, i32) {
    %c0_i32 = arith.constant 0 : i32
    %c0_i32_0 = arith.constant 0 : i32
    %c0_i32_1 = arith.constant 0 : i32
    return %c0_i32, %c0_i32_0 : i32, i32
  }
  func.func @transform_2(%arg0: i32) -> (i32, i32) {
    %c0_i32 = arith.constant 0 : i32
    %c0_i32_0 = arith.constant 0 : i32
    %c0_i32_1 = arith.constant 0 : i32
    return %c0_i32, %c0_i32_0 : i32, i32
  }
  func.func @transform_3(%arg0: i32) -> (i32, i32) {
    %c0_i32 = arith.constant 0 : i32
    %c0_i32_0 = arith.constant 0 : i32
    return %arg0, %c0_i32 : i32, i32
  }
}

module attributes {stable_mosaic.version = 11 : i64} {
  func.func @_gemm_kernel(%arg0: i32, %arg1: i32, %arg2: memref<32x144xbf16, #tpu.memory_space<vmem>>, %arg3: memref<144x32xbf16, #tpu.memory_space<vmem>>, %arg4: memref<1x32xf32, #tpu.memory_space<vmem>>, %arg5: memref<32x32xf32, #tpu.memory_space<vmem>>, %arg6: memref<1x2x32xf32, #tpu.memory_space<vmem>>) attributes {dimension_semantics = [#tpu.dimension_semantics<parallel>, #tpu.dimension_semantics<parallel>], iteration_bounds = array<i64: 1, 1>, scalar_prefetch = 0 : i64, scratch_operands = 0 : i64, tpu.core_type = #tpu.core_type<tc>, window_params = [{transform_indices = @transform_0, window_bounds = array<i64: 32, 144>}, {transform_indices = @transform_1, window_bounds = array<i64: 144, 32>}, {transform_indices = @transform_2, window_bounds = array<i64: 1, 32>}, {transform_indices = @transform_3, window_bounds = array<i64: 32, 32>}, {transform_indices = @transform_4, window_bounds = array<i64: 1, 2, 32>}]} {
    %c0 = arith.constant 0 : index
    %c0_0 = arith.constant 0 : index
    %0 = vector.load %arg2[%c0, %c0_0] : memref<32x144xbf16, #tpu.memory_space<vmem>>, vector<32x144xbf16>
    %c0_1 = arith.constant 0 : index
    %c0_2 = arith.constant 0 : index
    %1 = vector.load %arg3[%c0_1, %c0_2] : memref<144x32xbf16, #tpu.memory_space<vmem>>, vector<144x32xbf16>
    %cst = arith.constant dense<0.000000e+00> : vector<32x32xf32>
    %2 = tpu.matmul %0, %1, %cst {dimension_numbers = #tpu.dot_dimension_numbers<[1], [0], [0], [1], [0, 0, 1, 1], [], []>} : vector<32x144xbf16>, vector<144x32xbf16>, vector<32x32xf32> -> vector<32x32xf32>
    %c0_3 = arith.constant 0 : index
    %c0_4 = arith.constant 0 : index
    %3 = vector.load %arg4[%c0_3, %c0_4] : memref<1x32xf32, #tpu.memory_space<vmem>>, vector<1x32xf32>
    %4 = vector.broadcast %3 : vector<1x32xf32> to vector<32x32xf32>
    %5 = arith.addf %2, %4 : vector<32x32xf32>
    %6 = tpu.iota {dimensions = array<i32: 0>} : vector<32x32xi32>
    %c32_i32 = arith.constant 32 : i32
    %7 = arith.muli %arg0, %c32_i32 : i32
    %8 = vector.broadcast %7 : i32 to vector<32x32xi32>
    %9 = arith.addi %6, %8 : vector<32x32xi32>
    %c32_i32_5 = arith.constant 32 : i32
    %10 = vector.broadcast %c32_i32_5 : i32 to vector<32x32xi32>
    %11 = arith.cmpi slt, %9, %10 : vector<32x32xi32>
    %cst_6 = arith.constant 0.000000e+00 : f32
    %12 = vector.broadcast %cst_6 : f32 to vector<32x32xf32>
    %13 = arith.select %11, %5, %12 : vector<32x32xi1>, vector<32x32xf32>
    %cst_7 = arith.constant dense<0.000000e+00> : vector<32xf32>
    %14 = vector.multi_reduction <add>, %13, %cst_7 [0] : vector<32x32xf32> to vector<32xf32>
    %15 = vector.shape_cast %14 : vector<32xf32> to vector<1x32xf32>
    %16 = arith.mulf %13, %13 : vector<32x32xf32>
    %cst_8 = arith.constant dense<0.000000e+00> : vector<32xf32>
    %17 = vector.multi_reduction <add>, %16, %cst_8 [0] : vector<32x32xf32> to vector<32xf32>
    %18 = vector.shape_cast %17 : vector<32xf32> to vector<1x32xf32>
    %19 = tpu.concatenate %15, %18 in 0 : vector<1x32xf32>, vector<1x32xf32> -> vector<2x32xf32>
    %20 = vector.shape_cast %19 : vector<2x32xf32> to vector<1x2x32xf32>
    %c0_9 = arith.constant 0 : index
    %c0_10 = arith.constant 0 : index
    %c0_11 = arith.constant 0 : index
    %21 = vector.load %arg6[%c0_9, %c0_10, %c0_11] : memref<1x2x32xf32, #tpu.memory_space<vmem>>, vector<1x2x32xf32>
    tpu.vector_store %arg6[%c0_9, %c0_10, %c0_11], %20 {strides = array<i32>} : memref<1x2x32xf32, #tpu.memory_space<vmem>>, vector<1x2x32xf32>,
    %c0_12 = arith.constant 0 : index
    %c0_13 = arith.constant 0 : index
    %22 = vector.load %arg5[%c0_12, %c0_13] : memref<32x32xf32, #tpu.memory_space<vmem>>, vector<32x32xf32>
    tpu.vector_store %arg5[%c0_12, %c0_13], %5 {strides = array<i32>} : memref<32x32xf32, #tpu.memory_space<vmem>>, vector<32x32xf32>,
    return
  }
  func.func @transform_0(%arg0: i32, %arg1: i32) -> (i32, i32) {
    %c0_i32 = arith.constant 0 : i32
    %c0_i32_0 = arith.constant 0 : i32
    return %arg0, %c0_i32 : i32, i32
  }
  func.func @transform_1(%arg0: i32, %arg1: i32) -> (i32, i32) {
    %c0_i32 = arith.constant 0 : i32
    %c0_i32_0 = arith.constant 0 : i32
    return %c0_i32, %arg1 : i32, i32
  }
  func.func @transform_2(%arg0: i32, %arg1: i32) -> (i32, i32) {
    %c0_i32 = arith.constant 0 : i32
    %c0_i32_0 = arith.constant 0 : i32
    return %c0_i32, %arg1 : i32, i32
  }
  func.func @transform_3(%arg0: i32, %arg1: i32) -> (i32, i32) {
    %c0_i32 = arith.constant 0 : i32
    return %arg0, %arg1 : i32, i32
  }
  func.func @transform_4(%arg0: i32, %arg1: i32) -> (i32, i32, i32) {
    %c0_i32 = arith.constant 0 : i32
    %c0_i32_0 = arith.constant 0 : i32
    return %arg0, %c0_i32, %arg1 : i32, i32, i32
  }
}

module attributes {stable_mosaic.version = 11 : i64} {
  func.func @_affine_kernel(%arg0: i32, %arg1: memref<32x32xf32, #tpu.memory_space<vmem>>, %arg2: memref<1x32xf32, #tpu.memory_space<vmem>>, %arg3: memref<1x32xf32, #tpu.memory_space<vmem>>, %arg4: memref<32x32xf32, #tpu.memory_space<vmem>>) attributes {dimension_semantics = [#tpu.dimension_semantics<parallel>], iteration_bounds = array<i64: 1>, scalar_prefetch = 0 : i64, scratch_operands = 0 : i64, tpu.core_type = #tpu.core_type<tc>, window_params = [{transform_indices = @transform_0, window_bounds = array<i64: 32, 32>}, {pipeline_mode = #tpu.pipeline_mode<synchronous>, transform_indices = @transform_1, window_bounds = array<i64: 1, 32>}, {pipeline_mode = #tpu.pipeline_mode<synchronous>, transform_indices = @transform_2, window_bounds = array<i64: 1, 32>}, {transform_indices = @transform_3, window_bounds = array<i64: 32, 32>}]} {
    %c0 = arith.constant 0 : index
    %c0_0 = arith.constant 0 : index
    %0 = vector.load %arg1[%c0, %c0_0] : memref<32x32xf32, #tpu.memory_space<vmem>>, vector<32x32xf32>
    %c0_1 = arith.constant 0 : index
    %c0_2 = arith.constant 0 : index
    %1 = vector.load %arg2[%c0_1, %c0_2] : memref<1x32xf32, #tpu.memory_space<vmem>>, vector<1x32xf32>
    %2 = vector.broadcast %1 : vector<1x32xf32> to vector<32x32xf32>
    %3 = arith.mulf %0, %2 : vector<32x32xf32>
    %c0_3 = arith.constant 0 : index
    %c0_4 = arith.constant 0 : index
    %4 = vector.load %arg3[%c0_3, %c0_4] : memref<1x32xf32, #tpu.memory_space<vmem>>, vector<1x32xf32>
    %5 = vector.broadcast %4 : vector<1x32xf32> to vector<32x32xf32>
    %6 = arith.addf %3, %5 : vector<32x32xf32>
    %cst = arith.constant 0.000000e+00 : f32
    %7 = vector.broadcast %cst : f32 to vector<32x32xf32>
    %8 = arith.maximumf %6, %7 : vector<32x32xf32>
    %c0_5 = arith.constant 0 : index
    %c0_6 = arith.constant 0 : index
    %9 = vector.load %arg4[%c0_5, %c0_6] : memref<32x32xf32, #tpu.memory_space<vmem>>, vector<32x32xf32>
    tpu.vector_store %arg4[%c0_5, %c0_6], %8 {strides = array<i32>} : memref<32x32xf32, #tpu.memory_space<vmem>>, vector<32x32xf32>,
    return
  }
  func.func @transform_0(%arg0: i32) -> (i32, i32) {
    %c0_i32 = arith.constant 0 : i32
    %c0_i32_0 = arith.constant 0 : i32
    return %arg0, %c0_i32 : i32, i32
  }
  func.func @transform_1(%arg0: i32) -> (i32, i32) {
    %c0_i32 = arith.constant 0 : i32
    %c0_i32_0 = arith.constant 0 : i32
    %c0_i32_1 = arith.constant 0 : i32
    return %c0_i32, %c0_i32_0 : i32, i32
  }
  func.func @transform_2(%arg0: i32) -> (i32, i32) {
    %c0_i32 = arith.constant 0 : i32
    %c0_i32_0 = arith.constant 0 : i32
    %c0_i32_1 = arith.constant 0 : i32
    return %c0_i32, %c0_i32_0 : i32, i32
  }
  func.func @transform_3(%arg0: i32) -> (i32, i32) {
    %c0_i32 = arith.constant 0 : i32
    %c0_i32_0 = arith.constant 0 : i32
    return %arg0, %c0_i32 : i32, i32
  }
}

module attributes {stable_mosaic.version = 11 : i64} {
  func.func @_gemm_kernel(%arg0: i32, %arg1: i32, %arg2: memref<32x288xbf16, #tpu.memory_space<vmem>>, %arg3: memref<288x32xbf16, #tpu.memory_space<vmem>>, %arg4: memref<1x32xf32, #tpu.memory_space<vmem>>, %arg5: memref<32x32xf32, #tpu.memory_space<vmem>>, %arg6: memref<1x2x32xf32, #tpu.memory_space<vmem>>) attributes {dimension_semantics = [#tpu.dimension_semantics<parallel>, #tpu.dimension_semantics<parallel>], iteration_bounds = array<i64: 1, 1>, scalar_prefetch = 0 : i64, scratch_operands = 0 : i64, tpu.core_type = #tpu.core_type<tc>, window_params = [{transform_indices = @transform_0, window_bounds = array<i64: 32, 288>}, {transform_indices = @transform_1, window_bounds = array<i64: 288, 32>}, {transform_indices = @transform_2, window_bounds = array<i64: 1, 32>}, {transform_indices = @transform_3, window_bounds = array<i64: 32, 32>}, {transform_indices = @transform_4, window_bounds = array<i64: 1, 2, 32>}]} {
    %c0 = arith.constant 0 : index
    %c0_0 = arith.constant 0 : index
    %0 = vector.load %arg2[%c0, %c0_0] : memref<32x288xbf16, #tpu.memory_space<vmem>>, vector<32x288xbf16>
    %c0_1 = arith.constant 0 : index
    %c0_2 = arith.constant 0 : index
    %1 = vector.load %arg3[%c0_1, %c0_2] : memref<288x32xbf16, #tpu.memory_space<vmem>>, vector<288x32xbf16>
    %cst = arith.constant dense<0.000000e+00> : vector<32x32xf32>
    %2 = tpu.matmul %0, %1, %cst {dimension_numbers = #tpu.dot_dimension_numbers<[1], [0], [0], [1], [0, 0, 1, 1], [], []>} : vector<32x288xbf16>, vector<288x32xbf16>, vector<32x32xf32> -> vector<32x32xf32>
    %c0_3 = arith.constant 0 : index
    %c0_4 = arith.constant 0 : index
    %3 = vector.load %arg4[%c0_3, %c0_4] : memref<1x32xf32, #tpu.memory_space<vmem>>, vector<1x32xf32>
    %4 = vector.broadcast %3 : vector<1x32xf32> to vector<32x32xf32>
    %5 = arith.addf %2, %4 : vector<32x32xf32>
    %6 = tpu.iota {dimensions = array<i32: 0>} : vector<32x32xi32>
    %c32_i32 = arith.constant 32 : i32
    %7 = arith.muli %arg0, %c32_i32 : i32
    %8 = vector.broadcast %7 : i32 to vector<32x32xi32>
    %9 = arith.addi %6, %8 : vector<32x32xi32>
    %c32_i32_5 = arith.constant 32 : i32
    %10 = vector.broadcast %c32_i32_5 : i32 to vector<32x32xi32>
    %11 = arith.cmpi slt, %9, %10 : vector<32x32xi32>
    %cst_6 = arith.constant 0.000000e+00 : f32
    %12 = vector.broadcast %cst_6 : f32 to vector<32x32xf32>
    %13 = arith.select %11, %5, %12 : vector<32x32xi1>, vector<32x32xf32>
    %cst_7 = arith.constant dense<0.000000e+00> : vector<32xf32>
    %14 = vector.multi_reduction <add>, %13, %cst_7 [0] : vector<32x32xf32> to vector<32xf32>
    %15 = vector.shape_cast %14 : vector<32xf32> to vector<1x32xf32>
    %16 = arith.mulf %13, %13 : vector<32x32xf32>
    %cst_8 = arith.constant dense<0.000000e+00> : vector<32xf32>
    %17 = vector.multi_reduction <add>, %16, %cst_8 [0] : vector<32x32xf32> to vector<32xf32>
    %18 = vector.shape_cast %17 : vector<32xf32> to vector<1x32xf32>
    %19 = tpu.concatenate %15, %18 in 0 : vector<1x32xf32>, vector<1x32xf32> -> vector<2x32xf32>
    %20 = vector.shape_cast %19 : vector<2x32xf32> to vector<1x2x32xf32>
    %c0_9 = arith.constant 0 : index
    %c0_10 = arith.constant 0 : index
    %c0_11 = arith.constant 0 : index
    %21 = vector.load %arg6[%c0_9, %c0_10, %c0_11] : memref<1x2x32xf32, #tpu.memory_space<vmem>>, vector<1x2x32xf32>
    tpu.vector_store %arg6[%c0_9, %c0_10, %c0_11], %20 {strides = array<i32>} : memref<1x2x32xf32, #tpu.memory_space<vmem>>, vector<1x2x32xf32>,
    %c0_12 = arith.constant 0 : index
    %c0_13 = arith.constant 0 : index
    %22 = vector.load %arg5[%c0_12, %c0_13] : memref<32x32xf32, #tpu.memory_space<vmem>>, vector<32x32xf32>
    tpu.vector_store %arg5[%c0_12, %c0_13], %5 {strides = array<i32>} : memref<32x32xf32, #tpu.memory_space<vmem>>, vector<32x32xf32>,
    return
  }
  func.func @transform_0(%arg0: i32, %arg1: i32) -> (i32, i32) {
    %c0_i32 = arith.constant 0 : i32
    %c0_i32_0 = arith.constant 0 : i32
    return %arg0, %c0_i32 : i32, i32
  }
  func.func @transform_1(%arg0: i32, %arg1: i32) -> (i32, i32) {
    %c0_i32 = arith.constant 0 : i32
    %c0_i32_0 = arith.constant 0 : i32
    return %c0_i32, %arg1 : i32, i32
  }
  func.func @transform_2(%arg0: i32, %arg1: i32) -> (i32, i32) {
    %c0_i32 = arith.constant 0 : i32
    %c0_i32_0 = arith.constant 0 : i32
    return %c0_i32, %arg1 : i32, i32
  }
  func.func @transform_3(%arg0: i32, %arg1: i32) -> (i32, i32) {
    %c0_i32 = arith.constant 0 : i32
    return %arg0, %arg1 : i32, i32
  }
  func.func @transform_4(%arg0: i32, %arg1: i32) -> (i32, i32, i32) {
    %c0_i32 = arith.constant 0 : i32
    %c0_i32_0 = arith.constant 0 : i32
    return %arg0, %c0_i32, %arg1 : i32, i32, i32
  }
}

module attributes {stable_mosaic.version = 11 : i64} {
  func.func @_affine_res_kernel(%arg0: i32, %arg1: memref<32x32xf32, #tpu.memory_space<vmem>>, %arg2: memref<32x32xf32, #tpu.memory_space<vmem>>, %arg3: memref<1x32xf32, #tpu.memory_space<vmem>>, %arg4: memref<1x32xf32, #tpu.memory_space<vmem>>, %arg5: memref<32x32xf32, #tpu.memory_space<vmem>>) attributes {dimension_semantics = [#tpu.dimension_semantics<parallel>], iteration_bounds = array<i64: 1>, scalar_prefetch = 0 : i64, scratch_operands = 0 : i64, tpu.core_type = #tpu.core_type<tc>, window_params = [{transform_indices = @transform_0, window_bounds = array<i64: 32, 32>}, {transform_indices = @transform_1, window_bounds = array<i64: 32, 32>}, {pipeline_mode = #tpu.pipeline_mode<synchronous>, transform_indices = @transform_2, window_bounds = array<i64: 1, 32>}, {pipeline_mode = #tpu.pipeline_mode<synchronous>, transform_indices = @transform_3, window_bounds = array<i64: 1, 32>}, {transform_indices = @transform_4, window_bounds = array<i64: 32, 32>}]} {
    %c0 = arith.constant 0 : index
    %c0_0 = arith.constant 0 : index
    %0 = vector.load %arg2[%c0, %c0_0] : memref<32x32xf32, #tpu.memory_space<vmem>>, vector<32x32xf32>
    %c0_1 = arith.constant 0 : index
    %c0_2 = arith.constant 0 : index
    %1 = vector.load %arg1[%c0_1, %c0_2] : memref<32x32xf32, #tpu.memory_space<vmem>>, vector<32x32xf32>
    %c0_3 = arith.constant 0 : index
    %c0_4 = arith.constant 0 : index
    %2 = vector.load %arg3[%c0_3, %c0_4] : memref<1x32xf32, #tpu.memory_space<vmem>>, vector<1x32xf32>
    %3 = vector.broadcast %2 : vector<1x32xf32> to vector<32x32xf32>
    %4 = arith.mulf %1, %3 : vector<32x32xf32>
    %c0_5 = arith.constant 0 : index
    %c0_6 = arith.constant 0 : index
    %5 = vector.load %arg4[%c0_5, %c0_6] : memref<1x32xf32, #tpu.memory_space<vmem>>, vector<1x32xf32>
    %6 = vector.broadcast %5 : vector<1x32xf32> to vector<32x32xf32>
    %7 = arith.addf %4, %6 : vector<32x32xf32>
    %8 = arith.addf %0, %7 : vector<32x32xf32>
    %c0_7 = arith.constant 0 : index
    %c0_8 = arith.constant 0 : index
    %9 = vector.load %arg5[%c0_7, %c0_8] : memref<32x32xf32, #tpu.memory_space<vmem>>, vector<32x32xf32>
    tpu.vector_store %arg5[%c0_7, %c0_8], %8 {strides = array<i32>} : memref<32x32xf32, #tpu.memory_space<vmem>>, vector<32x32xf32>,
    return
  }
  func.func @transform_0(%arg0: i32) -> (i32, i32) {
    %c0_i32 = arith.constant 0 : i32
    %c0_i32_0 = arith.constant 0 : i32
    return %arg0, %c0_i32 : i32, i32
  }
  func.func @transform_1(%arg0: i32) -> (i32, i32) {
    %c0_i32 = arith.constant 0 : i32
    %c0_i32_0 = arith.constant 0 : i32
    return %arg0, %c0_i32 : i32, i32
  }
  func.func @transform_2(%arg0: i32) -> (i32, i32) {
    %c0_i32 = arith.constant 0 : i32
    %c0_i32_0 = arith.constant 0 : i32
    %c0_i32_1 = arith.constant 0 : i32
    return %c0_i32, %c0_i32_0 : i32, i32
  }
  func.func @transform_3(%arg0: i32) -> (i32, i32) {
    %c0_i32 = arith.constant 0 : i32
    %c0_i32_0 = arith.constant 0 : i32
    %c0_i32_1 = arith.constant 0 : i32
    return %c0_i32, %c0_i32_0 : i32, i32
  }
  func.func @transform_4(%arg0: i32) -> (i32, i32) {
    %c0_i32 = arith.constant 0 : i32
    %c0_i32_0 = arith.constant 0 : i32
    return %arg0, %c0_i32 : i32, i32
  }
}

module attributes {stable_mosaic.version = 11 : i64} {
  func.func @_gemm_kernel(%arg0: i32, %arg1: i32, %arg2: memref<32x64xbf16, #tpu.memory_space<vmem>>, %arg3: memref<64x16xbf16, #tpu.memory_space<vmem>>, %arg4: memref<1x16xf32, #tpu.memory_space<vmem>>, %arg5: memref<32x16xf32, #tpu.memory_space<vmem>>, %arg6: memref<1x2x16xf32, #tpu.memory_space<vmem>>) attributes {dimension_semantics = [#tpu.dimension_semantics<parallel>, #tpu.dimension_semantics<parallel>], iteration_bounds = array<i64: 1, 1>, scalar_prefetch = 0 : i64, scratch_operands = 0 : i64, tpu.core_type = #tpu.core_type<tc>, window_params = [{transform_indices = @transform_0, window_bounds = array<i64: 32, 64>}, {transform_indices = @transform_1, window_bounds = array<i64: 64, 16>}, {transform_indices = @transform_2, window_bounds = array<i64: 1, 16>}, {transform_indices = @transform_3, window_bounds = array<i64: 32, 16>}, {transform_indices = @transform_4, window_bounds = array<i64: 1, 2, 16>}]} {
    %c0 = arith.constant 0 : index
    %c0_0 = arith.constant 0 : index
    %0 = vector.load %arg2[%c0, %c0_0] : memref<32x64xbf16, #tpu.memory_space<vmem>>, vector<32x64xbf16>
    %c0_1 = arith.constant 0 : index
    %c0_2 = arith.constant 0 : index
    %1 = vector.load %arg3[%c0_1, %c0_2] : memref<64x16xbf16, #tpu.memory_space<vmem>>, vector<64x16xbf16>
    %cst = arith.constant dense<0.000000e+00> : vector<32x16xf32>
    %2 = tpu.matmul %0, %1, %cst {dimension_numbers = #tpu.dot_dimension_numbers<[1], [0], [0], [1], [0, 0, 1, 1], [], []>} : vector<32x64xbf16>, vector<64x16xbf16>, vector<32x16xf32> -> vector<32x16xf32>
    %c0_3 = arith.constant 0 : index
    %c0_4 = arith.constant 0 : index
    %3 = vector.load %arg4[%c0_3, %c0_4] : memref<1x16xf32, #tpu.memory_space<vmem>>, vector<1x16xf32>
    %4 = vector.broadcast %3 : vector<1x16xf32> to vector<32x16xf32>
    %5 = arith.addf %2, %4 : vector<32x16xf32>
    %6 = tpu.iota {dimensions = array<i32: 0>} : vector<32x16xi32>
    %c32_i32 = arith.constant 32 : i32
    %7 = arith.muli %arg0, %c32_i32 : i32
    %8 = vector.broadcast %7 : i32 to vector<32x16xi32>
    %9 = arith.addi %6, %8 : vector<32x16xi32>
    %c32_i32_5 = arith.constant 32 : i32
    %10 = vector.broadcast %c32_i32_5 : i32 to vector<32x16xi32>
    %11 = arith.cmpi slt, %9, %10 : vector<32x16xi32>
    %cst_6 = arith.constant 0.000000e+00 : f32
    %12 = vector.broadcast %cst_6 : f32 to vector<32x16xf32>
    %13 = arith.select %11, %5, %12 : vector<32x16xi1>, vector<32x16xf32>
    %cst_7 = arith.constant dense<0.000000e+00> : vector<16xf32>
    %14 = vector.multi_reduction <add>, %13, %cst_7 [0] : vector<32x16xf32> to vector<16xf32>
    %15 = vector.shape_cast %14 : vector<16xf32> to vector<1x16xf32>
    %16 = arith.mulf %13, %13 : vector<32x16xf32>
    %cst_8 = arith.constant dense<0.000000e+00> : vector<16xf32>
    %17 = vector.multi_reduction <add>, %16, %cst_8 [0] : vector<32x16xf32> to vector<16xf32>
    %18 = vector.shape_cast %17 : vector<16xf32> to vector<1x16xf32>
    %19 = tpu.concatenate %15, %18 in 0 : vector<1x16xf32>, vector<1x16xf32> -> vector<2x16xf32>
    %20 = vector.shape_cast %19 : vector<2x16xf32> to vector<1x2x16xf32>
    %c0_9 = arith.constant 0 : index
    %c0_10 = arith.constant 0 : index
    %c0_11 = arith.constant 0 : index
    %21 = vector.load %arg6[%c0_9, %c0_10, %c0_11] : memref<1x2x16xf32, #tpu.memory_space<vmem>>, vector<1x2x16xf32>
    tpu.vector_store %arg6[%c0_9, %c0_10, %c0_11], %20 {strides = array<i32>} : memref<1x2x16xf32, #tpu.memory_space<vmem>>, vector<1x2x16xf32>,
    %c0_12 = arith.constant 0 : index
    %c0_13 = arith.constant 0 : index
    %22 = vector.load %arg5[%c0_12, %c0_13] : memref<32x16xf32, #tpu.memory_space<vmem>>, vector<32x16xf32>
    tpu.vector_store %arg5[%c0_12, %c0_13], %5 {strides = array<i32>} : memref<32x16xf32, #tpu.memory_space<vmem>>, vector<32x16xf32>,
    return
  }
  func.func @transform_0(%arg0: i32, %arg1: i32) -> (i32, i32) {
    %c0_i32 = arith.constant 0 : i32
    %c0_i32_0 = arith.constant 0 : i32
    return %arg0, %c0_i32 : i32, i32
  }
  func.func @transform_1(%arg0: i32, %arg1: i32) -> (i32, i32) {
    %c0_i32 = arith.constant 0 : i32
    %c0_i32_0 = arith.constant 0 : i32
    return %c0_i32, %arg1 : i32, i32
  }
  func.func @transform_2(%arg0: i32, %arg1: i32) -> (i32, i32) {
    %c0_i32 = arith.constant 0 : i32
    %c0_i32_0 = arith.constant 0 : i32
    return %c0_i32, %arg1 : i32, i32
  }
  func.func @transform_3(%arg0: i32, %arg1: i32) -> (i32, i32) {
    %c0_i32 = arith.constant 0 : i32
    return %arg0, %arg1 : i32, i32
  }
  func.func @transform_4(%arg0: i32, %arg1: i32) -> (i32, i32, i32) {
    %c0_i32 = arith.constant 0 : i32
    %c0_i32_0 = arith.constant 0 : i32
    return %arg0, %c0_i32, %arg1 : i32, i32, i32
  }
}

module attributes {stable_mosaic.version = 11 : i64} {
  func.func @_gemm_kernel(%arg0: i32, %arg1: i32, %arg2: memref<32x128xbf16, #tpu.memory_space<vmem>>, %arg3: memref<128x16xbf16, #tpu.memory_space<vmem>>, %arg4: memref<1x16xf32, #tpu.memory_space<vmem>>, %arg5: memref<32x16xf32, #tpu.memory_space<vmem>>, %arg6: memref<1x2x16xf32, #tpu.memory_space<vmem>>) attributes {dimension_semantics = [#tpu.dimension_semantics<parallel>, #tpu.dimension_semantics<parallel>], iteration_bounds = array<i64: 1, 1>, scalar_prefetch = 0 : i64, scratch_operands = 0 : i64, tpu.core_type = #tpu.core_type<tc>, window_params = [{transform_indices = @transform_0, window_bounds = array<i64: 32, 128>}, {transform_indices = @transform_1, window_bounds = array<i64: 128, 16>}, {transform_indices = @transform_2, window_bounds = array<i64: 1, 16>}, {transform_indices = @transform_3, window_bounds = array<i64: 32, 16>}, {transform_indices = @transform_4, window_bounds = array<i64: 1, 2, 16>}]} {
    %c0 = arith.constant 0 : index
    %c0_0 = arith.constant 0 : index
    %0 = vector.load %arg2[%c0, %c0_0] : memref<32x128xbf16, #tpu.memory_space<vmem>>, vector<32x128xbf16>
    %c0_1 = arith.constant 0 : index
    %c0_2 = arith.constant 0 : index
    %1 = vector.load %arg3[%c0_1, %c0_2] : memref<128x16xbf16, #tpu.memory_space<vmem>>, vector<128x16xbf16>
    %cst = arith.constant dense<0.000000e+00> : vector<32x16xf32>
    %2 = tpu.matmul %0, %1, %cst {dimension_numbers = #tpu.dot_dimension_numbers<[1], [0], [0], [1], [0, 0, 1, 1], [], []>} : vector<32x128xbf16>, vector<128x16xbf16>, vector<32x16xf32> -> vector<32x16xf32>
    %c0_3 = arith.constant 0 : index
    %c0_4 = arith.constant 0 : index
    %3 = vector.load %arg4[%c0_3, %c0_4] : memref<1x16xf32, #tpu.memory_space<vmem>>, vector<1x16xf32>
    %4 = vector.broadcast %3 : vector<1x16xf32> to vector<32x16xf32>
    %5 = arith.addf %2, %4 : vector<32x16xf32>
    %6 = tpu.iota {dimensions = array<i32: 0>} : vector<32x16xi32>
    %c32_i32 = arith.constant 32 : i32
    %7 = arith.muli %arg0, %c32_i32 : i32
    %8 = vector.broadcast %7 : i32 to vector<32x16xi32>
    %9 = arith.addi %6, %8 : vector<32x16xi32>
    %c32_i32_5 = arith.constant 32 : i32
    %10 = vector.broadcast %c32_i32_5 : i32 to vector<32x16xi32>
    %11 = arith.cmpi slt, %9, %10 : vector<32x16xi32>
    %cst_6 = arith.constant 0.000000e+00 : f32
    %12 = vector.broadcast %cst_6 : f32 to vector<32x16xf32>
    %13 = arith.select %11, %5, %12 : vector<32x16xi1>, vector<32x16xf32>
    %cst_7 = arith.constant dense<0.000000e+00> : vector<16xf32>
    %14 = vector.multi_reduction <add>, %13, %cst_7 [0] : vector<32x16xf32> to vector<16xf32>
    %15 = vector.shape_cast %14 : vector<16xf32> to vector<1x16xf32>
    %16 = arith.mulf %13, %13 : vector<32x16xf32>
    %cst_8 = arith.constant dense<0.000000e+00> : vector<16xf32>
    %17 = vector.multi_reduction <add>, %16, %cst_8 [0] : vector<32x16xf32> to vector<16xf32>
    %18 = vector.shape_cast %17 : vector<16xf32> to vector<1x16xf32>
    %19 = tpu.concatenate %15, %18 in 0 : vector<1x16xf32>, vector<1x16xf32> -> vector<2x16xf32>
    %20 = vector.shape_cast %19 : vector<2x16xf32> to vector<1x2x16xf32>
    %c0_9 = arith.constant 0 : index
    %c0_10 = arith.constant 0 : index
    %c0_11 = arith.constant 0 : index
    %21 = vector.load %arg6[%c0_9, %c0_10, %c0_11] : memref<1x2x16xf32, #tpu.memory_space<vmem>>, vector<1x2x16xf32>
    tpu.vector_store %arg6[%c0_9, %c0_10, %c0_11], %20 {strides = array<i32>} : memref<1x2x16xf32, #tpu.memory_space<vmem>>, vector<1x2x16xf32>,
    %c0_12 = arith.constant 0 : index
    %c0_13 = arith.constant 0 : index
    %22 = vector.load %arg5[%c0_12, %c0_13] : memref<32x16xf32, #tpu.memory_space<vmem>>, vector<32x16xf32>
    tpu.vector_store %arg5[%c0_12, %c0_13], %5 {strides = array<i32>} : memref<32x16xf32, #tpu.memory_space<vmem>>, vector<32x16xf32>,
    return
  }
  func.func @transform_0(%arg0: i32, %arg1: i32) -> (i32, i32) {
    %c0_i32 = arith.constant 0 : i32
    %c0_i32_0 = arith.constant 0 : i32
    return %arg0, %c0_i32 : i32, i32
  }
  func.func @transform_1(%arg0: i32, %arg1: i32) -> (i32, i32) {
    %c0_i32 = arith.constant 0 : i32
    %c0_i32_0 = arith.constant 0 : i32
    return %c0_i32, %arg1 : i32, i32
  }
  func.func @transform_2(%arg0: i32, %arg1: i32) -> (i32, i32) {
    %c0_i32 = arith.constant 0 : i32
    %c0_i32_0 = arith.constant 0 : i32
    return %c0_i32, %arg1 : i32, i32
  }
  func.func @transform_3(%arg0: i32, %arg1: i32) -> (i32, i32) {
    %c0_i32 = arith.constant 0 : i32
    return %arg0, %arg1 : i32, i32
  }
  func.func @transform_4(%arg0: i32, %arg1: i32) -> (i32, i32, i32) {
    %c0_i32 = arith.constant 0 : i32
    %c0_i32_0 = arith.constant 0 : i32
    return %arg0, %c0_i32, %arg1 : i32, i32, i32
  }
}

module attributes {stable_mosaic.version = 11 : i64} {
  func.func @_gemm_kernel(%arg0: i32, %arg1: i32, %arg2: memref<32x32xbf16, #tpu.memory_space<vmem>>, %arg3: memref<32x16xbf16, #tpu.memory_space<vmem>>, %arg4: memref<1x16xf32, #tpu.memory_space<vmem>>, %arg5: memref<32x16xf32, #tpu.memory_space<vmem>>, %arg6: memref<1x2x16xf32, #tpu.memory_space<vmem>>) attributes {dimension_semantics = [#tpu.dimension_semantics<parallel>, #tpu.dimension_semantics<parallel>], iteration_bounds = array<i64: 1, 1>, scalar_prefetch = 0 : i64, scratch_operands = 0 : i64, tpu.core_type = #tpu.core_type<tc>, window_params = [{transform_indices = @transform_0, window_bounds = array<i64: 32, 32>}, {transform_indices = @transform_1, window_bounds = array<i64: 32, 16>}, {transform_indices = @transform_2, window_bounds = array<i64: 1, 16>}, {transform_indices = @transform_3, window_bounds = array<i64: 32, 16>}, {transform_indices = @transform_4, window_bounds = array<i64: 1, 2, 16>}]} {
    %c0 = arith.constant 0 : index
    %c0_0 = arith.constant 0 : index
    %0 = vector.load %arg2[%c0, %c0_0] : memref<32x32xbf16, #tpu.memory_space<vmem>>, vector<32x32xbf16>
    %c0_1 = arith.constant 0 : index
    %c0_2 = arith.constant 0 : index
    %1 = vector.load %arg3[%c0_1, %c0_2] : memref<32x16xbf16, #tpu.memory_space<vmem>>, vector<32x16xbf16>
    %cst = arith.constant dense<0.000000e+00> : vector<32x16xf32>
    %2 = tpu.matmul %0, %1, %cst {dimension_numbers = #tpu.dot_dimension_numbers<[1], [0], [0], [1], [0, 0, 1, 1], [], []>} : vector<32x32xbf16>, vector<32x16xbf16>, vector<32x16xf32> -> vector<32x16xf32>
    %c0_3 = arith.constant 0 : index
    %c0_4 = arith.constant 0 : index
    %3 = vector.load %arg4[%c0_3, %c0_4] : memref<1x16xf32, #tpu.memory_space<vmem>>, vector<1x16xf32>
    %4 = vector.broadcast %3 : vector<1x16xf32> to vector<32x16xf32>
    %5 = arith.addf %2, %4 : vector<32x16xf32>
    %6 = tpu.iota {dimensions = array<i32: 0>} : vector<32x16xi32>
    %c32_i32 = arith.constant 32 : i32
    %7 = arith.muli %arg0, %c32_i32 : i32
    %8 = vector.broadcast %7 : i32 to vector<32x16xi32>
    %9 = arith.addi %6, %8 : vector<32x16xi32>
    %c32_i32_5 = arith.constant 32 : i32
    %10 = vector.broadcast %c32_i32_5 : i32 to vector<32x16xi32>
    %11 = arith.cmpi slt, %9, %10 : vector<32x16xi32>
    %cst_6 = arith.constant 0.000000e+00 : f32
    %12 = vector.broadcast %cst_6 : f32 to vector<32x16xf32>
    %13 = arith.select %11, %5, %12 : vector<32x16xi1>, vector<32x16xf32>
    %cst_7 = arith.constant dense<0.000000e+00> : vector<16xf32>
    %14 = vector.multi_reduction <add>, %13, %cst_7 [0] : vector<32x16xf32> to vector<16xf32>
    %15 = vector.shape_cast %14 : vector<16xf32> to vector<1x16xf32>
    %16 = arith.mulf %13, %13 : vector<32x16xf32>
    %cst_8 = arith.constant dense<0.000000e+00> : vector<16xf32>
    %17 = vector.multi_reduction <add>, %16, %cst_8 [0] : vector<32x16xf32> to vector<16xf32>
    %18 = vector.shape_cast %17 : vector<16xf32> to vector<1x16xf32>
    %19 = tpu.concatenate %15, %18 in 0 : vector<1x16xf32>, vector<1x16xf32> -> vector<2x16xf32>
    %20 = vector.shape_cast %19 : vector<2x16xf32> to vector<1x2x16xf32>
    %c0_9 = arith.constant 0 : index
    %c0_10 = arith.constant 0 : index
    %c0_11 = arith.constant 0 : index
    %21 = vector.load %arg6[%c0_9, %c0_10, %c0_11] : memref<1x2x16xf32, #tpu.memory_space<vmem>>, vector<1x2x16xf32>
    tpu.vector_store %arg6[%c0_9, %c0_10, %c0_11], %20 {strides = array<i32>} : memref<1x2x16xf32, #tpu.memory_space<vmem>>, vector<1x2x16xf32>,
    %c0_12 = arith.constant 0 : index
    %c0_13 = arith.constant 0 : index
    %22 = vector.load %arg5[%c0_12, %c0_13] : memref<32x16xf32, #tpu.memory_space<vmem>>, vector<32x16xf32>
    tpu.vector_store %arg5[%c0_12, %c0_13], %5 {strides = array<i32>} : memref<32x16xf32, #tpu.memory_space<vmem>>, vector<32x16xf32>,
    return
  }
  func.func @transform_0(%arg0: i32, %arg1: i32) -> (i32, i32) {
    %c0_i32 = arith.constant 0 : i32
    %c0_i32_0 = arith.constant 0 : i32
    return %arg0, %c0_i32 : i32, i32
  }
  func.func @transform_1(%arg0: i32, %arg1: i32) -> (i32, i32) {
    %c0_i32 = arith.constant 0 : i32
    %c0_i32_0 = arith.constant 0 : i32
    return %c0_i32, %arg1 : i32, i32
  }
  func.func @transform_2(%arg0: i32, %arg1: i32) -> (i32, i32) {
    %c0_i32 = arith.constant 0 : i32
    %c0_i32_0 = arith.constant 0 : i32
    return %c0_i32, %arg1 : i32, i32
  }
  func.func @transform_3(%arg0: i32, %arg1: i32) -> (i32, i32) {
    %c0_i32 = arith.constant 0 : i32
    return %arg0, %arg1 : i32, i32
  }
  func.func @transform_4(%arg0: i32, %arg1: i32) -> (i32, i32, i32) {
    %c0_i32 = arith.constant 0 : i32
    %c0_i32_0 = arith.constant 0 : i32
    return %arg0, %c0_i32, %arg1 : i32, i32, i32
  }
}

module attributes {stable_mosaic.version = 11 : i64} {
  func.func @_gemm_kernel(%arg0: i32, %arg1: i32, %arg2: memref<128x32xbf16, #tpu.memory_space<vmem>>, %arg3: memref<32x8xbf16, #tpu.memory_space<vmem>>, %arg4: memref<1x8xf32, #tpu.memory_space<vmem>>, %arg5: memref<128x8xf32, #tpu.memory_space<vmem>>, %arg6: memref<1x2x8xf32, #tpu.memory_space<vmem>>) attributes {dimension_semantics = [#tpu.dimension_semantics<parallel>, #tpu.dimension_semantics<parallel>], iteration_bounds = array<i64: 1, 1>, scalar_prefetch = 0 : i64, scratch_operands = 0 : i64, tpu.core_type = #tpu.core_type<tc>, window_params = [{transform_indices = @transform_0, window_bounds = array<i64: 128, 32>}, {transform_indices = @transform_1, window_bounds = array<i64: 32, 8>}, {transform_indices = @transform_2, window_bounds = array<i64: 1, 8>}, {transform_indices = @transform_3, window_bounds = array<i64: 128, 8>}, {transform_indices = @transform_4, window_bounds = array<i64: 1, 2, 8>}]} {
    %c0 = arith.constant 0 : index
    %c0_0 = arith.constant 0 : index
    %0 = vector.load %arg2[%c0, %c0_0] : memref<128x32xbf16, #tpu.memory_space<vmem>>, vector<128x32xbf16>
    %c0_1 = arith.constant 0 : index
    %c0_2 = arith.constant 0 : index
    %1 = vector.load %arg3[%c0_1, %c0_2] : memref<32x8xbf16, #tpu.memory_space<vmem>>, vector<32x8xbf16>
    %cst = arith.constant dense<0.000000e+00> : vector<128x8xf32>
    %2 = tpu.matmul %0, %1, %cst {dimension_numbers = #tpu.dot_dimension_numbers<[1], [0], [0], [1], [0, 0, 1, 1], [], []>} : vector<128x32xbf16>, vector<32x8xbf16>, vector<128x8xf32> -> vector<128x8xf32>
    %c0_3 = arith.constant 0 : index
    %c0_4 = arith.constant 0 : index
    %3 = vector.load %arg4[%c0_3, %c0_4] : memref<1x8xf32, #tpu.memory_space<vmem>>, vector<1x8xf32>
    %4 = vector.broadcast %3 : vector<1x8xf32> to vector<128x8xf32>
    %5 = arith.addf %2, %4 : vector<128x8xf32>
    %6 = tpu.iota {dimensions = array<i32: 0>} : vector<128x8xi32>
    %c128_i32 = arith.constant 128 : i32
    %7 = arith.muli %arg0, %c128_i32 : i32
    %8 = vector.broadcast %7 : i32 to vector<128x8xi32>
    %9 = arith.addi %6, %8 : vector<128x8xi32>
    %c128_i32_5 = arith.constant 128 : i32
    %10 = vector.broadcast %c128_i32_5 : i32 to vector<128x8xi32>
    %11 = arith.cmpi slt, %9, %10 : vector<128x8xi32>
    %cst_6 = arith.constant 0.000000e+00 : f32
    %12 = vector.broadcast %cst_6 : f32 to vector<128x8xf32>
    %13 = arith.select %11, %5, %12 : vector<128x8xi1>, vector<128x8xf32>
    %cst_7 = arith.constant dense<0.000000e+00> : vector<8xf32>
    %14 = vector.multi_reduction <add>, %13, %cst_7 [0] : vector<128x8xf32> to vector<8xf32>
    %15 = vector.shape_cast %14 : vector<8xf32> to vector<1x8xf32>
    %16 = arith.mulf %13, %13 : vector<128x8xf32>
    %cst_8 = arith.constant dense<0.000000e+00> : vector<8xf32>
    %17 = vector.multi_reduction <add>, %16, %cst_8 [0] : vector<128x8xf32> to vector<8xf32>
    %18 = vector.shape_cast %17 : vector<8xf32> to vector<1x8xf32>
    %19 = tpu.concatenate %15, %18 in 0 : vector<1x8xf32>, vector<1x8xf32> -> vector<2x8xf32>
    %20 = vector.shape_cast %19 : vector<2x8xf32> to vector<1x2x8xf32>
    %c0_9 = arith.constant 0 : index
    %c0_10 = arith.constant 0 : index
    %c0_11 = arith.constant 0 : index
    %21 = vector.load %arg6[%c0_9, %c0_10, %c0_11] : memref<1x2x8xf32, #tpu.memory_space<vmem>>, vector<1x2x8xf32>
    tpu.vector_store %arg6[%c0_9, %c0_10, %c0_11], %20 {strides = array<i32>} : memref<1x2x8xf32, #tpu.memory_space<vmem>>, vector<1x2x8xf32>,
    %c0_12 = arith.constant 0 : index
    %c0_13 = arith.constant 0 : index
    %22 = vector.load %arg5[%c0_12, %c0_13] : memref<128x8xf32, #tpu.memory_space<vmem>>, vector<128x8xf32>
    tpu.vector_store %arg5[%c0_12, %c0_13], %5 {strides = array<i32>} : memref<128x8xf32, #tpu.memory_space<vmem>>, vector<128x8xf32>,
    return
  }
  func.func @transform_0(%arg0: i32, %arg1: i32) -> (i32, i32) {
    %c0_i32 = arith.constant 0 : i32
    %c0_i32_0 = arith.constant 0 : i32
    return %arg0, %c0_i32 : i32, i32
  }
  func.func @transform_1(%arg0: i32, %arg1: i32) -> (i32, i32) {
    %c0_i32 = arith.constant 0 : i32
    %c0_i32_0 = arith.constant 0 : i32
    return %c0_i32, %arg1 : i32, i32
  }
  func.func @transform_2(%arg0: i32, %arg1: i32) -> (i32, i32) {
    %c0_i32 = arith.constant 0 : i32
    %c0_i32_0 = arith.constant 0 : i32
    return %c0_i32, %arg1 : i32, i32
  }
  func.func @transform_3(%arg0: i32, %arg1: i32) -> (i32, i32) {
    %c0_i32 = arith.constant 0 : i32
    return %arg0, %arg1 : i32, i32
  }
  func.func @transform_4(%arg0: i32, %arg1: i32) -> (i32, i32, i32) {
    %c0_i32 = arith.constant 0 : i32
    %c0_i32_0 = arith.constant 0 : i32
    return %arg0, %c0_i32, %arg1 : i32, i32, i32
  }
}

module attributes {stable_mosaic.version = 11 : i64} {
  func.func @_gemm_kernel(%arg0: i32, %arg1: i32, %arg2: memref<128x64xbf16, #tpu.memory_space<vmem>>, %arg3: memref<64x8xbf16, #tpu.memory_space<vmem>>, %arg4: memref<1x8xf32, #tpu.memory_space<vmem>>, %arg5: memref<128x8xf32, #tpu.memory_space<vmem>>, %arg6: memref<1x2x8xf32, #tpu.memory_space<vmem>>) attributes {dimension_semantics = [#tpu.dimension_semantics<parallel>, #tpu.dimension_semantics<parallel>], iteration_bounds = array<i64: 1, 1>, scalar_prefetch = 0 : i64, scratch_operands = 0 : i64, tpu.core_type = #tpu.core_type<tc>, window_params = [{transform_indices = @transform_0, window_bounds = array<i64: 128, 64>}, {transform_indices = @transform_1, window_bounds = array<i64: 64, 8>}, {transform_indices = @transform_2, window_bounds = array<i64: 1, 8>}, {transform_indices = @transform_3, window_bounds = array<i64: 128, 8>}, {transform_indices = @transform_4, window_bounds = array<i64: 1, 2, 8>}]} {
    %c0 = arith.constant 0 : index
    %c0_0 = arith.constant 0 : index
    %0 = vector.load %arg2[%c0, %c0_0] : memref<128x64xbf16, #tpu.memory_space<vmem>>, vector<128x64xbf16>
    %c0_1 = arith.constant 0 : index
    %c0_2 = arith.constant 0 : index
    %1 = vector.load %arg3[%c0_1, %c0_2] : memref<64x8xbf16, #tpu.memory_space<vmem>>, vector<64x8xbf16>
    %cst = arith.constant dense<0.000000e+00> : vector<128x8xf32>
    %2 = tpu.matmul %0, %1, %cst {dimension_numbers = #tpu.dot_dimension_numbers<[1], [0], [0], [1], [0, 0, 1, 1], [], []>} : vector<128x64xbf16>, vector<64x8xbf16>, vector<128x8xf32> -> vector<128x8xf32>
    %c0_3 = arith.constant 0 : index
    %c0_4 = arith.constant 0 : index
    %3 = vector.load %arg4[%c0_3, %c0_4] : memref<1x8xf32, #tpu.memory_space<vmem>>, vector<1x8xf32>
    %4 = vector.broadcast %3 : vector<1x8xf32> to vector<128x8xf32>
    %5 = arith.addf %2, %4 : vector<128x8xf32>
    %6 = tpu.iota {dimensions = array<i32: 0>} : vector<128x8xi32>
    %c128_i32 = arith.constant 128 : i32
    %7 = arith.muli %arg0, %c128_i32 : i32
    %8 = vector.broadcast %7 : i32 to vector<128x8xi32>
    %9 = arith.addi %6, %8 : vector<128x8xi32>
    %c128_i32_5 = arith.constant 128 : i32
    %10 = vector.broadcast %c128_i32_5 : i32 to vector<128x8xi32>
    %11 = arith.cmpi slt, %9, %10 : vector<128x8xi32>
    %cst_6 = arith.constant 0.000000e+00 : f32
    %12 = vector.broadcast %cst_6 : f32 to vector<128x8xf32>
    %13 = arith.select %11, %5, %12 : vector<128x8xi1>, vector<128x8xf32>
    %cst_7 = arith.constant dense<0.000000e+00> : vector<8xf32>
    %14 = vector.multi_reduction <add>, %13, %cst_7 [0] : vector<128x8xf32> to vector<8xf32>
    %15 = vector.shape_cast %14 : vector<8xf32> to vector<1x8xf32>
    %16 = arith.mulf %13, %13 : vector<128x8xf32>
    %cst_8 = arith.constant dense<0.000000e+00> : vector<8xf32>
    %17 = vector.multi_reduction <add>, %16, %cst_8 [0] : vector<128x8xf32> to vector<8xf32>
    %18 = vector.shape_cast %17 : vector<8xf32> to vector<1x8xf32>
    %19 = tpu.concatenate %15, %18 in 0 : vector<1x8xf32>, vector<1x8xf32> -> vector<2x8xf32>
    %20 = vector.shape_cast %19 : vector<2x8xf32> to vector<1x2x8xf32>
    %c0_9 = arith.constant 0 : index
    %c0_10 = arith.constant 0 : index
    %c0_11 = arith.constant 0 : index
    %21 = vector.load %arg6[%c0_9, %c0_10, %c0_11] : memref<1x2x8xf32, #tpu.memory_space<vmem>>, vector<1x2x8xf32>
    tpu.vector_store %arg6[%c0_9, %c0_10, %c0_11], %20 {strides = array<i32>} : memref<1x2x8xf32, #tpu.memory_space<vmem>>, vector<1x2x8xf32>,
    %c0_12 = arith.constant 0 : index
    %c0_13 = arith.constant 0 : index
    %22 = vector.load %arg5[%c0_12, %c0_13] : memref<128x8xf32, #tpu.memory_space<vmem>>, vector<128x8xf32>
    tpu.vector_store %arg5[%c0_12, %c0_13], %5 {strides = array<i32>} : memref<128x8xf32, #tpu.memory_space<vmem>>, vector<128x8xf32>,
    return
  }
  func.func @transform_0(%arg0: i32, %arg1: i32) -> (i32, i32) {
    %c0_i32 = arith.constant 0 : i32
    %c0_i32_0 = arith.constant 0 : i32
    return %arg0, %c0_i32 : i32, i32
  }
  func.func @transform_1(%arg0: i32, %arg1: i32) -> (i32, i32) {
    %c0_i32 = arith.constant 0 : i32
    %c0_i32_0 = arith.constant 0 : i32
    return %c0_i32, %arg1 : i32, i32
  }
  func.func @transform_2(%arg0: i32, %arg1: i32) -> (i32, i32) {
    %c0_i32 = arith.constant 0 : i32
    %c0_i32_0 = arith.constant 0 : i32
    return %c0_i32, %arg1 : i32, i32
  }
  func.func @transform_3(%arg0: i32, %arg1: i32) -> (i32, i32) {
    %c0_i32 = arith.constant 0 : i32
    return %arg0, %arg1 : i32, i32
  }
  func.func @transform_4(%arg0: i32, %arg1: i32) -> (i32, i32, i32) {
    %c0_i32 = arith.constant 0 : i32
    %c0_i32_0 = arith.constant 0 : i32
    return %arg0, %c0_i32, %arg1 : i32, i32, i32
  }
}

module attributes {stable_mosaic.version = 11 : i64} {
  func.func @_gemm_kernel(%arg0: i32, %arg1: i32, %arg2: memref<128x16xbf16, #tpu.memory_space<vmem>>, %arg3: memref<16x8xbf16, #tpu.memory_space<vmem>>, %arg4: memref<1x8xf32, #tpu.memory_space<vmem>>, %arg5: memref<128x8xf32, #tpu.memory_space<vmem>>, %arg6: memref<1x2x8xf32, #tpu.memory_space<vmem>>) attributes {dimension_semantics = [#tpu.dimension_semantics<parallel>, #tpu.dimension_semantics<parallel>], iteration_bounds = array<i64: 1, 1>, scalar_prefetch = 0 : i64, scratch_operands = 0 : i64, tpu.core_type = #tpu.core_type<tc>, window_params = [{transform_indices = @transform_0, window_bounds = array<i64: 128, 16>}, {transform_indices = @transform_1, window_bounds = array<i64: 16, 8>}, {transform_indices = @transform_2, window_bounds = array<i64: 1, 8>}, {transform_indices = @transform_3, window_bounds = array<i64: 128, 8>}, {transform_indices = @transform_4, window_bounds = array<i64: 1, 2, 8>}]} {
    %c0 = arith.constant 0 : index
    %c0_0 = arith.constant 0 : index
    %0 = vector.load %arg2[%c0, %c0_0] : memref<128x16xbf16, #tpu.memory_space<vmem>>, vector<128x16xbf16>
    %c0_1 = arith.constant 0 : index
    %c0_2 = arith.constant 0 : index
    %1 = vector.load %arg3[%c0_1, %c0_2] : memref<16x8xbf16, #tpu.memory_space<vmem>>, vector<16x8xbf16>
    %cst = arith.constant dense<0.000000e+00> : vector<128x8xf32>
    %2 = tpu.matmul %0, %1, %cst {dimension_numbers = #tpu.dot_dimension_numbers<[1], [0], [0], [1], [0, 0, 1, 1], [], []>} : vector<128x16xbf16>, vector<16x8xbf16>, vector<128x8xf32> -> vector<128x8xf32>
    %c0_3 = arith.constant 0 : index
    %c0_4 = arith.constant 0 : index
    %3 = vector.load %arg4[%c0_3, %c0_4] : memref<1x8xf32, #tpu.memory_space<vmem>>, vector<1x8xf32>
    %4 = vector.broadcast %3 : vector<1x8xf32> to vector<128x8xf32>
    %5 = arith.addf %2, %4 : vector<128x8xf32>
    %6 = tpu.iota {dimensions = array<i32: 0>} : vector<128x8xi32>
    %c128_i32 = arith.constant 128 : i32
    %7 = arith.muli %arg0, %c128_i32 : i32
    %8 = vector.broadcast %7 : i32 to vector<128x8xi32>
    %9 = arith.addi %6, %8 : vector<128x8xi32>
    %c128_i32_5 = arith.constant 128 : i32
    %10 = vector.broadcast %c128_i32_5 : i32 to vector<128x8xi32>
    %11 = arith.cmpi slt, %9, %10 : vector<128x8xi32>
    %cst_6 = arith.constant 0.000000e+00 : f32
    %12 = vector.broadcast %cst_6 : f32 to vector<128x8xf32>
    %13 = arith.select %11, %5, %12 : vector<128x8xi1>, vector<128x8xf32>
    %cst_7 = arith.constant dense<0.000000e+00> : vector<8xf32>
    %14 = vector.multi_reduction <add>, %13, %cst_7 [0] : vector<128x8xf32> to vector<8xf32>
    %15 = vector.shape_cast %14 : vector<8xf32> to vector<1x8xf32>
    %16 = arith.mulf %13, %13 : vector<128x8xf32>
    %cst_8 = arith.constant dense<0.000000e+00> : vector<8xf32>
    %17 = vector.multi_reduction <add>, %16, %cst_8 [0] : vector<128x8xf32> to vector<8xf32>
    %18 = vector.shape_cast %17 : vector<8xf32> to vector<1x8xf32>
    %19 = tpu.concatenate %15, %18 in 0 : vector<1x8xf32>, vector<1x8xf32> -> vector<2x8xf32>
    %20 = vector.shape_cast %19 : vector<2x8xf32> to vector<1x2x8xf32>
    %c0_9 = arith.constant 0 : index
    %c0_10 = arith.constant 0 : index
    %c0_11 = arith.constant 0 : index
    %21 = vector.load %arg6[%c0_9, %c0_10, %c0_11] : memref<1x2x8xf32, #tpu.memory_space<vmem>>, vector<1x2x8xf32>
    tpu.vector_store %arg6[%c0_9, %c0_10, %c0_11], %20 {strides = array<i32>} : memref<1x2x8xf32, #tpu.memory_space<vmem>>, vector<1x2x8xf32>,
    %c0_12 = arith.constant 0 : index
    %c0_13 = arith.constant 0 : index
    %22 = vector.load %arg5[%c0_12, %c0_13] : memref<128x8xf32, #tpu.memory_space<vmem>>, vector<128x8xf32>
    tpu.vector_store %arg5[%c0_12, %c0_13], %5 {strides = array<i32>} : memref<128x8xf32, #tpu.memory_space<vmem>>, vector<128x8xf32>,
    return
  }
  func.func @transform_0(%arg0: i32, %arg1: i32) -> (i32, i32) {
    %c0_i32 = arith.constant 0 : i32
    %c0_i32_0 = arith.constant 0 : i32
    return %arg0, %c0_i32 : i32, i32
  }
  func.func @transform_1(%arg0: i32, %arg1: i32) -> (i32, i32) {
    %c0_i32 = arith.constant 0 : i32
    %c0_i32_0 = arith.constant 0 : i32
    return %c0_i32, %arg1 : i32, i32
  }
  func.func @transform_2(%arg0: i32, %arg1: i32) -> (i32, i32) {
    %c0_i32 = arith.constant 0 : i32
    %c0_i32_0 = arith.constant 0 : i32
    return %c0_i32, %arg1 : i32, i32
  }
  func.func @transform_3(%arg0: i32, %arg1: i32) -> (i32, i32) {
    %c0_i32 = arith.constant 0 : i32
    return %arg0, %arg1 : i32, i32
  }
  func.func @transform_4(%arg0: i32, %arg1: i32) -> (i32, i32, i32) {
    %c0_i32 = arith.constant 0 : i32
    %c0_i32_0 = arith.constant 0 : i32
    return %arg0, %c0_i32, %arg1 : i32, i32, i32
  }
}

module attributes {stable_mosaic.version = 11 : i64} {
  func.func @_gemm_kernel(%arg0: i32, %arg1: i32, %arg2: memref<512x392xbf16, #tpu.memory_space<vmem>>, %arg3: memref<392x3xbf16, #tpu.memory_space<vmem>>, %arg4: memref<1x3xf32, #tpu.memory_space<vmem>>, %arg5: memref<512x3xf32, #tpu.memory_space<vmem>>, %arg6: memref<1x2x3xf32, #tpu.memory_space<vmem>>) attributes {dimension_semantics = [#tpu.dimension_semantics<parallel>, #tpu.dimension_semantics<parallel>], iteration_bounds = array<i64: 1, 1>, scalar_prefetch = 0 : i64, scratch_operands = 0 : i64, tpu.core_type = #tpu.core_type<tc>, window_params = [{transform_indices = @transform_0, window_bounds = array<i64: 512, 392>}, {transform_indices = @transform_1, window_bounds = array<i64: 392, 3>}, {transform_indices = @transform_2, window_bounds = array<i64: 1, 3>}, {transform_indices = @transform_3, window_bounds = array<i64: 512, 3>}, {transform_indices = @transform_4, window_bounds = array<i64: 1, 2, 3>}]} {
    %c0 = arith.constant 0 : index
    %c0_0 = arith.constant 0 : index
    %0 = vector.load %arg2[%c0, %c0_0] : memref<512x392xbf16, #tpu.memory_space<vmem>>, vector<512x392xbf16>
    %c0_1 = arith.constant 0 : index
    %c0_2 = arith.constant 0 : index
    %1 = vector.load %arg3[%c0_1, %c0_2] : memref<392x3xbf16, #tpu.memory_space<vmem>>, vector<392x3xbf16>
    %cst = arith.constant dense<0.000000e+00> : vector<512x3xf32>
    %2 = tpu.matmul %0, %1, %cst {dimension_numbers = #tpu.dot_dimension_numbers<[1], [0], [0], [1], [0, 0, 1, 1], [], []>} : vector<512x392xbf16>, vector<392x3xbf16>, vector<512x3xf32> -> vector<512x3xf32>
    %c0_3 = arith.constant 0 : index
    %c0_4 = arith.constant 0 : index
    %3 = vector.load %arg4[%c0_3, %c0_4] : memref<1x3xf32, #tpu.memory_space<vmem>>, vector<1x3xf32>
    %4 = vector.broadcast %3 : vector<1x3xf32> to vector<512x3xf32>
    %5 = arith.addf %2, %4 : vector<512x3xf32>
    %6 = tpu.iota {dimensions = array<i32: 0>} : vector<512x3xi32>
    %c512_i32 = arith.constant 512 : i32
    %7 = arith.muli %arg0, %c512_i32 : i32
    %8 = vector.broadcast %7 : i32 to vector<512x3xi32>
    %9 = arith.addi %6, %8 : vector<512x3xi32>
    %c512_i32_5 = arith.constant 512 : i32
    %10 = vector.broadcast %c512_i32_5 : i32 to vector<512x3xi32>
    %11 = arith.cmpi slt, %9, %10 : vector<512x3xi32>
    %cst_6 = arith.constant 0.000000e+00 : f32
    %12 = vector.broadcast %cst_6 : f32 to vector<512x3xf32>
    %13 = arith.select %11, %5, %12 : vector<512x3xi1>, vector<512x3xf32>
    %cst_7 = arith.constant dense<0.000000e+00> : vector<3xf32>
    %14 = vector.multi_reduction <add>, %13, %cst_7 [0] : vector<512x3xf32> to vector<3xf32>
    %15 = vector.shape_cast %14 : vector<3xf32> to vector<1x3xf32>
    %16 = arith.mulf %13, %13 : vector<512x3xf32>
    %cst_8 = arith.constant dense<0.000000e+00> : vector<3xf32>
    %17 = vector.multi_reduction <add>, %16, %cst_8 [0] : vector<512x3xf32> to vector<3xf32>
    %18 = vector.shape_cast %17 : vector<3xf32> to vector<1x3xf32>
    %19 = tpu.concatenate %15, %18 in 0 : vector<1x3xf32>, vector<1x3xf32> -> vector<2x3xf32>
    %20 = vector.shape_cast %19 : vector<2x3xf32> to vector<1x2x3xf32>
    %c0_9 = arith.constant 0 : index
    %c0_10 = arith.constant 0 : index
    %c0_11 = arith.constant 0 : index
    %21 = vector.load %arg6[%c0_9, %c0_10, %c0_11] : memref<1x2x3xf32, #tpu.memory_space<vmem>>, vector<1x2x3xf32>
    tpu.vector_store %arg6[%c0_9, %c0_10, %c0_11], %20 {strides = array<i32>} : memref<1x2x3xf32, #tpu.memory_space<vmem>>, vector<1x2x3xf32>,
    %22 = math.tanh %5 : vector<512x3xf32>
    %c0_12 = arith.constant 0 : index
    %c0_13 = arith.constant 0 : index
    %23 = vector.load %arg5[%c0_12, %c0_13] : memref<512x3xf32, #tpu.memory_space<vmem>>, vector<512x3xf32>
    tpu.vector_store %arg5[%c0_12, %c0_13], %22 {strides = array<i32>} : memref<512x3xf32, #tpu.memory_space<vmem>>, vector<512x3xf32>,
    return
  }
  func.func @transform_0(%arg0: i32, %arg1: i32) -> (i32, i32) {
    %c0_i32 = arith.constant 0 : i32
    %c0_i32_0 = arith.constant 0 : i32
    return %arg0, %c0_i32 : i32, i32
  }
  func.func @transform_1(%arg0: i32, %arg1: i32) -> (i32, i32) {
    %c0_i32 = arith.constant 0 : i32
    %c0_i32_0 = arith.constant 0 : i32
    return %c0_i32, %arg1 : i32, i32
  }
  func.func @transform_2(%arg0: i32, %arg1: i32) -> (i32, i32) {
    %c0_i32 = arith.constant 0 : i32
    %c0_i32_0 = arith.constant 0 : i32
    return %c0_i32, %arg1 : i32, i32
  }
  func.func @transform_3(%arg0: i32, %arg1: i32) -> (i32, i32) {
    %c0_i32 = arith.constant 0 : i32
    return %arg0, %arg1 : i32, i32
  }
  func.func @transform_4(%arg0: i32, %arg1: i32) -> (i32, i32, i32) {
    %c0_i32 = arith.constant 0 : i32
    %c0_i32_0 = arith.constant 0 : i32
    return %arg0, %c0_i32, %arg1 : i32, i32, i32
  }
}

</mosaic_0001>

<llo_original>
// kernel: global_generator_forward.26
$region0: #{global_generator_forward.26}
  #allocation0 [shape = 'u32[]', space=smem, size = 0x4, offset = 0x4, fixed_abs, tag = 'smem constant byte address 0x4 - core index']
  #allocation1 [shape = 'u32[144,128]{1,0:T(1,128)}', space=vmem, size = 0x12000, scoped, tag = 'internal scratch']
  %s0 = inlined_call_operand.vmem [shape: f32[512,8], index: 0, kind: input, shape index: {}]
  %s1 = inlined_call_operand.vmem [shape: f32[1,8], index: 1, kind: input, shape index: {}]
  %s2 = inlined_call_operand.vmem [shape: f32[1,8], index: 2, kind: input, shape index: {}]
  %s3 = inlined_call_operand.vmem [shape: f32[512,8], index: 3, kind: output, shape index: {}]
  %s4 = sld [smem:[#allocation0]]
  $region22: #{global_generator_forward.26} parent=0
    _
  %s6 = ssub.s32 1, %s4
  %s7 = scalar_select 0, %s6, %s4
  // Predicated region
  $region2: #{global_generator_forward.26} parent=0 // pred_check
    _
  $region3: #{global_generator_forward.26} parent=0 // pred_check_branch
    %9 = sbr.rel (0) target = $region5
  $region4: #{global_generator_forward.26} parent=0 // pred_region
    _
  $region5: #{global_generator_forward.26} parent=0 // pred_fallthru
    _
  // Predicated region
  $region6: #{global_generator_forward.26} parent=0 // pred_check
    _
  $region7: #{global_generator_forward.26} parent=0 // pred_check_branch
    %11 = sbr.rel (0) target = $region9
  $region8: #{global_generator_forward.26} parent=0 // pred_region
    _
  $region9: #{global_generator_forward.26} parent=0 // pred_fallthru
    _
  // Predicated region
  $region10: #{global_generator_forward.26} parent=0 // pred_check
    _
  $region11: #{global_generator_forward.26} parent=0 // pred_check_branch
    %13 = sbr.rel (0) target = $region13
  $region12: #{global_generator_forward.26} parent=0 // pred_region
    _
  $region13: #{global_generator_forward.26} parent=0 // pred_fallthru
    _
  %v14 = vld [vmem:[%s0] sm:$0xff]
  %v15 = vld [vmem:[%s0 + $0x8] sm:$0xff]
  %v16 = vld [vmem:[%s0 + $0x10] sm:$0xff]
  %v17 = vld [vmem:[%s0 + $0x18] sm:$0xff]
  %v18 = vld [vmem:[%s0 + $0x20] sm:$0xff]
  %v19 = vld [vmem:[%s0 + $0x28] sm:$0xff]
  %v20 = vld [vmem:[%s0 + $0x30] sm:$0xff]
  %v21 = vld [vmem:[%s0 + $0x38] sm:$0xff]
  %v22 = vld [vmem:[%s0 + $0x40] sm:$0xff]
  %v23 = vld [vmem:[%s0 + $0x48] sm:$0xff]
  %v24 = vld [vmem:[%s0 + $0x50] sm:$0xff]
  %v25 = vld [vmem:[%s0 + $0x58] sm:$0xff]
  %v26 = vld [vmem:[%s0 + $0x60] sm:$0xff]
  %v27 = vld [vmem:[%s0 + $0x68] sm:$0xff]
  %v28 = vld [vmem:[%s0 + $0x70] sm:$0xff]
  %v29 = vld [vmem:[%s0 + $0x78] sm:$0xff]
  %v30 = vld [vmem:[%s0 + $0x80] sm:$0xff]
  %v31 = vld [vmem:[%s0 + $0x88] sm:$0xff]
  %v32 = vld [vmem:[%s0 + $0x90] sm:$0xff]
  %v33 = vld [vmem:[%s0 + $0x98] sm:$0xff]
  %v34 = vld [vmem:[%s0 + $0xa0] sm:$0xff]
  %v35 = vld [vmem:[%s0 + $0xa8] sm:$0xff]
  %v36 = vld [vmem:[%s0 + $0xb0] sm:$0xff]
  %v37 = vld [vmem:[%s0 + $0xb8] sm:$0xff]
  %v38 = vld [vmem:[%s0 + $0xc0] sm:$0xff]
  %v39 = vld [vmem:[%s0 + $0xc8] sm:$0xff]
  %v40 = vld [vmem:[%s0 + $0xd0] sm:$0xff]
  %v41 = vld [vmem:[%s0 + $0xd8] sm:$0xff]
  %v42 = vld [vmem:[%s0 + $0xe0] sm:$0xff]
  %v43 = vld [vmem:[%s0 + $0xe8] sm:$0xff]
  %v44 = vld [vmem:[%s0 + $0xf0] sm:$0xff]
  %v45 = vld [vmem:[%s0 + $0xf8] sm:$0xff]
  %v46 = vld [vmem:[%s0 + $0x100] sm:$0xff]
  %v47 = vld [vmem:[%s0 + $0x108] sm:$0xff]
  %v48 = vld [vmem:[%s0 + $0x110] sm:$0xff]
  %v49 = vld [vmem:[%s0 + $0x118] sm:$0xff]
  %v50 = vld [vmem:[%s0 + $0x120] sm:$0xff]
  %v51 = vld [vmem:[%s0 + $0x128] sm:$0xff]
  %v52 = vld [vmem:[%s0 + $0x130] sm:$0xff]
  %v53 = vld [vmem:[%s0 + $0x138] sm:$0xff]
  %v54 = vld [vmem:[%s0 + $0x140] sm:$0xff]
  %v55 = vld [vmem:[%s0 + $0x148] sm:$0xff]
  %v56 = vld [vmem:[%s0 + $0x150] sm:$0xff]
  %v57 = vld [vmem:[%s0 + $0x158] sm:$0xff]
  %v58 = vld [vmem:[%s0 + $0x160] sm:$0xff]
  %v59 = vld [vmem:[%s0 + $0x168] sm:$0xff]
  %v60 = vld [vmem:[%s0 + $0x170] sm:$0xff]
  %v61 = vld [vmem:[%s0 + $0x178] sm:$0xff]
  %v62 = vld [vmem:[%s0 + $0x180] sm:$0xff]
  %v63 = vld [vmem:[%s0 + $0x188] sm:$0xff]
  %v64 = vld [vmem:[%s0 + $0x190] sm:$0xff]
  %v65 = vld [vmem:[%s0 + $0x198] sm:$0xff]
  %v66 = vld [vmem:[%s0 + $0x1a0] sm:$0xff]
  %v67 = vld [vmem:[%s0 + $0x1a8] sm:$0xff]
  %v68 = vld [vmem:[%s0 + $0x1b0] sm:$0xff]
  %v69 = vld [vmem:[%s0 + $0x1b8] sm:$0xff]
  %v70 = vld [vmem:[%s0 + $0x1c0] sm:$0xff]
  %v71 = vld [vmem:[%s0 + $0x1c8] sm:$0xff]
  %v72 = vld [vmem:[%s0 + $0x1d0] sm:$0xff]
  %v73 = vld [vmem:[%s0 + $0x1d8] sm:$0xff]
  %v74 = vld [vmem:[%s0 + $0x1e0] sm:$0xff]
  %v75 = vld [vmem:[%s0 + $0x1e8] sm:$0xff]
  %v76 = vld [vmem:[%s0 + $0x1f0] sm:$0xff]
  %v77 = vld [vmem:[%s0 + $0x1f8] sm:$0xff]
  %v78 = vld [vmem:[%s1] sm:$0x1]
  %v80 = vlaneseq
  %v81 = vshrl.u32 %v80, 7
  %v82 = vsub.s32 0, %v81
  %v83 = vrot.slane %v78, %v82
  %v85 = vmul.f32 %v14, %v83
  %v86 = vmul.f32 %v15, %v83
  %v87 = vmul.f32 %v16, %v83
  %v88 = vmul.f32 %v17, %v83
  %v89 = vmul.f32 %v18, %v83
  %v90 = vmul.f32 %v19, %v83
  %v91 = vmul.f32 %v20, %v83
  %v92 = vmul.f32 %v21, %v83
  %v93 = vmul.f32 %v22, %v83
  %v94 = vmul.f32 %v23, %v83
  %v95 = vmul.f32 %v24, %v83
  %v96 = vmul.f32 %v25, %v83
  %v97 = vmul.f32 %v26, %v83
  %v98 = vmul.f32 %v27, %v83
  %v99 = vmul.f32 %v28, %v83
  %v100 = vmul.f32 %v29, %v83
  %v101 = vmul.f32 %v30, %v83
  %v102 = vmul.f32 %v31, %v83
  %v103 = vmul.f32 %v32, %v83
  %v104 = vmul.f32 %v33, %v83
  %v105 = vmul.f32 %v34, %v83
  %v106 = vmul.f32 %v35, %v83
  %v107 = vmul.f32 %v36, %v83
  %v108 = vmul.f32 %v37, %v83
  %v109 = vmul.f32 %v38, %v83
  %v110 = vmul.f32 %v39, %v83
  %v111 = vmul.f32 %v40, %v83
  %v112 = vmul.f32 %v41, %v83
  %v113 = vmul.f32 %v42, %v83
  %v114 = vmul.f32 %v43, %v83
  %v115 = vmul.f32 %v44, %v83
  %v116 = vmul.f32 %v45, %v83
  %v117 = vmul.f32 %v46, %v83
  %v118 = vmul.f32 %v47, %v83
  %v119 = vmul.f32 %v48, %v83
  %v120 = vmul.f32 %v49, %v83
  %v121 = vmul.f32 %v50, %v83
  %v122 = vmul.f32 %v51, %v83
  %v123 = vmul.f32 %v52, %v83
  %v124 = vmul.f32 %v53, %v83
  %v125 = vmul.f32 %v54, %v83
  %v126 = vmul.f32 %v55, %v83
  %v127 = vmul.f32 %v56, %v83
  %v128 = vmul.f32 %v57, %v83
  %v129 = vmul.f32 %v58, %v83
  %v130 = vmul.f32 %v59, %v83
  %v131 = vmul.f32 %v60, %v83
  %v132 = vmul.f32 %v61, %v83
  %v133 = vmul.f32 %v62, %v83
  %v134 = vmul.f32 %v63, %v83
  %v135 = vmul.f32 %v64, %v83
  %v136 = vmul.f32 %v65, %v83
  %v137 = vmul.f32 %v66, %v83
  %v138 = vmul.f32 %v67, %v83
  %v139 = vmul.f32 %v68, %v83
  %v140 = vmul.f32 %v69, %v83
  %v141 = vmul.f32 %v70, %v83
  %v142 = vmul.f32 %v71, %v83
  %v143 = vmul.f32 %v72, %v83
  %v144 = vmul.f32 %v73, %v83
  %v145 = vmul.f32 %v74, %v83
  %v146 = vmul.f32 %v75, %v83
  %v147 = vmul.f32 %v76, %v83
  %v148 = vmul.f32 %v77, %v83
  %v149 = vld [vmem:[%s2] sm:$0x1]
  %v151 = vlaneseq
  %v152 = vshrl.u32 %v151, 7
  %v153 = vsub.s32 0, %v152
  %v154 = vrot.slane %v149, %v153
  %v156 = vadd.f32 %v85, %v154
  %v157 = vadd.f32 %v86, %v154
  %v158 = vadd.f32 %v87, %v154
  %v159 = vadd.f32 %v88, %v154
  %v160 = vadd.f32 %v89, %v154
  %v161 = vadd.f32 %v90, %v154
  %v162 = vadd.f32 %v91, %v154
  %v163 = vadd.f32 %v92, %v154
  %v164 = vadd.f32 %v93, %v154
  %v165 = vadd.f32 %v94, %v154
  %v166 = vadd.f32 %v95, %v154
  %v167 = vadd.f32 %v96, %v154
  %v168 = vadd.f32 %v97, %v154
  %v169 = vadd.f32 %v98, %v154
  %v170 = vadd.f32 %v99, %v154
  %v171 = vadd.f32 %v100, %v154
  %v172 = vadd.f32 %v101, %v154
  %v173 = vadd.f32 %v102, %v154
  %v174 = vadd.f32 %v103, %v154
  %v175 = vadd.f32 %v104, %v154
  %v176 = vadd.f32 %v105, %v154
  %v177 = vadd.f32 %v106, %v154
  %v178 = vadd.f32 %v107, %v154
  %v179 = vadd.f32 %v108, %v154
  %v180 = vadd.f32 %v109, %v154
  %v181 = vadd.f32 %v110, %v154
  %v182 = vadd.f32 %v111, %v154
  %v183 = vadd.f32 %v112, %v154
  %v184 = vadd.f32 %v113, %v154
  %v185 = vadd.f32 %v114, %v154
  %v186 = vadd.f32 %v115, %v154
  %v187 = vadd.f32 %v116, %v154
  %v188 = vadd.f32 %v117, %v154
  %v189 = vadd.f32 %v118, %v154
  %v190 = vadd.f32 %v119, %v154
  %v191 = vadd.f32 %v120, %v154
  %v192 = vadd.f32 %v121, %v154
  %v193 = vadd.f32 %v122, %v154
  %v194 = vadd.f32 %v123, %v154
  %v195 = vadd.f32 %v124, %v154
  %v196 = vadd.f32 %v125, %v154
  %v197 = vadd.f32 %v126, %v154
  %v198 = vadd.f32 %v127, %v154
  %v199 = vadd.f32 %v128, %v154
  %v200 = vadd.f32 %v129, %v154
  %v201 = vadd.f32 %v130, %v154
  %v202 = vadd.f32 %v131, %v154
  %v203 = vadd.f32 %v132, %v154
  %v204 = vadd.f32 %v133, %v154
  %v205 = vadd.f32 %v134, %v154
  %v206 = vadd.f32 %v135, %v154
  %v207 = vadd.f32 %v136, %v154
  %v208 = vadd.f32 %v137, %v154
  %v209 = vadd.f32 %v138, %v154
  %v210 = vadd.f32 %v139, %v154
  %v211 = vadd.f32 %v140, %v154
  %v212 = vadd.f32 %v141, %v154
  %v213 = vadd.f32 %v142, %v154
  %v214 = vadd.f32 %v143, %v154
  %v215 = vadd.f32 %v144, %v154
  %v216 = vadd.f32 %v145, %v154
  %v217 = vadd.f32 %v146, %v154
  %v218 = vadd.f32 %v147, %v154
  %v219 = vadd.f32 %v148, %v154
  %v220 = vmax.f32 %v156, 0.0
  %v221 = vmax.f32 %v157, 0.0
  %v222 = vmax.f32 %v158, 0.0
  %v223 = vmax.f32 %v159, 0.0
  %v224 = vmax.f32 %v160, 0.0
  %v225 = vmax.f32 %v161, 0.0
  %v226 = vmax.f32 %v162, 0.0
  %v227 = vmax.f32 %v163, 0.0
  %v228 = vmax.f32 %v164, 0.0
  %v229 = vmax.f32 %v165, 0.0
  %v230 = vmax.f32 %v166, 0.0
  %v231 = vmax.f32 %v167, 0.0
  %v232 = vmax.f32 %v168, 0.0
  %v233 = vmax.f32 %v169, 0.0
  %v234 = vmax.f32 %v170, 0.0
  %v235 = vmax.f32 %v171, 0.0
  %v236 = vmax.f32 %v172, 0.0
  %v237 = vmax.f32 %v173, 0.0
  %v238 = vmax.f32 %v174, 0.0
  %v239 = vmax.f32 %v175, 0.0
  %v240 = vmax.f32 %v176, 0.0
  %v241 = vmax.f32 %v177, 0.0
  %v242 = vmax.f32 %v178, 0.0
  %v243 = vmax.f32 %v179, 0.0
  %v244 = vmax.f32 %v180, 0.0
  %v245 = vmax.f32 %v181, 0.0
  %v246 = vmax.f32 %v182, 0.0
  %v247 = vmax.f32 %v183, 0.0
  %v248 = vmax.f32 %v184, 0.0
  %v249 = vmax.f32 %v185, 0.0
  %v250 = vmax.f32 %v186, 0.0
  %v251 = vmax.f32 %v187, 0.0
  %v252 = vmax.f32 %v188, 0.0
  %v253 = vmax.f32 %v189, 0.0
  %v254 = vmax.f32 %v190, 0.0
  %v255 = vmax.f32 %v191, 0.0
  %v256 = vmax.f32 %v192, 0.0
  %v257 = vmax.f32 %v193, 0.0
  %v258 = vmax.f32 %v194, 0.0
  %v259 = vmax.f32 %v195, 0.0
  %v260 = vmax.f32 %v196, 0.0
  %v261 = vmax.f32 %v197, 0.0
  %v262 = vmax.f32 %v198, 0.0
  %v263 = vmax.f32 %v199, 0.0
  %v264 = vmax.f32 %v200, 0.0
  %v265 = vmax.f32 %v201, 0.0
  %v266 = vmax.f32 %v202, 0.0
  %v267 = vmax.f32 %v203, 0.0
  %v268 = vmax.f32 %v204, 0.0
  %v269 = vmax.f32 %v205, 0.0
  %v270 = vmax.f32 %v206, 0.0
  %v271 = vmax.f32 %v207, 0.0
  %v272 = vmax.f32 %v208, 0.0
  %v273 = vmax.f32 %v209, 0.0
  %v274 = vmax.f32 %v210, 0.0
  %v275 = vmax.f32 %v211, 0.0
  %v276 = vmax.f32 %v212, 0.0
  %v277 = vmax.f32 %v213, 0.0
  %v278 = vmax.f32 %v214, 0.0
  %v279 = vmax.f32 %v215, 0.0
  %v280 = vmax.f32 %v216, 0.0
  %v281 = vmax.f32 %v217, 0.0
  %v282 = vmax.f32 %v218, 0.0
  %v283 = vmax.f32 %v219, 0.0
  %vm284 = vcmask 64512
  %285 = vst.msk [vmem:[%s3] sm:$0xff] %vm284, %v220
  %286 = vst.msk [vmem:[%s3 + $0x8] sm:$0xff] %vm284, %v221
  %287 = vst.msk [vmem:[%s3 + $0x10] sm:$0xff] %vm284, %v222
  %288 = vst.msk [vmem:[%s3 + $0x18] sm:$0xff] %vm284, %v223
  %289 = vst.msk [vmem:[%s3 + $0x20] sm:$0xff] %vm284, %v224
  %290 = vst.msk [vmem:[%s3 + $0x28] sm:$0xff] %vm284, %v225
  %291 = vst.msk [vmem:[%s3 + $0x30] sm:$0xff] %vm284, %v226
  %292 = vst.msk [vmem:[%s3 + $0x38] sm:$0xff] %vm284, %v227
  %293 = vst.msk [vmem:[%s3 + $0x40] sm:$0xff] %vm284, %v228
  %294 = vst.msk [vmem:[%s3 + $0x48] sm:$0xff] %vm284, %v229
  %295 = vst.msk [vmem:[%s3 + $0x50] sm:$0xff] %vm284, %v230
  %296 = vst.msk [vmem:[%s3 + $0x58] sm:$0xff] %vm284, %v231
  %297 = vst.msk [vmem:[%s3 + $0x60] sm:$0xff] %vm284, %v232
  %298 = vst.msk [vmem:[%s3 + $0x68] sm:$0xff] %vm284, %v233
  %299 = vst.msk [vmem:[%s3 + $0x70] sm:$0xff] %vm284, %v234
  %300 = vst.msk [vmem:[%s3 + $0x78] sm:$0xff] %vm284, %v235
  %301 = vst.msk [vmem:[%s3 + $0x80] sm:$0xff] %vm284, %v236
  %302 = vst.msk [vmem:[%s3 + $0x88] sm:$0xff] %vm284, %v237
  %303 = vst.msk [vmem:[%s3 + $0x90] sm:$0xff] %vm284, %v238
  %304 = vst.msk [vmem:[%s3 + $0x98] sm:$0xff] %vm284, %v239
  %305 = vst.msk [vmem:[%s3 + $0xa0] sm:$0xff] %vm284, %v240
  %306 = vst.msk [vmem:[%s3 + $0xa8] sm:$0xff] %vm284, %v241
  %307 = vst.msk [vmem:[%s3 + $0xb0] sm:$0xff] %vm284, %v242
  %308 = vst.msk [vmem:[%s3 + $0xb8] sm:$0xff] %vm284, %v243
  %309 = vst.msk [vmem:[%s3 + $0xc0] sm:$0xff] %vm284, %v244
  %310 = vst.msk [vmem:[%s3 + $0xc8] sm:$0xff] %vm284, %v245
  %311 = vst.msk [vmem:[%s3 + $0xd0] sm:$0xff] %vm284, %v246
  %312 = vst.msk [vmem:[%s3 + $0xd8] sm:$0xff] %vm284, %v247
  %313 = vst.msk [vmem:[%s3 + $0xe0] sm:$0xff] %vm284, %v248
  %314 = vst.msk [vmem:[%s3 + $0xe8] sm:$0xff] %vm284, %v249
  %315 = vst.msk [vmem:[%s3 + $0xf0] sm:$0xff] %vm284, %v250
  %316 = vst.msk [vmem:[%s3 + $0xf8] sm:$0xff] %vm284, %v251
  %317 = vst.msk [vmem:[%s3 + $0x100] sm:$0xff] %vm284, %v252
  %318 = vst.msk [vmem:[%s3 + $0x108] sm:$0xff] %vm284, %v253
  %319 = vst.msk [vmem:[%s3 + $0x110] sm:$0xff] %vm284, %v254
  %320 = vst.msk [vmem:[%s3 + $0x118] sm:$0xff] %vm284, %v255
  %321 = vst.msk [vmem:[%s3 + $0x120] sm:$0xff] %vm284, %v256
  %322 = vst.msk [vmem:[%s3 + $0x128] sm:$0xff] %vm284, %v257
  %323 = vst.msk [vmem:[%s3 + $0x130] sm:$0xff] %vm284, %v258
  %324 = vst.msk [vmem:[%s3 + $0x138] sm:$0xff] %vm284, %v259
  %325 = vst.msk [vmem:[%s3 + $0x140] sm:$0xff] %vm284, %v260
  %326 = vst.msk [vmem:[%s3 + $0x148] sm:$0xff] %vm284, %v261
  %327 = vst.msk [vmem:[%s3 + $0x150] sm:$0xff] %vm284, %v262
  %328 = vst.msk [vmem:[%s3 + $0x158] sm:$0xff] %vm284, %v263
  %329 = vst.msk [vmem:[%s3 + $0x160] sm:$0xff] %vm284, %v264
  %330 = vst.msk [vmem:[%s3 + $0x168] sm:$0xff] %vm284, %v265
  %331 = vst.msk [vmem:[%s3 + $0x170] sm:$0xff] %vm284, %v266
  %332 = vst.msk [vmem:[%s3 + $0x178] sm:$0xff] %vm284, %v267
  %333 = vst.msk [vmem:[%s3 + $0x180] sm:$0xff] %vm284, %v268
  %334 = vst.msk [vmem:[%s3 + $0x188] sm:$0xff] %vm284, %v269
  %335 = vst.msk [vmem:[%s3 + $0x190] sm:$0xff] %vm284, %v270
  %336 = vst.msk [vmem:[%s3 + $0x198] sm:$0xff] %vm284, %v271
  %337 = vst.msk [vmem:[%s3 + $0x1a0] sm:$0xff] %vm284, %v272
  %338 = vst.msk [vmem:[%s3 + $0x1a8] sm:$0xff] %vm284, %v273
  %339 = vst.msk [vmem:[%s3 + $0x1b0] sm:$0xff] %vm284, %v274
  %340 = vst.msk [vmem:[%s3 + $0x1b8] sm:$0xff] %vm284, %v275
  %341 = vst.msk [vmem:[%s3 + $0x1c0] sm:$0xff] %vm284, %v276
  %342 = vst.msk [vmem:[%s3 + $0x1c8] sm:$0xff] %vm284, %v277
  %343 = vst.msk [vmem:[%s3 + $0x1d0] sm:$0xff] %vm284, %v278
  %344 = vst.msk [vmem:[%s3 + $0x1d8] sm:$0xff] %vm284, %v279
  %345 = vst.msk [vmem:[%s3 + $0x1e0] sm:$0xff] %vm284, %v280
  %346 = vst.msk [vmem:[%s3 + $0x1e8] sm:$0xff] %vm284, %v281
  %347 = vst.msk [vmem:[%s3 + $0x1f0] sm:$0xff] %vm284, %v282
  %348 = vst.msk [vmem:[%s3 + $0x1f8] sm:$0xff] %vm284, %v283
  // Predicated region
  $region14: #{global_generator_forward.26} parent=0 // pred_check
    _
  $region15: #{global_generator_forward.26} parent=0 // pred_check_branch
    %350 = sbr.rel (0) target = $region17
  $region16: #{global_generator_forward.26} parent=0 // pred_region
    _
  $region17: #{global_generator_forward.26} parent=0 // pred_fallthru
    _
  // Predicated region
  $region18: #{global_generator_forward.26} parent=0 // pred_check
    _
  $region19: #{global_generator_forward.26} parent=0 // pred_check_branch
    %352 = sbr.rel (0) target = $region21
  $region20: #{global_generator_forward.26} parent=0 // pred_region
    _
  $region21: #{global_generator_forward.26} parent=0 // pred_fallthru
    _

// kernel: global_generator_forward.25
$region0: #{global_generator_forward.25}
  #allocation0 [shape = 'u32[]', space=smem, size = 0x4, offset = 0x4, fixed_abs, tag = 'smem constant byte address 0x4 - core index']
  #allocation1 [shape = 'u32[144,128]{1,0:T(1,128)}', space=vmem, size = 0x12000, scoped, tag = 'internal scratch']
  %s0 = inlined_call_operand.vmem [shape: bf16[512,147], index: 0, kind: input, shape index: {}]
  %s1 = inlined_call_operand.vmem [shape: bf16[147,8], index: 1, kind: input, shape index: {}]
  %s2 = inlined_call_operand.vmem [shape: f32[1,8], index: 2, kind: input, shape index: {}]
  %s3 = inlined_call_operand.vmem [shape: f32[512,8], index: 3, kind: output, shape index: {0}]
  %s4 = inlined_call_operand.vmem [shape: f32[1,2,8], index: 4, kind: output, shape index: {1}]
  %5 = xla_tuple %s3, %s4
  %s6 = sld [smem:[#allocation0]]
  $region30: #{global_generator_forward.25} parent=0
    _
  %s8 = ssub.s32 1, %s6
  %s9 = scalar_select 0, %s8, %s6
  // Predicated region
  $region2: #{global_generator_forward.25} parent=0 // pred_check
    _
  $region3: #{global_generator_forward.25} parent=0 // pred_check_branch
    %11 = sbr.rel (0) target = $region5
  $region4: #{global_generator_forward.25} parent=0 // pred_region
    _
  $region5: #{global_generator_forward.25} parent=0 // pred_fallthru
    _
  // Predicated region
  $region6: #{global_generator_forward.25} parent=0 // pred_check
    _
  $region7: #{global_generator_forward.25} parent=0 // pred_check_branch
    %13 = sbr.rel (0) target = $region9
  $region8: #{global_generator_forward.25} parent=0 // pred_region
    _
  $region9: #{global_generator_forward.25} parent=0 // pred_fallthru
    _
  // Predicated region
  $region10: #{global_generator_forward.25} parent=0 // pred_check
    _
  $region11: #{global_generator_forward.25} parent=0 // pred_check_branch
    %15 = sbr.rel (0) target = $region13
  $region12: #{global_generator_forward.25} parent=0 // pred_region
    _
  $region13: #{global_generator_forward.25} parent=0 // pred_fallthru
    _
  %v17 = vld [vmem:[%s0] sm:$0xff]
  %v18 = vld [vmem:[%s0 + $0x8] sm:$0xff]
  %v19 = vld [vmem:[%s0 + $0x10] sm:$0xff]
  %v20 = vld [vmem:[%s0 + $0x18] sm:$0xff]
  %v21 = vld [vmem:[%s0 + $0x20] sm:$0xff]
  %v22 = vld [vmem:[%s0 + $0x28] sm:$0xff]
  %v23 = vld [vmem:[%s0 + $0x30] sm:$0xff]
  %v24 = vld [vmem:[%s0 + $0x38] sm:$0xff]
  %v25 = vld [vmem:[%s0 + $0x40] sm:$0xff]
  %v26 = vld [vmem:[%s0 + $0x48] sm:$0xff]
  %v27 = vld [vmem:[%s0 + $0x50] sm:$0xff]
  %v28 = vld [vmem:[%s0 + $0x58] sm:$0xff]
  %v29 = vld [vmem:[%s0 + $0x60] sm:$0xff]
  %v30 = vld [vmem:[%s0 + $0x68] sm:$0xff]
  %v31 = vld [vmem:[%s0 + $0x70] sm:$0xff]
  %v32 = vld [vmem:[%s0 + $0x78] sm:$0xff]
  %v33 = vld [vmem:[%s0 + $0x80] sm:$0xff]
  %v34 = vld [vmem:[%s0 + $0x88] sm:$0xff]
  %v35 = vld [vmem:[%s0 + $0x90] sm:$0xff]
  %v36 = vld [vmem:[%s0 + $0x98] sm:$0xff]
  %v37 = vld [vmem:[%s0 + $0xa0] sm:$0xff]
  %v38 = vld [vmem:[%s0 + $0xa8] sm:$0xff]
  %v39 = vld [vmem:[%s0 + $0xb0] sm:$0xff]
  %v40 = vld [vmem:[%s0 + $0xb8] sm:$0xff]
  %v41 = vld [vmem:[%s0 + $0xc0] sm:$0xff]
  %v42 = vld [vmem:[%s0 + $0xc8] sm:$0xff]
  %v43 = vld [vmem:[%s0 + $0xd0] sm:$0xff]
  %v44 = vld [vmem:[%s0 + $0xd8] sm:$0xff]
  %v45 = vld [vmem:[%s0 + $0xe0] sm:$0xff]
  %v46 = vld [vmem:[%s0 + $0xe8] sm:$0xff]
  %v47 = vld [vmem:[%s0 + $0xf0] sm:$0xff]
  %v48 = vld [vmem:[%s0 + $0xf8] sm:$0xff]
  %v49 = vld [vmem:[%s0 + $0x100] sm:$0xff]
  %v50 = vld [vmem:[%s0 + $0x108] sm:$0xff]
  %v51 = vld [vmem:[%s0 + $0x110] sm:$0xff]
  %v52 = vld [vmem:[%s0 + $0x118] sm:$0xff]
  %v53 = vld [vmem:[%s0 + $0x120] sm:$0xff]
  %v54 = vld [vmem:[%s0 + $0x128] sm:$0xff]
  %v55 = vld [vmem:[%s0 + $0x130] sm:$0xff]
  %v56 = vld [vmem:[%s0 + $0x138] sm:$0xff]
  %v57 = vld [vmem:[%s0 + $0x140] sm:$0xff]
  %v58 = vld [vmem:[%s0 + $0x148] sm:$0xff]
  %v59 = vld [vmem:[%s0 + $0x150] sm:$0xff]
  %v60 = vld [vmem:[%s0 + $0x158] sm:$0xff]
  %v61 = vld [vmem:[%s0 + $0x160] sm:$0xff]
  %v62 = vld [vmem:[%s0 + $0x168] sm:$0xff]
  %v63 = vld [vmem:[%s0 + $0x170] sm:$0xff]
  %v64 = vld [vmem:[%s0 + $0x178] sm:$0xff]
  %v65 = vld [vmem:[%s0 + $0x180] sm:$0xff]
  %v66 = vld [vmem:[%s0 + $0x188] sm:$0xff]
  %v67 = vld [vmem:[%s0 + $0x190] sm:$0xff]
  %v68 = vld [vmem:[%s0 + $0x198] sm:$0xff]
  %v69 = vld [vmem:[%s0 + $0x1a0] sm:$0xff]
  %v70 = vld [vmem:[%s0 + $0x1a8] sm:$0xff]
  %v71 = vld [vmem:[%s0 + $0x1b0] sm:$0xff]
  %v72 = vld [vmem:[%s0 + $0x1b8] sm:$0xff]
  %v73 = vld [vmem:[%s0 + $0x1c0] sm:$0xff]
  %v74 = vld [vmem:[%s0 + $0x1c8] sm:$0xff]
  %v75 = vld [vmem:[%s0 + $0x1d0] sm:$0xff]
  %v76 = vld [vmem:[%s0 + $0x1d8] sm:$0xff]
  %v77 = vld [vmem:[%s0 + $0x1e0] sm:$0xff]
  %v78 = vld [vmem:[%s0 + $0x1e8] sm:$0xff]
  %v79 = vld [vmem:[%s0 + $0x1f0] sm:$0xff]
  %v80 = vld [vmem:[%s0 + $0x1f8] sm:$0xff]
  %v81 = vld [vmem:[%s1] sm:$0xf]
  %v82 = vld [vmem:[%s1 + $0x4] sm:$0xf]
  %v83 = vld [vmem:[%s1 + $0x8] sm:$0xf]
  %v84 = vld [vmem:[%s1 + $0xc] sm:$0xf]
  %v85 = vld [vmem:[%s1 + $0x10] sm:$0xf]
  %v86 = vld [vmem:[%s1 + $0x14] sm:$0xf]
  %v87 = vld [vmem:[%s1 + $0x18] sm:$0xf]
  %v88 = vld [vmem:[%s1 + $0x1c] sm:$0xf]
  %v89 = vld [vmem:[%s1 + $0x20] sm:$0xf]
  %v90 = vld [vmem:[%s1 + $0x24] sm:$0xf]
  %v91 = vld [vmem:[%s1 + $0x28] sm:$0xf]
  %v92 = vld [vmem:[%s1 + $0x2c] sm:$0xf]
  %v93 = vld [vmem:[%s1 + $0x30] sm:$0xf]
  %v94 = vld [vmem:[%s1 + $0x34] sm:$0xf]
  %v95 = vld [vmem:[%s1 + $0x38] sm:$0xf]
  %v96 = vld [vmem:[%s1 + $0x3c] sm:$0xf]
  %v97 = vld [vmem:[%s1 + $0x40] sm:$0xf]
  %v98 = vld [vmem:[%s1 + $0x44] sm:$0xf]
  %v99 = vld [vmem:[%s1 + $0x48] sm:$0x3]
  %v100 = vld [vmem:[%s2] sm:$0x1]
  %v102 = vlaneseq
  %v103 = vshrl.u32 %v102, 7
  %v104 = vsub.s32 0, %v103
  %v105 = vrot.slane %v100, %v104
  %v171 = vunpack.c.l.b16 %v17
  %v172 = vunpack.c.h.b16 %v17
  %v173 = vunpack.c.l.b16 %v18
  %v174 = vunpack.c.h.b16 %v18
  %v175 = vunpack.c.l.b16 %v19
  %v176 = vunpack.c.h.b16 %v19
  %v177 = vunpack.c.l.b16 %v20
  %v178 = vunpack.c.h.b16 %v20
  %v179 = vunpack.c.l.b16 %v21
  %v180 = vunpack.c.h.b16 %v21
  %v181 = vunpack.c.l.b16 %v22
  %v182 = vunpack.c.h.b16 %v22
  %v183 = vunpack.c.l.b16 %v23
  %v184 = vunpack.c.h.b16 %v23
  %v185 = vunpack.c.l.b16 %v24
  %v186 = vunpack.c.h.b16 %v24
  %v187 = vunpack.c.l.b16 %v25
  %v188 = vunpack.c.h.b16 %v25
  %v189 = vunpack.c.l.b16 %v26
  %v190 = vunpack.c.h.b16 %v26
  %v191 = vunpack.c.l.b16 %v27
  %v192 = vunpack.c.h.b16 %v27
  %v193 = vunpack.c.l.b16 %v28
  %v194 = vunpack.c.h.b16 %v28
  %v195 = vunpack.c.l.b16 %v29
  %v196 = vunpack.c.h.b16 %v29
  %v197 = vunpack.c.l.b16 %v30
  %v198 = vunpack.c.h.b16 %v30
  %v199 = vunpack.c.l.b16 %v31
  %v200 = vunpack.c.h.b16 %v31
  %v201 = vunpack.c.l.b16 %v32
  %v202 = vunpack.c.h.b16 %v32
  %v203 = vunpack.c.l.b16 %v33
  %v204 = vunpack.c.h.b16 %v33
  %v205 = vunpack.c.l.b16 %v34
  %v206 = vunpack.c.h.b16 %v34
  %v207 = vunpack.c.l.b16 %v35
  %v208 = vunpack.c.h.b16 %v35
  %v209 = vunpack.c.l.b16 %v36
  %v210 = vunpack.c.h.b16 %v36
  %v211 = vunpack.c.l.b16 %v37
  %v212 = vunpack.c.h.b16 %v37
  %v213 = vunpack.c.l.b16 %v38
  %v214 = vunpack.c.h.b16 %v38
  %v215 = vunpack.c.l.b16 %v39
  %v216 = vunpack.c.h.b16 %v39
  %v217 = vunpack.c.l.b16 %v40
  %v218 = vunpack.c.h.b16 %v40
  %v219 = vunpack.c.l.b16 %v41
  %v220 = vunpack.c.h.b16 %v41
  %v221 = vunpack.c.l.b16 %v42
  %v222 = vunpack.c.h.b16 %v42
  %v223 = vunpack.c.l.b16 %v43
  %v224 = vunpack.c.h.b16 %v43
  %v225 = vunpack.c.l.b16 %v44
  %v226 = vunpack.c.h.b16 %v44
  %v227 = vunpack.c.l.b16 %v45
  %v228 = vunpack.c.h.b16 %v45
  %v229 = vunpack.c.l.b16 %v46
  %v230 = vunpack.c.h.b16 %v46
  %v231 = vunpack.c.l.b16 %v47
  %v232 = vunpack.c.h.b16 %v47
  %v233 = vunpack.c.l.b16 %v48
  %v234 = vunpack.c.h.b16 %v48
  %v235 = vunpack.c.l.b16 %v49
  %v236 = vunpack.c.h.b16 %v49
  %v237 = vunpack.c.l.b16 %v50
  %v238 = vunpack.c.h.b16 %v50
  %v239 = vunpack.c.l.b16 %v51
  %v240 = vunpack.c.h.b16 %v51
  %v241 = vunpack.c.l.b16 %v52
  %v242 = vunpack.c.h.b16 %v52
  %v243 = vunpack.c.l.b16 %v53
  %v244 = vunpack.c.h.b16 %v53
  %v245 = vunpack.c.l.b16 %v54
  %v246 = vunpack.c.h.b16 %v54
  %v247 = vunpack.c.l.b16 %v55
  %v248 = vunpack.c.h.b16 %v55
  %v249 = vunpack.c.l.b16 %v56
  %v250 = vunpack.c.h.b16 %v56
  %v251 = vunpack.c.l.b16 %v57
  %v252 = vunpack.c.h.b16 %v57
  %v253 = vunpack.c.l.b16 %v58
  %v254 = vunpack.c.h.b16 %v58
  %v255 = vunpack.c.l.b16 %v59
  %v256 = vunpack.c.h.b16 %v59
  %v257 = vunpack.c.l.b16 %v60
  %v258 = vunpack.c.h.b16 %v60
  %v259 = vunpack.c.l.b16 %v61
  %v260 = vunpack.c.h.b16 %v61
  %v261 = vunpack.c.l.b16 %v62
  %v262 = vunpack.c.h.b16 %v62
  %v263 = vunpack.c.l.b16 %v63
  %v264 = vunpack.c.h.b16 %v63
  %v265 = vunpack.c.l.b16 %v64
  %v266 = vunpack.c.h.b16 %v64
  %v267 = vunpack.c.l.b16 %v65
  %v268 = vunpack.c.h.b16 %v65
  %v269 = vunpack.c.l.b16 %v66
  %v270 = vunpack.c.h.b16 %v66
  %v271 = vunpack.c.l.b16 %v67
  %v272 = vunpack.c.h.b16 %v67
  %v273 = vunpack.c.l.b16 %v68
  %v274 = vunpack.c.h.b16 %v68
  %v275 = vunpack.c.l.b16 %v69
  %v276 = vunpack.c.h.b16 %v69
  %v277 = vunpack.c.l.b16 %v70
  %v278 = vunpack.c.h.b16 %v70
  %v279 = vunpack.c.l.b16 %v71
  %v280 = vunpack.c.h.b16 %v71
  %v281 = vunpack.c.l.b16 %v72
  %v282 = vunpack.c.h.b16 %v72
  %v283 = vunpack.c.l.b16 %v73
  %v284 = vunpack.c.h.b16 %v73
  %v285 = vunpack.c.l.b16 %v74
  %v286 = vunpack.c.h.b16 %v74
  %v287 = vunpack.c.l.b16 %v75
  %v288 = vunpack.c.h.b16 %v75
  %v289 = vunpack.c.l.b16 %v76
  %v290 = vunpack.c.h.b16 %v76
  %v291 = vunpack.c.l.b16 %v77
  %v292 = vunpack.c.h.b16 %v77
  %v293 = vunpack.c.l.b16 %v78
  %v294 = vunpack.c.h.b16 %v78
  %v295 = vunpack.c.l.b16 %v79
  %v296 = vunpack.c.h.b16 %v79
  %v297 = vunpack.c.l.b16 %v80
  %v298 = vunpack.c.h.b16 %v80
  %v299 = vpack.c.b16 %v173, %v171
  %v300 = vpack.c.b16 %v174, %v172
  %v301 = vpack.c.b16 %v177, %v175
  %v302 = vpack.c.b16 %v178, %v176
  %v303 = vpack.c.b16 %v181, %v179
  %v304 = vpack.c.b16 %v182, %v180
  %v305 = vpack.c.b16 %v185, %v183
  %v306 = vpack.c.b16 %v186, %v184
  %v307 = vpack.c.b16 %v189, %v187
  %v308 = vpack.c.b16 %v190, %v188
  %v309 = vpack.c.b16 %v193, %v191
  %v310 = vpack.c.b16 %v194, %v192
  %v311 = vpack.c.b16 %v197, %v195
  %v312 = vpack.c.b16 %v198, %v196
  %v313 = vpack.c.b16 %v201, %v199
  %v314 = vpack.c.b16 %v202, %v200
  %v315 = vpack.c.b16 %v205, %v203
  %v316 = vpack.c.b16 %v206, %v204
  %v317 = vpack.c.b16 %v209, %v207
  %v318 = vpack.c.b16 %v210, %v208
  %v319 = vpack.c.b16 %v213, %v211
  %v320 = vpack.c.b16 %v214, %v212
  %v321 = vpack.c.b16 %v217, %v215
  %v322 = vpack.c.b16 %v218, %v216
  %v323 = vpack.c.b16 %v221, %v219
  %v324 = vpack.c.b16 %v222, %v220
  %v325 = vpack.c.b16 %v225, %v223
  %v326 = vpack.c.b16 %v226, %v224
  %v327 = vpack.c.b16 %v229, %v227
  %v328 = vpack.c.b16 %v230, %v228
  %v329 = vpack.c.b16 %v233, %v231
  %v330 = vpack.c.b16 %v234, %v232
  %v331 = vpack.c.b16 %v237, %v235
  %v332 = vpack.c.b16 %v238, %v236
  %v333 = vpack.c.b16 %v241, %v239
  %v334 = vpack.c.b16 %v242, %v240
  %v335 = vpack.c.b16 %v245, %v243
  %v336 = vpack.c.b16 %v246, %v244
  %v337 = vpack.c.b16 %v249, %v247
  %v338 = vpack.c.b16 %v250, %v248
  %v339 = vpack.c.b16 %v253, %v251
  %v340 = vpack.c.b16 %v254, %v252
  %v341 = vpack.c.b16 %v257, %v255
  %v342 = vpack.c.b16 %v258, %v256
  %v343 = vpack.c.b16 %v261, %v259
  %v344 = vpack.c.b16 %v262, %v260
  %v345 = vpack.c.b16 %v265, %v263
  %v346 = vpack.c.b16 %v266, %v264
  %v347 = vpack.c.b16 %v269, %v267
  %v348 = vpack.c.b16 %v270, %v268
  %v349 = vpack.c.b16 %v273, %v271
  %v350 = vpack.c.b16 %v274, %v272
  %v351 = vpack.c.b16 %v277, %v275
  %v352 = vpack.c.b16 %v278, %v276
  %v353 = vpack.c.b16 %v281, %v279
  %v354 = vpack.c.b16 %v282, %v280
  %v355 = vpack.c.b16 %v285, %v283
  %v356 = vpack.c.b16 %v286, %v284
  %v357 = vpack.c.b16 %v289, %v287
  %v358 = vpack.c.b16 %v290, %v288
  %v359 = vpack.c.b16 %v293, %v291
  %v360 = vpack.c.b16 %v294, %v292
  %v361 = vpack.c.b16 %v297, %v295
  %v362 = vpack.c.b16 %v298, %v296
  %v414 = vunpack.c.l.b16 %v81
  %v415 = vunpack.c.l.b16 %v82
  %v416 = vunpack.c.l.b16 %v83
  %v417 = vunpack.c.l.b16 %v84
  %v418 = vunpack.c.l.b16 %v85
  %v419 = vunpack.c.l.b16 %v86
  %v420 = vunpack.c.l.b16 %v87
  %v421 = vunpack.c.l.b16 %v88
  %v422 = vunpack.c.l.b16 %v89
  %v423 = vunpack.c.l.b16 %v90
  %v424 = vunpack.c.l.b16 %v91
  %v425 = vunpack.c.l.b16 %v92
  %v426 = vunpack.c.l.b16 %v93
  %v427 = vunpack.c.l.b16 %v94
  %v428 = vunpack.c.l.b16 %v95
  %v429 = vunpack.c.l.b16 %v96
  %v430 = vunpack.c.l.b16 %v97
  %v431 = vunpack.c.l.b16 %v98
  %v432 = vunpack.c.l.b16 %v99
  %v433 = vpack.c.b16 %v415, %v414
  %v434 = vpack.c.b16 %v417, %v416
  %v435 = vpack.c.b16 %v419, %v418
  %v436 = vpack.c.b16 %v421, %v420
  %v437 = vpack.c.b16 %v423, %v422
  %v438 = vpack.c.b16 %v425, %v424
  %v439 = vpack.c.b16 %v427, %v426
  %v440 = vpack.c.b16 %v429, %v428
  %v441 = vpack.c.b16 %v431, %v430
  %v442 = vpack.c.b16 %v432, %v432
  %vm452 = vcmask 154624
  %v454 = vsel %vm452, %v300, 0
  %v457 = vsel %vm452, %v302, 0
  %v460 = vsel %vm452, %v304, 0
  %v463 = vsel %vm452, %v306, 0
  %v466 = vsel %vm452, %v308, 0
  %v469 = vsel %vm452, %v310, 0
  %v472 = vsel %vm452, %v312, 0
  %v475 = vsel %vm452, %v314, 0
  %v478 = vsel %vm452, %v316, 0
  %v481 = vsel %vm452, %v318, 0
  %v484 = vsel %vm452, %v320, 0
  %v487 = vsel %vm452, %v322, 0
  %v490 = vsel %vm452, %v324, 0
  %v493 = vsel %vm452, %v326, 0
  %v496 = vsel %vm452, %v328, 0
  %v499 = vsel %vm452, %v330, 0
  %v502 = vsel %vm452, %v332, 0
  %v505 = vsel %vm452, %v334, 0
  %v508 = vsel %vm452, %v336, 0
  %v511 = vsel %vm452, %v338, 0
  %v514 = vsel %vm452, %v340, 0
  %v517 = vsel %vm452, %v342, 0
  %v520 = vsel %vm452, %v344, 0
  %v523 = vsel %vm452, %v346, 0
  %v526 = vsel %vm452, %v348, 0
  %v529 = vsel %vm452, %v350, 0
  %v532 = vsel %vm452, %v352, 0
  %v535 = vsel %vm452, %v354, 0
  %v538 = vsel %vm452, %v356, 0
  %v541 = vsel %vm452, %v358, 0
  %v544 = vsel %vm452, %v360, 0
  %v547 = vsel %vm452, %v362, 0
  %vm549 = vcmask 1040384
  %vm550 = vcmask 1041408
  %v551 = vsel %vm549, 4294967295, 65535
  %v552 = vsel %vm550, %v551, 0
  %v554 = vand.u32 %v442, %v552
  %556 = vmatprep.subr.bf16.mxu0 0
  %557 = vmatpush1.bf16.msra.mxu0 %v440
  %558 = vmatprep.subr.bf16.mxu0 0
  %559 = vmatpush1.bf16.msra.mxu0 %v439
  %560 = vmatprep.subr.bf16.mxu0 0
  %561 = vmatpush1.bf16.msra.mxu0 %v438
  %562 = vmatprep.subr.bf16.mxu0 0
  %563 = vmatpush1.bf16.msra.mxu0 %v437
  %564 = vmatprep.subr.bf16.mxu0 0
  %565 = vmatpush1.bf16.msra.mxu0 %v436
  %566 = vmatprep.subr.bf16.mxu0 0
  %567 = vmatpush1.bf16.msra.mxu0 %v435
  %568 = vmatprep.subr.bf16.mxu0 0
  %569 = vmatpush1.bf16.msra.mxu0 %v434
  %570 = vmatprep.subr.bf16.mxu0 0
  %571 = vmatpush1.bf16.msra.mxu0 %v433
  %572 = vmatprep.subr.bf16.mxu0 0
  %573 = vmatpush2.bf16.msra.mxu0 0
  %574 = vmatprep.subr.bf16.mxu0 0
  %575 = vmatpush2.bf16.msra.mxu0 0
  %576 = vmatprep.subr.bf16.mxu0 0
  %577 = vmatpush2.bf16.msra.mxu0 0
  %578 = vmatprep.subr.bf16.mxu0 0
  %579 = vmatpush2.bf16.msra.mxu0 0
  %580 = vmatprep.subr.bf16.mxu0 0
  %581 = vmatpush2.bf16.msra.mxu0 0
  %582 = vmatprep.subr.bf16.mxu0 0
  %583 = vmatpush2.bf16.msra.mxu0 0
  %584 = vmatprep.subr.bf16.mxu0 0
  %585 = vmatpush2.bf16.msra.mxu0 %v554
  %586 = vmatprep.subr.bf16.mxu0 0
  %587 = vmatpush2.bf16.msra.mxu0 %v441
  %588 = vmatprep.mubr.bf16.mxu0 %v454
  %589 = vmatmul.mubr.bf16.gmra.mxu0 %v299
  %v590 = vpop.f32.mrf.mxu0
  %v591 = vadd.f32 %v105, %v590
  %v592 = vpop.f32.mrf.mxu0
  %v593 = vpop.f32.mrf.mxu0
  %v594 = vadd.f32 %v105, %v593
  %v595 = vpop.f32.mrf.mxu0
  %596 = vmatprep.mubr.bf16.mxu0 %v457
  %597 = vmatmul.mubr.bf16.gmra.mxu0 %v301
  %v598 = vpop.f32.mrf.mxu0
  %v599 = vadd.f32 %v105, %v598
  %v600 = vpop.f32.mrf.mxu0
  %v601 = vpop.f32.mrf.mxu0
  %v602 = vadd.f32 %v105, %v601
  %v603 = vpop.f32.mrf.mxu0
  %604 = vmatprep.mubr.bf16.mxu0 %v460
  %605 = vmatmul.mubr.bf16.gmra.mxu0 %v303
  %v606 = vpop.f32.mrf.mxu0
  %v607 = vadd.f32 %v105, %v606
  %v608 = vpop.f32.mrf.mxu0
  %v609 = vpop.f32.mrf.mxu0
  %v610 = vadd.f32 %v105, %v609
  %v611 = vpop.f32.mrf.mxu0
  %612 = vmatprep.mubr.bf16.mxu0 %v463
  %613 = vmatmul.mubr.bf16.gmra.mxu0 %v305
  %v614 = vpop.f32.mrf.mxu0
  %v615 = vadd.f32 %v105, %v614
  %v616 = vpop.f32.mrf.mxu0
  %v617 = vpop.f32.mrf.mxu0
  %v618 = vadd.f32 %v105, %v617
  %v619 = vpop.f32.mrf.mxu0
  %620 = vmatprep.mubr.bf16.mxu0 %v466
  %621 = vmatmul.mubr.bf16.gmra.mxu0 %v307
  %v622 = vpop.f32.mrf.mxu0
  %v623 = vadd.f32 %v105, %v622
  %v624 = vpop.f32.mrf.mxu0
  %v625 = vpop.f32.mrf.mxu0
  %v626 = vadd.f32 %v105, %v625
  %v627 = vpop.f32.mrf.mxu0
  %628 = vmatprep.mubr.bf16.mxu0 %v469
  %629 = vmatmul.mubr.bf16.gmra.mxu0 %v309
  %v630 = vpop.f32.mrf.mxu0
  %v631 = vadd.f32 %v105, %v630
  %v632 = vpop.f32.mrf.mxu0
  %v633 = vpop.f32.mrf.mxu0
  %v634 = vadd.f32 %v105, %v633
  %v635 = vpop.f32.mrf.mxu0
  %636 = vmatprep.mubr.bf16.mxu0 %v472
  %637 = vmatmul.mubr.bf16.gmra.mxu0 %v311
  %v638 = vpop.f32.mrf.mxu0
  %v639 = vadd.f32 %v105, %v638
  %v640 = vpop.f32.mrf.mxu0
  %v641 = vpop.f32.mrf.mxu0
  %v642 = vadd.f32 %v105, %v641
  %v643 = vpop.f32.mrf.mxu0
  %644 = vmatprep.mubr.bf16.mxu0 %v475
  %645 = vmatmul.mubr.bf16.gmra.mxu0 %v313
  %v646 = vpop.f32.mrf.mxu0
  %v647 = vadd.f32 %v105, %v646
  %v648 = vpop.f32.mrf.mxu0
  %v649 = vpop.f32.mrf.mxu0
  %v650 = vadd.f32 %v105, %v649
  %v651 = vpop.f32.mrf.mxu0
  %652 = vmatprep.mubr.bf16.mxu0 %v478
  %653 = vmatmul.mubr.bf16.gmra.mxu0 %v315
  %v654 = vpop.f32.mrf.mxu0
  %v655 = vadd.f32 %v105, %v654
  %v656 = vpop.f32.mrf.mxu0
  %v657 = vpop.f32.mrf.mxu0
  %v658 = vadd.f32 %v105, %v657
  %v659 = vpop.f32.mrf.mxu0
  %660 = vmatprep.mubr.bf16.mxu0 %v481
  %661 = vmatmul.mubr.bf16.gmra.mxu0 %v317
  %v662 = vpop.f32.mrf.mxu0
  %v663 = vadd.f32 %v105, %v662
  %v664 = vpop.f32.mrf.mxu0
  %v665 = vpop.f32.mrf.mxu0
  %v666 = vadd.f32 %v105, %v665
  %v667 = vpop.f32.mrf.mxu0
  %668 = vmatprep.mubr.bf16.mxu0 %v484
  %669 = vmatmul.mubr.bf16.gmra.mxu0 %v319
  %v670 = vpop.f32.mrf.mxu0
  %v671 = vadd.f32 %v105, %v670
  %v672 = vpop.f32.mrf.mxu0
  %v673 = vpop.f32.mrf.mxu0
  %v674 = vadd.f32 %v105, %v673
  %v675 = vpop.f32.mrf.mxu0
  %676 = vmatprep.mubr.bf16.mxu0 %v487
  %677 = vmatmul.mubr.bf16.gmra.mxu0 %v321
  %v678 = vpop.f32.mrf.mxu0
  %v679 = vadd.f32 %v105, %v678
  %v680 = vpop.f32.mrf.mxu0
  %v681 = vpop.f32.mrf.mxu0
  %v682 = vadd.f32 %v105, %v681
  %v683 = vpop.f32.mrf.mxu0
  %684 = vmatprep.mubr.bf16.mxu0 %v490
  %685 = vmatmul.mubr.bf16.gmra.mxu0 %v323
  %v686 = vpop.f32.mrf.mxu0
  %v687 = vadd.f32 %v105, %v686
  %v688 = vpop.f32.mrf.mxu0
  %v689 = vpop.f32.mrf.mxu0
  %v690 = vadd.f32 %v105, %v689
  %v691 = vpop.f32.mrf.mxu0
  %692 = vmatprep.mubr.bf16.mxu0 %v493
  %693 = vmatmul.mubr.bf16.gmra.mxu0 %v325
  %v694 = vpop.f32.mrf.mxu0
  %v695 = vadd.f32 %v105, %v694
  %v696 = vpop.f32.mrf.mxu0
  %v697 = vpop.f32.mrf.mxu0
  %v698 = vadd.f32 %v105, %v697
  %v699 = vpop.f32.mrf.mxu0
  %700 = vmatprep.mubr.bf16.mxu0 %v496
  %701 = vmatmul.mubr.bf16.gmra.mxu0 %v327
  %v702 = vpop.f32.mrf.mxu0
  %v703 = vadd.f32 %v105, %v702
  %v704 = vpop.f32.mrf.mxu0
  %v705 = vpop.f32.mrf.mxu0
  %v706 = vadd.f32 %v105, %v705
  %v707 = vpop.f32.mrf.mxu0
  %708 = vmatprep.mubr.bf16.mxu0 %v499
  %709 = vmatmul.mubr.bf16.gmra.mxu0 %v329
  %v710 = vpop.f32.mrf.mxu0
  %v711 = vadd.f32 %v105, %v710
  %v712 = vpop.f32.mrf.mxu0
  %v713 = vpop.f32.mrf.mxu0
  %v714 = vadd.f32 %v105, %v713
  %v715 = vpop.f32.mrf.mxu0
  %716 = vmatprep.mubr.bf16.mxu0 %v502
  %717 = vmatmul.mubr.bf16.gmra.mxu0 %v331
  %v718 = vpop.f32.mrf.mxu0
  %v719 = vadd.f32 %v105, %v718
  %v720 = vpop.f32.mrf.mxu0
  %v721 = vpop.f32.mrf.mxu0
  %v722 = vadd.f32 %v105, %v721
  %v723 = vpop.f32.mrf.mxu0
  %724 = vmatprep.mubr.bf16.mxu0 %v505
  %725 = vmatmul.mubr.bf16.gmra.mxu0 %v333
  %v726 = vpop.f32.mrf.mxu0
  %v727 = vadd.f32 %v105, %v726
  %v728 = vpop.f32.mrf.mxu0
  %v729 = vpop.f32.mrf.mxu0
  %v730 = vadd.f32 %v105, %v729
  %v731 = vpop.f32.mrf.mxu0
  %732 = vmatprep.mubr.bf16.mxu0 %v508
  %733 = vmatmul.mubr.bf16.gmra.mxu0 %v335
  %v734 = vpop.f32.mrf.mxu0
  %v735 = vadd.f32 %v105, %v734
  %v736 = vpop.f32.mrf.mxu0
  %v737 = vpop.f32.mrf.mxu0
  %v738 = vadd.f32 %v105, %v737
  %v739 = vpop.f32.mrf.mxu0
  %740 = vmatprep.mubr.bf16.mxu0 %v511
  %741 = vmatmul.mubr.bf16.gmra.mxu0 %v337
  %v742 = vpop.f32.mrf.mxu0
  %v743 = vadd.f32 %v105, %v742
  %v744 = vpop.f32.mrf.mxu0
  %v745 = vpop.f32.mrf.mxu0
  %v746 = vadd.f32 %v105, %v745
  %v747 = vpop.f32.mrf.mxu0
  %748 = vmatprep.mubr.bf16.mxu0 %v514
  %749 = vmatmul.mubr.bf16.gmra.mxu0 %v339
  %v750 = vpop.f32.mrf.mxu0
  %v751 = vadd.f32 %v105, %v750
  %v752 = vpop.f32.mrf.mxu0
  %v753 = vpop.f32.mrf.mxu0
  %v754 = vadd.f32 %v105, %v753
  %v755 = vpop.f32.mrf.mxu0
  %756 = vmatprep.mubr.bf16.mxu0 %v517
  %757 = vmatmul.mubr.bf16.gmra.mxu0 %v341
  %v758 = vpop.f32.mrf.mxu0
  %v759 = vadd.f32 %v105, %v758
  %v760 = vpop.f32.mrf.mxu0
  %v761 = vpop.f32.mrf.mxu0
  %v762 = vadd.f32 %v105, %v761
  %v763 = vpop.f32.mrf.mxu0
  %764 = vmatprep.mubr.bf16.mxu0 %v520
  %765 = vmatmul.mubr.bf16.gmra.mxu0 %v343
  %v766 = vpop.f32.mrf.mxu0
  %v767 = vadd.f32 %v105, %v766
  %v768 = vpop.f32.mrf.mxu0
  %v769 = vpop.f32.mrf.mxu0
  %v770 = vadd.f32 %v105, %v769
  %v771 = vpop.f32.mrf.mxu0
  %772 = vmatprep.mubr.bf16.mxu0 %v523
  %773 = vmatmul.mubr.bf16.gmra.mxu0 %v345
  %v774 = vpop.f32.mrf.mxu0
  %v775 = vadd.f32 %v105, %v774
  %v776 = vpop.f32.mrf.mxu0
  %v777 = vpop.f32.mrf.mxu0
  %v778 = vadd.f32 %v105, %v777
  %v779 = vpop.f32.mrf.mxu0
  %780 = vmatprep.mubr.bf16.mxu0 %v526
  %781 = vmatmul.mubr.bf16.gmra.mxu0 %v347
  %v782 = vpop.f32.mrf.mxu0
  %v783 = vadd.f32 %v105, %v782
  %v784 = vpop.f32.mrf.mxu0
  %v785 = vpop.f32.mrf.mxu0
  %v786 = vadd.f32 %v105, %v785
  %v787 = vpop.f32.mrf.mxu0
  %788 = vmatprep.mubr.bf16.mxu0 %v529
  %789 = vmatmul.mubr.bf16.gmra.mxu0 %v349
  %v790 = vpop.f32.mrf.mxu0
  %v791 = vadd.f32 %v105, %v790
  %v792 = vpop.f32.mrf.mxu0
  %v793 = vpop.f32.mrf.mxu0
  %v794 = vadd.f32 %v105, %v793
  %v795 = vpop.f32.mrf.mxu0
  %796 = vmatprep.mubr.bf16.mxu0 %v532
  %797 = vmatmul.mubr.bf16.gmra.mxu0 %v351
  %v798 = vpop.f32.mrf.mxu0
  %v799 = vadd.f32 %v105, %v798
  %v800 = vpop.f32.mrf.mxu0
  %v801 = vpop.f32.mrf.mxu0
  %v802 = vadd.f32 %v105, %v801
  %v803 = vpop.f32.mrf.mxu0
  %804 = vmatprep.mubr.bf16.mxu0 %v535
  %805 = vmatmul.mubr.bf16.gmra.mxu0 %v353
  %v806 = vpop.f32.mrf.mxu0
  %v807 = vadd.f32 %v105, %v806
  %v808 = vpop.f32.mrf.mxu0
  %v809 = vpop.f32.mrf.mxu0
  %v810 = vadd.f32 %v105, %v809
  %v811 = vpop.f32.mrf.mxu0
  %812 = vmatprep.mubr.bf16.mxu0 %v538
  %813 = vmatmul.mubr.bf16.gmra.mxu0 %v355
  %v814 = vpop.f32.mrf.mxu0
  %v815 = vadd.f32 %v105, %v814
  %v816 = vpop.f32.mrf.mxu0
  %v817 = vpop.f32.mrf.mxu0
  %v818 = vadd.f32 %v105, %v817
  %v819 = vpop.f32.mrf.mxu0
  %820 = vmatprep.mubr.bf16.mxu0 %v541
  %821 = vmatmul.mubr.bf16.gmra.mxu0 %v357
  %v822 = vpop.f32.mrf.mxu0
  %v823 = vadd.f32 %v105, %v822
  %v824 = vpop.f32.mrf.mxu0
  %v825 = vpop.f32.mrf.mxu0
  %v826 = vadd.f32 %v105, %v825
  %v827 = vpop.f32.mrf.mxu0
  %828 = vmatprep.mubr.bf16.mxu0 %v544
  %829 = vmatmul.mubr.bf16.gmra.mxu0 %v359
  %v830 = vpop.f32.mrf.mxu0
  %v831 = vadd.f32 %v105, %v830
  %v832 = vpop.f32.mrf.mxu0
  %v833 = vpop.f32.mrf.mxu0
  %v834 = vadd.f32 %v105, %v833
  %v835 = vpop.f32.mrf.mxu0
  %836 = vmatprep.mubr.bf16.mxu0 %v547
  %837 = vmatmul.mubr.bf16.gmra.mxu0 %v361
  %v838 = vpop.f32.mrf.mxu0
  %v839 = vadd.f32 %v105, %v838
  %v840 = vpop.f32.mrf.mxu0
  %v841 = vpop.f32.mrf.mxu0
  %v842 = vadd.f32 %v105, %v841
  %v843 = vpop.f32.mrf.mxu0
  %844 = vdwg.mxu0
  %v845 = vlaneseq
  %v846 = vshrl.u32 %v845, 7
  %v847 = vadd.s32 %v846, 8
  %v848 = vadd.s32 %v846, 16
  %v849 = vadd.s32 %v846, 24
  %v850 = vadd.s32 %v846, 32
  %v851 = vadd.s32 %v846, 40
  %v852 = vadd.s32 %v846, 48
  %v853 = vadd.s32 %v846, 56
  %v854 = vadd.s32 %v846, 64
  %v855 = vadd.s32 %v846, 72
  %v856 = vadd.s32 %v846, 80
  %v857 = vadd.s32 %v846, 88
  %v858 = vadd.s32 %v846, 96
  %v859 = vadd.s32 %v846, 104
  %v860 = vadd.s32 %v846, 112
  %v861 = vadd.s32 %v846, 120
  %v862 = vadd.s32 %v846, 128
  %v863 = vadd.s32 %v846, 136
  %v864 = vadd.s32 %v846, 144
  %v865 = vadd.s32 %v846, 152
  %v866 = vadd.s32 %v846, 160
  %v867 = vadd.s32 %v846, 168
  %v868 = vadd.s32 %v846, 176
  %v869 = vadd.s32 %v846, 184
  %v870 = vadd.s32 %v846, 192
  %v871 = vadd.s32 %v846, 200
  %v872 = vadd.s32 %v846, 208
  %v873 = vadd.s32 %v846, 216
  %v874 = vadd.s32 %v846, 224
  %v875 = vadd.s32 %v846, 232
  %v876 = vadd.s32 %v846, 240
  %v877 = vadd.s32 %v846, 248
  %v878 = vadd.s32 %v846, 256
  %v879 = vadd.s32 %v846, 264
  %v880 = vadd.s32 %v846, 272
  %v881 = vadd.s32 %v846, 280
  %v882 = vadd.s32 %v846, 288
  %v883 = vadd.s32 %v846, 296
  %v884 = vadd.s32 %v846, 304
  %v885 = vadd.s32 %v846, 312
  %v886 = vadd.s32 %v846, 320
  %v887 = vadd.s32 %v846, 328
  %v888 = vadd.s32 %v846, 336
  %v889 = vadd.s32 %v846, 344
  %v890 = vadd.s32 %v846, 352
  %v891 = vadd.s32 %v846, 360
  %v892 = vadd.s32 %v846, 368
  %v893 = vadd.s32 %v846, 376
  %v894 = vadd.s32 %v846, 384
  %v895 = vadd.s32 %v846, 392
  %v896 = vadd.s32 %v846, 400
  %v897 = vadd.s32 %v846, 408
  %v898 = vadd.s32 %v846, 416
  %v899 = vadd.s32 %v846, 424
  %v900 = vadd.s32 %v846, 432
  %v901 = vadd.s32 %v846, 440
  %v902 = vadd.s32 %v846, 448
  %v903 = vadd.s32 %v846, 456
  %v904 = vadd.s32 %v846, 464
  %v905 = vadd.s32 %v846, 472
  %v906 = vadd.s32 %v846, 480
  %v907 = vadd.s32 %v846, 488
  %v908 = vadd.s32 %v846, 496
  %v909 = vadd.s32 %v846, 504
  %s910 = smul.u32 0, 512
  %v911 = vstv %s910
  %v912 = vadd.s32 %v846, %v911
  %v913 = vadd.s32 %v847, %v911
  %v914 = vadd.s32 %v848, %v911
  %v915 = vadd.s32 %v849, %v911
  %v916 = vadd.s32 %v850, %v911
  %v917 = vadd.s32 %v851, %v911
  %v918 = vadd.s32 %v852, %v911
  %v919 = vadd.s32 %v853, %v911
  %v920 = vadd.s32 %v854, %v911
  %v921 = vadd.s32 %v855, %v911
  %v922 = vadd.s32 %v856, %v911
  %v923 = vadd.s32 %v857, %v911
  %v924 = vadd.s32 %v858, %v911
  %v925 = vadd.s32 %v859, %v911
  %v926 = vadd.s32 %v860, %v911
  %v927 = vadd.s32 %v861, %v911
  %v928 = vadd.s32 %v862, %v911
  %v929 = vadd.s32 %v863, %v911
  %v930 = vadd.s32 %v864, %v911
  %v931 = vadd.s32 %v865, %v911
  %v932 = vadd.s32 %v866, %v911
  %v933 = vadd.s32 %v867, %v911
  %v934 = vadd.s32 %v868, %v911
  %v935 = vadd.s32 %v869, %v911
  %v936 = vadd.s32 %v870, %v911
  %v937 = vadd.s32 %v871, %v911
  %v938 = vadd.s32 %v872, %v911
  %v939 = vadd.s32 %v873, %v911
  %v940 = vadd.s32 %v874, %v911
  %v941 = vadd.s32 %v875, %v911
  %v942 = vadd.s32 %v876, %v911
  %v943 = vadd.s32 %v877, %v911
  %v944 = vadd.s32 %v878, %v911
  %v945 = vadd.s32 %v879, %v911
  %v946 = vadd.s32 %v880, %v911
  %v947 = vadd.s32 %v881, %v911
  %v948 = vadd.s32 %v882, %v911
  %v949 = vadd.s32 %v883, %v911
  %v950 = vadd.s32 %v884, %v911
  %v951 = vadd.s32 %v885, %v911
  %v952 = vadd.s32 %v886, %v911
  %v953 = vadd.s32 %v887, %v911
  %v954 = vadd.s32 %v888, %v911
  %v955 = vadd.s32 %v889, %v911
  %v956 = vadd.s32 %v890, %v911
  %v957 = vadd.s32 %v891, %v911
  %v958 = vadd.s32 %v892, %v911
  %v959 = vadd.s32 %v893, %v911
  %v960 = vadd.s32 %v894, %v911
  %v961 = vadd.s32 %v895, %v911
  %v962 = vadd.s32 %v896, %v911
  %v963 = vadd.s32 %v897, %v911
  %v964 = vadd.s32 %v898, %v911
  %v965 = vadd.s32 %v899, %v911
  %v966 = vadd.s32 %v900, %v911
  %v967 = vadd.s32 %v901, %v911
  %v968 = vadd.s32 %v902, %v911
  %v969 = vadd.s32 %v903, %v911
  %v970 = vadd.s32 %v904, %v911
  %v971 = vadd.s32 %v905, %v911
  %v972 = vadd.s32 %v906, %v911
  %v973 = vadd.s32 %v907, %v911
  %v974 = vadd.s32 %v908, %v911
  %v975 = vadd.s32 %v909, %v911
  %vm976 = vcmp.lt.s32.totalorder %v912, 512
  %vm977 = vcmp.lt.s32.totalorder %v913, 512
  %vm978 = vcmp.lt.s32.totalorder %v914, 512
  %vm979 = vcmp.lt.s32.totalorder %v915, 512
  %vm980 = vcmp.lt.s32.totalorder %v916, 512
  %vm981 = vcmp.lt.s32.totalorder %v917, 512
  %vm982 = vcmp.lt.s32.totalorder %v918, 512
  %vm983 = vcmp.lt.s32.totalorder %v919, 512
  %vm984 = vcmp.lt.s32.totalorder %v920, 512
  %vm985 = vcmp.lt.s32.totalorder %v921, 512
  %vm986 = vcmp.lt.s32.totalorder %v922, 512
  %vm987 = vcmp.lt.s32.totalorder %v923, 512
  %vm988 = vcmp.lt.s32.totalorder %v924, 512
  %vm989 = vcmp.lt.s32.totalorder %v925, 512
  %vm990 = vcmp.lt.s32.totalorder %v926, 512
  %vm991 = vcmp.lt.s32.totalorder %v927, 512
  %vm992 = vcmp.lt.s32.totalorder %v928, 512
  %vm993 = vcmp.lt.s32.totalorder %v929, 512
  %vm994 = vcmp.lt.s32.totalorder %v930, 512
  %vm995 = vcmp.lt.s32.totalorder %v931, 512
  %vm996 = vcmp.lt.s32.totalorder %v932, 512
  %vm997 = vcmp.lt.s32.totalorder %v933, 512
  %vm998 = vcmp.lt.s32.totalorder %v934, 512
  %vm999 = vcmp.lt.s32.totalorder %v935, 512
  %vm1000 = vcmp.lt.s32.totalorder %v936, 512
  %vm1001 = vcmp.lt.s32.totalorder %v937, 512
  %vm1002 = vcmp.lt.s32.totalorder %v938, 512
  %vm1003 = vcmp.lt.s32.totalorder %v939, 512
  %vm1004 = vcmp.lt.s32.totalorder %v940, 512
  %vm1005 = vcmp.lt.s32.totalorder %v941, 512
  %vm1006 = vcmp.lt.s32.totalorder %v942, 512
  %vm1007 = vcmp.lt.s32.totalorder %v943, 512
  %vm1008 = vcmp.lt.s32.totalorder %v944, 512
  %vm1009 = vcmp.lt.s32.totalorder %v945, 512
  %vm1010 = vcmp.lt.s32.totalorder %v946, 512
  %vm1011 = vcmp.lt.s32.totalorder %v947, 512
  %vm1012 = vcmp.lt.s32.totalorder %v948, 512
  %vm1013 = vcmp.lt.s32.totalorder %v949, 512
  %vm1014 = vcmp.lt.s32.totalorder %v950, 512
  %vm1015 = vcmp.lt.s32.totalorder %v951, 512
  %vm1016 = vcmp.lt.s32.totalorder %v952, 512
  %vm1017 = vcmp.lt.s32.totalorder %v953, 512
  %vm1018 = vcmp.lt.s32.totalorder %v954, 512
  %vm1019 = vcmp.lt.s32.totalorder %v955, 512
  %vm1020 = vcmp.lt.s32.totalorder %v956, 512
  %vm1021 = vcmp.lt.s32.totalorder %v957, 512
  %vm1022 = vcmp.lt.s32.totalorder %v958, 512
  %vm1023 = vcmp.lt.s32.totalorder %v959, 512
  %vm1024 = vcmp.lt.s32.totalorder %v960, 512
  %vm1025 = vcmp.lt.s32.totalorder %v961, 512
  %vm1026 = vcmp.lt.s32.totalorder %v962, 512
  %vm1027 = vcmp.lt.s32.totalorder %v963, 512
  %vm1028 = vcmp.lt.s32.totalorder %v964, 512
  %vm1029 = vcmp.lt.s32.totalorder %v965, 512
  %vm1030 = vcmp.lt.s32.totalorder %v966, 512
  %vm1031 = vcmp.lt.s32.totalorder %v967, 512
  %vm1032 = vcmp.lt.s32.totalorder %v968, 512
  %vm1033 = vcmp.lt.s32.totalorder %v969, 512
  %vm1034 = vcmp.lt.s32.totalorder %v970, 512
  %vm1035 = vcmp.lt.s32.totalorder %v971, 512
  %vm1036 = vcmp.lt.s32.totalorder %v972, 512
  %vm1037 = vcmp.lt.s32.totalorder %v973, 512
  %vm1038 = vcmp.lt.s32.totalorder %v974, 512
  %vm1039 = vcmp.lt.s32.totalorder %v975, 512
  %v1040 = vsel %vm976, %v591, 0.0
  %v1041 = vsel %vm977, %v594, 0.0
  %v1042 = vsel %vm978, %v599, 0.0
  %v1043 = vsel %vm979, %v602, 0.0
  %v1044 = vsel %vm980, %v607, 0.0
  %v1045 = vsel %vm981, %v610, 0.0
  %v1046 = vsel %vm982, %v615, 0.0
  %v1047 = vsel %vm983, %v618, 0.0
  %v1048 = vsel %vm984, %v623, 0.0
  %v1049 = vsel %vm985, %v626, 0.0
  %v1050 = vsel %vm986, %v631, 0.0
  %v1051 = vsel %vm987, %v634, 0.0
  %v1052 = vsel %vm988, %v639, 0.0
  %v1053 = vsel %vm989, %v642, 0.0
  %v1054 = vsel %vm990, %v647, 0.0
  %v1055 = vsel %vm991, %v650, 0.0
  %v1056 = vsel %vm992, %v655, 0.0
  %v1057 = vsel %vm993, %v658, 0.0
  %v1058 = vsel %vm994, %v663, 0.0
  %v1059 = vsel %vm995, %v666, 0.0
  %v1060 = vsel %vm996, %v671, 0.0
  %v1061 = vsel %vm997, %v674, 0.0
  %v1062 = vsel %vm998, %v679, 0.0
  %v1063 = vsel %vm999, %v682, 0.0
  %v1064 = vsel %vm1000, %v687, 0.0
  %v1065 = vsel %vm1001, %v690, 0.0
  %v1066 = vsel %vm1002, %v695, 0.0
  %v1067 = vsel %vm1003, %v698, 0.0
  %v1068 = vsel %vm1004, %v703, 0.0
  %v1069 = vsel %vm1005, %v706, 0.0
  %v1070 = vsel %vm1006, %v711, 0.0
  %v1071 = vsel %vm1007, %v714, 0.0
  %v1072 = vsel %vm1008, %v719, 0.0
  %v1073 = vsel %vm1009, %v722, 0.0
  %v1074 = vsel %vm1010, %v727, 0.0
  %v1075 = vsel %vm1011, %v730, 0.0
  %v1076 = vsel %vm1012, %v735, 0.0
  %v1077 = vsel %vm1013, %v738, 0.0
  %v1078 = vsel %vm1014, %v743, 0.0
  %v1079 = vsel %vm1015, %v746, 0.0
  %v1080 = vsel %vm1016, %v751, 0.0
  %v1081 = vsel %vm1017, %v754, 0.0
  %v1082 = vsel %vm1018, %v759, 0.0
  %v1083 = vsel %vm1019, %v762, 0.0
  %v1084 = vsel %vm1020, %v767, 0.0
  %v1085 = vsel %vm1021, %v770, 0.0
  %v1086 = vsel %vm1022, %v775, 0.0
  %v1087 = vsel %vm1023, %v778, 0.0
  %v1088 = vsel %vm1024, %v783, 0.0
  %v1089 = vsel %vm1025, %v786, 0.0
  %v1090 = vsel %vm1026, %v791, 0.0
  %v1091 = vsel %vm1027, %v794, 0.0
  %v1092 = vsel %vm1028, %v799, 0.0
  %v1093 = vsel %vm1029, %v802, 0.0
  %v1094 = vsel %vm1030, %v807, 0.0
  %v1095 = vsel %vm1031, %v810, 0.0
  %v1096 = vsel %vm1032, %v815, 0.0
  %v1097 = vsel %vm1033, %v818, 0.0
  %v1098 = vsel %vm1034, %v823, 0.0
  %v1099 = vsel %vm1035, %v826, 0.0
  %v1100 = vsel %vm1036, %v831, 0.0
  %v1101 = vsel %vm1037, %v834, 0.0
  %v1102 = vsel %vm1038, %v839, 0.0
  %v1103 = vsel %vm1039, %v842, 0.0
  %vm1104 = vcmask 64512
  %v1105 = vsel %vm1104, %v1040, 0.0
  %v1106 = vsel %vm1104, %v1041, 0.0
  %v1107 = vadd.f32 %v1105, %v1106
  %v1108 = vsel %vm1104, %v1042, 0.0
  %v1109 = vadd.f32 %v1107, %v1108
  %v1110 = vsel %vm1104, %v1043, 0.0
  %v1111 = vadd.f32 %v1109, %v1110
  %v1112 = vsel %vm1104, %v1044, 0.0
  %v1113 = vadd.f32 %v1111, %v1112
  %v1114 = vsel %vm1104, %v1045, 0.0
  %v1115 = vadd.f32 %v1113, %v1114
  %v1116 = vsel %vm1104, %v1046, 0.0
  %v1117 = vadd.f32 %v1115, %v1116
  %v1118 = vsel %vm1104, %v1047, 0.0
  %v1119 = vadd.f32 %v1117, %v1118
  %v1120 = vsel %vm1104, %v1048, 0.0
  %v1121 = vadd.f32 %v1119, %v1120
  %v1122 = vsel %vm1104, %v1049, 0.0
  %v1123 = vadd.f32 %v1121, %v1122
  %v1124 = vsel %vm1104, %v1050, 0.0
  %v1125 = vadd.f32 %v1123, %v1124
  %v1126 = vsel %vm1104, %v1051, 0.0
  %v1127 = vadd.f32 %v1125, %v1126
  %v1128 = vsel %vm1104, %v1052, 0.0
  %v1129 = vadd.f32 %v1127, %v1128
  %v1130 = vsel %vm1104, %v1053, 0.0
  %v1131 = vadd.f32 %v1129, %v1130
  %v1132 = vsel %vm1104, %v1054, 0.0
  %v1133 = vadd.f32 %v1131, %v1132
  %v1134 = vsel %vm1104, %v1055, 0.0
  %v1135 = vadd.f32 %v1133, %v1134
  %v1136 = vsel %vm1104, %v1056, 0.0
  %v1137 = vadd.f32 %v1135, %v1136
  %v1138 = vsel %vm1104, %v1057, 0.0
  %v1139 = vadd.f32 %v1137, %v1138
  %v1140 = vsel %vm1104, %v1058, 0.0
  %v1141 = vadd.f32 %v1139, %v1140
  %v1142 = vsel %vm1104, %v1059, 0.0
  %v1143 = vadd.f32 %v1141, %v1142
  %v1144 = vsel %vm1104, %v1060, 0.0
  %v1145 = vadd.f32 %v1143, %v1144
  %v1146 = vsel %vm1104, %v1061, 0.0
  %v1147 = vadd.f32 %v1145, %v1146
  %v1148 = vsel %vm1104, %v1062, 0.0
  %v1149 = vadd.f32 %v1147, %v1148
  %v1150 = vsel %vm1104, %v1063, 0.0
  %v1151 = vadd.f32 %v1149, %v1150
  %v1152 = vsel %vm1104, %v1064, 0.0
  %v1153 = vadd.f32 %v1151, %v1152
  %v1154 = vsel %vm1104, %v1065, 0.0
  %v1155 = vadd.f32 %v1153, %v1154
  %v1156 = vsel %vm1104, %v1066, 0.0
  %v1157 = vadd.f32 %v1155, %v1156
  %v1158 = vsel %vm1104, %v1067, 0.0
  %v1159 = vadd.f32 %v1157, %v1158
  %v1160 = vsel %vm1104, %v1068, 0.0
  %v1161 = vadd.f32 %v1159, %v1160
  %v1162 = vsel %vm1104, %v1069, 0.0
  %v1163 = vadd.f32 %v1161, %v1162
  %v1164 = vsel %vm1104, %v1070, 0.0
  %v1165 = vadd.f32 %v1163, %v1164
  %v1166 = vsel %vm1104, %v1071, 0.0
  %v1167 = vadd.f32 %v1165, %v1166
  %v1168 = vsel %vm1104, %v1072, 0.0
  %v1169 = vadd.f32 %v1167, %v1168
  %v1170 = vsel %vm1104, %v1073, 0.0
  %v1171 = vadd.f32 %v1169, %v1170
  %v1172 = vsel %vm1104, %v1074, 0.0
  %v1173 = vadd.f32 %v1171, %v1172
  %v1174 = vsel %vm1104, %v1075, 0.0
  %v1175 = vadd.f32 %v1173, %v1174
  %v1176 = vsel %vm1104, %v1076, 0.0
  %v1177 = vadd.f32 %v1175, %v1176
  %v1178 = vsel %vm1104, %v1077, 0.0
  %v1179 = vadd.f32 %v1177, %v1178
  %v1180 = vsel %vm1104, %v1078, 0.0
  %v1181 = vadd.f32 %v1179, %v1180
  %v1182 = vsel %vm1104, %v1079, 0.0
  %v1183 = vadd.f32 %v1181, %v1182
  %v1184 = vsel %vm1104, %v1080, 0.0
  %v1185 = vadd.f32 %v1183, %v1184
  %v1186 = vsel %vm1104, %v1081, 0.0
  %v1187 = vadd.f32 %v1185, %v1186
  %v1188 = vsel %vm1104, %v1082, 0.0
  %v1189 = vadd.f32 %v1187, %v1188
  %v1190 = vsel %vm1104, %v1083, 0.0
  %v1191 = vadd.f32 %v1189, %v1190
  %v1192 = vsel %vm1104, %v1084, 0.0
  %v1193 = vadd.f32 %v1191, %v1192
  %v1194 = vsel %vm1104, %v1085, 0.0
  %v1195 = vadd.f32 %v1193, %v1194
  %v1196 = vsel %vm1104, %v1086, 0.0
  %v1197 = vadd.f32 %v1195, %v1196
  %v1198 = vsel %vm1104, %v1087, 0.0
  %v1199 = vadd.f32 %v1197, %v1198
  %v1200 = vsel %vm1104, %v1088, 0.0
  %v1201 = vadd.f32 %v1199, %v1200
  %v1202 = vsel %vm1104, %v1089, 0.0
  %v1203 = vadd.f32 %v1201, %v1202
  %v1204 = vsel %vm1104, %v1090, 0.0
  %v1205 = vadd.f32 %v1203, %v1204
  %v1206 = vsel %vm1104, %v1091, 0.0
  %v1207 = vadd.f32 %v1205, %v1206
  %v1208 = vsel %vm1104, %v1092, 0.0
  %v1209 = vadd.f32 %v1207, %v1208
  %v1210 = vsel %vm1104, %v1093, 0.0
  %v1211 = vadd.f32 %v1209, %v1210
  %v1212 = vsel %vm1104, %v1094, 0.0
  %v1213 = vadd.f32 %v1211, %v1212
  %v1214 = vsel %vm1104, %v1095, 0.0
  %v1215 = vadd.f32 %v1213, %v1214
  %v1216 = vsel %vm1104, %v1096, 0.0
  %v1217 = vadd.f32 %v1215, %v1216
  %v1218 = vsel %vm1104, %v1097, 0.0
  %v1219 = vadd.f32 %v1217, %v1218
  %v1220 = vsel %vm1104, %v1098, 0.0
  %v1221 = vadd.f32 %v1219, %v1220
  %v1222 = vsel %vm1104, %v1099, 0.0
  %v1223 = vadd.f32 %v1221, %v1222
  %v1224 = vsel %vm1104, %v1100, 0.0
  %v1225 = vadd.f32 %v1223, %v1224
  %v1226 = vsel %vm1104, %v1101, 0.0
  %v1227 = vadd.f32 %v1225, %v1226
  %v1228 = vsel %vm1104, %v1102, 0.0
  %v1229 = vadd.f32 %v1227, %v1228
  %v1230 = vsel %vm1104, %v1103, 0.0
  %v1231 = vadd.f32 %v1229, %v1230
  %v1232 = vrot.slane %v1231, 4
  %v1233 = vadd.f32 %v1231, %v1232
  %v1234 = vrot.slane %v1233, 2
  %v1235 = vadd.f32 %v1233, %v1234
  %v1236 = vrot.slane %v1235, 1
  %v1237 = vadd.f32 %v1235, %v1236
  %v1238 = vmul.f32 %v1040, %v1040
  %v1239 = vmul.f32 %v1041, %v1041
  %v1240 = vmul.f32 %v1042, %v1042
  %v1241 = vmul.f32 %v1043, %v1043
  %v1242 = vmul.f32 %v1044, %v1044
  %v1243 = vmul.f32 %v1045, %v1045
  %v1244 = vmul.f32 %v1046, %v1046
  %v1245 = vmul.f32 %v1047, %v1047
  %v1246 = vmul.f32 %v1048, %v1048
  %v1247 = vmul.f32 %v1049, %v1049
  %v1248 = vmul.f32 %v1050, %v1050
  %v1249 = vmul.f32 %v1051, %v1051
  %v1250 = vmul.f32 %v1052, %v1052
  %v1251 = vmul.f32 %v1053, %v1053
  %v1252 = vmul.f32 %v1054, %v1054
  %v1253 = vmul.f32 %v1055, %v1055
  %v1254 = vmul.f32 %v1056, %v1056
  %v1255 = vmul.f32 %v1057, %v1057
  %v1256 = vmul.f32 %v1058, %v1058
  %v1257 = vmul.f32 %v1059, %v1059
  %v1258 = vmul.f32 %v1060, %v1060
  %v1259 = vmul.f32 %v1061, %v1061
  %v1260 = vmul.f32 %v1062, %v1062
  %v1261 = vmul.f32 %v1063, %v1063
  %v1262 = vmul.f32 %v1064, %v1064
  %v1263 = vmul.f32 %v1065, %v1065
  %v1264 = vmul.f32 %v1066, %v1066
  %v1265 = vmul.f32 %v1067, %v1067
  %v1266 = vmul.f32 %v1068, %v1068
  %v1267 = vmul.f32 %v1069, %v1069
  %v1268 = vmul.f32 %v1070, %v1070
  %v1269 = vmul.f32 %v1071, %v1071
  %v1270 = vmul.f32 %v1072, %v1072
  %v1271 = vmul.f32 %v1073, %v1073
  %v1272 = vmul.f32 %v1074, %v1074
  %v1273 = vmul.f32 %v1075, %v1075
  %v1274 = vmul.f32 %v1076, %v1076
  %v1275 = vmul.f32 %v1077, %v1077
  %v1276 = vmul.f32 %v1078, %v1078
  %v1277 = vmul.f32 %v1079, %v1079
  %v1278 = vmul.f32 %v1080, %v1080
  %v1279 = vmul.f32 %v1081, %v1081
  %v1280 = vmul.f32 %v1082, %v1082
  %v1281 = vmul.f32 %v1083, %v1083
  %v1282 = vmul.f32 %v1084, %v1084
  %v1283 = vmul.f32 %v1085, %v1085
  %v1284 = vmul.f32 %v1086, %v1086
  %v1285 = vmul.f32 %v1087, %v1087
  %v1286 = vmul.f32 %v1088, %v1088
  %v1287 = vmul.f32 %v1089, %v1089
  %v1288 = vmul.f32 %v1090, %v1090
  %v1289 = vmul.f32 %v1091, %v1091
  %v1290 = vmul.f32 %v1092, %v1092
  %v1291 = vmul.f32 %v1093, %v1093
  %v1292 = vmul.f32 %v1094, %v1094
  %v1293 = vmul.f32 %v1095, %v1095
  %v1294 = vmul.f32 %v1096, %v1096
  %v1295 = vmul.f32 %v1097, %v1097
  %v1296 = vmul.f32 %v1098, %v1098
  %v1297 = vmul.f32 %v1099, %v1099
  %v1298 = vmul.f32 %v1100, %v1100
  %v1299 = vmul.f32 %v1101, %v1101
  %v1300 = vmul.f32 %v1102, %v1102
  %v1301 = vmul.f32 %v1103, %v1103
  %v1302 = vsel %vm1104, %v1238, 0.0
  %v1303 = vsel %vm1104, %v1239, 0.0
  %v1304 = vadd.f32 %v1302, %v1303
  %v1305 = vsel %vm1104, %v1240, 0.0
  %v1306 = vadd.f32 %v1304, %v1305
  %v1307 = vsel %vm1104, %v1241, 0.0
  %v1308 = vadd.f32 %v1306, %v1307
  %v1309 = vsel %vm1104, %v1242, 0.0
  %v1310 = vadd.f32 %v1308, %v1309
  %v1311 = vsel %vm1104, %v1243, 0.0
  %v1312 = vadd.f32 %v1310, %v1311
  %v1313 = vsel %vm1104, %v1244, 0.0
  %v1314 = vadd.f32 %v1312, %v1313
  %v1315 = vsel %vm1104, %v1245, 0.0
  %v1316 = vadd.f32 %v1314, %v1315
  %v1317 = vsel %vm1104, %v1246, 0.0
  %v1318 = vadd.f32 %v1316, %v1317
  %v1319 = vsel %vm1104, %v1247, 0.0
  %v1320 = vadd.f32 %v1318, %v1319
  %v1321 = vsel %vm1104, %v1248, 0.0
  %v1322 = vadd.f32 %v1320, %v1321
  %v1323 = vsel %vm1104, %v1249, 0.0
  %v1324 = vadd.f32 %v1322, %v1323
  %v1325 = vsel %vm1104, %v1250, 0.0
  %v1326 = vadd.f32 %v1324, %v1325
  %v1327 = vsel %vm1104, %v1251, 0.0
  %v1328 = vadd.f32 %v1326, %v1327
  %v1329 = vsel %vm1104, %v1252, 0.0
  %v1330 = vadd.f32 %v1328, %v1329
  %v1331 = vsel %vm1104, %v1253, 0.0
  %v1332 = vadd.f32 %v1330, %v1331
  %v1333 = vsel %vm1104, %v1254, 0.0
  %v1334 = vadd.f32 %v1332, %v1333
  %v1335 = vsel %vm1104, %v1255, 0.0
  %v1336 = vadd.f32 %v1334, %v1335
  %v1337 = vsel %vm1104, %v1256, 0.0
  %v1338 = vadd.f32 %v1336, %v1337
  %v1339 = vsel %vm1104, %v1257, 0.0
  %v1340 = vadd.f32 %v1338, %v1339
  %v1341 = vsel %vm1104, %v1258, 0.0
  %v1342 = vadd.f32 %v1340, %v1341
  %v1343 = vsel %vm1104, %v1259, 0.0
  %v1344 = vadd.f32 %v1342, %v1343
  %v1345 = vsel %vm1104, %v1260, 0.0
  %v1346 = vadd.f32 %v1344, %v1345
  %v1347 = vsel %vm1104, %v1261, 0.0
  %v1348 = vadd.f32 %v1346, %v1347
  %v1349 = vsel %vm1104, %v1262, 0.0
  %v1350 = vadd.f32 %v1348, %v1349
  %v1351 = vsel %vm1104, %v1263, 0.0
  %v1352 = vadd.f32 %v1350, %v1351
  %v1353 = vsel %vm1104, %v1264, 0.0
  %v1354 = vadd.f32 %v1352, %v1353
  %v1355 = vsel %vm1104, %v1265, 0.0
  %v1356 = vadd.f32 %v1354, %v1355
  %v1357 = vsel %vm1104, %v1266, 0.0
  %v1358 = vadd.f32 %v1356, %v1357
  %v1359 = vsel %vm1104, %v1267, 0.0
  %v1360 = vadd.f32 %v1358, %v1359
  %v1361 = vsel %vm1104, %v1268, 0.0
  %v1362 = vadd.f32 %v1360, %v1361
  %v1363 = vsel %vm1104, %v1269, 0.0
  %v1364 = vadd.f32 %v1362, %v1363
  %v1365 = vsel %vm1104, %v1270, 0.0
  %v1366 = vadd.f32 %v1364, %v1365
  %v1367 = vsel %vm1104, %v1271, 0.0
  %v1368 = vadd.f32 %v1366, %v1367
  %v1369 = vsel %vm1104, %v1272, 0.0
  %v1370 = vadd.f32 %v1368, %v1369
  %v1371 = vsel %vm1104, %v1273, 0.0
  %v1372 = vadd.f32 %v1370, %v1371
  %v1373 = vsel %vm1104, %v1274, 0.0
  %v1374 = vadd.f32 %v1372, %v1373
  %v1375 = vsel %vm1104, %v1275, 0.0
  %v1376 = vadd.f32 %v1374, %v1375
  %v1377 = vsel %vm1104, %v1276, 0.0
  %v1378 = vadd.f32 %v1376, %v1377
  %v1379 = vsel %vm1104, %v1277, 0.0
  %v1380 = vadd.f32 %v1378, %v1379
  %v1381 = vsel %vm1104, %v1278, 0.0
  %v1382 = vadd.f32 %v1380, %v1381
  %v1383 = vsel %vm1104, %v1279, 0.0
  %v1384 = vadd.f32 %v1382, %v1383
  %v1385 = vsel %vm1104, %v1280, 0.0
  %v1386 = vadd.f32 %v1384, %v1385
  %v1387 = vsel %vm1104, %v1281, 0.0
  %v1388 = vadd.f32 %v1386, %v1387
  %v1389 = vsel %vm1104, %v1282, 0.0
  %v1390 = vadd.f32 %v1388, %v1389
  %v1391 = vsel %vm1104, %v1283, 0.0
  %v1392 = vadd.f32 %v1390, %v1391
  %v1393 = vsel %vm1104, %v1284, 0.0
  %v1394 = vadd.f32 %v1392, %v1393
  %v1395 = vsel %vm1104, %v1285, 0.0
  %v1396 = vadd.f32 %v1394, %v1395
  %v1397 = vsel %vm1104, %v1286, 0.0
  %v1398 = vadd.f32 %v1396, %v1397
  %v1399 = vsel %vm1104, %v1287, 0.0
  %v1400 = vadd.f32 %v1398, %v1399
  %v1401 = vsel %vm1104, %v1288, 0.0
  %v1402 = vadd.f32 %v1400, %v1401
  %v1403 = vsel %vm1104, %v1289, 0.0
  %v1404 = vadd.f32 %v1402, %v1403
  %v1405 = vsel %vm1104, %v1290, 0.0
  %v1406 = vadd.f32 %v1404, %v1405
  %v1407 = vsel %vm1104, %v1291, 0.0
  %v1408 = vadd.f32 %v1406, %v1407
  %v1409 = vsel %vm1104, %v1292, 0.0
  %v1410 = vadd.f32 %v1408, %v1409
  %v1411 = vsel %vm1104, %v1293, 0.0
  %v1412 = vadd.f32 %v1410, %v1411
  %v1413 = vsel %vm1104, %v1294, 0.0
  %v1414 = vadd.f32 %v1412, %v1413
  %v1415 = vsel %vm1104, %v1295, 0.0
  %v1416 = vadd.f32 %v1414, %v1415
  %v1417 = vsel %vm1104, %v1296, 0.0
  %v1418 = vadd.f32 %v1416, %v1417
  %v1419 = vsel %vm1104, %v1297, 0.0
  %v1420 = vadd.f32 %v1418, %v1419
  %v1421 = vsel %vm1104, %v1298, 0.0
  %v1422 = vadd.f32 %v1420, %v1421
  %v1423 = vsel %vm1104, %v1299, 0.0
  %v1424 = vadd.f32 %v1422, %v1423
  %v1425 = vsel %vm1104, %v1300, 0.0
  %v1426 = vadd.f32 %v1424, %v1425
  %v1427 = vsel %vm1104, %v1301, 0.0
  %v1428 = vadd.f32 %v1426, %v1427
  %v1429 = vrot.slane %v1428, 4
  %v1430 = vadd.f32 %v1428, %v1429
  %v1431 = vrot.slane %v1430, 2
  %v1432 = vadd.f32 %v1430, %v1431
  %v1433 = vrot.slane %v1432, 1
  %v1434 = vadd.f32 %v1432, %v1433
  %v1435 = vsel %vm549, %v1237, %v1434
  %vm1436 = vcmask 58368
  %1437 = vst.msk [vmem:[%s4] sm:$0x3] %vm1436, %v1435
  %1438 = vst.msk [vmem:[%s3] sm:$0xff] %vm1104, %v591
  %1439 = vst.msk [vmem:[%s3 + $0x8] sm:$0xff] %vm1104, %v594
  %1440 = vst.msk [vmem:[%s3 + $0x10] sm:$0xff] %vm1104, %v599
  %1441 = vst.msk [vmem:[%s3 + $0x18] sm:$0xff] %vm1104, %v602
  %1442 = vst.msk [vmem:[%s3 + $0x20] sm:$0xff] %vm1104, %v607
  %1443 = vst.msk [vmem:[%s3 + $0x28] sm:$0xff] %vm1104, %v610
  %1444 = vst.msk [vmem:[%s3 + $0x30] sm:$0xff] %vm1104, %v615
  %1445 = vst.msk [vmem:[%s3 + $0x38] sm:$0xff] %vm1104, %v618
  %1446 = vst.msk [vmem:[%s3 + $0x40] sm:$0xff] %vm1104, %v623
  %1447 = vst.msk [vmem:[%s3 + $0x48] sm:$0xff] %vm1104, %v626
  %1448 = vst.msk [vmem:[%s3 + $0x50] sm:$0xff] %vm1104, %v631
  %1449 = vst.msk [vmem:[%s3 + $0x58] sm:$0xff] %vm1104, %v634
  %1450 = vst.msk [vmem:[%s3 + $0x60] sm:$0xff] %vm1104, %v639
  %1451 = vst.msk [vmem:[%s3 + $0x68] sm:$0xff] %vm1104, %v642
  %1452 = vst.msk [vmem:[%s3 + $0x70] sm:$0xff] %vm1104, %v647
  %1453 = vst.msk [vmem:[%s3 + $0x78] sm:$0xff] %vm1104, %v650
  %1454 = vst.msk [vmem:[%s3 + $0x80] sm:$0xff] %vm1104, %v655
  %1455 = vst.msk [vmem:[%s3 + $0x88] sm:$0xff] %vm1104, %v658
  %1456 = vst.msk [vmem:[%s3 + $0x90] sm:$0xff] %vm1104, %v663
  %1457 = vst.msk [vmem:[%s3 + $0x98] sm:$0xff] %vm1104, %v666
  %1458 = vst.msk [vmem:[%s3 + $0xa0] sm:$0xff] %vm1104, %v671
  %1459 = vst.msk [vmem:[%s3 + $0xa8] sm:$0xff] %vm1104, %v674
  %1460 = vst.msk [vmem:[%s3 + $0xb0] sm:$0xff] %vm1104, %v679
  %1461 = vst.msk [vmem:[%s3 + $0xb8] sm:$0xff] %vm1104, %v682
  %1462 = vst.msk [vmem:[%s3 + $0xc0] sm:$0xff] %vm1104, %v687
  %1463 = vst.msk [vmem:[%s3 + $0xc8] sm:$0xff] %vm1104, %v690
  %1464 = vst.msk [vmem:[%s3 + $0xd0] sm:$0xff] %vm1104, %v695
  %1465 = vst.msk [vmem:[%s3 + $0xd8] sm:$0xff] %vm1104, %v698
  %1466 = vst.msk [vmem:[%s3 + $0xe0] sm:$0xff] %vm1104, %v703
  %1467 = vst.msk [vmem:[%s3 + $0xe8] sm:$0xff] %vm1104, %v706
  %1468 = vst.msk [vmem:[%s3 + $0xf0] sm:$0xff] %vm1104, %v711
  %1469 = vst.msk [vmem:[%s3 + $0xf8] sm:$0xff] %vm1104, %v714
  %1470 = vst.msk [vmem:[%s3 + $0x100] sm:$0xff] %vm1104, %v719
  %1471 = vst.msk [vmem:[%s3 + $0x108] sm:$0xff] %vm1104, %v722
  %1472 = vst.msk [vmem:[%s3 + $0x110] sm:$0xff] %vm1104, %v727
  %1473 = vst.msk [vmem:[%s3 + $0x118] sm:$0xff] %vm1104, %v730
  %1474 = vst.msk [vmem:[%s3 + $0x120] sm:$0xff] %vm1104, %v735
  %1475 = vst.msk [vmem:[%s3 + $0x128] sm:$0xff] %vm1104, %v738
  %1476 = vst.msk [vmem:[%s3 + $0x130] sm:$0xff] %vm1104, %v743
  %1477 = vst.msk [vmem:[%s3 + $0x138] sm:$0xff] %vm1104, %v746
  %1478 = vst.msk [vmem:[%s3 + $0x140] sm:$0xff] %vm1104, %v751
  %1479 = vst.msk [vmem:[%s3 + $0x148] sm:$0xff] %vm1104, %v754
  %1480 = vst.msk [vmem:[%s3 + $0x150] sm:$0xff] %vm1104, %v759
  %1481 = vst.msk [vmem:[%s3 + $0x158] sm:$0xff] %vm1104, %v762
  %1482 = vst.msk [vmem:[%s3 + $0x160] sm:$0xff] %vm1104, %v767
  %1483 = vst.msk [vmem:[%s3 + $0x168] sm:$0xff] %vm1104, %v770
  %1484 = vst.msk [vmem:[%s3 + $0x170] sm:$0xff] %vm1104, %v775
  %1485 = vst.msk [vmem:[%s3 + $0x178] sm:$0xff] %vm1104, %v778
  %1486 = vst.msk [vmem:[%s3 + $0x180] sm:$0xff] %vm1104, %v783
  %1487 = vst.msk [vmem:[%s3 + $0x188] sm:$0xff] %vm1104, %v786
  %1488 = vst.msk [vmem:[%s3 + $0x190] sm:$0xff] %vm1104, %v791
  %1489 = vst.msk [vmem:[%s3 + $0x198] sm:$0xff] %vm1104, %v794
  %1490 = vst.msk [vmem:[%s3 + $0x1a0] sm:$0xff] %vm1104, %v799
  %1491 = vst.msk [vmem:[%s3 + $0x1a8] sm:$0xff] %vm1104, %v802
  %1492 = vst.msk [vmem:[%s3 + $0x1b0] sm:$0xff] %vm1104, %v807
  %1493 = vst.msk [vmem:[%s3 + $0x1b8] sm:$0xff] %vm1104, %v810
  %1494 = vst.msk [vmem:[%s3 + $0x1c0] sm:$0xff] %vm1104, %v815
  %1495 = vst.msk [vmem:[%s3 + $0x1c8] sm:$0xff] %vm1104, %v818
  %1496 = vst.msk [vmem:[%s3 + $0x1d0] sm:$0xff] %vm1104, %v823
  %1497 = vst.msk [vmem:[%s3 + $0x1d8] sm:$0xff] %vm1104, %v826
  %1498 = vst.msk [vmem:[%s3 + $0x1e0] sm:$0xff] %vm1104, %v831
  %1499 = vst.msk [vmem:[%s3 + $0x1e8] sm:$0xff] %vm1104, %v834
  %1500 = vst.msk [vmem:[%s3 + $0x1f0] sm:$0xff] %vm1104, %v839
  %1501 = vst.msk [vmem:[%s3 + $0x1f8] sm:$0xff] %vm1104, %v842
  // Predicated region
  $region14: #{global_generator_forward.25} parent=0 // pred_check
    _
  $region15: #{global_generator_forward.25} parent=0 // pred_check_branch
    %1503 = sbr.rel (0) target = $region17
  $region16: #{global_generator_forward.25} parent=0 // pred_region
    _
  $region17: #{global_generator_forward.25} parent=0 // pred_fallthru
    _
  // Predicated region
  $region18: #{global_generator_forward.25} parent=0 // pred_check
    _
  $region19: #{global_generator_forward.25} parent=0 // pred_check_branch
    %1505 = sbr.rel (0) target = $region21
  $region20: #{global_generator_forward.25} parent=0 // pred_region
    _
  $region21: #{global_generator_forward.25} parent=0 // pred_fallthru
    _
  // Predicated region
  $region22: #{global_generator_forward.25} parent=0 // pred_check
    _
  $region23: #{global_generator_forward.25} parent=0 // pred_check_branch
    %1507 = sbr.rel (0) target = $region25
  $region24: #{global_generator_forward.25} parent=0 // pred_region
    _
  $region25: #{global_generator_forward.25} parent=0 // pred_fallthru
    _
  // Predicated region
  $region26: #{global_generator_forward.25} parent=0 // pred_check
    _
  $region27: #{global_generator_forward.25} parent=0 // pred_check_branch
    %1509 = sbr.rel (0) target = $region29
  $region28: #{global_generator_forward.25} parent=0 // pred_region
    _
  $region29: #{global_generator_forward.25} parent=0 // pred_fallthru
    _

// kernel: global_generator_forward.27
$region0: #{global_generator_forward.27}
  #allocation0 [shape = 'u32[]', space=smem, size = 0x4, offset = 0x4, fixed_abs, tag = 'smem constant byte address 0x4 - core index']
  #allocation1 [shape = 'u32[144,128]{1,0:T(1,128)}', space=vmem, size = 0x12000, scoped, tag = 'internal scratch']
  %s0 = inlined_call_operand.vmem [shape: bf16[128,72], index: 0, kind: input, shape index: {}]
  %s1 = inlined_call_operand.vmem [shape: bf16[72,16], index: 1, kind: input, shape index: {}]
  %s2 = inlined_call_operand.vmem [shape: f32[1,16], index: 2, kind: input, shape index: {}]
  %s3 = inlined_call_operand.vmem [shape: f32[128,16], index: 3, kind: output, shape index: {0}]
  %s4 = inlined_call_operand.vmem [shape: f32[1,2,16], index: 4, kind: output, shape index: {1}]
  %5 = xla_tuple %s3, %s4
  %s6 = sld [smem:[#allocation0]]
  $region30: #{global_generator_forward.27} parent=0
    _
  %s8 = ssub.s32 1, %s6
  %s9 = scalar_select 0, %s8, %s6
  // Predicated region
  $region2: #{global_generator_forward.27} parent=0 // pred_check
    _
  $region3: #{global_generator_forward.27} parent=0 // pred_check_branch
    %11 = sbr.rel (0) target = $region5
  $region4: #{global_generator_forward.27} parent=0 // pred_region
    _
  $region5: #{global_generator_forward.27} parent=0 // pred_fallthru
    _
  // Predicated region
  $region6: #{global_generator_forward.27} parent=0 // pred_check
    _
  $region7: #{global_generator_forward.27} parent=0 // pred_check_branch
    %13 = sbr.rel (0) target = $region9
  $region8: #{global_generator_forward.27} parent=0 // pred_region
    _
  $region9: #{global_generator_forward.27} parent=0 // pred_fallthru
    _
  // Predicated region
  $region10: #{global_generator_forward.27} parent=0 // pred_check
    _
  $region11: #{global_generator_forward.27} parent=0 // pred_check_branch
    %15 = sbr.rel (0) target = $region13
  $region12: #{global_generator_forward.27} parent=0 // pred_region
    _
  $region13: #{global_generator_forward.27} parent=0 // pred_fallthru
    _
  %v17 = vld [vmem:[%s0] sm:$0xf]
  %v18 = vld [vmem:[%s0 + $0x4] sm:$0xf]
  %v19 = vld [vmem:[%s0 + $0x8] sm:$0xf]
  %v20 = vld [vmem:[%s0 + $0xc] sm:$0xf]
  %v21 = vld [vmem:[%s0 + $0x10] sm:$0xf]
  %v22 = vld [vmem:[%s0 + $0x14] sm:$0xf]
  %v23 = vld [vmem:[%s0 + $0x18] sm:$0xf]
  %v24 = vld [vmem:[%s0 + $0x1c] sm:$0xf]
  %v25 = vld [vmem:[%s0 + $0x20] sm:$0xf]
  %v26 = vld [vmem:[%s0 + $0x24] sm:$0xf]
  %v27 = vld [vmem:[%s0 + $0x28] sm:$0xf]
  %v28 = vld [vmem:[%s0 + $0x2c] sm:$0xf]
  %v29 = vld [vmem:[%s0 + $0x30] sm:$0xf]
  %v30 = vld [vmem:[%s0 + $0x34] sm:$0xf]
  %v31 = vld [vmem:[%s0 + $0x38] sm:$0xf]
  %v32 = vld [vmem:[%s0 + $0x3c] sm:$0xf]
  %v33 = vld [vmem:[%s1] sm:$0xf]
  %v34 = vld [vmem:[%s1 + $0x4] sm:$0xf]
  %v35 = vld [vmem:[%s1 + $0x8] sm:$0xf]
  %v36 = vld [vmem:[%s1 + $0xc] sm:$0xf]
  %v37 = vld [vmem:[%s1 + $0x10] sm:$0xf]
  %v38 = vld [vmem:[%s1 + $0x14] sm:$0xf]
  %v39 = vld [vmem:[%s1 + $0x18] sm:$0xf]
  %v40 = vld [vmem:[%s1 + $0x1c] sm:$0xf]
  %v41 = vld [vmem:[%s1 + $0x20] sm:$0xf]
  %v42 = vld [vmem:[%s2] sm:$0x1]
  %v44 = vlaneseq
  %v45 = vshrl.u32 %v44, 7
  %v46 = vsub.s32 0, %v45
  %v47 = vrot.slane %v42, %v46
  %v65 = vunpack.c.l.b16 %v17
  %v66 = vunpack.c.l.b16 %v18
  %v67 = vunpack.c.l.b16 %v19
  %v68 = vunpack.c.l.b16 %v20
  %v69 = vunpack.c.l.b16 %v21
  %v70 = vunpack.c.l.b16 %v22
  %v71 = vunpack.c.l.b16 %v23
  %v72 = vunpack.c.l.b16 %v24
  %v73 = vunpack.c.l.b16 %v25
  %v74 = vunpack.c.l.b16 %v26
  %v75 = vunpack.c.l.b16 %v27
  %v76 = vunpack.c.l.b16 %v28
  %v77 = vunpack.c.l.b16 %v29
  %v78 = vunpack.c.l.b16 %v30
  %v79 = vunpack.c.l.b16 %v31
  %v80 = vunpack.c.l.b16 %v32
  %v81 = vpack.c.b16 %v66, %v65
  %v82 = vpack.c.b16 %v68, %v67
  %v83 = vpack.c.b16 %v70, %v69
  %v84 = vpack.c.b16 %v72, %v71
  %v85 = vpack.c.b16 %v74, %v73
  %v86 = vpack.c.b16 %v76, %v75
  %v87 = vpack.c.b16 %v78, %v77
  %v88 = vpack.c.b16 %v80, %v79
  %v98 = vunpack.c.l.b16 %v33
  %v99 = vunpack.c.l.b16 %v34
  %v100 = vunpack.c.l.b16 %v35
  %v101 = vunpack.c.l.b16 %v36
  %v102 = vunpack.c.l.b16 %v37
  %v103 = vunpack.c.l.b16 %v38
  %v104 = vunpack.c.l.b16 %v39
  %v105 = vunpack.c.l.b16 %v40
  %v106 = vunpack.c.l.b16 %v41
  %v107 = vpack.c.b16 %v99, %v98
  %v108 = vpack.c.b16 %v101, %v100
  %v109 = vpack.c.b16 %v103, %v102
  %v110 = vpack.c.b16 %v105, %v104
  %v111 = vpack.c.b16 %v106, %v106
  %vm116 = vcmask 588800
  %v118 = vsel %vm116, %v81, 0
  %v121 = vsel %vm116, %v82, 0
  %v124 = vsel %vm116, %v83, 0
  %v127 = vsel %vm116, %v84, 0
  %v130 = vsel %vm116, %v85, 0
  %v133 = vsel %vm116, %v86, 0
  %v136 = vsel %vm116, %v87, 0
  %v139 = vsel %vm116, %v88, 0
  %vm141 = vcmask 1043456
  %v143 = vsel %vm141, %v111, 0
  %145 = vmatprep.subr.bf16.mxu0 0
  %146 = vmatpush1.bf16.msra.mxu0 0
  %147 = vmatprep.subr.bf16.mxu0 0
  %148 = vmatpush1.bf16.msra.mxu0 0
  %149 = vmatprep.subr.bf16.mxu0 0
  %150 = vmatpush1.bf16.msra.mxu0 0
  %151 = vmatprep.subr.bf16.mxu0 0
  %152 = vmatpush1.bf16.msra.mxu0 %v143
  %153 = vmatprep.subr.bf16.mxu0 0
  %154 = vmatpush1.bf16.msra.mxu0 %v110
  %155 = vmatprep.subr.bf16.mxu0 0
  %156 = vmatpush1.bf16.msra.mxu0 %v109
  %157 = vmatprep.subr.bf16.mxu0 0
  %158 = vmatpush1.bf16.msra.mxu0 %v108
  %159 = vmatprep.subr.bf16.mxu0 0
  %160 = vmatpush1.bf16.msra.mxu0 %v107
  %161 = vmatprep.subr.bf16.mxu0 0
  %162 = vmatpush2.bf16.msra.mxu0 0
  %163 = vmatprep.subr.bf16.mxu0 0
  %164 = vmatpush2.bf16.msra.mxu0 0
  %165 = vmatprep.subr.bf16.mxu0 0
  %166 = vmatpush2.bf16.msra.mxu0 0
  %167 = vmatprep.subr.bf16.mxu0 0
  %168 = vmatpush2.bf16.msra.mxu0 0
  %169 = vmatprep.subr.bf16.mxu0 0
  %170 = vmatpush2.bf16.msra.mxu0 0
  %171 = vmatprep.subr.bf16.mxu0 0
  %172 = vmatpush2.bf16.msra.mxu0 0
  %173 = vmatprep.subr.bf16.mxu0 0
  %174 = vmatpush2.bf16.msra.mxu0 0
  %175 = vmatprep.subr.bf16.mxu0 0
  %176 = vmatpush2.bf16.msra.mxu0 0
  %177 = vmatprep.mubr.bf16.mxu0 0
  %178 = vmatmul.mubr.bf16.gmra.mxu0 %v118
  %v179 = vpop.f32.mrf.mxu0
  %v180 = vadd.f32 %v47, %v179
  %v181 = vpop.f32.mrf.mxu0
  %v182 = vpop.f32.mrf.mxu0
  %v183 = vadd.f32 %v47, %v182
  %v184 = vpop.f32.mrf.mxu0
  %185 = vmatprep.mubr.bf16.mxu0 0
  %186 = vmatmul.mubr.bf16.gmra.mxu0 %v121
  %v187 = vpop.f32.mrf.mxu0
  %v188 = vadd.f32 %v47, %v187
  %v189 = vpop.f32.mrf.mxu0
  %v190 = vpop.f32.mrf.mxu0
  %v191 = vadd.f32 %v47, %v190
  %v192 = vpop.f32.mrf.mxu0
  %193 = vmatprep.mubr.bf16.mxu0 0
  %194 = vmatmul.mubr.bf16.gmra.mxu0 %v124
  %v195 = vpop.f32.mrf.mxu0
  %v196 = vadd.f32 %v47, %v195
  %v197 = vpop.f32.mrf.mxu0
  %v198 = vpop.f32.mrf.mxu0
  %v199 = vadd.f32 %v47, %v198
  %v200 = vpop.f32.mrf.mxu0
  %201 = vmatprep.mubr.bf16.mxu0 0
  %202 = vmatmul.mubr.bf16.gmra.mxu0 %v127
  %v203 = vpop.f32.mrf.mxu0
  %v204 = vadd.f32 %v47, %v203
  %v205 = vpop.f32.mrf.mxu0
  %v206 = vpop.f32.mrf.mxu0
  %v207 = vadd.f32 %v47, %v206
  %v208 = vpop.f32.mrf.mxu0
  %209 = vmatprep.mubr.bf16.mxu0 0
  %210 = vmatmul.mubr.bf16.gmra.mxu0 %v130
  %v211 = vpop.f32.mrf.mxu0
  %v212 = vadd.f32 %v47, %v211
  %v213 = vpop.f32.mrf.mxu0
  %v214 = vpop.f32.mrf.mxu0
  %v215 = vadd.f32 %v47, %v214
  %v216 = vpop.f32.mrf.mxu0
  %217 = vmatprep.mubr.bf16.mxu0 0
  %218 = vmatmul.mubr.bf16.gmra.mxu0 %v133
  %v219 = vpop.f32.mrf.mxu0
  %v220 = vadd.f32 %v47, %v219
  %v221 = vpop.f32.mrf.mxu0
  %v222 = vpop.f32.mrf.mxu0
  %v223 = vadd.f32 %v47, %v222
  %v224 = vpop.f32.mrf.mxu0
  %225 = vmatprep.mubr.bf16.mxu0 0
  %226 = vmatmul.mubr.bf16.gmra.mxu0 %v136
  %v227 = vpop.f32.mrf.mxu0
  %v228 = vadd.f32 %v47, %v227
  %v229 = vpop.f32.mrf.mxu0
  %v230 = vpop.f32.mrf.mxu0
  %v231 = vadd.f32 %v47, %v230
  %v232 = vpop.f32.mrf.mxu0
  %233 = vmatprep.mubr.bf16.mxu0 0
  %234 = vmatmul.mubr.bf16.gmra.mxu0 %v139
  %v235 = vpop.f32.mrf.mxu0
  %v236 = vadd.f32 %v47, %v235
  %v237 = vpop.f32.mrf.mxu0
  %v238 = vpop.f32.mrf.mxu0
  %v239 = vadd.f32 %v47, %v238
  %v240 = vpop.f32.mrf.mxu0
  %241 = vdwg.mxu0
  %v242 = vlaneseq
  %v243 = vshrl.u32 %v242, 7
  %v244 = vadd.s32 %v243, 8
  %v245 = vadd.s32 %v243, 16
  %v246 = vadd.s32 %v243, 24
  %v247 = vadd.s32 %v243, 32
  %v248 = vadd.s32 %v243, 40
  %v249 = vadd.s32 %v243, 48
  %v250 = vadd.s32 %v243, 56
  %v251 = vadd.s32 %v243, 64
  %v252 = vadd.s32 %v243, 72
  %v253 = vadd.s32 %v243, 80
  %v254 = vadd.s32 %v243, 88
  %v255 = vadd.s32 %v243, 96
  %v256 = vadd.s32 %v243, 104
  %v257 = vadd.s32 %v243, 112
  %v258 = vadd.s32 %v243, 120
  %s259 = smul.u32 0, 128
  %v260 = vstv %s259
  %v261 = vadd.s32 %v243, %v260
  %v262 = vadd.s32 %v244, %v260
  %v263 = vadd.s32 %v245, %v260
  %v264 = vadd.s32 %v246, %v260
  %v265 = vadd.s32 %v247, %v260
  %v266 = vadd.s32 %v248, %v260
  %v267 = vadd.s32 %v249, %v260
  %v268 = vadd.s32 %v250, %v260
  %v269 = vadd.s32 %v251, %v260
  %v270 = vadd.s32 %v252, %v260
  %v271 = vadd.s32 %v253, %v260
  %v272 = vadd.s32 %v254, %v260
  %v273 = vadd.s32 %v255, %v260
  %v274 = vadd.s32 %v256, %v260
  %v275 = vadd.s32 %v257, %v260
  %v276 = vadd.s32 %v258, %v260
  %vm277 = vcmp.lt.s32.totalorder %v261, 128
  %vm278 = vcmp.lt.s32.totalorder %v262, 128
  %vm279 = vcmp.lt.s32.totalorder %v263, 128
  %vm280 = vcmp.lt.s32.totalorder %v264, 128
  %vm281 = vcmp.lt.s32.totalorder %v265, 128
  %vm282 = vcmp.lt.s32.totalorder %v266, 128
  %vm283 = vcmp.lt.s32.totalorder %v267, 128
  %vm284 = vcmp.lt.s32.totalorder %v268, 128
  %vm285 = vcmp.lt.s32.totalorder %v269, 128
  %vm286 = vcmp.lt.s32.totalorder %v270, 128
  %vm287 = vcmp.lt.s32.totalorder %v271, 128
  %vm288 = vcmp.lt.s32.totalorder %v272, 128
  %vm289 = vcmp.lt.s32.totalorder %v273, 128
  %vm290 = vcmp.lt.s32.totalorder %v274, 128
  %vm291 = vcmp.lt.s32.totalorder %v275, 128
  %vm292 = vcmp.lt.s32.totalorder %v276, 128
  %v293 = vsel %vm277, %v180, 0.0
  %v294 = vsel %vm278, %v183, 0.0
  %v295 = vsel %vm279, %v188, 0.0
  %v296 = vsel %vm280, %v191, 0.0
  %v297 = vsel %vm281, %v196, 0.0
  %v298 = vsel %vm282, %v199, 0.0
  %v299 = vsel %vm283, %v204, 0.0
  %v300 = vsel %vm284, %v207, 0.0
  %v301 = vsel %vm285, %v212, 0.0
  %v302 = vsel %vm286, %v215, 0.0
  %v303 = vsel %vm287, %v220, 0.0
  %v304 = vsel %vm288, %v223, 0.0
  %v305 = vsel %vm289, %v228, 0.0
  %v306 = vsel %vm290, %v231, 0.0
  %v307 = vsel %vm291, %v236, 0.0
  %v308 = vsel %vm292, %v239, 0.0
  %vm309 = vcmask 130048
  %v310 = vsel %vm309, %v293, 0.0
  %v311 = vsel %vm309, %v294, 0.0
  %v312 = vadd.f32 %v310, %v311
  %v313 = vsel %vm309, %v295, 0.0
  %v314 = vadd.f32 %v312, %v313
  %v315 = vsel %vm309, %v296, 0.0
  %v316 = vadd.f32 %v314, %v315
  %v317 = vsel %vm309, %v297, 0.0
  %v318 = vadd.f32 %v316, %v317
  %v319 = vsel %vm309, %v298, 0.0
  %v320 = vadd.f32 %v318, %v319
  %v321 = vsel %vm309, %v299, 0.0
  %v322 = vadd.f32 %v320, %v321
  %v323 = vsel %vm309, %v300, 0.0
  %v324 = vadd.f32 %v322, %v323
  %v325 = vsel %vm309, %v301, 0.0
  %v326 = vadd.f32 %v324, %v325
  %v327 = vsel %vm309, %v302, 0.0
  %v328 = vadd.f32 %v326, %v327
  %v329 = vsel %vm309, %v303, 0.0
  %v330 = vadd.f32 %v328, %v329
  %v331 = vsel %vm309, %v304, 0.0
  %v332 = vadd.f32 %v330, %v331
  %v333 = vsel %vm309, %v305, 0.0
  %v334 = vadd.f32 %v332, %v333
  %v335 = vsel %vm309, %v306, 0.0
  %v336 = vadd.f32 %v334, %v335
  %v337 = vsel %vm309, %v307, 0.0
  %v338 = vadd.f32 %v336, %v337
  %v339 = vsel %vm309, %v308, 0.0
  %v340 = vadd.f32 %v338, %v339
  %v341 = vrot.slane %v340, 4
  %v342 = vadd.f32 %v340, %v341
  %v343 = vrot.slane %v342, 2
  %v344 = vadd.f32 %v342, %v343
  %v345 = vrot.slane %v344, 1
  %v346 = vadd.f32 %v344, %v345
  %v347 = vmul.f32 %v293, %v293
  %v348 = vmul.f32 %v294, %v294
  %v349 = vmul.f32 %v295, %v295
  %v350 = vmul.f32 %v296, %v296
  %v351 = vmul.f32 %v297, %v297
  %v352 = vmul.f32 %v298, %v298
  %v353 = vmul.f32 %v299, %v299
  %v354 = vmul.f32 %v300, %v300
  %v355 = vmul.f32 %v301, %v301
  %v356 = vmul.f32 %v302, %v302
  %v357 = vmul.f32 %v303, %v303
  %v358 = vmul.f32 %v304, %v304
  %v359 = vmul.f32 %v305, %v305
  %v360 = vmul.f32 %v306, %v306
  %v361 = vmul.f32 %v307, %v307
  %v362 = vmul.f32 %v308, %v308
  %v363 = vsel %vm309, %v347, 0.0
  %v364 = vsel %vm309, %v348, 0.0
  %v365 = vadd.f32 %v363, %v364
  %v366 = vsel %vm309, %v349, 0.0
  %v367 = vadd.f32 %v365, %v366
  %v368 = vsel %vm309, %v350, 0.0
  %v369 = vadd.f32 %v367, %v368
  %v370 = vsel %vm309, %v351, 0.0
  %v371 = vadd.f32 %v369, %v370
  %v372 = vsel %vm309, %v352, 0.0
  %v373 = vadd.f32 %v371, %v372
  %v374 = vsel %vm309, %v353, 0.0
  %v375 = vadd.f32 %v373, %v374
  %v376 = vsel %vm309, %v354, 0.0
  %v377 = vadd.f32 %v375, %v376
  %v378 = vsel %vm309, %v355, 0.0
  %v379 = vadd.f32 %v377, %v378
  %v380 = vsel %vm309, %v356, 0.0
  %v381 = vadd.f32 %v379, %v380
  %v382 = vsel %vm309, %v357, 0.0
  %v383 = vadd.f32 %v381, %v382
  %v384 = vsel %vm309, %v358, 0.0
  %v385 = vadd.f32 %v383, %v384
  %v386 = vsel %vm309, %v359, 0.0
  %v387 = vadd.f32 %v385, %v386
  %v388 = vsel %vm309, %v360, 0.0
  %v389 = vadd.f32 %v387, %v388
  %v390 = vsel %vm309, %v361, 0.0
  %v391 = vadd.f32 %v389, %v390
  %v392 = vsel %vm309, %v362, 0.0
  %v393 = vadd.f32 %v391, %v392
  %v394 = vrot.slane %v393, 4
  %v395 = vadd.f32 %v393, %v394
  %v396 = vrot.slane %v395, 2
  %v397 = vadd.f32 %v395, %v396
  %v398 = vrot.slane %v397, 1
  %v399 = vadd.f32 %v397, %v398
  %vm400 = vcmask 1040384
  %v401 = vsel %vm400, %v346, %v399
  %vm402 = vcmask 123904
  %403 = vst.msk [vmem:[%s4] sm:$0x3] %vm402, %v401
  %404 = vst.msk [vmem:[%s3] sm:$0xff] %vm309, %v180
  %405 = vst.msk [vmem:[%s3 + $0x8] sm:$0xff] %vm309, %v183
  %406 = vst.msk [vmem:[%s3 + $0x10] sm:$0xff] %vm309, %v188
  %407 = vst.msk [vmem:[%s3 + $0x18] sm:$0xff] %vm309, %v191
  %408 = vst.msk [vmem:[%s3 + $0x20] sm:$0xff] %vm309, %v196
  %409 = vst.msk [vmem:[%s3 + $0x28] sm:$0xff] %vm309, %v199
  %410 = vst.msk [vmem:[%s3 + $0x30] sm:$0xff] %vm309, %v204
  %411 = vst.msk [vmem:[%s3 + $0x38] sm:$0xff] %vm309, %v207
  %412 = vst.msk [vmem:[%s3 + $0x40] sm:$0xff] %vm309, %v212
  %413 = vst.msk [vmem:[%s3 + $0x48] sm:$0xff] %vm309, %v215
  %414 = vst.msk [vmem:[%s3 + $0x50] sm:$0xff] %vm309, %v220
  %415 = vst.msk [vmem:[%s3 + $0x58] sm:$0xff] %vm309, %v223
  %416 = vst.msk [vmem:[%s3 + $0x60] sm:$0xff] %vm309, %v228
  %417 = vst.msk [vmem:[%s3 + $0x68] sm:$0xff] %vm309, %v231
  %418 = vst.msk [vmem:[%s3 + $0x70] sm:$0xff] %vm309, %v236
  %419 = vst.msk [vmem:[%s3 + $0x78] sm:$0xff] %vm309, %v239
  // Predicated region
  $region14: #{global_generator_forward.27} parent=0 // pred_check
    _
  $region15: #{global_generator_forward.27} parent=0 // pred_check_branch
    %421 = sbr.rel (0) target = $region17
  $region16: #{global_generator_forward.27} parent=0 // pred_region
    _
  $region17: #{global_generator_forward.27} parent=0 // pred_fallthru
    _
  // Predicated region
  $region18: #{global_generator_forward.27} parent=0 // pred_check
    _
  $region19: #{global_generator_forward.27} parent=0 // pred_check_branch
    %423 = sbr.rel (0) target = $region21
  $region20: #{global_generator_forward.27} parent=0 // pred_region
    _
  $region21: #{global_generator_forward.27} parent=0 // pred_fallthru
    _
  // Predicated region
  $region22: #{global_generator_forward.27} parent=0 // pred_check
    _
  $region23: #{global_generator_forward.27} parent=0 // pred_check_branch
    %425 = sbr.rel (0) target = $region25
  $region24: #{global_generator_forward.27} parent=0 // pred_region
    _
  $region25: #{global_generator_forward.27} parent=0 // pred_fallthru
    _
  // Predicated region
  $region26: #{global_generator_forward.27} parent=0 // pred_check
    _
  $region27: #{global_generator_forward.27} parent=0 // pred_check_branch
    %427 = sbr.rel (0) target = $region29
  $region28: #{global_generator_forward.27} parent=0 // pred_region
    _
  $region29: #{global_generator_forward.27} parent=0 // pred_fallthru
    _

// kernel: global_generator_forward.28
$region0: #{global_generator_forward.28}
  #allocation0 [shape = 'u32[]', space=smem, size = 0x4, offset = 0x4, fixed_abs, tag = 'smem constant byte address 0x4 - core index']
  #allocation1 [shape = 'u32[144,128]{1,0:T(1,128)}', space=vmem, size = 0x12000, scoped, tag = 'internal scratch']
  %s0 = inlined_call_operand.vmem [shape: f32[128,16], index: 0, kind: input, shape index: {}]
  %s1 = inlined_call_operand.vmem [shape: f32[1,16], index: 1, kind: input, shape index: {}]
  %s2 = inlined_call_operand.vmem [shape: f32[1,16], index: 2, kind: input, shape index: {}]
  %s3 = inlined_call_operand.vmem [shape: f32[128,16], index: 3, kind: output, shape index: {}]
  %s4 = sld [smem:[#allocation0]]
  $region22: #{global_generator_forward.28} parent=0
    _
  %s6 = ssub.s32 1, %s4
  %s7 = scalar_select 0, %s6, %s4
  // Predicated region
  $region2: #{global_generator_forward.28} parent=0 // pred_check
    _
  $region3: #{global_generator_forward.28} parent=0 // pred_check_branch
    %9 = sbr.rel (0) target = $region5
  $region4: #{global_generator_forward.28} parent=0 // pred_region
    _
  $region5: #{global_generator_forward.28} parent=0 // pred_fallthru
    _
  // Predicated region
  $region6: #{global_generator_forward.28} parent=0 // pred_check
    _
  $region7: #{global_generator_forward.28} parent=0 // pred_check_branch
    %11 = sbr.rel (0) target = $region9
  $region8: #{global_generator_forward.28} parent=0 // pred_region
    _
  $region9: #{global_generator_forward.28} parent=0 // pred_fallthru
    _
  // Predicated region
  $region10: #{global_generator_forward.28} parent=0 // pred_check
    _
  $region11: #{global_generator_forward.28} parent=0 // pred_check_branch
    %13 = sbr.rel (0) target = $region13
  $region12: #{global_generator_forward.28} parent=0 // pred_region
    _
  $region13: #{global_generator_forward.28} parent=0 // pred_fallthru
    _
  %v14 = vld [vmem:[%s0] sm:$0xff]
  %v15 = vld [vmem:[%s0 + $0x8] sm:$0xff]
  %v16 = vld [vmem:[%s0 + $0x10] sm:$0xff]
  %v17 = vld [vmem:[%s0 + $0x18] sm:$0xff]
  %v18 = vld [vmem:[%s0 + $0x20] sm:$0xff]
  %v19 = vld [vmem:[%s0 + $0x28] sm:$0xff]
  %v20 = vld [vmem:[%s0 + $0x30] sm:$0xff]
  %v21 = vld [vmem:[%s0 + $0x38] sm:$0xff]
  %v22 = vld [vmem:[%s0 + $0x40] sm:$0xff]
  %v23 = vld [vmem:[%s0 + $0x48] sm:$0xff]
  %v24 = vld [vmem:[%s0 + $0x50] sm:$0xff]
  %v25 = vld [vmem:[%s0 + $0x58] sm:$0xff]
  %v26 = vld [vmem:[%s0 + $0x60] sm:$0xff]
  %v27 = vld [vmem:[%s0 + $0x68] sm:$0xff]
  %v28 = vld [vmem:[%s0 + $0x70] sm:$0xff]
  %v29 = vld [vmem:[%s0 + $0x78] sm:$0xff]
  %v30 = vld [vmem:[%s1] sm:$0x1]
  %v32 = vlaneseq
  %v33 = vshrl.u32 %v32, 7
  %v34 = vsub.s32 0, %v33
  %v35 = vrot.slane %v30, %v34
  %v37 = vmul.f32 %v14, %v35
  %v38 = vmul.f32 %v15, %v35
  %v39 = vmul.f32 %v16, %v35
  %v40 = vmul.f32 %v17, %v35
  %v41 = vmul.f32 %v18, %v35
  %v42 = vmul.f32 %v19, %v35
  %v43 = vmul.f32 %v20, %v35
  %v44 = vmul.f32 %v21, %v35
  %v45 = vmul.f32 %v22, %v35
  %v46 = vmul.f32 %v23, %v35
  %v47 = vmul.f32 %v24, %v35
  %v48 = vmul.f32 %v25, %v35
  %v49 = vmul.f32 %v26, %v35
  %v50 = vmul.f32 %v27, %v35
  %v51 = vmul.f32 %v28, %v35
  %v52 = vmul.f32 %v29, %v35
  %v53 = vld [vmem:[%s2] sm:$0x1]
  %v55 = vlaneseq
  %v56 = vshrl.u32 %v55, 7
  %v57 = vsub.s32 0, %v56
  %v58 = vrot.slane %v53, %v57
  %v60 = vadd.f32 %v37, %v58
  %v61 = vadd.f32 %v38, %v58
  %v62 = vadd.f32 %v39, %v58
  %v63 = vadd.f32 %v40, %v58
  %v64 = vadd.f32 %v41, %v58
  %v65 = vadd.f32 %v42, %v58
  %v66 = vadd.f32 %v43, %v58
  %v67 = vadd.f32 %v44, %v58
  %v68 = vadd.f32 %v45, %v58
  %v69 = vadd.f32 %v46, %v58
  %v70 = vadd.f32 %v47, %v58
  %v71 = vadd.f32 %v48, %v58
  %v72 = vadd.f32 %v49, %v58
  %v73 = vadd.f32 %v50, %v58
  %v74 = vadd.f32 %v51, %v58
  %v75 = vadd.f32 %v52, %v58
  %v76 = vmax.f32 %v60, 0.0
  %v77 = vmax.f32 %v61, 0.0
  %v78 = vmax.f32 %v62, 0.0
  %v79 = vmax.f32 %v63, 0.0
  %v80 = vmax.f32 %v64, 0.0
  %v81 = vmax.f32 %v65, 0.0
  %v82 = vmax.f32 %v66, 0.0
  %v83 = vmax.f32 %v67, 0.0
  %v84 = vmax.f32 %v68, 0.0
  %v85 = vmax.f32 %v69, 0.0
  %v86 = vmax.f32 %v70, 0.0
  %v87 = vmax.f32 %v71, 0.0
  %v88 = vmax.f32 %v72, 0.0
  %v89 = vmax.f32 %v73, 0.0
  %v90 = vmax.f32 %v74, 0.0
  %v91 = vmax.f32 %v75, 0.0
  %vm92 = vcmask 130048
  %93 = vst.msk [vmem:[%s3] sm:$0xff] %vm92, %v76
  %94 = vst.msk [vmem:[%s3 + $0x8] sm:$0xff] %vm92, %v77
  %95 = vst.msk [vmem:[%s3 + $0x10] sm:$0xff] %vm92, %v78
  %96 = vst.msk [vmem:[%s3 + $0x18] sm:$0xff] %vm92, %v79
  %97 = vst.msk [vmem:[%s3 + $0x20] sm:$0xff] %vm92, %v80
  %98 = vst.msk [vmem:[%s3 + $0x28] sm:$0xff] %vm92, %v81
  %99 = vst.msk [vmem:[%s3 + $0x30] sm:$0xff] %vm92, %v82
  %100 = vst.msk [vmem:[%s3 + $0x38] sm:$0xff] %vm92, %v83
  %101 = vst.msk [vmem:[%s3 + $0x40] sm:$0xff] %vm92, %v84
  %102 = vst.msk [vmem:[%s3 + $0x48] sm:$0xff] %vm92, %v85
  %103 = vst.msk [vmem:[%s3 + $0x50] sm:$0xff] %vm92, %v86
  %104 = vst.msk [vmem:[%s3 + $0x58] sm:$0xff] %vm92, %v87
  %105 = vst.msk [vmem:[%s3 + $0x60] sm:$0xff] %vm92, %v88
  %106 = vst.msk [vmem:[%s3 + $0x68] sm:$0xff] %vm92, %v89
  %107 = vst.msk [vmem:[%s3 + $0x70] sm:$0xff] %vm92, %v90
  %108 = vst.msk [vmem:[%s3 + $0x78] sm:$0xff] %vm92, %v91
  // Predicated region
  $region14: #{global_generator_forward.28} parent=0 // pred_check
    _
  $region15: #{global_generator_forward.28} parent=0 // pred_check_branch
    %110 = sbr.rel (0) target = $region17
  $region16: #{global_generator_forward.28} parent=0 // pred_region
    _
  $region17: #{global_generator_forward.28} parent=0 // pred_fallthru
    _
  // Predicated region
  $region18: #{global_generator_forward.28} parent=0 // pred_check
    _
  $region19: #{global_generator_forward.28} parent=0 // pred_check_branch
    %112 = sbr.rel (0) target = $region21
  $region20: #{global_generator_forward.28} parent=0 // pred_region
    _
  $region21: #{global_generator_forward.28} parent=0 // pred_fallthru
    _

// kernel: global_generator_forward.30
$region0: #{global_generator_forward.30}
  #allocation0 [shape = 'u32[]', space=smem, size = 0x4, offset = 0x4, fixed_abs, tag = 'smem constant byte address 0x4 - core index']
  #allocation1 [shape = 'u32[144,128]{1,0:T(1,128)}', space=vmem, size = 0x12000, scoped, tag = 'internal scratch']
  %s0 = inlined_call_operand.vmem [shape: f32[32,32], index: 0, kind: input, shape index: {}]
  %s1 = inlined_call_operand.vmem [shape: f32[1,32], index: 1, kind: input, shape index: {}]
  %s2 = inlined_call_operand.vmem [shape: f32[1,32], index: 2, kind: input, shape index: {}]
  %s3 = inlined_call_operand.vmem [shape: f32[32,32], index: 3, kind: output, shape index: {}]
  %s4 = sld [smem:[#allocation0]]
  $region22: #{global_generator_forward.30} parent=0
    _
  %s6 = ssub.s32 1, %s4
  %s7 = scalar_select 0, %s6, %s4
  // Predicated region
  $region2: #{global_generator_forward.30} parent=0 // pred_check
    _
  $region3: #{global_generator_forward.30} parent=0 // pred_check_branch
    %9 = sbr.rel (0) target = $region5
  $region4: #{global_generator_forward.30} parent=0 // pred_region
    _
  $region5: #{global_generator_forward.30} parent=0 // pred_fallthru
    _
  // Predicated region
  $region6: #{global_generator_forward.30} parent=0 // pred_check
    _
  $region7: #{global_generator_forward.30} parent=0 // pred_check_branch
    %11 = sbr.rel (0) target = $region9
  $region8: #{global_generator_forward.30} parent=0 // pred_region
    _
  $region9: #{global_generator_forward.30} parent=0 // pred_fallthru
    _
  // Predicated region
  $region10: #{global_generator_forward.30} parent=0 // pred_check
    _
  $region11: #{global_generator_forward.30} parent=0 // pred_check_branch
    %13 = sbr.rel (0) target = $region13
  $region12: #{global_generator_forward.30} parent=0 // pred_region
    _
  $region13: #{global_generator_forward.30} parent=0 // pred_fallthru
    _
  %v14 = vld [vmem:[%s0] sm:$0xff]
  %v15 = vld [vmem:[%s0 + $0x8] sm:$0xff]
  %v16 = vld [vmem:[%s0 + $0x10] sm:$0xff]
  %v17 = vld [vmem:[%s0 + $0x18] sm:$0xff]
  %v18 = vld [vmem:[%s1] sm:$0x1]
  %v20 = vlaneseq
  %v21 = vshrl.u32 %v20, 7
  %v22 = vsub.s32 0, %v21
  %v23 = vrot.slane %v18, %v22
  %v25 = vmul.f32 %v14, %v23
  %v26 = vmul.f32 %v15, %v23
  %v27 = vmul.f32 %v16, %v23
  %v28 = vmul.f32 %v17, %v23
  %v29 = vld [vmem:[%s2] sm:$0x1]
  %v31 = vlaneseq
  %v32 = vshrl.u32 %v31, 7
  %v33 = vsub.s32 0, %v32
  %v34 = vrot.slane %v29, %v33
  %v36 = vadd.f32 %v25, %v34
  %v37 = vadd.f32 %v26, %v34
  %v38 = vadd.f32 %v27, %v34
  %v39 = vadd.f32 %v28, %v34
  %v40 = vmax.f32 %v36, 0.0
  %v41 = vmax.f32 %v37, 0.0
  %v42 = vmax.f32 %v38, 0.0
  %v43 = vmax.f32 %v39, 0.0
  %vm44 = vcmask 261120
  %45 = vst.msk [vmem:[%s3] sm:$0xff] %vm44, %v40
  %46 = vst.msk [vmem:[%s3 + $0x8] sm:$0xff] %vm44, %v41
  %47 = vst.msk [vmem:[%s3 + $0x10] sm:$0xff] %vm44, %v42
  %48 = vst.msk [vmem:[%s3 + $0x18] sm:$0xff] %vm44, %v43
  // Predicated region
  $region14: #{global_generator_forward.30} parent=0 // pred_check
    _
  $region15: #{global_generator_forward.30} parent=0 // pred_check_branch
    %50 = sbr.rel (0) target = $region17
  $region16: #{global_generator_forward.30} parent=0 // pred_region
    _
  $region17: #{global_generator_forward.30} parent=0 // pred_fallthru
    _
  // Predicated region
  $region18: #{global_generator_forward.30} parent=0 // pred_check
    _
  $region19: #{global_generator_forward.30} parent=0 // pred_check_branch
    %52 = sbr.rel (0) target = $region21
  $region20: #{global_generator_forward.30} parent=0 // pred_region
    _
  $region21: #{global_generator_forward.30} parent=0 // pred_fallthru
    _

// kernel: global_generator_forward.29
$region0: #{global_generator_forward.29}
  #allocation0 [shape = 'u32[]', space=smem, size = 0x4, offset = 0x4, fixed_abs, tag = 'smem constant byte address 0x4 - core index']
  #allocation1 [shape = 'u32[144,128]{1,0:T(1,128)}', space=vmem, size = 0x12000, scoped, tag = 'internal scratch']
  %s0 = inlined_call_operand.vmem [shape: bf16[32,144], index: 0, kind: input, shape index: {}]
  %s1 = inlined_call_operand.vmem [shape: bf16[144,32], index: 1, kind: input, shape index: {}]
  %s2 = inlined_call_operand.vmem [shape: f32[1,32], index: 2, kind: input, shape index: {}]
  %s3 = inlined_call_operand.vmem [shape: f32[32,32], index: 3, kind: output, shape index: {0}]
  %s4 = inlined_call_operand.vmem [shape: f32[1,2,32], index: 4, kind: output, shape index: {1}]
  %5 = xla_tuple %s3, %s4
  %s6 = sld [smem:[#allocation0]]
  $region30: #{global_generator_forward.29} parent=0
    _
  %s8 = ssub.s32 1, %s6
  %s9 = scalar_select 0, %s8, %s6
  // Predicated region
  $region2: #{global_generator_forward.29} parent=0 // pred_check
    _
  $region3: #{global_generator_forward.29} parent=0 // pred_check_branch
    %11 = sbr.rel (0) target = $region5
  $region4: #{global_generator_forward.29} parent=0 // pred_region
    _
  $region5: #{global_generator_forward.29} parent=0 // pred_fallthru
    _
  // Predicated region
  $region6: #{global_generator_forward.29} parent=0 // pred_check
    _
  $region7: #{global_generator_forward.29} parent=0 // pred_check_branch
    %13 = sbr.rel (0) target = $region9
  $region8: #{global_generator_forward.29} parent=0 // pred_region
    _
  $region9: #{global_generator_forward.29} parent=0 // pred_fallthru
    _
  // Predicated region
  $region10: #{global_generator_forward.29} parent=0 // pred_check
    _
  $region11: #{global_generator_forward.29} parent=0 // pred_check_branch
    %15 = sbr.rel (0) target = $region13
  $region12: #{global_generator_forward.29} parent=0 // pred_region
    _
  $region13: #{global_generator_forward.29} parent=0 // pred_fallthru
    _
  %v17 = vld [vmem:[%s0] sm:$0xff]
  %v18 = vld [vmem:[%s0 + $0x8] sm:$0xff]
  %v19 = vld [vmem:[%s0 + $0x10] sm:$0xff]
  %v20 = vld [vmem:[%s0 + $0x18] sm:$0xff]
  %v21 = vld [vmem:[%s1] sm:$0xf]
  %v22 = vld [vmem:[%s1 + $0x4] sm:$0xf]
  %v23 = vld [vmem:[%s1 + $0x8] sm:$0xf]
  %v24 = vld [vmem:[%s1 + $0xc] sm:$0xf]
  %v25 = vld [vmem:[%s1 + $0x10] sm:$0xf]
  %v26 = vld [vmem:[%s1 + $0x14] sm:$0xf]
  %v27 = vld [vmem:[%s1 + $0x18] sm:$0xf]
  %v28 = vld [vmem:[%s1 + $0x1c] sm:$0xf]
  %v29 = vld [vmem:[%s1 + $0x20] sm:$0xf]
  %v30 = vld [vmem:[%s1 + $0x24] sm:$0xf]
  %v31 = vld [vmem:[%s1 + $0x28] sm:$0xf]
  %v32 = vld [vmem:[%s1 + $0x2c] sm:$0xf]
  %v33 = vld [vmem:[%s1 + $0x30] sm:$0xf]
  %v34 = vld [vmem:[%s1 + $0x34] sm:$0xf]
  %v35 = vld [vmem:[%s1 + $0x38] sm:$0xf]
  %v36 = vld [vmem:[%s1 + $0x3c] sm:$0xf]
  %v37 = vld [vmem:[%s1 + $0x40] sm:$0xf]
  %v38 = vld [vmem:[%s1 + $0x44] sm:$0xf]
  %v39 = vld [vmem:[%s2] sm:$0x1]
  %v41 = vlaneseq
  %v42 = vshrl.u32 %v41, 7
  %v43 = vsub.s32 0, %v42
  %v44 = vrot.slane %v39, %v43
  %v50 = vunpack.c.l.b16 %v17
  %v51 = vunpack.c.h.b16 %v17
  %v52 = vunpack.c.l.b16 %v18
  %v53 = vunpack.c.h.b16 %v18
  %v54 = vunpack.c.l.b16 %v19
  %v55 = vunpack.c.h.b16 %v19
  %v56 = vunpack.c.l.b16 %v20
  %v57 = vunpack.c.h.b16 %v20
  %v58 = vpack.c.b16 %v52, %v50
  %v59 = vpack.c.b16 %v53, %v51
  %v60 = vpack.c.b16 %v56, %v54
  %v61 = vpack.c.b16 %v57, %v55
  %v82 = vunpack.c.l.b16 %v21
  %v83 = vunpack.c.l.b16 %v22
  %v84 = vunpack.c.l.b16 %v23
  %v85 = vunpack.c.l.b16 %v24
  %v86 = vunpack.c.l.b16 %v25
  %v87 = vunpack.c.l.b16 %v26
  %v88 = vunpack.c.l.b16 %v27
  %v89 = vunpack.c.l.b16 %v28
  %v90 = vunpack.c.l.b16 %v29
  %v91 = vunpack.c.l.b16 %v30
  %v92 = vunpack.c.l.b16 %v31
  %v93 = vunpack.c.l.b16 %v32
  %v94 = vunpack.c.l.b16 %v33
  %v95 = vunpack.c.l.b16 %v34
  %v96 = vunpack.c.l.b16 %v35
  %v97 = vunpack.c.l.b16 %v36
  %v98 = vunpack.c.l.b16 %v37
  %v99 = vunpack.c.l.b16 %v38
  %v100 = vpack.c.b16 %v83, %v82
  %v101 = vpack.c.b16 %v85, %v84
  %v102 = vpack.c.b16 %v87, %v86
  %v103 = vpack.c.b16 %v89, %v88
  %v104 = vpack.c.b16 %v91, %v90
  %v105 = vpack.c.b16 %v93, %v92
  %v106 = vpack.c.b16 %v95, %v94
  %v107 = vpack.c.b16 %v97, %v96
  %v108 = vpack.c.b16 %v99, %v98
  %vm118 = vcmask 130048
  %v120 = vsel %vm118, %v59, 0
  %v123 = vsel %vm118, %v61, 0
  %125 = vmatprep.subr.bf16.mxu0 0
  %126 = vmatpush1.bf16.msra.mxu0 %v107
  %127 = vmatprep.subr.bf16.mxu0 0
  %128 = vmatpush1.bf16.msra.mxu0 %v106
  %129 = vmatprep.subr.bf16.mxu0 0
  %130 = vmatpush1.bf16.msra.mxu0 %v105
  %131 = vmatprep.subr.bf16.mxu0 0
  %132 = vmatpush1.bf16.msra.mxu0 %v104
  %133 = vmatprep.subr.bf16.mxu0 0
  %134 = vmatpush1.bf16.msra.mxu0 %v103
  %135 = vmatprep.subr.bf16.mxu0 0
  %136 = vmatpush1.bf16.msra.mxu0 %v102
  %137 = vmatprep.subr.bf16.mxu0 0
  %138 = vmatpush1.bf16.msra.mxu0 %v101
  %139 = vmatprep.subr.bf16.mxu0 0
  %140 = vmatpush1.bf16.msra.mxu0 %v100
  %141 = vmatprep.subr.bf16.mxu0 0
  %142 = vmatpush2.bf16.msra.mxu0 0
  %143 = vmatprep.subr.bf16.mxu0 0
  %144 = vmatpush2.bf16.msra.mxu0 0
  %145 = vmatprep.subr.bf16.mxu0 0
  %146 = vmatpush2.bf16.msra.mxu0 0
  %147 = vmatprep.subr.bf16.mxu0 0
  %148 = vmatpush2.bf16.msra.mxu0 0
  %149 = vmatprep.subr.bf16.mxu0 0
  %150 = vmatpush2.bf16.msra.mxu0 0
  %151 = vmatprep.subr.bf16.mxu0 0
  %152 = vmatpush2.bf16.msra.mxu0 0
  %153 = vmatprep.subr.bf16.mxu0 0
  %154 = vmatpush2.bf16.msra.mxu0 0
  %155 = vmatprep.subr.bf16.mxu0 0
  %156 = vmatpush2.bf16.msra.mxu0 %v108
  %157 = vmatprep.mubr.bf16.mxu0 %v120
  %158 = vmatmul.mubr.bf16.gmra.mxu0 %v58
  %v159 = vpop.f32.mrf.mxu0
  %v160 = vadd.f32 %v44, %v159
  %v161 = vpop.f32.mrf.mxu0
  %v162 = vpop.f32.mrf.mxu0
  %v163 = vadd.f32 %v44, %v162
  %v164 = vpop.f32.mrf.mxu0
  %165 = vmatprep.mubr.bf16.mxu0 %v123
  %166 = vmatmul.mubr.bf16.gmra.mxu0 %v60
  %v167 = vpop.f32.mrf.mxu0
  %v168 = vadd.f32 %v44, %v167
  %v169 = vpop.f32.mrf.mxu0
  %v170 = vpop.f32.mrf.mxu0
  %v171 = vadd.f32 %v44, %v170
  %v172 = vpop.f32.mrf.mxu0
  %173 = vdwg.mxu0
  %v174 = vlaneseq
  %v175 = vshrl.u32 %v174, 7
  %v176 = vadd.s32 %v175, 8
  %v177 = vadd.s32 %v175, 16
  %v178 = vadd.s32 %v175, 24
  %s179 = smul.u32 0, 32
  %v180 = vstv %s179
  %v181 = vadd.s32 %v175, %v180
  %v182 = vadd.s32 %v176, %v180
  %v183 = vadd.s32 %v177, %v180
  %v184 = vadd.s32 %v178, %v180
  %vm185 = vcmp.lt.s32.totalorder %v181, 32
  %vm186 = vcmp.lt.s32.totalorder %v182, 32
  %vm187 = vcmp.lt.s32.totalorder %v183, 32
  %vm188 = vcmp.lt.s32.totalorder %v184, 32
  %v189 = vsel %vm185, %v160, 0.0
  %v190 = vsel %vm186, %v163, 0.0
  %v191 = vsel %vm187, %v168, 0.0
  %v192 = vsel %vm188, %v171, 0.0
  %vm193 = vcmask 261120
  %v194 = vsel %vm193, %v189, 0.0
  %v195 = vsel %vm193, %v190, 0.0
  %v196 = vadd.f32 %v194, %v195
  %v197 = vsel %vm193, %v191, 0.0
  %v198 = vadd.f32 %v196, %v197
  %v199 = vsel %vm193, %v192, 0.0
  %v200 = vadd.f32 %v198, %v199
  %v201 = vrot.slane %v200, 4
  %v202 = vadd.f32 %v200, %v201
  %v203 = vrot.slane %v202, 2
  %v204 = vadd.f32 %v202, %v203
  %v205 = vrot.slane %v204, 1
  %v206 = vadd.f32 %v204, %v205
  %v207 = vmul.f32 %v189, %v189
  %v208 = vmul.f32 %v190, %v190
  %v209 = vmul.f32 %v191, %v191
  %v210 = vmul.f32 %v192, %v192
  %v211 = vsel %vm193, %v207, 0.0
  %v212 = vsel %vm193, %v208, 0.0
  %v213 = vadd.f32 %v211, %v212
  %v214 = vsel %vm193, %v209, 0.0
  %v215 = vadd.f32 %v213, %v214
  %v216 = vsel %vm193, %v210, 0.0
  %v217 = vadd.f32 %v215, %v216
  %v218 = vrot.slane %v217, 4
  %v219 = vadd.f32 %v217, %v218
  %v220 = vrot.slane %v219, 2
  %v221 = vadd.f32 %v219, %v220
  %v222 = vrot.slane %v221, 1
  %v223 = vadd.f32 %v221, %v222
  %vm224 = vcmask 1040384
  %v225 = vsel %vm224, %v206, %v223
  %vm226 = vcmask 254976
  %227 = vst.msk [vmem:[%s4] sm:$0x3] %vm226, %v225
  %228 = vst.msk [vmem:[%s3] sm:$0xff] %vm193, %v160
  %229 = vst.msk [vmem:[%s3 + $0x8] sm:$0xff] %vm193, %v163
  %230 = vst.msk [vmem:[%s3 + $0x10] sm:$0xff] %vm193, %v168
  %231 = vst.msk [vmem:[%s3 + $0x18] sm:$0xff] %vm193, %v171
  // Predicated region
  $region14: #{global_generator_forward.29} parent=0 // pred_check
    _
  $region15: #{global_generator_forward.29} parent=0 // pred_check_branch
    %233 = sbr.rel (0) target = $region17
  $region16: #{global_generator_forward.29} parent=0 // pred_region
    _
  $region17: #{global_generator_forward.29} parent=0 // pred_fallthru
    _
  // Predicated region
  $region18: #{global_generator_forward.29} parent=0 // pred_check
    _
  $region19: #{global_generator_forward.29} parent=0 // pred_check_branch
    %235 = sbr.rel (0) target = $region21
  $region20: #{global_generator_forward.29} parent=0 // pred_region
    _
  $region21: #{global_generator_forward.29} parent=0 // pred_fallthru
    _
  // Predicated region
  $region22: #{global_generator_forward.29} parent=0 // pred_check
    _
  $region23: #{global_generator_forward.29} parent=0 // pred_check_branch
    %237 = sbr.rel (0) target = $region25
  $region24: #{global_generator_forward.29} parent=0 // pred_region
    _
  $region25: #{global_generator_forward.29} parent=0 // pred_fallthru
    _
  // Predicated region
  $region26: #{global_generator_forward.29} parent=0 // pred_check
    _
  $region27: #{global_generator_forward.29} parent=0 // pred_check_branch
    %239 = sbr.rel (0) target = $region29
  $region28: #{global_generator_forward.29} parent=0 // pred_region
    _
  $region29: #{global_generator_forward.29} parent=0 // pred_fallthru
    _

// kernel: global_generator_forward.31
$region0: #{global_generator_forward.31}
  #allocation0 [shape = 'u32[]', space=smem, size = 0x4, offset = 0x4, fixed_abs, tag = 'smem constant byte address 0x4 - core index']
  #allocation1 [shape = 'u32[144,128]{1,0:T(1,128)}', space=vmem, size = 0x12000, scoped, tag = 'internal scratch']
  %s0 = inlined_call_operand.vmem [shape: bf16[32,288], index: 0, kind: input, shape index: {}]
  %s1 = inlined_call_operand.vmem [shape: bf16[288,32], index: 1, kind: input, shape index: {}]
  %s2 = inlined_call_operand.vmem [shape: f32[1,32], index: 2, kind: input, shape index: {}]
  %s3 = inlined_call_operand.vmem [shape: f32[32,32], index: 3, kind: output, shape index: {0}]
  %s4 = inlined_call_operand.vmem [shape: f32[1,2,32], index: 4, kind: output, shape index: {1}]
  %5 = xla_tuple %s3, %s4
  %s6 = sld [smem:[#allocation0]]
  $region30: #{global_generator_forward.31} parent=0
    _
  %s8 = ssub.s32 1, %s6
  %s9 = scalar_select 0, %s8, %s6
  // Predicated region
  $region2: #{global_generator_forward.31} parent=0 // pred_check
    _
  $region3: #{global_generator_forward.31} parent=0 // pred_check_branch
    %11 = sbr.rel (0) target = $region5
  $region4: #{global_generator_forward.31} parent=0 // pred_region
    _
  $region5: #{global_generator_forward.31} parent=0 // pred_fallthru
    _
  // Predicated region
  $region6: #{global_generator_forward.31} parent=0 // pred_check
    _
  $region7: #{global_generator_forward.31} parent=0 // pred_check_branch
    %13 = sbr.rel (0) target = $region9
  $region8: #{global_generator_forward.31} parent=0 // pred_region
    _
  $region9: #{global_generator_forward.31} parent=0 // pred_fallthru
    _
  // Predicated region
  $region10: #{global_generator_forward.31} parent=0 // pred_check
    _
  $region11: #{global_generator_forward.31} parent=0 // pred_check_branch
    %15 = sbr.rel (0) target = $region13
  $region12: #{global_generator_forward.31} parent=0 // pred_region
    _
  $region13: #{global_generator_forward.31} parent=0 // pred_fallthru
    _
  %v17 = vld [vmem:[%s0] sm:$0xff]
  %v18 = vld [vmem:[%s0 + $0x8] sm:$0xf]
  %v19 = vld [vmem:[%s0 + $0xc] sm:$0xff]
  %v20 = vld [vmem:[%s0 + $0x14] sm:$0xf]
  %v21 = vld [vmem:[%s0 + $0x18] sm:$0xff]
  %v22 = vld [vmem:[%s0 + $0x20] sm:$0xf]
  %v23 = vld [vmem:[%s0 + $0x24] sm:$0xff]
  %v24 = vld [vmem:[%s0 + $0x2c] sm:$0xf]
  %v25 = vld [vmem:[%s1] sm:$0xf]
  %v26 = vld [vmem:[%s1 + $0x4] sm:$0xf]
  %v27 = vld [vmem:[%s1 + $0x8] sm:$0xf]
  %v28 = vld [vmem:[%s1 + $0xc] sm:$0xf]
  %v29 = vld [vmem:[%s1 + $0x10] sm:$0xf]
  %v30 = vld [vmem:[%s1 + $0x14] sm:$0xf]
  %v31 = vld [vmem:[%s1 + $0x18] sm:$0xf]
  %v32 = vld [vmem:[%s1 + $0x1c] sm:$0xf]
  %v33 = vld [vmem:[%s1 + $0x20] sm:$0xf]
  %v34 = vld [vmem:[%s1 + $0x24] sm:$0xf]
  %v35 = vld [vmem:[%s1 + $0x28] sm:$0xf]
  %v36 = vld [vmem:[%s1 + $0x2c] sm:$0xf]
  %v37 = vld [vmem:[%s1 + $0x30] sm:$0xf]
  %v38 = vld [vmem:[%s1 + $0x34] sm:$0xf]
  %v39 = vld [vmem:[%s1 + $0x38] sm:$0xf]
  %v40 = vld [vmem:[%s1 + $0x3c] sm:$0xf]
  %v41 = vld [vmem:[%s1 + $0x40] sm:$0xf]
  %v42 = vld [vmem:[%s1 + $0x44] sm:$0xf]
  %v43 = vld [vmem:[%s1 + $0x48] sm:$0xf]
  %v44 = vld [vmem:[%s1 + $0x4c] sm:$0xf]
  %v45 = vld [vmem:[%s1 + $0x50] sm:$0xf]
  %v46 = vld [vmem:[%s1 + $0x54] sm:$0xf]
  %v47 = vld [vmem:[%s1 + $0x58] sm:$0xf]
  %v48 = vld [vmem:[%s1 + $0x5c] sm:$0xf]
  %v49 = vld [vmem:[%s1 + $0x60] sm:$0xf]
  %v50 = vld [vmem:[%s1 + $0x64] sm:$0xf]
  %v51 = vld [vmem:[%s1 + $0x68] sm:$0xf]
  %v52 = vld [vmem:[%s1 + $0x6c] sm:$0xf]
  %v53 = vld [vmem:[%s1 + $0x70] sm:$0xf]
  %v54 = vld [vmem:[%s1 + $0x74] sm:$0xf]
  %v55 = vld [vmem:[%s1 + $0x78] sm:$0xf]
  %v56 = vld [vmem:[%s1 + $0x7c] sm:$0xf]
  %v57 = vld [vmem:[%s1 + $0x80] sm:$0xf]
  %v58 = vld [vmem:[%s1 + $0x84] sm:$0xf]
  %v59 = vld [vmem:[%s1 + $0x88] sm:$0xf]
  %v60 = vld [vmem:[%s1 + $0x8c] sm:$0xf]
  %v61 = vld [vmem:[%s2] sm:$0x1]
  %v63 = vlaneseq
  %v64 = vshrl.u32 %v63, 7
  %v65 = vsub.s32 0, %v64
  %v66 = vrot.slane %v61, %v65
  %v76 = vunpack.c.l.b16 %v17
  %v77 = vunpack.c.h.b16 %v17
  %v78 = vunpack.c.l.b16 %v18
  %v79 = vunpack.c.l.b16 %v19
  %v80 = vunpack.c.h.b16 %v19
  %v81 = vunpack.c.l.b16 %v20
  %v82 = vunpack.c.l.b16 %v21
  %v83 = vunpack.c.h.b16 %v21
  %v84 = vunpack.c.l.b16 %v22
  %v85 = vunpack.c.l.b16 %v23
  %v86 = vunpack.c.h.b16 %v23
  %v87 = vunpack.c.l.b16 %v24
  %v88 = vpack.c.b16 %v79, %v76
  %v89 = vpack.c.b16 %v80, %v77
  %v90 = vpack.c.b16 %v81, %v78
  %v91 = vpack.c.b16 %v85, %v82
  %v92 = vpack.c.b16 %v86, %v83
  %v93 = vpack.c.b16 %v87, %v84
  %v134 = vunpack.c.l.b16 %v25
  %v135 = vunpack.c.l.b16 %v26
  %v136 = vunpack.c.l.b16 %v27
  %v137 = vunpack.c.l.b16 %v28
  %v138 = vunpack.c.l.b16 %v29
  %v139 = vunpack.c.l.b16 %v30
  %v140 = vunpack.c.l.b16 %v31
  %v141 = vunpack.c.l.b16 %v32
  %v142 = vunpack.c.l.b16 %v33
  %v143 = vunpack.c.l.b16 %v34
  %v144 = vunpack.c.l.b16 %v35
  %v145 = vunpack.c.l.b16 %v36
  %v146 = vunpack.c.l.b16 %v37
  %v147 = vunpack.c.l.b16 %v38
  %v148 = vunpack.c.l.b16 %v39
  %v149 = vunpack.c.l.b16 %v40
  %v150 = vunpack.c.l.b16 %v41
  %v151 = vunpack.c.l.b16 %v42
  %v152 = vunpack.c.l.b16 %v43
  %v153 = vunpack.c.l.b16 %v44
  %v154 = vunpack.c.l.b16 %v45
  %v155 = vunpack.c.l.b16 %v46
  %v156 = vunpack.c.l.b16 %v47
  %v157 = vunpack.c.l.b16 %v48
  %v158 = vunpack.c.l.b16 %v49
  %v159 = vunpack.c.l.b16 %v50
  %v160 = vunpack.c.l.b16 %v51
  %v161 = vunpack.c.l.b16 %v52
  %v162 = vunpack.c.l.b16 %v53
  %v163 = vunpack.c.l.b16 %v54
  %v164 = vunpack.c.l.b16 %v55
  %v165 = vunpack.c.l.b16 %v56
  %v166 = vunpack.c.l.b16 %v57
  %v167 = vunpack.c.l.b16 %v58
  %v168 = vunpack.c.l.b16 %v59
  %v169 = vunpack.c.l.b16 %v60
  %v170 = vpack.c.b16 %v135, %v134
  %v171 = vpack.c.b16 %v137, %v136
  %v172 = vpack.c.b16 %v139, %v138
  %v173 = vpack.c.b16 %v141, %v140
  %v174 = vpack.c.b16 %v143, %v142
  %v175 = vpack.c.b16 %v145, %v144
  %v176 = vpack.c.b16 %v147, %v146
  %v177 = vpack.c.b16 %v149, %v148
  %v178 = vpack.c.b16 %v151, %v150
  %v179 = vpack.c.b16 %v153, %v152
  %v180 = vpack.c.b16 %v155, %v154
  %v181 = vpack.c.b16 %v157, %v156
  %v182 = vpack.c.b16 %v159, %v158
  %v183 = vpack.c.b16 %v161, %v160
  %v184 = vpack.c.b16 %v163, %v162
  %v185 = vpack.c.b16 %v165, %v164
  %v186 = vpack.c.b16 %v167, %v166
  %v187 = vpack.c.b16 %v169, %v168
  %vm206 = vcmask 261120
  %v208 = vsel %vm206, %v90, 0
  %v211 = vsel %vm206, %v93, 0
  %213 = vmatprep.subr.bf16.mxu0 0
  %214 = vmatpush1.bf16.msra.mxu0 %v177
  %215 = vmatprep.subr.bf16.mxu0 0
  %216 = vmatpush1.bf16.msra.mxu0 %v176
  %217 = vmatprep.subr.bf16.mxu0 0
  %218 = vmatpush1.bf16.msra.mxu0 %v175
  %219 = vmatprep.subr.bf16.mxu0 0
  %220 = vmatpush1.bf16.msra.mxu0 %v174
  %221 = vmatprep.subr.bf16.mxu0 0
  %222 = vmatpush1.bf16.msra.mxu0 %v173
  %223 = vmatprep.subr.bf16.mxu0 0
  %224 = vmatpush1.bf16.msra.mxu0 %v172
  %225 = vmatprep.subr.bf16.mxu0 0
  %226 = vmatpush1.bf16.msra.mxu0 %v171
  %227 = vmatprep.subr.bf16.mxu0 0
  %228 = vmatpush1.bf16.msra.mxu0 %v170
  %229 = vmatprep.subr.bf16.mxu0 0
  %230 = vmatpush2.bf16.msra.mxu0 %v185
  %231 = vmatprep.subr.bf16.mxu0 0
  %232 = vmatpush2.bf16.msra.mxu0 %v184
  %233 = vmatprep.subr.bf16.mxu0 0
  %234 = vmatpush2.bf16.msra.mxu0 %v183
  %235 = vmatprep.subr.bf16.mxu0 0
  %236 = vmatpush2.bf16.msra.mxu0 %v182
  %237 = vmatprep.subr.bf16.mxu0 0
  %238 = vmatpush2.bf16.msra.mxu0 %v181
  %239 = vmatprep.subr.bf16.mxu0 0
  %240 = vmatpush2.bf16.msra.mxu0 %v180
  %241 = vmatprep.subr.bf16.mxu0 0
  %242 = vmatpush2.bf16.msra.mxu0 %v179
  %243 = vmatprep.subr.bf16.mxu0 0
  %244 = vmatpush2.bf16.msra.mxu0 %v178
  %245 = vmatprep.mubr.bf16.mxu0 %v89
  %246 = vmatmul.mubr.bf16.gmra.mxu0 %v88
  %v247 = vpop.f32.mrf.mxu0
  %v248 = vadd.f32 %v66, %v247
  %v249 = vpop.f32.mrf.mxu0
  %v250 = vpop.f32.mrf.mxu0
  %v251 = vadd.f32 %v66, %v250
  %v252 = vpop.f32.mrf.mxu0
  %253 = vmatprep.mubr.bf16.mxu0 %v92
  %254 = vmatmul.mubr.bf16.gmra.mxu0 %v91
  %v255 = vpop.f32.mrf.mxu0
  %v256 = vadd.f32 %v66, %v255
  %v257 = vpop.f32.mrf.mxu0
  %v258 = vpop.f32.mrf.mxu0
  %v259 = vadd.f32 %v66, %v258
  %v260 = vpop.f32.mrf.mxu0
  %261 = vdwg.mxu0
  %262 = vmatprep.subr.bf16.mxu0 0
  %263 = vmatpush1.bf16.msra.mxu0 0
  %264 = vmatprep.subr.bf16.mxu0 0
  %265 = vmatpush1.bf16.msra.mxu0 0
  %266 = vmatprep.subr.bf16.mxu0 0
  %267 = vmatpush1.bf16.msra.mxu0 0
  %268 = vmatprep.subr.bf16.mxu0 0
  %269 = vmatpush1.bf16.msra.mxu0 0
  %270 = vmatprep.subr.bf16.mxu0 0
  %271 = vmatpush1.bf16.msra.mxu0 0
  %272 = vmatprep.subr.bf16.mxu0 0
  %273 = vmatpush1.bf16.msra.mxu0 0
  %274 = vmatprep.subr.bf16.mxu0 0
  %275 = vmatpush1.bf16.msra.mxu0 %v187
  %276 = vmatprep.subr.bf16.mxu0 0
  %277 = vmatpush1.bf16.msra.mxu0 %v186
  %278 = vmatprep.subr.bf16.mxu0 0
  %279 = vmatpush2.bf16.msra.mxu0 0
  %280 = vmatprep.subr.bf16.mxu0 0
  %281 = vmatpush2.bf16.msra.mxu0 0
  %282 = vmatprep.subr.bf16.mxu0 0
  %283 = vmatpush2.bf16.msra.mxu0 0
  %284 = vmatprep.subr.bf16.mxu0 0
  %285 = vmatpush2.bf16.msra.mxu0 0
  %286 = vmatprep.subr.bf16.mxu0 0
  %287 = vmatpush2.bf16.msra.mxu0 0
  %288 = vmatprep.subr.bf16.mxu0 0
  %289 = vmatpush2.bf16.msra.mxu0 0
  %290 = vmatprep.subr.bf16.mxu0 0
  %291 = vmatpush2.bf16.msra.mxu0 0
  %292 = vmatprep.subr.bf16.mxu0 0
  %293 = vmatpush2.bf16.msra.mxu0 0
  %294 = vmatprep.mubr.bf16.mxu0 0
  %295 = vmatmul.mubr.bf16.gmra.mxu0 %v208
  %v296 = vpop.f32.mrf.mxu0
  %v297 = vadd.f32 %v248, %v296
  %v298 = vpop.f32.mrf.mxu0
  %v299 = vpop.f32.mrf.mxu0
  %v300 = vadd.f32 %v251, %v299
  %v301 = vpop.f32.mrf.mxu0
  %302 = vmatprep.mubr.bf16.mxu0 0
  %303 = vmatmul.mubr.bf16.gmra.mxu0 %v211
  %v304 = vpop.f32.mrf.mxu0
  %v305 = vadd.f32 %v256, %v304
  %v306 = vpop.f32.mrf.mxu0
  %v307 = vpop.f32.mrf.mxu0
  %v308 = vadd.f32 %v259, %v307
  %v309 = vpop.f32.mrf.mxu0
  %310 = vdwg.mxu0
  %v311 = vlaneseq
  %v312 = vshrl.u32 %v311, 7
  %v313 = vadd.s32 %v312, 8
  %v314 = vadd.s32 %v312, 16
  %v315 = vadd.s32 %v312, 24
  %s316 = smul.u32 0, 32
  %v317 = vstv %s316
  %v318 = vadd.s32 %v312, %v317
  %v319 = vadd.s32 %v313, %v317
  %v320 = vadd.s32 %v314, %v317
  %v321 = vadd.s32 %v315, %v317
  %vm322 = vcmp.lt.s32.totalorder %v318, 32
  %vm323 = vcmp.lt.s32.totalorder %v319, 32
  %vm324 = vcmp.lt.s32.totalorder %v320, 32
  %vm325 = vcmp.lt.s32.totalorder %v321, 32
  %v326 = vsel %vm322, %v297, 0.0
  %v327 = vsel %vm323, %v300, 0.0
  %v328 = vsel %vm324, %v305, 0.0
  %v329 = vsel %vm325, %v308, 0.0
  %v330 = vsel %vm206, %v326, 0.0
  %v331 = vsel %vm206, %v327, 0.0
  %v332 = vadd.f32 %v330, %v331
  %v333 = vsel %vm206, %v328, 0.0
  %v334 = vadd.f32 %v332, %v333
  %v335 = vsel %vm206, %v329, 0.0
  %v336 = vadd.f32 %v334, %v335
  %v337 = vrot.slane %v336, 4
  %v338 = vadd.f32 %v336, %v337
  %v339 = vrot.slane %v338, 2
  %v340 = vadd.f32 %v338, %v339
  %v341 = vrot.slane %v340, 1
  %v342 = vadd.f32 %v340, %v341
  %v343 = vmul.f32 %v326, %v326
  %v344 = vmul.f32 %v327, %v327
  %v345 = vmul.f32 %v328, %v328
  %v346 = vmul.f32 %v329, %v329
  %v347 = vsel %vm206, %v343, 0.0
  %v348 = vsel %vm206, %v344, 0.0
  %v349 = vadd.f32 %v347, %v348
  %v350 = vsel %vm206, %v345, 0.0
  %v351 = vadd.f32 %v349, %v350
  %v352 = vsel %vm206, %v346, 0.0
  %v353 = vadd.f32 %v351, %v352
  %v354 = vrot.slane %v353, 4
  %v355 = vadd.f32 %v353, %v354
  %v356 = vrot.slane %v355, 2
  %v357 = vadd.f32 %v355, %v356
  %v358 = vrot.slane %v357, 1
  %v359 = vadd.f32 %v357, %v358
  %vm360 = vcmask 1040384
  %v361 = vsel %vm360, %v342, %v359
  %vm362 = vcmask 254976
  %363 = vst.msk [vmem:[%s4] sm:$0x3] %vm362, %v361
  %364 = vst.msk [vmem:[%s3] sm:$0xff] %vm206, %v297
  %365 = vst.msk [vmem:[%s3 + $0x8] sm:$0xff] %vm206, %v300
  %366 = vst.msk [vmem:[%s3 + $0x10] sm:$0xff] %vm206, %v305
  %367 = vst.msk [vmem:[%s3 + $0x18] sm:$0xff] %vm206, %v308
  // Predicated region
  $region14: #{global_generator_forward.31} parent=0 // pred_check
    _
  $region15: #{global_generator_forward.31} parent=0 // pred_check_branch
    %369 = sbr.rel (0) target = $region17
  $region16: #{global_generator_forward.31} parent=0 // pred_region
    _
  $region17: #{global_generator_forward.31} parent=0 // pred_fallthru
    _
  // Predicated region
  $region18: #{global_generator_forward.31} parent=0 // pred_check
    _
  $region19: #{global_generator_forward.31} parent=0 // pred_check_branch
    %371 = sbr.rel (0) target = $region21
  $region20: #{global_generator_forward.31} parent=0 // pred_region
    _
  $region21: #{global_generator_forward.31} parent=0 // pred_fallthru
    _
  // Predicated region
  $region22: #{global_generator_forward.31} parent=0 // pred_check
    _
  $region23: #{global_generator_forward.31} parent=0 // pred_check_branch
    %373 = sbr.rel (0) target = $region25
  $region24: #{global_generator_forward.31} parent=0 // pred_region
    _
  $region25: #{global_generator_forward.31} parent=0 // pred_fallthru
    _
  // Predicated region
  $region26: #{global_generator_forward.31} parent=0 // pred_check
    _
  $region27: #{global_generator_forward.31} parent=0 // pred_check_branch
    %375 = sbr.rel (0) target = $region29
  $region28: #{global_generator_forward.31} parent=0 // pred_region
    _
  $region29: #{global_generator_forward.31} parent=0 // pred_fallthru
    _

// kernel: global_generator_forward.34
$region0: #{global_generator_forward.34}
  #allocation0 [shape = 'u32[]', space=smem, size = 0x4, offset = 0x4, fixed_abs, tag = 'smem constant byte address 0x4 - core index']
  #allocation1 [shape = 'u32[144,128]{1,0:T(1,128)}', space=vmem, size = 0x12000, scoped, tag = 'internal scratch']
  %s0 = inlined_call_operand.vmem [shape: f32[32,32], index: 0, kind: input, shape index: {}]
  %s1 = inlined_call_operand.vmem [shape: f32[32,32], index: 1, kind: input, shape index: {}]
  %s2 = inlined_call_operand.vmem [shape: f32[1,32], index: 2, kind: input, shape index: {}]
  %s3 = inlined_call_operand.vmem [shape: f32[1,32], index: 3, kind: input, shape index: {}]
  %s4 = inlined_call_operand.vmem [shape: f32[32,32], index: 4, kind: output, shape index: {}]
  %s5 = sld [smem:[#allocation0]]
  $region26: #{global_generator_forward.34} parent=0
    _
  %s7 = ssub.s32 1, %s5
  %s8 = scalar_select 0, %s7, %s5
  // Predicated region
  $region2: #{global_generator_forward.34} parent=0 // pred_check
    _
  $region3: #{global_generator_forward.34} parent=0 // pred_check_branch
    %10 = sbr.rel (0) target = $region5
  $region4: #{global_generator_forward.34} parent=0 // pred_region
    _
  $region5: #{global_generator_forward.34} parent=0 // pred_fallthru
    _
  // Predicated region
  $region6: #{global_generator_forward.34} parent=0 // pred_check
    _
  $region7: #{global_generator_forward.34} parent=0 // pred_check_branch
    %12 = sbr.rel (0) target = $region9
  $region8: #{global_generator_forward.34} parent=0 // pred_region
    _
  $region9: #{global_generator_forward.34} parent=0 // pred_fallthru
    _
  // Predicated region
  $region10: #{global_generator_forward.34} parent=0 // pred_check
    _
  $region11: #{global_generator_forward.34} parent=0 // pred_check_branch
    %14 = sbr.rel (0) target = $region13
  $region12: #{global_generator_forward.34} parent=0 // pred_region
    _
  $region13: #{global_generator_forward.34} parent=0 // pred_fallthru
    _
  // Predicated region
  $region14: #{global_generator_forward.34} parent=0 // pred_check
    _
  $region15: #{global_generator_forward.34} parent=0 // pred_check_branch
    %16 = sbr.rel (0) target = $region17
  $region16: #{global_generator_forward.34} parent=0 // pred_region
    _
  $region17: #{global_generator_forward.34} parent=0 // pred_fallthru
    _
  %v17 = vld [vmem:[%s1] sm:$0xff]
  %v18 = vld [vmem:[%s1 + $0x8] sm:$0xff]
  %v19 = vld [vmem:[%s1 + $0x10] sm:$0xff]
  %v20 = vld [vmem:[%s1 + $0x18] sm:$0xff]
  %v21 = vld [vmem:[%s0] sm:$0xff]
  %v22 = vld [vmem:[%s0 + $0x8] sm:$0xff]
  %v23 = vld [vmem:[%s0 + $0x10] sm:$0xff]
  %v24 = vld [vmem:[%s0 + $0x18] sm:$0xff]
  %v25 = vld [vmem:[%s2] sm:$0x1]
  %v27 = vlaneseq
  %v28 = vshrl.u32 %v27, 7
  %v29 = vsub.s32 0, %v28
  %v30 = vrot.slane %v25, %v29
  %v32 = vmul.f32 %v21, %v30
  %v33 = vmul.f32 %v22, %v30
  %v34 = vmul.f32 %v23, %v30
  %v35 = vmul.f32 %v24, %v30
  %v36 = vld [vmem:[%s3] sm:$0x1]
  %v38 = vlaneseq
  %v39 = vshrl.u32 %v38, 7
  %v40 = vsub.s32 0, %v39
  %v41 = vrot.slane %v36, %v40
  %v43 = vadd.f32 %v32, %v41
  %v44 = vadd.f32 %v33, %v41
  %v45 = vadd.f32 %v34, %v41
  %v46 = vadd.f32 %v35, %v41
  %v47 = vadd.f32 %v17, %v43
  %v48 = vadd.f32 %v18, %v44
  %v49 = vadd.f32 %v19, %v45
  %v50 = vadd.f32 %v20, %v46
  %vm51 = vcmask 261120
  %52 = vst.msk [vmem:[%s4] sm:$0xff] %vm51, %v47
  %53 = vst.msk [vmem:[%s4 + $0x8] sm:$0xff] %vm51, %v48
  %54 = vst.msk [vmem:[%s4 + $0x10] sm:$0xff] %vm51, %v49
  %55 = vst.msk [vmem:[%s4 + $0x18] sm:$0xff] %vm51, %v50
  // Predicated region
  $region18: #{global_generator_forward.34} parent=0 // pred_check
    _
  $region19: #{global_generator_forward.34} parent=0 // pred_check_branch
    %57 = sbr.rel (0) target = $region21
  $region20: #{global_generator_forward.34} parent=0 // pred_region
    _
  $region21: #{global_generator_forward.34} parent=0 // pred_fallthru
    _
  // Predicated region
  $region22: #{global_generator_forward.34} parent=0 // pred_check
    _
  $region23: #{global_generator_forward.34} parent=0 // pred_check_branch
    %59 = sbr.rel (0) target = $region25
  $region24: #{global_generator_forward.34} parent=0 // pred_region
    _
  $region25: #{global_generator_forward.34} parent=0 // pred_fallthru
    _

// kernel: global_generator_forward.39
$region0: #{global_generator_forward.39}
  #allocation0 [shape = 'u32[]', space=smem, size = 0x4, offset = 0x4, fixed_abs, tag = 'smem constant byte address 0x4 - core index']
  #allocation1 [shape = 'u32[144,128]{1,0:T(1,128)}', space=vmem, size = 0x12000, scoped, tag = 'internal scratch']
  %s0 = inlined_call_operand.vmem [shape: bf16[32,32], index: 0, kind: input, shape index: {}]
  %s1 = inlined_call_operand.vmem [shape: bf16[32,16], index: 1, kind: input, shape index: {}]
  %s2 = inlined_call_operand.vmem [shape: f32[1,16], index: 2, kind: input, shape index: {}]
  %s3 = inlined_call_operand.vmem [shape: f32[32,16], index: 3, kind: output, shape index: {0}]
  %s4 = inlined_call_operand.vmem [shape: f32[1,2,16], index: 4, kind: output, shape index: {1}]
  %5 = xla_tuple %s3, %s4
  %s6 = sld [smem:[#allocation0]]
  $region30: #{global_generator_forward.39} parent=0
    _
  %s8 = ssub.s32 1, %s6
  %s9 = scalar_select 0, %s8, %s6
  // Predicated region
  $region2: #{global_generator_forward.39} parent=0 // pred_check
    _
  $region3: #{global_generator_forward.39} parent=0 // pred_check_branch
    %11 = sbr.rel (0) target = $region5
  $region4: #{global_generator_forward.39} parent=0 // pred_region
    _
  $region5: #{global_generator_forward.39} parent=0 // pred_fallthru
    _
  // Predicated region
  $region6: #{global_generator_forward.39} parent=0 // pred_check
    _
  $region7: #{global_generator_forward.39} parent=0 // pred_check_branch
    %13 = sbr.rel (0) target = $region9
  $region8: #{global_generator_forward.39} parent=0 // pred_region
    _
  $region9: #{global_generator_forward.39} parent=0 // pred_fallthru
    _
  // Predicated region
  $region10: #{global_generator_forward.39} parent=0 // pred_check
    _
  $region11: #{global_generator_forward.39} parent=0 // pred_check_branch
    %15 = sbr.rel (0) target = $region13
  $region12: #{global_generator_forward.39} parent=0 // pred_region
    _
  $region13: #{global_generator_forward.39} parent=0 // pred_fallthru
    _
  %v17 = vld [vmem:[%s0] sm:$0xf]
  %v18 = vld [vmem:[%s0 + $0x4] sm:$0xf]
  %v19 = vld [vmem:[%s0 + $0x8] sm:$0xf]
  %v20 = vld [vmem:[%s0 + $0xc] sm:$0xf]
  %v21 = vld [vmem:[%s1] sm:$0xf]
  %v22 = vld [vmem:[%s1 + $0x4] sm:$0xf]
  %v23 = vld [vmem:[%s1 + $0x8] sm:$0xf]
  %v24 = vld [vmem:[%s1 + $0xc] sm:$0xf]
  %v25 = vld [vmem:[%s2] sm:$0x1]
  %v27 = vlaneseq
  %v28 = vshrl.u32 %v27, 7
  %v29 = vsub.s32 0, %v28
  %v30 = vrot.slane %v25, %v29
  %v36 = vunpack.c.l.b16 %v17
  %v37 = vunpack.c.l.b16 %v18
  %v38 = vunpack.c.l.b16 %v19
  %v39 = vunpack.c.l.b16 %v20
  %v40 = vpack.c.b16 %v37, %v36
  %v41 = vpack.c.b16 %v39, %v38
  %v46 = vunpack.c.l.b16 %v21
  %v47 = vunpack.c.l.b16 %v22
  %v48 = vunpack.c.l.b16 %v23
  %v49 = vunpack.c.l.b16 %v24
  %v50 = vpack.c.b16 %v47, %v46
  %v51 = vpack.c.b16 %v49, %v48
  %vm54 = vcmask 261120
  %v56 = vsel %vm54, %v40, 0
  %v59 = vsel %vm54, %v41, 0
  %61 = vmatprep.subr.bf16.mxu0 0
  %62 = vmatpush1.bf16.msra.mxu0 0
  %63 = vmatprep.subr.bf16.mxu0 0
  %64 = vmatpush1.bf16.msra.mxu0 0
  %65 = vmatprep.subr.bf16.mxu0 0
  %66 = vmatpush1.bf16.msra.mxu0 0
  %67 = vmatprep.subr.bf16.mxu0 0
  %68 = vmatpush1.bf16.msra.mxu0 0
  %69 = vmatprep.subr.bf16.mxu0 0
  %70 = vmatpush1.bf16.msra.mxu0 0
  %71 = vmatprep.subr.bf16.mxu0 0
  %72 = vmatpush1.bf16.msra.mxu0 0
  %73 = vmatprep.subr.bf16.mxu0 0
  %74 = vmatpush1.bf16.msra.mxu0 %v51
  %75 = vmatprep.subr.bf16.mxu0 0
  %76 = vmatpush1.bf16.msra.mxu0 %v50
  %77 = vmatprep.subr.bf16.mxu0 0
  %78 = vmatpush2.bf16.msra.mxu0 0
  %79 = vmatprep.subr.bf16.mxu0 0
  %80 = vmatpush2.bf16.msra.mxu0 0
  %81 = vmatprep.subr.bf16.mxu0 0
  %82 = vmatpush2.bf16.msra.mxu0 0
  %83 = vmatprep.subr.bf16.mxu0 0
  %84 = vmatpush2.bf16.msra.mxu0 0
  %85 = vmatprep.subr.bf16.mxu0 0
  %86 = vmatpush2.bf16.msra.mxu0 0
  %87 = vmatprep.subr.bf16.mxu0 0
  %88 = vmatpush2.bf16.msra.mxu0 0
  %89 = vmatprep.subr.bf16.mxu0 0
  %90 = vmatpush2.bf16.msra.mxu0 0
  %91 = vmatprep.subr.bf16.mxu0 0
  %92 = vmatpush2.bf16.msra.mxu0 0
  %93 = vmatprep.mubr.bf16.mxu0 0
  %94 = vmatmul.mubr.bf16.gmra.mxu0 %v56
  %v95 = vpop.f32.mrf.mxu0
  %v96 = vadd.f32 %v30, %v95
  %v97 = vpop.f32.mrf.mxu0
  %v98 = vpop.f32.mrf.mxu0
  %v99 = vadd.f32 %v30, %v98
  %v100 = vpop.f32.mrf.mxu0
  %101 = vmatprep.mubr.bf16.mxu0 0
  %102 = vmatmul.mubr.bf16.gmra.mxu0 %v59
  %v103 = vpop.f32.mrf.mxu0
  %v104 = vadd.f32 %v30, %v103
  %v105 = vpop.f32.mrf.mxu0
  %v106 = vpop.f32.mrf.mxu0
  %v107 = vadd.f32 %v30, %v106
  %v108 = vpop.f32.mrf.mxu0
  %109 = vdwg.mxu0
  %v110 = vlaneseq
  %v111 = vshrl.u32 %v110, 7
  %v112 = vadd.s32 %v111, 8
  %v113 = vadd.s32 %v111, 16
  %v114 = vadd.s32 %v111, 24
  %s115 = smul.u32 0, 32
  %v116 = vstv %s115
  %v117 = vadd.s32 %v111, %v116
  %v118 = vadd.s32 %v112, %v116
  %v119 = vadd.s32 %v113, %v116
  %v120 = vadd.s32 %v114, %v116
  %vm121 = vcmp.lt.s32.totalorder %v117, 32
  %vm122 = vcmp.lt.s32.totalorder %v118, 32
  %vm123 = vcmp.lt.s32.totalorder %v119, 32
  %vm124 = vcmp.lt.s32.totalorder %v120, 32
  %v125 = vsel %vm121, %v96, 0.0
  %v126 = vsel %vm122, %v99, 0.0
  %v127 = vsel %vm123, %v104, 0.0
  %v128 = vsel %vm124, %v107, 0.0
  %vm129 = vcmask 130048
  %v130 = vsel %vm129, %v125, 0.0
  %v131 = vsel %vm129, %v126, 0.0
  %v132 = vadd.f32 %v130, %v131
  %v133 = vsel %vm129, %v127, 0.0
  %v134 = vadd.f32 %v132, %v133
  %v135 = vsel %vm129, %v128, 0.0
  %v136 = vadd.f32 %v134, %v135
  %v137 = vrot.slane %v136, 4
  %v138 = vadd.f32 %v136, %v137
  %v139 = vrot.slane %v138, 2
  %v140 = vadd.f32 %v138, %v139
  %v141 = vrot.slane %v140, 1
  %v142 = vadd.f32 %v140, %v141
  %v143 = vmul.f32 %v125, %v125
  %v144 = vmul.f32 %v126, %v126
  %v145 = vmul.f32 %v127, %v127
  %v146 = vmul.f32 %v128, %v128
  %v147 = vsel %vm129, %v143, 0.0
  %v148 = vsel %vm129, %v144, 0.0
  %v149 = vadd.f32 %v147, %v148
  %v150 = vsel %vm129, %v145, 0.0
  %v151 = vadd.f32 %v149, %v150
  %v152 = vsel %vm129, %v146, 0.0
  %v153 = vadd.f32 %v151, %v152
  %v154 = vrot.slane %v153, 4
  %v155 = vadd.f32 %v153, %v154
  %v156 = vrot.slane %v155, 2
  %v157 = vadd.f32 %v155, %v156
  %v158 = vrot.slane %v157, 1
  %v159 = vadd.f32 %v157, %v158
  %vm160 = vcmask 1040384
  %v161 = vsel %vm160, %v142, %v159
  %vm162 = vcmask 123904
  %163 = vst.msk [vmem:[%s4] sm:$0x3] %vm162, %v161
  %164 = vst.msk [vmem:[%s3] sm:$0xff] %vm129, %v96
  %165 = vst.msk [vmem:[%s3 + $0x8] sm:$0xff] %vm129, %v99
  %166 = vst.msk [vmem:[%s3 + $0x10] sm:$0xff] %vm129, %v104
  %167 = vst.msk [vmem:[%s3 + $0x18] sm:$0xff] %vm129, %v107
  // Predicated region
  $region14: #{global_generator_forward.39} parent=0 // pred_check
    _
  $region15: #{global_generator_forward.39} parent=0 // pred_check_branch
    %169 = sbr.rel (0) target = $region17
  $region16: #{global_generator_forward.39} parent=0 // pred_region
    _
  $region17: #{global_generator_forward.39} parent=0 // pred_fallthru
    _
  // Predicated region
  $region18: #{global_generator_forward.39} parent=0 // pred_check
    _
  $region19: #{global_generator_forward.39} parent=0 // pred_check_branch
    %171 = sbr.rel (0) target = $region21
  $region20: #{global_generator_forward.39} parent=0 // pred_region
    _
  $region21: #{global_generator_forward.39} parent=0 // pred_fallthru
    _
  // Predicated region
  $region22: #{global_generator_forward.39} parent=0 // pred_check
    _
  $region23: #{global_generator_forward.39} parent=0 // pred_check_branch
    %173 = sbr.rel (0) target = $region25
  $region24: #{global_generator_forward.39} parent=0 // pred_region
    _
  $region25: #{global_generator_forward.39} parent=0 // pred_fallthru
    _
  // Predicated region
  $region26: #{global_generator_forward.39} parent=0 // pred_check
    _
  $region27: #{global_generator_forward.39} parent=0 // pred_check_branch
    %175 = sbr.rel (0) target = $region29
  $region28: #{global_generator_forward.39} parent=0 // pred_region
    _
  $region29: #{global_generator_forward.39} parent=0 // pred_fallthru
    _

// kernel: global_generator_forward.40
$region0: #{global_generator_forward.40}
  #allocation0 [shape = 'u32[]', space=smem, size = 0x4, offset = 0x4, fixed_abs, tag = 'smem constant byte address 0x4 - core index']
  #allocation1 [shape = 'u32[144,128]{1,0:T(1,128)}', space=vmem, size = 0x12000, scoped, tag = 'internal scratch']
  %s0 = inlined_call_operand.vmem [shape: bf16[32,64], index: 0, kind: input, shape index: {}]
  %s1 = inlined_call_operand.vmem [shape: bf16[64,16], index: 1, kind: input, shape index: {}]
  %s2 = inlined_call_operand.vmem [shape: f32[1,16], index: 2, kind: input, shape index: {}]
  %s3 = inlined_call_operand.vmem [shape: f32[32,16], index: 3, kind: output, shape index: {0}]
  %s4 = inlined_call_operand.vmem [shape: f32[1,2,16], index: 4, kind: output, shape index: {1}]
  %5 = xla_tuple %s3, %s4
  %s6 = sld [smem:[#allocation0]]
  $region30: #{global_generator_forward.40} parent=0
    _
  %s8 = ssub.s32 1, %s6
  %s9 = scalar_select 0, %s8, %s6
  // Predicated region
  $region2: #{global_generator_forward.40} parent=0 // pred_check
    _
  $region3: #{global_generator_forward.40} parent=0 // pred_check_branch
    %11 = sbr.rel (0) target = $region5
  $region4: #{global_generator_forward.40} parent=0 // pred_region
    _
  $region5: #{global_generator_forward.40} parent=0 // pred_fallthru
    _
  // Predicated region
  $region6: #{global_generator_forward.40} parent=0 // pred_check
    _
  $region7: #{global_generator_forward.40} parent=0 // pred_check_branch
    %13 = sbr.rel (0) target = $region9
  $region8: #{global_generator_forward.40} parent=0 // pred_region
    _
  $region9: #{global_generator_forward.40} parent=0 // pred_fallthru
    _
  // Predicated region
  $region10: #{global_generator_forward.40} parent=0 // pred_check
    _
  $region11: #{global_generator_forward.40} parent=0 // pred_check_branch
    %15 = sbr.rel (0) target = $region13
  $region12: #{global_generator_forward.40} parent=0 // pred_region
    _
  $region13: #{global_generator_forward.40} parent=0 // pred_fallthru
    _
  %v17 = vld [vmem:[%s0] sm:$0xf]
  %v18 = vld [vmem:[%s0 + $0x4] sm:$0xf]
  %v19 = vld [vmem:[%s0 + $0x8] sm:$0xf]
  %v20 = vld [vmem:[%s0 + $0xc] sm:$0xf]
  %v21 = vld [vmem:[%s1] sm:$0xf]
  %v22 = vld [vmem:[%s1 + $0x4] sm:$0xf]
  %v23 = vld [vmem:[%s1 + $0x8] sm:$0xf]
  %v24 = vld [vmem:[%s1 + $0xc] sm:$0xf]
  %v25 = vld [vmem:[%s1 + $0x10] sm:$0xf]
  %v26 = vld [vmem:[%s1 + $0x14] sm:$0xf]
  %v27 = vld [vmem:[%s1 + $0x18] sm:$0xf]
  %v28 = vld [vmem:[%s1 + $0x1c] sm:$0xf]
  %v29 = vld [vmem:[%s2] sm:$0x1]
  %v31 = vlaneseq
  %v32 = vshrl.u32 %v31, 7
  %v33 = vsub.s32 0, %v32
  %v34 = vrot.slane %v29, %v33
  %v40 = vunpack.c.l.b16 %v17
  %v41 = vunpack.c.l.b16 %v18
  %v42 = vunpack.c.l.b16 %v19
  %v43 = vunpack.c.l.b16 %v20
  %v44 = vpack.c.b16 %v41, %v40
  %v45 = vpack.c.b16 %v43, %v42
  %v54 = vunpack.c.l.b16 %v21
  %v55 = vunpack.c.l.b16 %v22
  %v56 = vunpack.c.l.b16 %v23
  %v57 = vunpack.c.l.b16 %v24
  %v58 = vunpack.c.l.b16 %v25
  %v59 = vunpack.c.l.b16 %v26
  %v60 = vunpack.c.l.b16 %v27
  %v61 = vunpack.c.l.b16 %v28
  %v62 = vpack.c.b16 %v55, %v54
  %v63 = vpack.c.b16 %v57, %v56
  %v64 = vpack.c.b16 %v59, %v58
  %v65 = vpack.c.b16 %v61, %v60
  %vm70 = vcmask 523264
  %v72 = vsel %vm70, %v44, 0
  %v75 = vsel %vm70, %v45, 0
  %77 = vmatprep.subr.bf16.mxu0 0
  %78 = vmatpush1.bf16.msra.mxu0 0
  %79 = vmatprep.subr.bf16.mxu0 0
  %80 = vmatpush1.bf16.msra.mxu0 0
  %81 = vmatprep.subr.bf16.mxu0 0
  %82 = vmatpush1.bf16.msra.mxu0 0
  %83 = vmatprep.subr.bf16.mxu0 0
  %84 = vmatpush1.bf16.msra.mxu0 0
  %85 = vmatprep.subr.bf16.mxu0 0
  %86 = vmatpush1.bf16.msra.mxu0 %v65
  %87 = vmatprep.subr.bf16.mxu0 0
  %88 = vmatpush1.bf16.msra.mxu0 %v64
  %89 = vmatprep.subr.bf16.mxu0 0
  %90 = vmatpush1.bf16.msra.mxu0 %v63
  %91 = vmatprep.subr.bf16.mxu0 0
  %92 = vmatpush1.bf16.msra.mxu0 %v62
  %93 = vmatprep.subr.bf16.mxu0 0
  %94 = vmatpush2.bf16.msra.mxu0 0
  %95 = vmatprep.subr.bf16.mxu0 0
  %96 = vmatpush2.bf16.msra.mxu0 0
  %97 = vmatprep.subr.bf16.mxu0 0
  %98 = vmatpush2.bf16.msra.mxu0 0
  %99 = vmatprep.subr.bf16.mxu0 0
  %100 = vmatpush2.bf16.msra.mxu0 0
  %101 = vmatprep.subr.bf16.mxu0 0
  %102 = vmatpush2.bf16.msra.mxu0 0
  %103 = vmatprep.subr.bf16.mxu0 0
  %104 = vmatpush2.bf16.msra.mxu0 0
  %105 = vmatprep.subr.bf16.mxu0 0
  %106 = vmatpush2.bf16.msra.mxu0 0
  %107 = vmatprep.subr.bf16.mxu0 0
  %108 = vmatpush2.bf16.msra.mxu0 0
  %109 = vmatprep.mubr.bf16.mxu0 0
  %110 = vmatmul.mubr.bf16.gmra.mxu0 %v72
  %v111 = vpop.f32.mrf.mxu0
  %v112 = vadd.f32 %v34, %v111
  %v113 = vpop.f32.mrf.mxu0
  %v114 = vpop.f32.mrf.mxu0
  %v115 = vadd.f32 %v34, %v114
  %v116 = vpop.f32.mrf.mxu0
  %117 = vmatprep.mubr.bf16.mxu0 0
  %118 = vmatmul.mubr.bf16.gmra.mxu0 %v75
  %v119 = vpop.f32.mrf.mxu0
  %v120 = vadd.f32 %v34, %v119
  %v121 = vpop.f32.mrf.mxu0
  %v122 = vpop.f32.mrf.mxu0
  %v123 = vadd.f32 %v34, %v122
  %v124 = vpop.f32.mrf.mxu0
  %125 = vdwg.mxu0
  %v126 = vlaneseq
  %v127 = vshrl.u32 %v126, 7
  %v128 = vadd.s32 %v127, 8
  %v129 = vadd.s32 %v127, 16
  %v130 = vadd.s32 %v127, 24
  %s131 = smul.u32 0, 32
  %v132 = vstv %s131
  %v133 = vadd.s32 %v127, %v132
  %v134 = vadd.s32 %v128, %v132
  %v135 = vadd.s32 %v129, %v132
  %v136 = vadd.s32 %v130, %v132
  %vm137 = vcmp.lt.s32.totalorder %v133, 32
  %vm138 = vcmp.lt.s32.totalorder %v134, 32
  %vm139 = vcmp.lt.s32.totalorder %v135, 32
  %vm140 = vcmp.lt.s32.totalorder %v136, 32
  %v141 = vsel %vm137, %v112, 0.0
  %v142 = vsel %vm138, %v115, 0.0
  %v143 = vsel %vm139, %v120, 0.0
  %v144 = vsel %vm140, %v123, 0.0
  %vm145 = vcmask 130048
  %v146 = vsel %vm145, %v141, 0.0
  %v147 = vsel %vm145, %v142, 0.0
  %v148 = vadd.f32 %v146, %v147
  %v149 = vsel %vm145, %v143, 0.0
  %v150 = vadd.f32 %v148, %v149
  %v151 = vsel %vm145, %v144, 0.0
  %v152 = vadd.f32 %v150, %v151
  %v153 = vrot.slane %v152, 4
  %v154 = vadd.f32 %v152, %v153
  %v155 = vrot.slane %v154, 2
  %v156 = vadd.f32 %v154, %v155
  %v157 = vrot.slane %v156, 1
  %v158 = vadd.f32 %v156, %v157
  %v159 = vmul.f32 %v141, %v141
  %v160 = vmul.f32 %v142, %v142
  %v161 = vmul.f32 %v143, %v143
  %v162 = vmul.f32 %v144, %v144
  %v163 = vsel %vm145, %v159, 0.0
  %v164 = vsel %vm145, %v160, 0.0
  %v165 = vadd.f32 %v163, %v164
  %v166 = vsel %vm145, %v161, 0.0
  %v167 = vadd.f32 %v165, %v166
  %v168 = vsel %vm145, %v162, 0.0
  %v169 = vadd.f32 %v167, %v168
  %v170 = vrot.slane %v169, 4
  %v171 = vadd.f32 %v169, %v170
  %v172 = vrot.slane %v171, 2
  %v173 = vadd.f32 %v171, %v172
  %v174 = vrot.slane %v173, 1
  %v175 = vadd.f32 %v173, %v174
  %vm176 = vcmask 1040384
  %v177 = vsel %vm176, %v158, %v175
  %vm178 = vcmask 123904
  %179 = vst.msk [vmem:[%s4] sm:$0x3] %vm178, %v177
  %180 = vst.msk [vmem:[%s3] sm:$0xff] %vm145, %v112
  %181 = vst.msk [vmem:[%s3 + $0x8] sm:$0xff] %vm145, %v115
  %182 = vst.msk [vmem:[%s3 + $0x10] sm:$0xff] %vm145, %v120
  %183 = vst.msk [vmem:[%s3 + $0x18] sm:$0xff] %vm145, %v123
  // Predicated region
  $region14: #{global_generator_forward.40} parent=0 // pred_check
    _
  $region15: #{global_generator_forward.40} parent=0 // pred_check_branch
    %185 = sbr.rel (0) target = $region17
  $region16: #{global_generator_forward.40} parent=0 // pred_region
    _
  $region17: #{global_generator_forward.40} parent=0 // pred_fallthru
    _
  // Predicated region
  $region18: #{global_generator_forward.40} parent=0 // pred_check
    _
  $region19: #{global_generator_forward.40} parent=0 // pred_check_branch
    %187 = sbr.rel (0) target = $region21
  $region20: #{global_generator_forward.40} parent=0 // pred_region
    _
  $region21: #{global_generator_forward.40} parent=0 // pred_fallthru
    _
  // Predicated region
  $region22: #{global_generator_forward.40} parent=0 // pred_check
    _
  $region23: #{global_generator_forward.40} parent=0 // pred_check_branch
    %189 = sbr.rel (0) target = $region25
  $region24: #{global_generator_forward.40} parent=0 // pred_region
    _
  $region25: #{global_generator_forward.40} parent=0 // pred_fallthru
    _
  // Predicated region
  $region26: #{global_generator_forward.40} parent=0 // pred_check
    _
  $region27: #{global_generator_forward.40} parent=0 // pred_check_branch
    %191 = sbr.rel (0) target = $region29
  $region28: #{global_generator_forward.40} parent=0 // pred_region
    _
  $region29: #{global_generator_forward.40} parent=0 // pred_fallthru
    _

// kernel: global_generator_forward.42
$region0: #{global_generator_forward.42}
  #allocation0 [shape = 'u32[]', space=smem, size = 0x4, offset = 0x4, fixed_abs, tag = 'smem constant byte address 0x4 - core index']
  #allocation1 [shape = 'u32[144,128]{1,0:T(1,128)}', space=vmem, size = 0x12000, scoped, tag = 'internal scratch']
  %s0 = inlined_call_operand.vmem [shape: bf16[32,128], index: 0, kind: input, shape index: {}]
  %s1 = inlined_call_operand.vmem [shape: bf16[128,16], index: 1, kind: input, shape index: {}]
  %s2 = inlined_call_operand.vmem [shape: f32[1,16], index: 2, kind: input, shape index: {}]
  %s3 = inlined_call_operand.vmem [shape: f32[32,16], index: 3, kind: output, shape index: {0}]
  %s4 = inlined_call_operand.vmem [shape: f32[1,2,16], index: 4, kind: output, shape index: {1}]
  %5 = xla_tuple %s3, %s4
  %s6 = sld [smem:[#allocation0]]
  $region30: #{global_generator_forward.42} parent=0
    _
  %s8 = ssub.s32 1, %s6
  %s9 = scalar_select 0, %s8, %s6
  // Predicated region
  $region2: #{global_generator_forward.42} parent=0 // pred_check
    _
  $region3: #{global_generator_forward.42} parent=0 // pred_check_branch
    %11 = sbr.rel (0) target = $region5
  $region4: #{global_generator_forward.42} parent=0 // pred_region
    _
  $region5: #{global_generator_forward.42} parent=0 // pred_fallthru
    _
  // Predicated region
  $region6: #{global_generator_forward.42} parent=0 // pred_check
    _
  $region7: #{global_generator_forward.42} parent=0 // pred_check_branch
    %13 = sbr.rel (0) target = $region9
  $region8: #{global_generator_forward.42} parent=0 // pred_region
    _
  $region9: #{global_generator_forward.42} parent=0 // pred_fallthru
    _
  // Predicated region
  $region10: #{global_generator_forward.42} parent=0 // pred_check
    _
  $region11: #{global_generator_forward.42} parent=0 // pred_check_branch
    %15 = sbr.rel (0) target = $region13
  $region12: #{global_generator_forward.42} parent=0 // pred_region
    _
  $region13: #{global_generator_forward.42} parent=0 // pred_fallthru
    _
  %v17 = vld [vmem:[%s0] sm:$0xf]
  %v18 = vld [vmem:[%s0 + $0x4] sm:$0xf]
  %v19 = vld [vmem:[%s0 + $0x8] sm:$0xf]
  %v20 = vld [vmem:[%s0 + $0xc] sm:$0xf]
  %v21 = vld [vmem:[%s1] sm:$0xf]
  %v22 = vld [vmem:[%s1 + $0x4] sm:$0xf]
  %v23 = vld [vmem:[%s1 + $0x8] sm:$0xf]
  %v24 = vld [vmem:[%s1 + $0xc] sm:$0xf]
  %v25 = vld [vmem:[%s1 + $0x10] sm:$0xf]
  %v26 = vld [vmem:[%s1 + $0x14] sm:$0xf]
  %v27 = vld [vmem:[%s1 + $0x18] sm:$0xf]
  %v28 = vld [vmem:[%s1 + $0x1c] sm:$0xf]
  %v29 = vld [vmem:[%s1 + $0x20] sm:$0xf]
  %v30 = vld [vmem:[%s1 + $0x24] sm:$0xf]
  %v31 = vld [vmem:[%s1 + $0x28] sm:$0xf]
  %v32 = vld [vmem:[%s1 + $0x2c] sm:$0xf]
  %v33 = vld [vmem:[%s1 + $0x30] sm:$0xf]
  %v34 = vld [vmem:[%s1 + $0x34] sm:$0xf]
  %v35 = vld [vmem:[%s1 + $0x38] sm:$0xf]
  %v36 = vld [vmem:[%s1 + $0x3c] sm:$0xf]
  %v37 = vld [vmem:[%s2] sm:$0x1]
  %v39 = vlaneseq
  %v40 = vshrl.u32 %v39, 7
  %v41 = vsub.s32 0, %v40
  %v42 = vrot.slane %v37, %v41
  %v48 = vunpack.c.l.b16 %v17
  %v49 = vunpack.c.l.b16 %v18
  %v50 = vunpack.c.l.b16 %v19
  %v51 = vunpack.c.l.b16 %v20
  %v52 = vpack.c.b16 %v49, %v48
  %v53 = vpack.c.b16 %v51, %v50
  %v72 = vunpack.c.l.b16 %v21
  %v73 = vunpack.c.l.b16 %v22
  %v74 = vunpack.c.l.b16 %v23
  %v75 = vunpack.c.l.b16 %v24
  %v76 = vunpack.c.l.b16 %v25
  %v77 = vunpack.c.l.b16 %v26
  %v78 = vunpack.c.l.b16 %v27
  %v79 = vunpack.c.l.b16 %v28
  %v80 = vunpack.c.l.b16 %v29
  %v81 = vunpack.c.l.b16 %v30
  %v82 = vunpack.c.l.b16 %v31
  %v83 = vunpack.c.l.b16 %v32
  %v84 = vunpack.c.l.b16 %v33
  %v85 = vunpack.c.l.b16 %v34
  %v86 = vunpack.c.l.b16 %v35
  %v87 = vunpack.c.l.b16 %v36
  %v88 = vpack.c.b16 %v73, %v72
  %v89 = vpack.c.b16 %v75, %v74
  %v90 = vpack.c.b16 %v77, %v76
  %v91 = vpack.c.b16 %v79, %v78
  %v92 = vpack.c.b16 %v81, %v80
  %v93 = vpack.c.b16 %v83, %v82
  %v94 = vpack.c.b16 %v85, %v84
  %v95 = vpack.c.b16 %v87, %v86
  %104 = vmatprep.subr.bf16.mxu0 0
  %105 = vmatpush1.bf16.msra.mxu0 %v95
  %106 = vmatprep.subr.bf16.mxu0 0
  %107 = vmatpush1.bf16.msra.mxu0 %v94
  %108 = vmatprep.subr.bf16.mxu0 0
  %109 = vmatpush1.bf16.msra.mxu0 %v93
  %110 = vmatprep.subr.bf16.mxu0 0
  %111 = vmatpush1.bf16.msra.mxu0 %v92
  %112 = vmatprep.subr.bf16.mxu0 0
  %113 = vmatpush1.bf16.msra.mxu0 %v91
  %114 = vmatprep.subr.bf16.mxu0 0
  %115 = vmatpush1.bf16.msra.mxu0 %v90
  %116 = vmatprep.subr.bf16.mxu0 0
  %117 = vmatpush1.bf16.msra.mxu0 %v89
  %118 = vmatprep.subr.bf16.mxu0 0
  %119 = vmatpush1.bf16.msra.mxu0 %v88
  %120 = vmatprep.subr.bf16.mxu0 0
  %121 = vmatpush2.bf16.msra.mxu0 0
  %122 = vmatprep.subr.bf16.mxu0 0
  %123 = vmatpush2.bf16.msra.mxu0 0
  %124 = vmatprep.subr.bf16.mxu0 0
  %125 = vmatpush2.bf16.msra.mxu0 0
  %126 = vmatprep.subr.bf16.mxu0 0
  %127 = vmatpush2.bf16.msra.mxu0 0
  %128 = vmatprep.subr.bf16.mxu0 0
  %129 = vmatpush2.bf16.msra.mxu0 0
  %130 = vmatprep.subr.bf16.mxu0 0
  %131 = vmatpush2.bf16.msra.mxu0 0
  %132 = vmatprep.subr.bf16.mxu0 0
  %133 = vmatpush2.bf16.msra.mxu0 0
  %134 = vmatprep.subr.bf16.mxu0 0
  %135 = vmatpush2.bf16.msra.mxu0 0
  %136 = vmatprep.mubr.bf16.mxu0 0
  %137 = vmatmul.mubr.bf16.gmra.mxu0 %v52
  %v138 = vpop.f32.mrf.mxu0
  %v139 = vadd.f32 %v42, %v138
  %v140 = vpop.f32.mrf.mxu0
  %v141 = vpop.f32.mrf.mxu0
  %v142 = vadd.f32 %v42, %v141
  %v143 = vpop.f32.mrf.mxu0
  %144 = vmatprep.mubr.bf16.mxu0 0
  %145 = vmatmul.mubr.bf16.gmra.mxu0 %v53
  %v146 = vpop.f32.mrf.mxu0
  %v147 = vadd.f32 %v42, %v146
  %v148 = vpop.f32.mrf.mxu0
  %v149 = vpop.f32.mrf.mxu0
  %v150 = vadd.f32 %v42, %v149
  %v151 = vpop.f32.mrf.mxu0
  %152 = vdwg.mxu0
  %v153 = vlaneseq
  %v154 = vshrl.u32 %v153, 7
  %v155 = vadd.s32 %v154, 8
  %v156 = vadd.s32 %v154, 16
  %v157 = vadd.s32 %v154, 24
  %s158 = smul.u32 0, 32
  %v159 = vstv %s158
  %v160 = vadd.s32 %v154, %v159
  %v161 = vadd.s32 %v155, %v159
  %v162 = vadd.s32 %v156, %v159
  %v163 = vadd.s32 %v157, %v159
  %vm164 = vcmp.lt.s32.totalorder %v160, 32
  %vm165 = vcmp.lt.s32.totalorder %v161, 32
  %vm166 = vcmp.lt.s32.totalorder %v162, 32
  %vm167 = vcmp.lt.s32.totalorder %v163, 32
  %v168 = vsel %vm164, %v139, 0.0
  %v169 = vsel %vm165, %v142, 0.0
  %v170 = vsel %vm166, %v147, 0.0
  %v171 = vsel %vm167, %v150, 0.0
  %vm172 = vcmask 130048
  %v173 = vsel %vm172, %v168, 0.0
  %v174 = vsel %vm172, %v169, 0.0
  %v175 = vadd.f32 %v173, %v174
  %v176 = vsel %vm172, %v170, 0.0
  %v177 = vadd.f32 %v175, %v176
  %v178 = vsel %vm172, %v171, 0.0
  %v179 = vadd.f32 %v177, %v178
  %v180 = vrot.slane %v179, 4
  %v181 = vadd.f32 %v179, %v180
  %v182 = vrot.slane %v181, 2
  %v183 = vadd.f32 %v181, %v182
  %v184 = vrot.slane %v183, 1
  %v185 = vadd.f32 %v183, %v184
  %v186 = vmul.f32 %v168, %v168
  %v187 = vmul.f32 %v169, %v169
  %v188 = vmul.f32 %v170, %v170
  %v189 = vmul.f32 %v171, %v171
  %v190 = vsel %vm172, %v186, 0.0
  %v191 = vsel %vm172, %v187, 0.0
  %v192 = vadd.f32 %v190, %v191
  %v193 = vsel %vm172, %v188, 0.0
  %v194 = vadd.f32 %v192, %v193
  %v195 = vsel %vm172, %v189, 0.0
  %v196 = vadd.f32 %v194, %v195
  %v197 = vrot.slane %v196, 4
  %v198 = vadd.f32 %v196, %v197
  %v199 = vrot.slane %v198, 2
  %v200 = vadd.f32 %v198, %v199
  %v201 = vrot.slane %v200, 1
  %v202 = vadd.f32 %v200, %v201
  %vm203 = vcmask 1040384
  %v204 = vsel %vm203, %v185, %v202
  %vm205 = vcmask 123904
  %206 = vst.msk [vmem:[%s4] sm:$0x3] %vm205, %v204
  %207 = vst.msk [vmem:[%s3] sm:$0xff] %vm172, %v139
  %208 = vst.msk [vmem:[%s3 + $0x8] sm:$0xff] %vm172, %v142
  %209 = vst.msk [vmem:[%s3 + $0x10] sm:$0xff] %vm172, %v147
  %210 = vst.msk [vmem:[%s3 + $0x18] sm:$0xff] %vm172, %v150
  // Predicated region
  $region14: #{global_generator_forward.42} parent=0 // pred_check
    _
  $region15: #{global_generator_forward.42} parent=0 // pred_check_branch
    %212 = sbr.rel (0) target = $region17
  $region16: #{global_generator_forward.42} parent=0 // pred_region
    _
  $region17: #{global_generator_forward.42} parent=0 // pred_fallthru
    _
  // Predicated region
  $region18: #{global_generator_forward.42} parent=0 // pred_check
    _
  $region19: #{global_generator_forward.42} parent=0 // pred_check_branch
    %214 = sbr.rel (0) target = $region21
  $region20: #{global_generator_forward.42} parent=0 // pred_region
    _
  $region21: #{global_generator_forward.42} parent=0 // pred_fallthru
    _
  // Predicated region
  $region22: #{global_generator_forward.42} parent=0 // pred_check
    _
  $region23: #{global_generator_forward.42} parent=0 // pred_check_branch
    %216 = sbr.rel (0) target = $region25
  $region24: #{global_generator_forward.42} parent=0 // pred_region
    _
  $region25: #{global_generator_forward.42} parent=0 // pred_fallthru
    _
  // Predicated region
  $region26: #{global_generator_forward.42} parent=0 // pred_check
    _
  $region27: #{global_generator_forward.42} parent=0 // pred_check_branch
    %218 = sbr.rel (0) target = $region29
  $region28: #{global_generator_forward.42} parent=0 // pred_region
    _
  $region29: #{global_generator_forward.42} parent=0 // pred_fallthru
    _

// kernel: global_generator_forward.45
$region0: #{global_generator_forward.45}
  #allocation0 [shape = 'u32[]', space=smem, size = 0x4, offset = 0x4, fixed_abs, tag = 'smem constant byte address 0x4 - core index']
  #allocation1 [shape = 'u32[144,128]{1,0:T(1,128)}', space=vmem, size = 0x12000, scoped, tag = 'internal scratch']
  %s0 = inlined_call_operand.vmem [shape: bf16[128,32], index: 0, kind: input, shape index: {}]
  %s1 = inlined_call_operand.vmem [shape: bf16[32,8], index: 1, kind: input, shape index: {}]
  %s2 = inlined_call_operand.vmem [shape: f32[1,8], index: 2, kind: input, shape index: {}]
  %s3 = inlined_call_operand.vmem [shape: f32[128,8], index: 3, kind: output, shape index: {0}]
  %s4 = inlined_call_operand.vmem [shape: f32[1,2,8], index: 4, kind: output, shape index: {1}]
  %5 = xla_tuple %s3, %s4
  %s6 = sld [smem:[#allocation0]]
  $region30: #{global_generator_forward.45} parent=0
    _
  %s8 = ssub.s32 1, %s6
  %s9 = scalar_select 0, %s8, %s6
  // Predicated region
  $region2: #{global_generator_forward.45} parent=0 // pred_check
    _
  $region3: #{global_generator_forward.45} parent=0 // pred_check_branch
    %11 = sbr.rel (0) target = $region5
  $region4: #{global_generator_forward.45} parent=0 // pred_region
    _
  $region5: #{global_generator_forward.45} parent=0 // pred_fallthru
    _
  // Predicated region
  $region6: #{global_generator_forward.45} parent=0 // pred_check
    _
  $region7: #{global_generator_forward.45} parent=0 // pred_check_branch
    %13 = sbr.rel (0) target = $region9
  $region8: #{global_generator_forward.45} parent=0 // pred_region
    _
  $region9: #{global_generator_forward.45} parent=0 // pred_fallthru
    _
  // Predicated region
  $region10: #{global_generator_forward.45} parent=0 // pred_check
    _
  $region11: #{global_generator_forward.45} parent=0 // pred_check_branch
    %15 = sbr.rel (0) target = $region13
  $region12: #{global_generator_forward.45} parent=0 // pred_region
    _
  $region13: #{global_generator_forward.45} parent=0 // pred_fallthru
    _
  %v17 = vld [vmem:[%s0] sm:$0xf]
  %v18 = vld [vmem:[%s0 + $0x4] sm:$0xf]
  %v19 = vld [vmem:[%s0 + $0x8] sm:$0xf]
  %v20 = vld [vmem:[%s0 + $0xc] sm:$0xf]
  %v21 = vld [vmem:[%s0 + $0x10] sm:$0xf]
  %v22 = vld [vmem:[%s0 + $0x14] sm:$0xf]
  %v23 = vld [vmem:[%s0 + $0x18] sm:$0xf]
  %v24 = vld [vmem:[%s0 + $0x1c] sm:$0xf]
  %v25 = vld [vmem:[%s0 + $0x20] sm:$0xf]
  %v26 = vld [vmem:[%s0 + $0x24] sm:$0xf]
  %v27 = vld [vmem:[%s0 + $0x28] sm:$0xf]
  %v28 = vld [vmem:[%s0 + $0x2c] sm:$0xf]
  %v29 = vld [vmem:[%s0 + $0x30] sm:$0xf]
  %v30 = vld [vmem:[%s0 + $0x34] sm:$0xf]
  %v31 = vld [vmem:[%s0 + $0x38] sm:$0xf]
  %v32 = vld [vmem:[%s0 + $0x3c] sm:$0xf]
  %v33 = vld [vmem:[%s1] sm:$0xf]
  %v34 = vld [vmem:[%s1 + $0x4] sm:$0xf]
  %v35 = vld [vmem:[%s1 + $0x8] sm:$0xf]
  %v36 = vld [vmem:[%s1 + $0xc] sm:$0xf]
  %v37 = vld [vmem:[%s2] sm:$0x1]
  %v39 = vlaneseq
  %v40 = vshrl.u32 %v39, 7
  %v41 = vsub.s32 0, %v40
  %v42 = vrot.slane %v37, %v41
  %v60 = vunpack.c.l.b16 %v17
  %v61 = vunpack.c.l.b16 %v18
  %v62 = vunpack.c.l.b16 %v19
  %v63 = vunpack.c.l.b16 %v20
  %v64 = vunpack.c.l.b16 %v21
  %v65 = vunpack.c.l.b16 %v22
  %v66 = vunpack.c.l.b16 %v23
  %v67 = vunpack.c.l.b16 %v24
  %v68 = vunpack.c.l.b16 %v25
  %v69 = vunpack.c.l.b16 %v26
  %v70 = vunpack.c.l.b16 %v27
  %v71 = vunpack.c.l.b16 %v28
  %v72 = vunpack.c.l.b16 %v29
  %v73 = vunpack.c.l.b16 %v30
  %v74 = vunpack.c.l.b16 %v31
  %v75 = vunpack.c.l.b16 %v32
  %v76 = vpack.c.b16 %v61, %v60
  %v77 = vpack.c.b16 %v63, %v62
  %v78 = vpack.c.b16 %v65, %v64
  %v79 = vpack.c.b16 %v67, %v66
  %v80 = vpack.c.b16 %v69, %v68
  %v81 = vpack.c.b16 %v71, %v70
  %v82 = vpack.c.b16 %v73, %v72
  %v83 = vpack.c.b16 %v75, %v74
  %v88 = vunpack.c.l.b16 %v33
  %v89 = vunpack.c.l.b16 %v34
  %v90 = vunpack.c.l.b16 %v35
  %v91 = vunpack.c.l.b16 %v36
  %v92 = vpack.c.b16 %v89, %v88
  %v93 = vpack.c.b16 %v91, %v90
  %vm96 = vcmask 261120
  %v98 = vsel %vm96, %v76, 0
  %v101 = vsel %vm96, %v77, 0
  %v104 = vsel %vm96, %v78, 0
  %v107 = vsel %vm96, %v79, 0
  %v110 = vsel %vm96, %v80, 0
  %v113 = vsel %vm96, %v81, 0
  %v116 = vsel %vm96, %v82, 0
  %v119 = vsel %vm96, %v83, 0
  %121 = vmatprep.subr.bf16.mxu0 0
  %122 = vmatpush1.bf16.msra.mxu0 0
  %123 = vmatprep.subr.bf16.mxu0 0
  %124 = vmatpush1.bf16.msra.mxu0 0
  %125 = vmatprep.subr.bf16.mxu0 0
  %126 = vmatpush1.bf16.msra.mxu0 0
  %127 = vmatprep.subr.bf16.mxu0 0
  %128 = vmatpush1.bf16.msra.mxu0 0
  %129 = vmatprep.subr.bf16.mxu0 0
  %130 = vmatpush1.bf16.msra.mxu0 0
  %131 = vmatprep.subr.bf16.mxu0 0
  %132 = vmatpush1.bf16.msra.mxu0 0
  %133 = vmatprep.subr.bf16.mxu0 0
  %134 = vmatpush1.bf16.msra.mxu0 %v93
  %135 = vmatprep.subr.bf16.mxu0 0
  %136 = vmatpush1.bf16.msra.mxu0 %v92
  %137 = vmatprep.subr.bf16.mxu0 0
  %138 = vmatpush2.bf16.msra.mxu0 0
  %139 = vmatprep.subr.bf16.mxu0 0
  %140 = vmatpush2.bf16.msra.mxu0 0
  %141 = vmatprep.subr.bf16.mxu0 0
  %142 = vmatpush2.bf16.msra.mxu0 0
  %143 = vmatprep.subr.bf16.mxu0 0
  %144 = vmatpush2.bf16.msra.mxu0 0
  %145 = vmatprep.subr.bf16.mxu0 0
  %146 = vmatpush2.bf16.msra.mxu0 0
  %147 = vmatprep.subr.bf16.mxu0 0
  %148 = vmatpush2.bf16.msra.mxu0 0
  %149 = vmatprep.subr.bf16.mxu0 0
  %150 = vmatpush2.bf16.msra.mxu0 0
  %151 = vmatprep.subr.bf16.mxu0 0
  %152 = vmatpush2.bf16.msra.mxu0 0
  %153 = vmatprep.mubr.bf16.mxu0 0
  %154 = vmatmul.mubr.bf16.gmra.mxu0 %v98
  %v155 = vpop.f32.mrf.mxu0
  %v156 = vadd.f32 %v42, %v155
  %v157 = vpop.f32.mrf.mxu0
  %v158 = vpop.f32.mrf.mxu0
  %v159 = vadd.f32 %v42, %v158
  %v160 = vpop.f32.mrf.mxu0
  %161 = vmatprep.mubr.bf16.mxu0 0
  %162 = vmatmul.mubr.bf16.gmra.mxu0 %v101
  %v163 = vpop.f32.mrf.mxu0
  %v164 = vadd.f32 %v42, %v163
  %v165 = vpop.f32.mrf.mxu0
  %v166 = vpop.f32.mrf.mxu0
  %v167 = vadd.f32 %v42, %v166
  %v168 = vpop.f32.mrf.mxu0
  %169 = vmatprep.mubr.bf16.mxu0 0
  %170 = vmatmul.mubr.bf16.gmra.mxu0 %v104
  %v171 = vpop.f32.mrf.mxu0
  %v172 = vadd.f32 %v42, %v171
  %v173 = vpop.f32.mrf.mxu0
  %v174 = vpop.f32.mrf.mxu0
  %v175 = vadd.f32 %v42, %v174
  %v176 = vpop.f32.mrf.mxu0
  %177 = vmatprep.mubr.bf16.mxu0 0
  %178 = vmatmul.mubr.bf16.gmra.mxu0 %v107
  %v179 = vpop.f32.mrf.mxu0
  %v180 = vadd.f32 %v42, %v179
  %v181 = vpop.f32.mrf.mxu0
  %v182 = vpop.f32.mrf.mxu0
  %v183 = vadd.f32 %v42, %v182
  %v184 = vpop.f32.mrf.mxu0
  %185 = vmatprep.mubr.bf16.mxu0 0
  %186 = vmatmul.mubr.bf16.gmra.mxu0 %v110
  %v187 = vpop.f32.mrf.mxu0
  %v188 = vadd.f32 %v42, %v187
  %v189 = vpop.f32.mrf.mxu0
  %v190 = vpop.f32.mrf.mxu0
  %v191 = vadd.f32 %v42, %v190
  %v192 = vpop.f32.mrf.mxu0
  %193 = vmatprep.mubr.bf16.mxu0 0
  %194 = vmatmul.mubr.bf16.gmra.mxu0 %v113
  %v195 = vpop.f32.mrf.mxu0
  %v196 = vadd.f32 %v42, %v195
  %v197 = vpop.f32.mrf.mxu0
  %v198 = vpop.f32.mrf.mxu0
  %v199 = vadd.f32 %v42, %v198
  %v200 = vpop.f32.mrf.mxu0
  %201 = vmatprep.mubr.bf16.mxu0 0
  %202 = vmatmul.mubr.bf16.gmra.mxu0 %v116
  %v203 = vpop.f32.mrf.mxu0
  %v204 = vadd.f32 %v42, %v203
  %v205 = vpop.f32.mrf.mxu0
  %v206 = vpop.f32.mrf.mxu0
  %v207 = vadd.f32 %v42, %v206
  %v208 = vpop.f32.mrf.mxu0
  %209 = vmatprep.mubr.bf16.mxu0 0
  %210 = vmatmul.mubr.bf16.gmra.mxu0 %v119
  %v211 = vpop.f32.mrf.mxu0
  %v212 = vadd.f32 %v42, %v211
  %v213 = vpop.f32.mrf.mxu0
  %v214 = vpop.f32.mrf.mxu0
  %v215 = vadd.f32 %v42, %v214
  %v216 = vpop.f32.mrf.mxu0
  %217 = vdwg.mxu0
  %v218 = vlaneseq
  %v219 = vshrl.u32 %v218, 7
  %v220 = vadd.s32 %v219, 8
  %v221 = vadd.s32 %v219, 16
  %v222 = vadd.s32 %v219, 24
  %v223 = vadd.s32 %v219, 32
  %v224 = vadd.s32 %v219, 40
  %v225 = vadd.s32 %v219, 48
  %v226 = vadd.s32 %v219, 56
  %v227 = vadd.s32 %v219, 64
  %v228 = vadd.s32 %v219, 72
  %v229 = vadd.s32 %v219, 80
  %v230 = vadd.s32 %v219, 88
  %v231 = vadd.s32 %v219, 96
  %v232 = vadd.s32 %v219, 104
  %v233 = vadd.s32 %v219, 112
  %v234 = vadd.s32 %v219, 120
  %s235 = smul.u32 0, 128
  %v236 = vstv %s235
  %v237 = vadd.s32 %v219, %v236
  %v238 = vadd.s32 %v220, %v236
  %v239 = vadd.s32 %v221, %v236
  %v240 = vadd.s32 %v222, %v236
  %v241 = vadd.s32 %v223, %v236
  %v242 = vadd.s32 %v224, %v236
  %v243 = vadd.s32 %v225, %v236
  %v244 = vadd.s32 %v226, %v236
  %v245 = vadd.s32 %v227, %v236
  %v246 = vadd.s32 %v228, %v236
  %v247 = vadd.s32 %v229, %v236
  %v248 = vadd.s32 %v230, %v236
  %v249 = vadd.s32 %v231, %v236
  %v250 = vadd.s32 %v232, %v236
  %v251 = vadd.s32 %v233, %v236
  %v252 = vadd.s32 %v234, %v236
  %vm253 = vcmp.lt.s32.totalorder %v237, 128
  %vm254 = vcmp.lt.s32.totalorder %v238, 128
  %vm255 = vcmp.lt.s32.totalorder %v239, 128
  %vm256 = vcmp.lt.s32.totalorder %v240, 128
  %vm257 = vcmp.lt.s32.totalorder %v241, 128
  %vm258 = vcmp.lt.s32.totalorder %v242, 128
  %vm259 = vcmp.lt.s32.totalorder %v243, 128
  %vm260 = vcmp.lt.s32.totalorder %v244, 128
  %vm261 = vcmp.lt.s32.totalorder %v245, 128
  %vm262 = vcmp.lt.s32.totalorder %v246, 128
  %vm263 = vcmp.lt.s32.totalorder %v247, 128
  %vm264 = vcmp.lt.s32.totalorder %v248, 128
  %vm265 = vcmp.lt.s32.totalorder %v249, 128
  %vm266 = vcmp.lt.s32.totalorder %v250, 128
  %vm267 = vcmp.lt.s32.totalorder %v251, 128
  %vm268 = vcmp.lt.s32.totalorder %v252, 128
  %v269 = vsel %vm253, %v156, 0.0
  %v270 = vsel %vm254, %v159, 0.0
  %v271 = vsel %vm255, %v164, 0.0
  %v272 = vsel %vm256, %v167, 0.0
  %v273 = vsel %vm257, %v172, 0.0
  %v274 = vsel %vm258, %v175, 0.0
  %v275 = vsel %vm259, %v180, 0.0
  %v276 = vsel %vm260, %v183, 0.0
  %v277 = vsel %vm261, %v188, 0.0
  %v278 = vsel %vm262, %v191, 0.0
  %v279 = vsel %vm263, %v196, 0.0
  %v280 = vsel %vm264, %v199, 0.0
  %v281 = vsel %vm265, %v204, 0.0
  %v282 = vsel %vm266, %v207, 0.0
  %v283 = vsel %vm267, %v212, 0.0
  %v284 = vsel %vm268, %v215, 0.0
  %vm285 = vcmask 64512
  %v286 = vsel %vm285, %v269, 0.0
  %v287 = vsel %vm285, %v270, 0.0
  %v288 = vadd.f32 %v286, %v287
  %v289 = vsel %vm285, %v271, 0.0
  %v290 = vadd.f32 %v288, %v289
  %v291 = vsel %vm285, %v272, 0.0
  %v292 = vadd.f32 %v290, %v291
  %v293 = vsel %vm285, %v273, 0.0
  %v294 = vadd.f32 %v292, %v293
  %v295 = vsel %vm285, %v274, 0.0
  %v296 = vadd.f32 %v294, %v295
  %v297 = vsel %vm285, %v275, 0.0
  %v298 = vadd.f32 %v296, %v297
  %v299 = vsel %vm285, %v276, 0.0
  %v300 = vadd.f32 %v298, %v299
  %v301 = vsel %vm285, %v277, 0.0
  %v302 = vadd.f32 %v300, %v301
  %v303 = vsel %vm285, %v278, 0.0
  %v304 = vadd.f32 %v302, %v303
  %v305 = vsel %vm285, %v279, 0.0
  %v306 = vadd.f32 %v304, %v305
  %v307 = vsel %vm285, %v280, 0.0
  %v308 = vadd.f32 %v306, %v307
  %v309 = vsel %vm285, %v281, 0.0
  %v310 = vadd.f32 %v308, %v309
  %v311 = vsel %vm285, %v282, 0.0
  %v312 = vadd.f32 %v310, %v311
  %v313 = vsel %vm285, %v283, 0.0
  %v314 = vadd.f32 %v312, %v313
  %v315 = vsel %vm285, %v284, 0.0
  %v316 = vadd.f32 %v314, %v315
  %v317 = vrot.slane %v316, 4
  %v318 = vadd.f32 %v316, %v317
  %v319 = vrot.slane %v318, 2
  %v320 = vadd.f32 %v318, %v319
  %v321 = vrot.slane %v320, 1
  %v322 = vadd.f32 %v320, %v321
  %v323 = vmul.f32 %v269, %v269
  %v324 = vmul.f32 %v270, %v270
  %v325 = vmul.f32 %v271, %v271
  %v326 = vmul.f32 %v272, %v272
  %v327 = vmul.f32 %v273, %v273
  %v328 = vmul.f32 %v274, %v274
  %v329 = vmul.f32 %v275, %v275
  %v330 = vmul.f32 %v276, %v276
  %v331 = vmul.f32 %v277, %v277
  %v332 = vmul.f32 %v278, %v278
  %v333 = vmul.f32 %v279, %v279
  %v334 = vmul.f32 %v280, %v280
  %v335 = vmul.f32 %v281, %v281
  %v336 = vmul.f32 %v282, %v282
  %v337 = vmul.f32 %v283, %v283
  %v338 = vmul.f32 %v284, %v284
  %v339 = vsel %vm285, %v323, 0.0
  %v340 = vsel %vm285, %v324, 0.0
  %v341 = vadd.f32 %v339, %v340
  %v342 = vsel %vm285, %v325, 0.0
  %v343 = vadd.f32 %v341, %v342
  %v344 = vsel %vm285, %v326, 0.0
  %v345 = vadd.f32 %v343, %v344
  %v346 = vsel %vm285, %v327, 0.0
  %v347 = vadd.f32 %v345, %v346
  %v348 = vsel %vm285, %v328, 0.0
  %v349 = vadd.f32 %v347, %v348
  %v350 = vsel %vm285, %v329, 0.0
  %v351 = vadd.f32 %v349, %v350
  %v352 = vsel %vm285, %v330, 0.0
  %v353 = vadd.f32 %v351, %v352
  %v354 = vsel %vm285, %v331, 0.0
  %v355 = vadd.f32 %v353, %v354
  %v356 = vsel %vm285, %v332, 0.0
  %v357 = vadd.f32 %v355, %v356
  %v358 = vsel %vm285, %v333, 0.0
  %v359 = vadd.f32 %v357, %v358
  %v360 = vsel %vm285, %v334, 0.0
  %v361 = vadd.f32 %v359, %v360
  %v362 = vsel %vm285, %v335, 0.0
  %v363 = vadd.f32 %v361, %v362
  %v364 = vsel %vm285, %v336, 0.0
  %v365 = vadd.f32 %v363, %v364
  %v366 = vsel %vm285, %v337, 0.0
  %v367 = vadd.f32 %v365, %v366
  %v368 = vsel %vm285, %v338, 0.0
  %v369 = vadd.f32 %v367, %v368
  %v370 = vrot.slane %v369, 4
  %v371 = vadd.f32 %v369, %v370
  %v372 = vrot.slane %v371, 2
  %v373 = vadd.f32 %v371, %v372
  %v374 = vrot.slane %v373, 1
  %v375 = vadd.f32 %v373, %v374
  %vm376 = vcmask 1040384
  %v377 = vsel %vm376, %v322, %v375
  %vm378 = vcmask 58368
  %379 = vst.msk [vmem:[%s4] sm:$0x3] %vm378, %v377
  %380 = vst.msk [vmem:[%s3] sm:$0xff] %vm285, %v156
  %381 = vst.msk [vmem:[%s3 + $0x8] sm:$0xff] %vm285, %v159
  %382 = vst.msk [vmem:[%s3 + $0x10] sm:$0xff] %vm285, %v164
  %383 = vst.msk [vmem:[%s3 + $0x18] sm:$0xff] %vm285, %v167
  %384 = vst.msk [vmem:[%s3 + $0x20] sm:$0xff] %vm285, %v172
  %385 = vst.msk [vmem:[%s3 + $0x28] sm:$0xff] %vm285, %v175
  %386 = vst.msk [vmem:[%s3 + $0x30] sm:$0xff] %vm285, %v180
  %387 = vst.msk [vmem:[%s3 + $0x38] sm:$0xff] %vm285, %v183
  %388 = vst.msk [vmem:[%s3 + $0x40] sm:$0xff] %vm285, %v188
  %389 = vst.msk [vmem:[%s3 + $0x48] sm:$0xff] %vm285, %v191
  %390 = vst.msk [vmem:[%s3 + $0x50] sm:$0xff] %vm285, %v196
  %391 = vst.msk [vmem:[%s3 + $0x58] sm:$0xff] %vm285, %v199
  %392 = vst.msk [vmem:[%s3 + $0x60] sm:$0xff] %vm285, %v204
  %393 = vst.msk [vmem:[%s3 + $0x68] sm:$0xff] %vm285, %v207
  %394 = vst.msk [vmem:[%s3 + $0x70] sm:$0xff] %vm285, %v212
  %395 = vst.msk [vmem:[%s3 + $0x78] sm:$0xff] %vm285, %v215
  // Predicated region
  $region14: #{global_generator_forward.45} parent=0 // pred_check
    _
  $region15: #{global_generator_forward.45} parent=0 // pred_check_branch
    %397 = sbr.rel (0) target = $region17
  $region16: #{global_generator_forward.45} parent=0 // pred_region
    _
  $region17: #{global_generator_forward.45} parent=0 // pred_fallthru
    _
  // Predicated region
  $region18: #{global_generator_forward.45} parent=0 // pred_check
    _
  $region19: #{global_generator_forward.45} parent=0 // pred_check_branch
    %399 = sbr.rel (0) target = $region21
  $region20: #{global_generator_forward.45} parent=0 // pred_region
    _
  $region21: #{global_generator_forward.45} parent=0 // pred_fallthru
    _
  // Predicated region
  $region22: #{global_generator_forward.45} parent=0 // pred_check
    _
  $region23: #{global_generator_forward.45} parent=0 // pred_check_branch
    %401 = sbr.rel (0) target = $region25
  $region24: #{global_generator_forward.45} parent=0 // pred_region
    _
  $region25: #{global_generator_forward.45} parent=0 // pred_fallthru
    _
  // Predicated region
  $region26: #{global_generator_forward.45} parent=0 // pred_check
    _
  $region27: #{global_generator_forward.45} parent=0 // pred_check_branch
    %403 = sbr.rel (0) target = $region29
  $region28: #{global_generator_forward.45} parent=0 // pred_region
    _
  $region29: #{global_generator_forward.45} parent=0 // pred_fallthru
    _

// kernel: global_generator_forward.47
$region0: #{global_generator_forward.47}
  #allocation0 [shape = 'u32[]', space=smem, size = 0x4, offset = 0x4, fixed_abs, tag = 'smem constant byte address 0x4 - core index']
  #allocation1 [shape = 'u32[144,128]{1,0:T(1,128)}', space=vmem, size = 0x12000, scoped, tag = 'internal scratch']
  %s0 = inlined_call_operand.vmem [shape: bf16[128,64], index: 0, kind: input, shape index: {}]
  %s1 = inlined_call_operand.vmem [shape: bf16[64,8], index: 1, kind: input, shape index: {}]
  %s2 = inlined_call_operand.vmem [shape: f32[1,8], index: 2, kind: input, shape index: {}]
  %s3 = inlined_call_operand.vmem [shape: f32[128,8], index: 3, kind: output, shape index: {0}]
  %s4 = inlined_call_operand.vmem [shape: f32[1,2,8], index: 4, kind: output, shape index: {1}]
  %5 = xla_tuple %s3, %s4
  %s6 = sld [smem:[#allocation0]]
  $region30: #{global_generator_forward.47} parent=0
    _
  %s8 = ssub.s32 1, %s6
  %s9 = scalar_select 0, %s8, %s6
  // Predicated region
  $region2: #{global_generator_forward.47} parent=0 // pred_check
    _
  $region3: #{global_generator_forward.47} parent=0 // pred_check_branch
    %11 = sbr.rel (0) target = $region5
  $region4: #{global_generator_forward.47} parent=0 // pred_region
    _
  $region5: #{global_generator_forward.47} parent=0 // pred_fallthru
    _
  // Predicated region
  $region6: #{global_generator_forward.47} parent=0 // pred_check
    _
  $region7: #{global_generator_forward.47} parent=0 // pred_check_branch
    %13 = sbr.rel (0) target = $region9
  $region8: #{global_generator_forward.47} parent=0 // pred_region
    _
  $region9: #{global_generator_forward.47} parent=0 // pred_fallthru
    _
  // Predicated region
  $region10: #{global_generator_forward.47} parent=0 // pred_check
    _
  $region11: #{global_generator_forward.47} parent=0 // pred_check_branch
    %15 = sbr.rel (0) target = $region13
  $region12: #{global_generator_forward.47} parent=0 // pred_region
    _
  $region13: #{global_generator_forward.47} parent=0 // pred_fallthru
    _
  %v17 = vld [vmem:[%s0] sm:$0xf]
  %v18 = vld [vmem:[%s0 + $0x4] sm:$0xf]
  %v19 = vld [vmem:[%s0 + $0x8] sm:$0xf]
  %v20 = vld [vmem:[%s0 + $0xc] sm:$0xf]
  %v21 = vld [vmem:[%s0 + $0x10] sm:$0xf]
  %v22 = vld [vmem:[%s0 + $0x14] sm:$0xf]
  %v23 = vld [vmem:[%s0 + $0x18] sm:$0xf]
  %v24 = vld [vmem:[%s0 + $0x1c] sm:$0xf]
  %v25 = vld [vmem:[%s0 + $0x20] sm:$0xf]
  %v26 = vld [vmem:[%s0 + $0x24] sm:$0xf]
  %v27 = vld [vmem:[%s0 + $0x28] sm:$0xf]
  %v28 = vld [vmem:[%s0 + $0x2c] sm:$0xf]
  %v29 = vld [vmem:[%s0 + $0x30] sm:$0xf]
  %v30 = vld [vmem:[%s0 + $0x34] sm:$0xf]
  %v31 = vld [vmem:[%s0 + $0x38] sm:$0xf]
  %v32 = vld [vmem:[%s0 + $0x3c] sm:$0xf]
  %v33 = vld [vmem:[%s1] sm:$0xf]
  %v34 = vld [vmem:[%s1 + $0x4] sm:$0xf]
  %v35 = vld [vmem:[%s1 + $0x8] sm:$0xf]
  %v36 = vld [vmem:[%s1 + $0xc] sm:$0xf]
  %v37 = vld [vmem:[%s1 + $0x10] sm:$0xf]
  %v38 = vld [vmem:[%s1 + $0x14] sm:$0xf]
  %v39 = vld [vmem:[%s1 + $0x18] sm:$0xf]
  %v40 = vld [vmem:[%s1 + $0x1c] sm:$0xf]
  %v41 = vld [vmem:[%s2] sm:$0x1]
  %v43 = vlaneseq
  %v44 = vshrl.u32 %v43, 7
  %v45 = vsub.s32 0, %v44
  %v46 = vrot.slane %v41, %v45
  %v64 = vunpack.c.l.b16 %v17
  %v65 = vunpack.c.l.b16 %v18
  %v66 = vunpack.c.l.b16 %v19
  %v67 = vunpack.c.l.b16 %v20
  %v68 = vunpack.c.l.b16 %v21
  %v69 = vunpack.c.l.b16 %v22
  %v70 = vunpack.c.l.b16 %v23
  %v71 = vunpack.c.l.b16 %v24
  %v72 = vunpack.c.l.b16 %v25
  %v73 = vunpack.c.l.b16 %v26
  %v74 = vunpack.c.l.b16 %v27
  %v75 = vunpack.c.l.b16 %v28
  %v76 = vunpack.c.l.b16 %v29
  %v77 = vunpack.c.l.b16 %v30
  %v78 = vunpack.c.l.b16 %v31
  %v79 = vunpack.c.l.b16 %v32
  %v80 = vpack.c.b16 %v65, %v64
  %v81 = vpack.c.b16 %v67, %v66
  %v82 = vpack.c.b16 %v69, %v68
  %v83 = vpack.c.b16 %v71, %v70
  %v84 = vpack.c.b16 %v73, %v72
  %v85 = vpack.c.b16 %v75, %v74
  %v86 = vpack.c.b16 %v77, %v76
  %v87 = vpack.c.b16 %v79, %v78
  %v96 = vunpack.c.l.b16 %v33
  %v97 = vunpack.c.l.b16 %v34
  %v98 = vunpack.c.l.b16 %v35
  %v99 = vunpack.c.l.b16 %v36
  %v100 = vunpack.c.l.b16 %v37
  %v101 = vunpack.c.l.b16 %v38
  %v102 = vunpack.c.l.b16 %v39
  %v103 = vunpack.c.l.b16 %v40
  %v104 = vpack.c.b16 %v97, %v96
  %v105 = vpack.c.b16 %v99, %v98
  %v106 = vpack.c.b16 %v101, %v100
  %v107 = vpack.c.b16 %v103, %v102
  %vm112 = vcmask 523264
  %v114 = vsel %vm112, %v80, 0
  %v117 = vsel %vm112, %v81, 0
  %v120 = vsel %vm112, %v82, 0
  %v123 = vsel %vm112, %v83, 0
  %v126 = vsel %vm112, %v84, 0
  %v129 = vsel %vm112, %v85, 0
  %v132 = vsel %vm112, %v86, 0
  %v135 = vsel %vm112, %v87, 0
  %137 = vmatprep.subr.bf16.mxu0 0
  %138 = vmatpush1.bf16.msra.mxu0 0
  %139 = vmatprep.subr.bf16.mxu0 0
  %140 = vmatpush1.bf16.msra.mxu0 0
  %141 = vmatprep.subr.bf16.mxu0 0
  %142 = vmatpush1.bf16.msra.mxu0 0
  %143 = vmatprep.subr.bf16.mxu0 0
  %144 = vmatpush1.bf16.msra.mxu0 0
  %145 = vmatprep.subr.bf16.mxu0 0
  %146 = vmatpush1.bf16.msra.mxu0 %v107
  %147 = vmatprep.subr.bf16.mxu0 0
  %148 = vmatpush1.bf16.msra.mxu0 %v106
  %149 = vmatprep.subr.bf16.mxu0 0
  %150 = vmatpush1.bf16.msra.mxu0 %v105
  %151 = vmatprep.subr.bf16.mxu0 0
  %152 = vmatpush1.bf16.msra.mxu0 %v104
  %153 = vmatprep.subr.bf16.mxu0 0
  %154 = vmatpush2.bf16.msra.mxu0 0
  %155 = vmatprep.subr.bf16.mxu0 0
  %156 = vmatpush2.bf16.msra.mxu0 0
  %157 = vmatprep.subr.bf16.mxu0 0
  %158 = vmatpush2.bf16.msra.mxu0 0
  %159 = vmatprep.subr.bf16.mxu0 0
  %160 = vmatpush2.bf16.msra.mxu0 0
  %161 = vmatprep.subr.bf16.mxu0 0
  %162 = vmatpush2.bf16.msra.mxu0 0
  %163 = vmatprep.subr.bf16.mxu0 0
  %164 = vmatpush2.bf16.msra.mxu0 0
  %165 = vmatprep.subr.bf16.mxu0 0
  %166 = vmatpush2.bf16.msra.mxu0 0
  %167 = vmatprep.subr.bf16.mxu0 0
  %168 = vmatpush2.bf16.msra.mxu0 0
  %169 = vmatprep.mubr.bf16.mxu0 0
  %170 = vmatmul.mubr.bf16.gmra.mxu0 %v114
  %v171 = vpop.f32.mrf.mxu0
  %v172 = vadd.f32 %v46, %v171
  %v173 = vpop.f32.mrf.mxu0
  %v174 = vpop.f32.mrf.mxu0
  %v175 = vadd.f32 %v46, %v174
  %v176 = vpop.f32.mrf.mxu0
  %177 = vmatprep.mubr.bf16.mxu0 0
  %178 = vmatmul.mubr.bf16.gmra.mxu0 %v117
  %v179 = vpop.f32.mrf.mxu0
  %v180 = vadd.f32 %v46, %v179
  %v181 = vpop.f32.mrf.mxu0
  %v182 = vpop.f32.mrf.mxu0
  %v183 = vadd.f32 %v46, %v182
  %v184 = vpop.f32.mrf.mxu0
  %185 = vmatprep.mubr.bf16.mxu0 0
  %186 = vmatmul.mubr.bf16.gmra.mxu0 %v120
  %v187 = vpop.f32.mrf.mxu0
  %v188 = vadd.f32 %v46, %v187
  %v189 = vpop.f32.mrf.mxu0
  %v190 = vpop.f32.mrf.mxu0
  %v191 = vadd.f32 %v46, %v190
  %v192 = vpop.f32.mrf.mxu0
  %193 = vmatprep.mubr.bf16.mxu0 0
  %194 = vmatmul.mubr.bf16.gmra.mxu0 %v123
  %v195 = vpop.f32.mrf.mxu0
  %v196 = vadd.f32 %v46, %v195
  %v197 = vpop.f32.mrf.mxu0
  %v198 = vpop.f32.mrf.mxu0
  %v199 = vadd.f32 %v46, %v198
  %v200 = vpop.f32.mrf.mxu0
  %201 = vmatprep.mubr.bf16.mxu0 0
  %202 = vmatmul.mubr.bf16.gmra.mxu0 %v126
  %v203 = vpop.f32.mrf.mxu0
  %v204 = vadd.f32 %v46, %v203
  %v205 = vpop.f32.mrf.mxu0
  %v206 = vpop.f32.mrf.mxu0
  %v207 = vadd.f32 %v46, %v206
  %v208 = vpop.f32.mrf.mxu0
  %209 = vmatprep.mubr.bf16.mxu0 0
  %210 = vmatmul.mubr.bf16.gmra.mxu0 %v129
  %v211 = vpop.f32.mrf.mxu0
  %v212 = vadd.f32 %v46, %v211
  %v213 = vpop.f32.mrf.mxu0
  %v214 = vpop.f32.mrf.mxu0
  %v215 = vadd.f32 %v46, %v214
  %v216 = vpop.f32.mrf.mxu0
  %217 = vmatprep.mubr.bf16.mxu0 0
  %218 = vmatmul.mubr.bf16.gmra.mxu0 %v132
  %v219 = vpop.f32.mrf.mxu0
  %v220 = vadd.f32 %v46, %v219
  %v221 = vpop.f32.mrf.mxu0
  %v222 = vpop.f32.mrf.mxu0
  %v223 = vadd.f32 %v46, %v222
  %v224 = vpop.f32.mrf.mxu0
  %225 = vmatprep.mubr.bf16.mxu0 0
  %226 = vmatmul.mubr.bf16.gmra.mxu0 %v135
  %v227 = vpop.f32.mrf.mxu0
  %v228 = vadd.f32 %v46, %v227
  %v229 = vpop.f32.mrf.mxu0
  %v230 = vpop.f32.mrf.mxu0
  %v231 = vadd.f32 %v46, %v230
  %v232 = vpop.f32.mrf.mxu0
  %233 = vdwg.mxu0
  %v234 = vlaneseq
  %v235 = vshrl.u32 %v234, 7
  %v236 = vadd.s32 %v235, 8
  %v237 = vadd.s32 %v235, 16
  %v238 = vadd.s32 %v235, 24
  %v239 = vadd.s32 %v235, 32
  %v240 = vadd.s32 %v235, 40
  %v241 = vadd.s32 %v235, 48
  %v242 = vadd.s32 %v235, 56
  %v243 = vadd.s32 %v235, 64
  %v244 = vadd.s32 %v235, 72
  %v245 = vadd.s32 %v235, 80
  %v246 = vadd.s32 %v235, 88
  %v247 = vadd.s32 %v235, 96
  %v248 = vadd.s32 %v235, 104
  %v249 = vadd.s32 %v235, 112
  %v250 = vadd.s32 %v235, 120
  %s251 = smul.u32 0, 128
  %v252 = vstv %s251
  %v253 = vadd.s32 %v235, %v252
  %v254 = vadd.s32 %v236, %v252
  %v255 = vadd.s32 %v237, %v252
  %v256 = vadd.s32 %v238, %v252
  %v257 = vadd.s32 %v239, %v252
  %v258 = vadd.s32 %v240, %v252
  %v259 = vadd.s32 %v241, %v252
  %v260 = vadd.s32 %v242, %v252
  %v261 = vadd.s32 %v243, %v252
  %v262 = vadd.s32 %v244, %v252
  %v263 = vadd.s32 %v245, %v252
  %v264 = vadd.s32 %v246, %v252
  %v265 = vadd.s32 %v247, %v252
  %v266 = vadd.s32 %v248, %v252
  %v267 = vadd.s32 %v249, %v252
  %v268 = vadd.s32 %v250, %v252
  %vm269 = vcmp.lt.s32.totalorder %v253, 128
  %vm270 = vcmp.lt.s32.totalorder %v254, 128
  %vm271 = vcmp.lt.s32.totalorder %v255, 128
  %vm272 = vcmp.lt.s32.totalorder %v256, 128
  %vm273 = vcmp.lt.s32.totalorder %v257, 128
  %vm274 = vcmp.lt.s32.totalorder %v258, 128
  %vm275 = vcmp.lt.s32.totalorder %v259, 128
  %vm276 = vcmp.lt.s32.totalorder %v260, 128
  %vm277 = vcmp.lt.s32.totalorder %v261, 128
  %vm278 = vcmp.lt.s32.totalorder %v262, 128
  %vm279 = vcmp.lt.s32.totalorder %v263, 128
  %vm280 = vcmp.lt.s32.totalorder %v264, 128
  %vm281 = vcmp.lt.s32.totalorder %v265, 128
  %vm282 = vcmp.lt.s32.totalorder %v266, 128
  %vm283 = vcmp.lt.s32.totalorder %v267, 128
  %vm284 = vcmp.lt.s32.totalorder %v268, 128
  %v285 = vsel %vm269, %v172, 0.0
  %v286 = vsel %vm270, %v175, 0.0
  %v287 = vsel %vm271, %v180, 0.0
  %v288 = vsel %vm272, %v183, 0.0
  %v289 = vsel %vm273, %v188, 0.0
  %v290 = vsel %vm274, %v191, 0.0
  %v291 = vsel %vm275, %v196, 0.0
  %v292 = vsel %vm276, %v199, 0.0
  %v293 = vsel %vm277, %v204, 0.0
  %v294 = vsel %vm278, %v207, 0.0
  %v295 = vsel %vm279, %v212, 0.0
  %v296 = vsel %vm280, %v215, 0.0
  %v297 = vsel %vm281, %v220, 0.0
  %v298 = vsel %vm282, %v223, 0.0
  %v299 = vsel %vm283, %v228, 0.0
  %v300 = vsel %vm284, %v231, 0.0
  %vm301 = vcmask 64512
  %v302 = vsel %vm301, %v285, 0.0
  %v303 = vsel %vm301, %v286, 0.0
  %v304 = vadd.f32 %v302, %v303
  %v305 = vsel %vm301, %v287, 0.0
  %v306 = vadd.f32 %v304, %v305
  %v307 = vsel %vm301, %v288, 0.0
  %v308 = vadd.f32 %v306, %v307
  %v309 = vsel %vm301, %v289, 0.0
  %v310 = vadd.f32 %v308, %v309
  %v311 = vsel %vm301, %v290, 0.0
  %v312 = vadd.f32 %v310, %v311
  %v313 = vsel %vm301, %v291, 0.0
  %v314 = vadd.f32 %v312, %v313
  %v315 = vsel %vm301, %v292, 0.0
  %v316 = vadd.f32 %v314, %v315
  %v317 = vsel %vm301, %v293, 0.0
  %v318 = vadd.f32 %v316, %v317
  %v319 = vsel %vm301, %v294, 0.0
  %v320 = vadd.f32 %v318, %v319
  %v321 = vsel %vm301, %v295, 0.0
  %v322 = vadd.f32 %v320, %v321
  %v323 = vsel %vm301, %v296, 0.0
  %v324 = vadd.f32 %v322, %v323
  %v325 = vsel %vm301, %v297, 0.0
  %v326 = vadd.f32 %v324, %v325
  %v327 = vsel %vm301, %v298, 0.0
  %v328 = vadd.f32 %v326, %v327
  %v329 = vsel %vm301, %v299, 0.0
  %v330 = vadd.f32 %v328, %v329
  %v331 = vsel %vm301, %v300, 0.0
  %v332 = vadd.f32 %v330, %v331
  %v333 = vrot.slane %v332, 4
  %v334 = vadd.f32 %v332, %v333
  %v335 = vrot.slane %v334, 2
  %v336 = vadd.f32 %v334, %v335
  %v337 = vrot.slane %v336, 1
  %v338 = vadd.f32 %v336, %v337
  %v339 = vmul.f32 %v285, %v285
  %v340 = vmul.f32 %v286, %v286
  %v341 = vmul.f32 %v287, %v287
  %v342 = vmul.f32 %v288, %v288
  %v343 = vmul.f32 %v289, %v289
  %v344 = vmul.f32 %v290, %v290
  %v345 = vmul.f32 %v291, %v291
  %v346 = vmul.f32 %v292, %v292
  %v347 = vmul.f32 %v293, %v293
  %v348 = vmul.f32 %v294, %v294
  %v349 = vmul.f32 %v295, %v295
  %v350 = vmul.f32 %v296, %v296
  %v351 = vmul.f32 %v297, %v297
  %v352 = vmul.f32 %v298, %v298
  %v353 = vmul.f32 %v299, %v299
  %v354 = vmul.f32 %v300, %v300
  %v355 = vsel %vm301, %v339, 0.0
  %v356 = vsel %vm301, %v340, 0.0
  %v357 = vadd.f32 %v355, %v356
  %v358 = vsel %vm301, %v341, 0.0
  %v359 = vadd.f32 %v357, %v358
  %v360 = vsel %vm301, %v342, 0.0
  %v361 = vadd.f32 %v359, %v360
  %v362 = vsel %vm301, %v343, 0.0
  %v363 = vadd.f32 %v361, %v362
  %v364 = vsel %vm301, %v344, 0.0
  %v365 = vadd.f32 %v363, %v364
  %v366 = vsel %vm301, %v345, 0.0
  %v367 = vadd.f32 %v365, %v366
  %v368 = vsel %vm301, %v346, 0.0
  %v369 = vadd.f32 %v367, %v368
  %v370 = vsel %vm301, %v347, 0.0
  %v371 = vadd.f32 %v369, %v370
  %v372 = vsel %vm301, %v348, 0.0
  %v373 = vadd.f32 %v371, %v372
  %v374 = vsel %vm301, %v349, 0.0
  %v375 = vadd.f32 %v373, %v374
  %v376 = vsel %vm301, %v350, 0.0
  %v377 = vadd.f32 %v375, %v376
  %v378 = vsel %vm301, %v351, 0.0
  %v379 = vadd.f32 %v377, %v378
  %v380 = vsel %vm301, %v352, 0.0
  %v381 = vadd.f32 %v379, %v380
  %v382 = vsel %vm301, %v353, 0.0
  %v383 = vadd.f32 %v381, %v382
  %v384 = vsel %vm301, %v354, 0.0
  %v385 = vadd.f32 %v383, %v384
  %v386 = vrot.slane %v385, 4
  %v387 = vadd.f32 %v385, %v386
  %v388 = vrot.slane %v387, 2
  %v389 = vadd.f32 %v387, %v388
  %v390 = vrot.slane %v389, 1
  %v391 = vadd.f32 %v389, %v390
  %vm392 = vcmask 1040384
  %v393 = vsel %vm392, %v338, %v391
  %vm394 = vcmask 58368
  %395 = vst.msk [vmem:[%s4] sm:$0x3] %vm394, %v393
  %396 = vst.msk [vmem:[%s3] sm:$0xff] %vm301, %v172
  %397 = vst.msk [vmem:[%s3 + $0x8] sm:$0xff] %vm301, %v175
  %398 = vst.msk [vmem:[%s3 + $0x10] sm:$0xff] %vm301, %v180
  %399 = vst.msk [vmem:[%s3 + $0x18] sm:$0xff] %vm301, %v183
  %400 = vst.msk [vmem:[%s3 + $0x20] sm:$0xff] %vm301, %v188
  %401 = vst.msk [vmem:[%s3 + $0x28] sm:$0xff] %vm301, %v191
  %402 = vst.msk [vmem:[%s3 + $0x30] sm:$0xff] %vm301, %v196
  %403 = vst.msk [vmem:[%s3 + $0x38] sm:$0xff] %vm301, %v199
  %404 = vst.msk [vmem:[%s3 + $0x40] sm:$0xff] %vm301, %v204
  %405 = vst.msk [vmem:[%s3 + $0x48] sm:$0xff] %vm301, %v207
  %406 = vst.msk [vmem:[%s3 + $0x50] sm:$0xff] %vm301, %v212
  %407 = vst.msk [vmem:[%s3 + $0x58] sm:$0xff] %vm301, %v215
  %408 = vst.msk [vmem:[%s3 + $0x60] sm:$0xff] %vm301, %v220
  %409 = vst.msk [vmem:[%s3 + $0x68] sm:$0xff] %vm301, %v223
  %410 = vst.msk [vmem:[%s3 + $0x70] sm:$0xff] %vm301, %v228
  %411 = vst.msk [vmem:[%s3 + $0x78] sm:$0xff] %vm301, %v231
  // Predicated region
  $region14: #{global_generator_forward.47} parent=0 // pred_check
    _
  $region15: #{global_generator_forward.47} parent=0 // pred_check_branch
    %413 = sbr.rel (0) target = $region17
  $region16: #{global_generator_forward.47} parent=0 // pred_region
    _
  $region17: #{global_generator_forward.47} parent=0 // pred_fallthru
    _
  // Predicated region
  $region18: #{global_generator_forward.47} parent=0 // pred_check
    _
  $region19: #{global_generator_forward.47} parent=0 // pred_check_branch
    %415 = sbr.rel (0) target = $region21
  $region20: #{global_generator_forward.47} parent=0 // pred_region
    _
  $region21: #{global_generator_forward.47} parent=0 // pred_fallthru
    _
  // Predicated region
  $region22: #{global_generator_forward.47} parent=0 // pred_check
    _
  $region23: #{global_generator_forward.47} parent=0 // pred_check_branch
    %417 = sbr.rel (0) target = $region25
  $region24: #{global_generator_forward.47} parent=0 // pred_region
    _
  $region25: #{global_generator_forward.47} parent=0 // pred_fallthru
    _
  // Predicated region
  $region26: #{global_generator_forward.47} parent=0 // pred_check
    _
  $region27: #{global_generator_forward.47} parent=0 // pred_check_branch
    %419 = sbr.rel (0) target = $region29
  $region28: #{global_generator_forward.47} parent=0 // pred_region
    _
  $region29: #{global_generator_forward.47} parent=0 // pred_fallthru
    _

// kernel: global_generator_forward.44
$region0: #{global_generator_forward.44}
  #allocation0 [shape = 'u32[]', space=smem, size = 0x4, offset = 0x4, fixed_abs, tag = 'smem constant byte address 0x4 - core index']
  #allocation1 [shape = 'u32[144,128]{1,0:T(1,128)}', space=vmem, size = 0x12000, scoped, tag = 'internal scratch']
  %s0 = inlined_call_operand.vmem [shape: bf16[128,16], index: 0, kind: input, shape index: {}]
  %s1 = inlined_call_operand.vmem [shape: bf16[16,8], index: 1, kind: input, shape index: {}]
  %s2 = inlined_call_operand.vmem [shape: f32[1,8], index: 2, kind: input, shape index: {}]
  %s3 = inlined_call_operand.vmem [shape: f32[128,8], index: 3, kind: output, shape index: {0}]
  %s4 = inlined_call_operand.vmem [shape: f32[1,2,8], index: 4, kind: output, shape index: {1}]
  %5 = xla_tuple %s3, %s4
  %s6 = sld [smem:[#allocation0]]
  $region30: #{global_generator_forward.44} parent=0
    _
  %s8 = ssub.s32 1, %s6
  %s9 = scalar_select 0, %s8, %s6
  // Predicated region
  $region2: #{global_generator_forward.44} parent=0 // pred_check
    _
  $region3: #{global_generator_forward.44} parent=0 // pred_check_branch
    %11 = sbr.rel (0) target = $region5
  $region4: #{global_generator_forward.44} parent=0 // pred_region
    _
  $region5: #{global_generator_forward.44} parent=0 // pred_fallthru
    _
  // Predicated region
  $region6: #{global_generator_forward.44} parent=0 // pred_check
    _
  $region7: #{global_generator_forward.44} parent=0 // pred_check_branch
    %13 = sbr.rel (0) target = $region9
  $region8: #{global_generator_forward.44} parent=0 // pred_region
    _
  $region9: #{global_generator_forward.44} parent=0 // pred_fallthru
    _
  // Predicated region
  $region10: #{global_generator_forward.44} parent=0 // pred_check
    _
  $region11: #{global_generator_forward.44} parent=0 // pred_check_branch
    %15 = sbr.rel (0) target = $region13
  $region12: #{global_generator_forward.44} parent=0 // pred_region
    _
  $region13: #{global_generator_forward.44} parent=0 // pred_fallthru
    _
  %v17 = vld [vmem:[%s0] sm:$0xf]
  %v18 = vld [vmem:[%s0 + $0x4] sm:$0xf]
  %v19 = vld [vmem:[%s0 + $0x8] sm:$0xf]
  %v20 = vld [vmem:[%s0 + $0xc] sm:$0xf]
  %v21 = vld [vmem:[%s0 + $0x10] sm:$0xf]
  %v22 = vld [vmem:[%s0 + $0x14] sm:$0xf]
  %v23 = vld [vmem:[%s0 + $0x18] sm:$0xf]
  %v24 = vld [vmem:[%s0 + $0x1c] sm:$0xf]
  %v25 = vld [vmem:[%s0 + $0x20] sm:$0xf]
  %v26 = vld [vmem:[%s0 + $0x24] sm:$0xf]
  %v27 = vld [vmem:[%s0 + $0x28] sm:$0xf]
  %v28 = vld [vmem:[%s0 + $0x2c] sm:$0xf]
  %v29 = vld [vmem:[%s0 + $0x30] sm:$0xf]
  %v30 = vld [vmem:[%s0 + $0x34] sm:$0xf]
  %v31 = vld [vmem:[%s0 + $0x38] sm:$0xf]
  %v32 = vld [vmem:[%s0 + $0x3c] sm:$0xf]
  %v33 = vld [vmem:[%s1] sm:$0xf]
  %v34 = vld [vmem:[%s1 + $0x4] sm:$0xf]
  %v35 = vld [vmem:[%s2] sm:$0x1]
  %v37 = vlaneseq
  %v38 = vshrl.u32 %v37, 7
  %v39 = vsub.s32 0, %v38
  %v40 = vrot.slane %v35, %v39
  %v58 = vunpack.c.l.b16 %v17
  %v59 = vunpack.c.l.b16 %v18
  %v60 = vunpack.c.l.b16 %v19
  %v61 = vunpack.c.l.b16 %v20
  %v62 = vunpack.c.l.b16 %v21
  %v63 = vunpack.c.l.b16 %v22
  %v64 = vunpack.c.l.b16 %v23
  %v65 = vunpack.c.l.b16 %v24
  %v66 = vunpack.c.l.b16 %v25
  %v67 = vunpack.c.l.b16 %v26
  %v68 = vunpack.c.l.b16 %v27
  %v69 = vunpack.c.l.b16 %v28
  %v70 = vunpack.c.l.b16 %v29
  %v71 = vunpack.c.l.b16 %v30
  %v72 = vunpack.c.l.b16 %v31
  %v73 = vunpack.c.l.b16 %v32
  %v74 = vpack.c.b16 %v59, %v58
  %v75 = vpack.c.b16 %v61, %v60
  %v76 = vpack.c.b16 %v63, %v62
  %v77 = vpack.c.b16 %v65, %v64
  %v78 = vpack.c.b16 %v67, %v66
  %v79 = vpack.c.b16 %v69, %v68
  %v80 = vpack.c.b16 %v71, %v70
  %v81 = vpack.c.b16 %v73, %v72
  %v84 = vunpack.c.l.b16 %v33
  %v85 = vunpack.c.l.b16 %v34
  %v86 = vpack.c.b16 %v85, %v84
  %vm88 = vcmask 130048
  %v90 = vsel %vm88, %v74, 0
  %v93 = vsel %vm88, %v75, 0
  %v96 = vsel %vm88, %v76, 0
  %v99 = vsel %vm88, %v77, 0
  %v102 = vsel %vm88, %v78, 0
  %v105 = vsel %vm88, %v79, 0
  %v108 = vsel %vm88, %v80, 0
  %v111 = vsel %vm88, %v81, 0
  %113 = vmatprep.subr.bf16.mxu0 0
  %114 = vmatpush1.bf16.msra.mxu0 0
  %115 = vmatprep.subr.bf16.mxu0 0
  %116 = vmatpush1.bf16.msra.mxu0 0
  %117 = vmatprep.subr.bf16.mxu0 0
  %118 = vmatpush1.bf16.msra.mxu0 0
  %119 = vmatprep.subr.bf16.mxu0 0
  %120 = vmatpush1.bf16.msra.mxu0 0
  %121 = vmatprep.subr.bf16.mxu0 0
  %122 = vmatpush1.bf16.msra.mxu0 0
  %123 = vmatprep.subr.bf16.mxu0 0
  %124 = vmatpush1.bf16.msra.mxu0 0
  %125 = vmatprep.subr.bf16.mxu0 0
  %126 = vmatpush1.bf16.msra.mxu0 0
  %127 = vmatprep.subr.bf16.mxu0 0
  %128 = vmatpush1.bf16.msra.mxu0 %v86
  %129 = vmatprep.subr.bf16.mxu0 0
  %130 = vmatpush2.bf16.msra.mxu0 0
  %131 = vmatprep.subr.bf16.mxu0 0
  %132 = vmatpush2.bf16.msra.mxu0 0
  %133 = vmatprep.subr.bf16.mxu0 0
  %134 = vmatpush2.bf16.msra.mxu0 0
  %135 = vmatprep.subr.bf16.mxu0 0
  %136 = vmatpush2.bf16.msra.mxu0 0
  %137 = vmatprep.subr.bf16.mxu0 0
  %138 = vmatpush2.bf16.msra.mxu0 0
  %139 = vmatprep.subr.bf16.mxu0 0
  %140 = vmatpush2.bf16.msra.mxu0 0
  %141 = vmatprep.subr.bf16.mxu0 0
  %142 = vmatpush2.bf16.msra.mxu0 0
  %143 = vmatprep.subr.bf16.mxu0 0
  %144 = vmatpush2.bf16.msra.mxu0 0
  %145 = vmatprep.mubr.bf16.mxu0 0
  %146 = vmatmul.mubr.bf16.gmra.mxu0 %v90
  %v147 = vpop.f32.mrf.mxu0
  %v148 = vadd.f32 %v40, %v147
  %v149 = vpop.f32.mrf.mxu0
  %v150 = vpop.f32.mrf.mxu0
  %v151 = vadd.f32 %v40, %v150
  %v152 = vpop.f32.mrf.mxu0
  %153 = vmatprep.mubr.bf16.mxu0 0
  %154 = vmatmul.mubr.bf16.gmra.mxu0 %v93
  %v155 = vpop.f32.mrf.mxu0
  %v156 = vadd.f32 %v40, %v155
  %v157 = vpop.f32.mrf.mxu0
  %v158 = vpop.f32.mrf.mxu0
  %v159 = vadd.f32 %v40, %v158
  %v160 = vpop.f32.mrf.mxu0
  %161 = vmatprep.mubr.bf16.mxu0 0
  %162 = vmatmul.mubr.bf16.gmra.mxu0 %v96
  %v163 = vpop.f32.mrf.mxu0
  %v164 = vadd.f32 %v40, %v163
  %v165 = vpop.f32.mrf.mxu0
  %v166 = vpop.f32.mrf.mxu0
  %v167 = vadd.f32 %v40, %v166
  %v168 = vpop.f32.mrf.mxu0
  %169 = vmatprep.mubr.bf16.mxu0 0
  %170 = vmatmul.mubr.bf16.gmra.mxu0 %v99
  %v171 = vpop.f32.mrf.mxu0
  %v172 = vadd.f32 %v40, %v171
  %v173 = vpop.f32.mrf.mxu0
  %v174 = vpop.f32.mrf.mxu0
  %v175 = vadd.f32 %v40, %v174
  %v176 = vpop.f32.mrf.mxu0
  %177 = vmatprep.mubr.bf16.mxu0 0
  %178 = vmatmul.mubr.bf16.gmra.mxu0 %v102
  %v179 = vpop.f32.mrf.mxu0
  %v180 = vadd.f32 %v40, %v179
  %v181 = vpop.f32.mrf.mxu0
  %v182 = vpop.f32.mrf.mxu0
  %v183 = vadd.f32 %v40, %v182
  %v184 = vpop.f32.mrf.mxu0
  %185 = vmatprep.mubr.bf16.mxu0 0
  %186 = vmatmul.mubr.bf16.gmra.mxu0 %v105
  %v187 = vpop.f32.mrf.mxu0
  %v188 = vadd.f32 %v40, %v187
  %v189 = vpop.f32.mrf.mxu0
  %v190 = vpop.f32.mrf.mxu0
  %v191 = vadd.f32 %v40, %v190
  %v192 = vpop.f32.mrf.mxu0
  %193 = vmatprep.mubr.bf16.mxu0 0
  %194 = vmatmul.mubr.bf16.gmra.mxu0 %v108
  %v195 = vpop.f32.mrf.mxu0
  %v196 = vadd.f32 %v40, %v195
  %v197 = vpop.f32.mrf.mxu0
  %v198 = vpop.f32.mrf.mxu0
  %v199 = vadd.f32 %v40, %v198
  %v200 = vpop.f32.mrf.mxu0
  %201 = vmatprep.mubr.bf16.mxu0 0
  %202 = vmatmul.mubr.bf16.gmra.mxu0 %v111
  %v203 = vpop.f32.mrf.mxu0
  %v204 = vadd.f32 %v40, %v203
  %v205 = vpop.f32.mrf.mxu0
  %v206 = vpop.f32.mrf.mxu0
  %v207 = vadd.f32 %v40, %v206
  %v208 = vpop.f32.mrf.mxu0
  %209 = vdwg.mxu0
  %v210 = vlaneseq
  %v211 = vshrl.u32 %v210, 7
  %v212 = vadd.s32 %v211, 8
  %v213 = vadd.s32 %v211, 16
  %v214 = vadd.s32 %v211, 24
  %v215 = vadd.s32 %v211, 32
  %v216 = vadd.s32 %v211, 40
  %v217 = vadd.s32 %v211, 48
  %v218 = vadd.s32 %v211, 56
  %v219 = vadd.s32 %v211, 64
  %v220 = vadd.s32 %v211, 72
  %v221 = vadd.s32 %v211, 80
  %v222 = vadd.s32 %v211, 88
  %v223 = vadd.s32 %v211, 96
  %v224 = vadd.s32 %v211, 104
  %v225 = vadd.s32 %v211, 112
  %v226 = vadd.s32 %v211, 120
  %s227 = smul.u32 0, 128
  %v228 = vstv %s227
  %v229 = vadd.s32 %v211, %v228
  %v230 = vadd.s32 %v212, %v228
  %v231 = vadd.s32 %v213, %v228
  %v232 = vadd.s32 %v214, %v228
  %v233 = vadd.s32 %v215, %v228
  %v234 = vadd.s32 %v216, %v228
  %v235 = vadd.s32 %v217, %v228
  %v236 = vadd.s32 %v218, %v228
  %v237 = vadd.s32 %v219, %v228
  %v238 = vadd.s32 %v220, %v228
  %v239 = vadd.s32 %v221, %v228
  %v240 = vadd.s32 %v222, %v228
  %v241 = vadd.s32 %v223, %v228
  %v242 = vadd.s32 %v224, %v228
  %v243 = vadd.s32 %v225, %v228
  %v244 = vadd.s32 %v226, %v228
  %vm245 = vcmp.lt.s32.totalorder %v229, 128
  %vm246 = vcmp.lt.s32.totalorder %v230, 128
  %vm247 = vcmp.lt.s32.totalorder %v231, 128
  %vm248 = vcmp.lt.s32.totalorder %v232, 128
  %vm249 = vcmp.lt.s32.totalorder %v233, 128
  %vm250 = vcmp.lt.s32.totalorder %v234, 128
  %vm251 = vcmp.lt.s32.totalorder %v235, 128
  %vm252 = vcmp.lt.s32.totalorder %v236, 128
  %vm253 = vcmp.lt.s32.totalorder %v237, 128
  %vm254 = vcmp.lt.s32.totalorder %v238, 128
  %vm255 = vcmp.lt.s32.totalorder %v239, 128
  %vm256 = vcmp.lt.s32.totalorder %v240, 128
  %vm257 = vcmp.lt.s32.totalorder %v241, 128
  %vm258 = vcmp.lt.s32.totalorder %v242, 128
  %vm259 = vcmp.lt.s32.totalorder %v243, 128
  %vm260 = vcmp.lt.s32.totalorder %v244, 128
  %v261 = vsel %vm245, %v148, 0.0
  %v262 = vsel %vm246, %v151, 0.0
  %v263 = vsel %vm247, %v156, 0.0
  %v264 = vsel %vm248, %v159, 0.0
  %v265 = vsel %vm249, %v164, 0.0
  %v266 = vsel %vm250, %v167, 0.0
  %v267 = vsel %vm251, %v172, 0.0
  %v268 = vsel %vm252, %v175, 0.0
  %v269 = vsel %vm253, %v180, 0.0
  %v270 = vsel %vm254, %v183, 0.0
  %v271 = vsel %vm255, %v188, 0.0
  %v272 = vsel %vm256, %v191, 0.0
  %v273 = vsel %vm257, %v196, 0.0
  %v274 = vsel %vm258, %v199, 0.0
  %v275 = vsel %vm259, %v204, 0.0
  %v276 = vsel %vm260, %v207, 0.0
  %vm277 = vcmask 64512
  %v278 = vsel %vm277, %v261, 0.0
  %v279 = vsel %vm277, %v262, 0.0
  %v280 = vadd.f32 %v278, %v279
  %v281 = vsel %vm277, %v263, 0.0
  %v282 = vadd.f32 %v280, %v281
  %v283 = vsel %vm277, %v264, 0.0
  %v284 = vadd.f32 %v282, %v283
  %v285 = vsel %vm277, %v265, 0.0
  %v286 = vadd.f32 %v284, %v285
  %v287 = vsel %vm277, %v266, 0.0
  %v288 = vadd.f32 %v286, %v287
  %v289 = vsel %vm277, %v267, 0.0
  %v290 = vadd.f32 %v288, %v289
  %v291 = vsel %vm277, %v268, 0.0
  %v292 = vadd.f32 %v290, %v291
  %v293 = vsel %vm277, %v269, 0.0
  %v294 = vadd.f32 %v292, %v293
  %v295 = vsel %vm277, %v270, 0.0
  %v296 = vadd.f32 %v294, %v295
  %v297 = vsel %vm277, %v271, 0.0
  %v298 = vadd.f32 %v296, %v297
  %v299 = vsel %vm277, %v272, 0.0
  %v300 = vadd.f32 %v298, %v299
  %v301 = vsel %vm277, %v273, 0.0
  %v302 = vadd.f32 %v300, %v301
  %v303 = vsel %vm277, %v274, 0.0
  %v304 = vadd.f32 %v302, %v303
  %v305 = vsel %vm277, %v275, 0.0
  %v306 = vadd.f32 %v304, %v305
  %v307 = vsel %vm277, %v276, 0.0
  %v308 = vadd.f32 %v306, %v307
  %v309 = vrot.slane %v308, 4
  %v310 = vadd.f32 %v308, %v309
  %v311 = vrot.slane %v310, 2
  %v312 = vadd.f32 %v310, %v311
  %v313 = vrot.slane %v312, 1
  %v314 = vadd.f32 %v312, %v313
  %v315 = vmul.f32 %v261, %v261
  %v316 = vmul.f32 %v262, %v262
  %v317 = vmul.f32 %v263, %v263
  %v318 = vmul.f32 %v264, %v264
  %v319 = vmul.f32 %v265, %v265
  %v320 = vmul.f32 %v266, %v266
  %v321 = vmul.f32 %v267, %v267
  %v322 = vmul.f32 %v268, %v268
  %v323 = vmul.f32 %v269, %v269
  %v324 = vmul.f32 %v270, %v270
  %v325 = vmul.f32 %v271, %v271
  %v326 = vmul.f32 %v272, %v272
  %v327 = vmul.f32 %v273, %v273
  %v328 = vmul.f32 %v274, %v274
  %v329 = vmul.f32 %v275, %v275
  %v330 = vmul.f32 %v276, %v276
  %v331 = vsel %vm277, %v315, 0.0
  %v332 = vsel %vm277, %v316, 0.0
  %v333 = vadd.f32 %v331, %v332
  %v334 = vsel %vm277, %v317, 0.0
  %v335 = vadd.f32 %v333, %v334
  %v336 = vsel %vm277, %v318, 0.0
  %v337 = vadd.f32 %v335, %v336
  %v338 = vsel %vm277, %v319, 0.0
  %v339 = vadd.f32 %v337, %v338
  %v340 = vsel %vm277, %v320, 0.0
  %v341 = vadd.f32 %v339, %v340
  %v342 = vsel %vm277, %v321, 0.0
  %v343 = vadd.f32 %v341, %v342
  %v344 = vsel %vm277, %v322, 0.0
  %v345 = vadd.f32 %v343, %v344
  %v346 = vsel %vm277, %v323, 0.0
  %v347 = vadd.f32 %v345, %v346
  %v348 = vsel %vm277, %v324, 0.0
  %v349 = vadd.f32 %v347, %v348
  %v350 = vsel %vm277, %v325, 0.0
  %v351 = vadd.f32 %v349, %v350
  %v352 = vsel %vm277, %v326, 0.0
  %v353 = vadd.f32 %v351, %v352
  %v354 = vsel %vm277, %v327, 0.0
  %v355 = vadd.f32 %v353, %v354
  %v356 = vsel %vm277, %v328, 0.0
  %v357 = vadd.f32 %v355, %v356
  %v358 = vsel %vm277, %v329, 0.0
  %v359 = vadd.f32 %v357, %v358
  %v360 = vsel %vm277, %v330, 0.0
  %v361 = vadd.f32 %v359, %v360
  %v362 = vrot.slane %v361, 4
  %v363 = vadd.f32 %v361, %v362
  %v364 = vrot.slane %v363, 2
  %v365 = vadd.f32 %v363, %v364
  %v366 = vrot.slane %v365, 1
  %v367 = vadd.f32 %v365, %v366
  %vm368 = vcmask 1040384
  %v369 = vsel %vm368, %v314, %v367
  %vm370 = vcmask 58368
  %371 = vst.msk [vmem:[%s4] sm:$0x3] %vm370, %v369
  %372 = vst.msk [vmem:[%s3] sm:$0xff] %vm277, %v148
  %373 = vst.msk [vmem:[%s3 + $0x8] sm:$0xff] %vm277, %v151
  %374 = vst.msk [vmem:[%s3 + $0x10] sm:$0xff] %vm277, %v156
  %375 = vst.msk [vmem:[%s3 + $0x18] sm:$0xff] %vm277, %v159
  %376 = vst.msk [vmem:[%s3 + $0x20] sm:$0xff] %vm277, %v164
  %377 = vst.msk [vmem:[%s3 + $0x28] sm:$0xff] %vm277, %v167
  %378 = vst.msk [vmem:[%s3 + $0x30] sm:$0xff] %vm277, %v172
  %379 = vst.msk [vmem:[%s3 + $0x38] sm:$0xff] %vm277, %v175
  %380 = vst.msk [vmem:[%s3 + $0x40] sm:$0xff] %vm277, %v180
  %381 = vst.msk [vmem:[%s3 + $0x48] sm:$0xff] %vm277, %v183
  %382 = vst.msk [vmem:[%s3 + $0x50] sm:$0xff] %vm277, %v188
  %383 = vst.msk [vmem:[%s3 + $0x58] sm:$0xff] %vm277, %v191
  %384 = vst.msk [vmem:[%s3 + $0x60] sm:$0xff] %vm277, %v196
  %385 = vst.msk [vmem:[%s3 + $0x68] sm:$0xff] %vm277, %v199
  %386 = vst.msk [vmem:[%s3 + $0x70] sm:$0xff] %vm277, %v204
  %387 = vst.msk [vmem:[%s3 + $0x78] sm:$0xff] %vm277, %v207
  // Predicated region
  $region14: #{global_generator_forward.44} parent=0 // pred_check
    _
  $region15: #{global_generator_forward.44} parent=0 // pred_check_branch
    %389 = sbr.rel (0) target = $region17
  $region16: #{global_generator_forward.44} parent=0 // pred_region
    _
  $region17: #{global_generator_forward.44} parent=0 // pred_fallthru
    _
  // Predicated region
  $region18: #{global_generator_forward.44} parent=0 // pred_check
    _
  $region19: #{global_generator_forward.44} parent=0 // pred_check_branch
    %391 = sbr.rel (0) target = $region21
  $region20: #{global_generator_forward.44} parent=0 // pred_region
    _
  $region21: #{global_generator_forward.44} parent=0 // pred_fallthru
    _
  // Predicated region
  $region22: #{global_generator_forward.44} parent=0 // pred_check
    _
  $region23: #{global_generator_forward.44} parent=0 // pred_check_branch
    %393 = sbr.rel (0) target = $region25
  $region24: #{global_generator_forward.44} parent=0 // pred_region
    _
  $region25: #{global_generator_forward.44} parent=0 // pred_fallthru
    _
  // Predicated region
  $region26: #{global_generator_forward.44} parent=0 // pred_check
    _
  $region27: #{global_generator_forward.44} parent=0 // pred_check_branch
    %395 = sbr.rel (0) target = $region29
  $region28: #{global_generator_forward.44} parent=0 // pred_region
    _
  $region29: #{global_generator_forward.44} parent=0 // pred_fallthru
    _

// kernel: global_generator_forward.49
$region0: #{global_generator_forward.49}
  #allocation0 [shape = 'u32[]', space=smem, size = 0x4, offset = 0x4, fixed_abs, tag = 'smem constant byte address 0x4 - core index']
  #allocation1 [shape = 'u32[144,128]{1,0:T(1,128)}', space=vmem, size = 0x12000, scoped, tag = 'internal scratch']
  %s0 = inlined_call_operand.vmem [shape: bf16[512,392], index: 0, kind: input, shape index: {}]
  %s1 = inlined_call_operand.vmem [shape: bf16[392,3], index: 1, kind: input, shape index: {}]
  %s2 = inlined_call_operand.vmem [shape: f32[1,3], index: 2, kind: input, shape index: {}]
  %s3 = inlined_call_operand.vmem [shape: f32[512,3], index: 3, kind: output, shape index: {0}]
  %s4 = inlined_call_operand.hbm [shape: f32[1,2,3], index: 4, kind: output, shape index: {1}]
  %5 = xla_tuple %s3, %s4
  %s6 = sld [smem:[#allocation0]]
  $region30: #{global_generator_forward.49} parent=0
    _
  %s8 = ssub.s32 1, %s6
  %s9 = scalar_select 0, %s8, %s6
  $region1: #{global_generator_forward.49} parent=0
    #allocation2 [shape = 'u8[1024]{0}', space=vmem, size = 0x400, scoped, tag = 'output window, operand 1, single buffered']
    #allocation3 [shape = 's32[1]{0}', space=sflag, size = 0x4, scoped, tag = 'scoped memory for global_generator_forward.49']
    %10 = vsyncpa [#allocation3], 0
    // Predicated region
    $region2: #{global_generator_forward.49} parent=1 // pred_check
      _
    $region3: #{global_generator_forward.49} parent=1 // pred_check_branch
      %12 = sbr.rel (0) target = $region5
    $region4: #{global_generator_forward.49} parent=1 // pred_region
      _
    $region5: #{global_generator_forward.49} parent=1 // pred_fallthru
      _
    // Predicated region
    $region6: #{global_generator_forward.49} parent=1 // pred_check
      _
    $region7: #{global_generator_forward.49} parent=1 // pred_check_branch
      %14 = sbr.rel (0) target = $region9
    $region8: #{global_generator_forward.49} parent=1 // pred_region
      _
    $region9: #{global_generator_forward.49} parent=1 // pred_fallthru
      _
    // Predicated region
    $region10: #{global_generator_forward.49} parent=1 // pred_check
      _
    $region11: #{global_generator_forward.49} parent=1 // pred_check_branch
      %16 = sbr.rel (0) target = $region13
    $region12: #{global_generator_forward.49} parent=1 // pred_region
      _
    $region13: #{global_generator_forward.49} parent=1 // pred_fallthru
      _
    %v18 = vld [vmem:[%s0] sm:$0xff]
    %v19 = vld [vmem:[%s0 + $0x8] sm:$0xff]
    %v20 = vld [vmem:[%s0 + $0x10] sm:$0xff]
    %v21 = vld [vmem:[%s0 + $0x18] sm:$0xff]
    %v22 = vld [vmem:[%s0 + $0x20] sm:$0xff]
    %v23 = vld [vmem:[%s0 + $0x28] sm:$0xff]
    %v24 = vld [vmem:[%s0 + $0x30] sm:$0xff]
    %v25 = vld [vmem:[%s0 + $0x38] sm:$0xff]
    %v26 = vld [vmem:[%s0 + $0x40] sm:$0xff]
    %v27 = vld [vmem:[%s0 + $0x48] sm:$0xff]
    %v28 = vld [vmem:[%s0 + $0x50] sm:$0xff]
    %v29 = vld [vmem:[%s0 + $0x58] sm:$0xff]
    %v30 = vld [vmem:[%s0 + $0x60] sm:$0xff]
    %v31 = vld [vmem:[%s0 + $0x68] sm:$0xff]
    %v32 = vld [vmem:[%s0 + $0x70] sm:$0xff]
    %v33 = vld [vmem:[%s0 + $0x78] sm:$0xff]
    %v34 = vld [vmem:[%s0 + $0x80] sm:$0xff]
    %v35 = vld [vmem:[%s0 + $0x88] sm:$0xff]
    %v36 = vld [vmem:[%s0 + $0x90] sm:$0xff]
    %v37 = vld [vmem:[%s0 + $0x98] sm:$0xff]
    %v38 = vld [vmem:[%s0 + $0xa0] sm:$0xff]
    %v39 = vld [vmem:[%s0 + $0xa8] sm:$0xff]
    %v40 = vld [vmem:[%s0 + $0xb0] sm:$0xff]
    %v41 = vld [vmem:[%s0 + $0xb8] sm:$0xff]
    %v42 = vld [vmem:[%s0 + $0xc0] sm:$0xff]
    %v43 = vld [vmem:[%s0 + $0xc8] sm:$0xff]
    %v44 = vld [vmem:[%s0 + $0xd0] sm:$0xff]
    %v45 = vld [vmem:[%s0 + $0xd8] sm:$0xff]
    %v46 = vld [vmem:[%s0 + $0xe0] sm:$0xff]
    %v47 = vld [vmem:[%s0 + $0xe8] sm:$0xff]
    %v48 = vld [vmem:[%s0 + $0xf0] sm:$0xff]
    %v49 = vld [vmem:[%s0 + $0xf8] sm:$0xff]
    %v50 = vld [vmem:[%s0 + $0x100] sm:$0xff]
    %v51 = vld [vmem:[%s0 + $0x108] sm:$0xff]
    %v52 = vld [vmem:[%s0 + $0x110] sm:$0xff]
    %v53 = vld [vmem:[%s0 + $0x118] sm:$0xff]
    %v54 = vld [vmem:[%s0 + $0x120] sm:$0xff]
    %v55 = vld [vmem:[%s0 + $0x128] sm:$0xff]
    %v56 = vld [vmem:[%s0 + $0x130] sm:$0xff]
    %v57 = vld [vmem:[%s0 + $0x138] sm:$0xff]
    %v58 = vld [vmem:[%s0 + $0x140] sm:$0xff]
    %v59 = vld [vmem:[%s0 + $0x148] sm:$0xff]
    %v60 = vld [vmem:[%s0 + $0x150] sm:$0xff]
    %v61 = vld [vmem:[%s0 + $0x158] sm:$0xff]
    %v62 = vld [vmem:[%s0 + $0x160] sm:$0xff]
    %v63 = vld [vmem:[%s0 + $0x168] sm:$0xff]
    %v64 = vld [vmem:[%s0 + $0x170] sm:$0xff]
    %v65 = vld [vmem:[%s0 + $0x178] sm:$0xff]
    %v66 = vld [vmem:[%s0 + $0x180] sm:$0xff]
    %v67 = vld [vmem:[%s0 + $0x188] sm:$0xff]
    %v68 = vld [vmem:[%s0 + $0x190] sm:$0xff]
    %v69 = vld [vmem:[%s0 + $0x198] sm:$0xff]
    %v70 = vld [vmem:[%s0 + $0x1a0] sm:$0xff]
    %v71 = vld [vmem:[%s0 + $0x1a8] sm:$0xff]
    %v72 = vld [vmem:[%s0 + $0x1b0] sm:$0xff]
    %v73 = vld [vmem:[%s0 + $0x1b8] sm:$0xff]
    %v74 = vld [vmem:[%s0 + $0x1c0] sm:$0xff]
    %v75 = vld [vmem:[%s0 + $0x1c8] sm:$0xff]
    %v76 = vld [vmem:[%s0 + $0x1d0] sm:$0xff]
    %v77 = vld [vmem:[%s0 + $0x1d8] sm:$0xff]
    %v78 = vld [vmem:[%s0 + $0x1e0] sm:$0xff]
    %v79 = vld [vmem:[%s0 + $0x1e8] sm:$0xff]
    %v80 = vld [vmem:[%s0 + $0x1f0] sm:$0xff]
    %v81 = vld [vmem:[%s0 + $0x1f8] sm:$0xff]
    %v82 = vld [vmem:[%s0 + $0x200] sm:$0xff]
    %v83 = vld [vmem:[%s0 + $0x208] sm:$0xff]
    %v84 = vld [vmem:[%s0 + $0x210] sm:$0xff]
    %v85 = vld [vmem:[%s0 + $0x218] sm:$0xff]
    %v86 = vld [vmem:[%s0 + $0x220] sm:$0xff]
    %v87 = vld [vmem:[%s0 + $0x228] sm:$0xff]
    %v88 = vld [vmem:[%s0 + $0x230] sm:$0xff]
    %v89 = vld [vmem:[%s0 + $0x238] sm:$0xff]
    %v90 = vld [vmem:[%s0 + $0x240] sm:$0xff]
    %v91 = vld [vmem:[%s0 + $0x248] sm:$0xff]
    %v92 = vld [vmem:[%s0 + $0x250] sm:$0xff]
    %v93 = vld [vmem:[%s0 + $0x258] sm:$0xff]
    %v94 = vld [vmem:[%s0 + $0x260] sm:$0xff]
    %v95 = vld [vmem:[%s0 + $0x268] sm:$0xff]
    %v96 = vld [vmem:[%s0 + $0x270] sm:$0xff]
    %v97 = vld [vmem:[%s0 + $0x278] sm:$0xff]
    %v98 = vld [vmem:[%s0 + $0x280] sm:$0xff]
    %v99 = vld [vmem:[%s0 + $0x288] sm:$0xff]
    %v100 = vld [vmem:[%s0 + $0x290] sm:$0xff]
    %v101 = vld [vmem:[%s0 + $0x298] sm:$0xff]
    %v102 = vld [vmem:[%s0 + $0x2a0] sm:$0xff]
    %v103 = vld [vmem:[%s0 + $0x2a8] sm:$0xff]
    %v104 = vld [vmem:[%s0 + $0x2b0] sm:$0xff]
    %v105 = vld [vmem:[%s0 + $0x2b8] sm:$0xff]
    %v106 = vld [vmem:[%s0 + $0x2c0] sm:$0xff]
    %v107 = vld [vmem:[%s0 + $0x2c8] sm:$0xff]
    %v108 = vld [vmem:[%s0 + $0x2d0] sm:$0xff]
    %v109 = vld [vmem:[%s0 + $0x2d8] sm:$0xff]
    %v110 = vld [vmem:[%s0 + $0x2e0] sm:$0xff]
    %v111 = vld [vmem:[%s0 + $0x2e8] sm:$0xff]
    %v112 = vld [vmem:[%s0 + $0x2f0] sm:$0xff]
    %v113 = vld [vmem:[%s0 + $0x2f8] sm:$0xff]
    %v114 = vld [vmem:[%s0 + $0x300] sm:$0xff]
    %v115 = vld [vmem:[%s0 + $0x308] sm:$0xff]
    %v116 = vld [vmem:[%s0 + $0x310] sm:$0xff]
    %v117 = vld [vmem:[%s0 + $0x318] sm:$0xff]
    %v118 = vld [vmem:[%s0 + $0x320] sm:$0xff]
    %v119 = vld [vmem:[%s0 + $0x328] sm:$0xff]
    %v120 = vld [vmem:[%s0 + $0x330] sm:$0xff]
    %v121 = vld [vmem:[%s0 + $0x338] sm:$0xff]
    %v122 = vld [vmem:[%s0 + $0x340] sm:$0xff]
    %v123 = vld [vmem:[%s0 + $0x348] sm:$0xff]
    %v124 = vld [vmem:[%s0 + $0x350] sm:$0xff]
    %v125 = vld [vmem:[%s0 + $0x358] sm:$0xff]
    %v126 = vld [vmem:[%s0 + $0x360] sm:$0xff]
    %v127 = vld [vmem:[%s0 + $0x368] sm:$0xff]
    %v128 = vld [vmem:[%s0 + $0x370] sm:$0xff]
    %v129 = vld [vmem:[%s0 + $0x378] sm:$0xff]
    %v130 = vld [vmem:[%s0 + $0x380] sm:$0xff]
    %v131 = vld [vmem:[%s0 + $0x388] sm:$0xff]
    %v132 = vld [vmem:[%s0 + $0x390] sm:$0xff]
    %v133 = vld [vmem:[%s0 + $0x398] sm:$0xff]
    %v134 = vld [vmem:[%s0 + $0x3a0] sm:$0xff]
    %v135 = vld [vmem:[%s0 + $0x3a8] sm:$0xff]
    %v136 = vld [vmem:[%s0 + $0x3b0] sm:$0xff]
    %v137 = vld [vmem:[%s0 + $0x3b8] sm:$0xff]
    %v138 = vld [vmem:[%s0 + $0x3c0] sm:$0xff]
    %v139 = vld [vmem:[%s0 + $0x3c8] sm:$0xff]
    %v140 = vld [vmem:[%s0 + $0x3d0] sm:$0xff]
    %v141 = vld [vmem:[%s0 + $0x3d8] sm:$0xff]
    %v142 = vld [vmem:[%s0 + $0x3e0] sm:$0xff]
    %v143 = vld [vmem:[%s0 + $0x3e8] sm:$0xff]
    %v144 = vld [vmem:[%s0 + $0x3f0] sm:$0xff]
    %v145 = vld [vmem:[%s0 + $0x3f8] sm:$0xff]
    %v146 = vld [vmem:[%s1] sm:$0xf]
    %v147 = vld [vmem:[%s1 + $0x4] sm:$0xf]
    %v148 = vld [vmem:[%s1 + $0x8] sm:$0xf]
    %v149 = vld [vmem:[%s1 + $0xc] sm:$0xf]
    %v150 = vld [vmem:[%s1 + $0x10] sm:$0xf]
    %v151 = vld [vmem:[%s1 + $0x14] sm:$0xf]
    %v152 = vld [vmem:[%s1 + $0x18] sm:$0xf]
    %v153 = vld [vmem:[%s1 + $0x1c] sm:$0xf]
    %v154 = vld [vmem:[%s1 + $0x20] sm:$0xf]
    %v155 = vld [vmem:[%s1 + $0x24] sm:$0xf]
    %v156 = vld [vmem:[%s1 + $0x28] sm:$0xf]
    %v157 = vld [vmem:[%s1 + $0x2c] sm:$0xf]
    %v158 = vld [vmem:[%s1 + $0x30] sm:$0xf]
    %v159 = vld [vmem:[%s1 + $0x34] sm:$0xf]
    %v160 = vld [vmem:[%s1 + $0x38] sm:$0xf]
    %v161 = vld [vmem:[%s1 + $0x3c] sm:$0xf]
    %v162 = vld [vmem:[%s1 + $0x40] sm:$0xf]
    %v163 = vld [vmem:[%s1 + $0x44] sm:$0xf]
    %v164 = vld [vmem:[%s1 + $0x48] sm:$0xf]
    %v165 = vld [vmem:[%s1 + $0x4c] sm:$0xf]
    %v166 = vld [vmem:[%s1 + $0x50] sm:$0xf]
    %v167 = vld [vmem:[%s1 + $0x54] sm:$0xf]
    %v168 = vld [vmem:[%s1 + $0x58] sm:$0xf]
    %v169 = vld [vmem:[%s1 + $0x5c] sm:$0xf]
    %v170 = vld [vmem:[%s1 + $0x60] sm:$0xf]
    %v171 = vld [vmem:[%s1 + $0x64] sm:$0xf]
    %v172 = vld [vmem:[%s1 + $0x68] sm:$0xf]
    %v173 = vld [vmem:[%s1 + $0x6c] sm:$0xf]
    %v174 = vld [vmem:[%s1 + $0x70] sm:$0xf]
    %v175 = vld [vmem:[%s1 + $0x74] sm:$0xf]
    %v176 = vld [vmem:[%s1 + $0x78] sm:$0xf]
    %v177 = vld [vmem:[%s1 + $0x7c] sm:$0xf]
    %v178 = vld [vmem:[%s1 + $0x80] sm:$0xf]
    %v179 = vld [vmem:[%s1 + $0x84] sm:$0xf]
    %v180 = vld [vmem:[%s1 + $0x88] sm:$0xf]
    %v181 = vld [vmem:[%s1 + $0x8c] sm:$0xf]
    %v182 = vld [vmem:[%s1 + $0x90] sm:$0xf]
    %v183 = vld [vmem:[%s1 + $0x94] sm:$0xf]
    %v184 = vld [vmem:[%s1 + $0x98] sm:$0xf]
    %v185 = vld [vmem:[%s1 + $0x9c] sm:$0xf]
    %v186 = vld [vmem:[%s1 + $0xa0] sm:$0xf]
    %v187 = vld [vmem:[%s1 + $0xa4] sm:$0xf]
    %v188 = vld [vmem:[%s1 + $0xa8] sm:$0xf]
    %v189 = vld [vmem:[%s1 + $0xac] sm:$0xf]
    %v190 = vld [vmem:[%s1 + $0xb0] sm:$0xf]
    %v191 = vld [vmem:[%s1 + $0xb4] sm:$0xf]
    %v192 = vld [vmem:[%s1 + $0xb8] sm:$0xf]
    %v193 = vld [vmem:[%s1 + $0xbc] sm:$0xf]
    %v194 = vld [vmem:[%s1 + $0xc0] sm:$0xf]
    %v195 = vld [vmem:[%s2] sm:$0x1]
    %v197 = vlaneseq
    %v198 = vshrl.u32 %v197, 7
    %v199 = vsub.s32 0, %v198
    %v200 = vrot.slane %v195, %v199
    %v330 = vunpack.c.l.b16 %v18
    %v331 = vunpack.c.h.b16 %v18
    %v332 = vunpack.c.l.b16 %v19
    %v333 = vunpack.c.h.b16 %v19
    %v334 = vunpack.c.l.b16 %v20
    %v335 = vunpack.c.h.b16 %v20
    %v336 = vunpack.c.l.b16 %v21
    %v337 = vunpack.c.h.b16 %v21
    %v338 = vunpack.c.l.b16 %v22
    %v339 = vunpack.c.h.b16 %v22
    %v340 = vunpack.c.l.b16 %v23
    %v341 = vunpack.c.h.b16 %v23
    %v342 = vunpack.c.l.b16 %v24
    %v343 = vunpack.c.h.b16 %v24
    %v344 = vunpack.c.l.b16 %v25
    %v345 = vunpack.c.h.b16 %v25
    %v346 = vunpack.c.l.b16 %v26
    %v347 = vunpack.c.h.b16 %v26
    %v348 = vunpack.c.l.b16 %v27
    %v349 = vunpack.c.h.b16 %v27
    %v350 = vunpack.c.l.b16 %v28
    %v351 = vunpack.c.h.b16 %v28
    %v352 = vunpack.c.l.b16 %v29
    %v353 = vunpack.c.h.b16 %v29
    %v354 = vunpack.c.l.b16 %v30
    %v355 = vunpack.c.h.b16 %v30
    %v356 = vunpack.c.l.b16 %v31
    %v357 = vunpack.c.h.b16 %v31
    %v358 = vunpack.c.l.b16 %v32
    %v359 = vunpack.c.h.b16 %v32
    %v360 = vunpack.c.l.b16 %v33
    %v361 = vunpack.c.h.b16 %v33
    %v362 = vunpack.c.l.b16 %v34
    %v363 = vunpack.c.h.b16 %v34
    %v364 = vunpack.c.l.b16 %v35
    %v365 = vunpack.c.h.b16 %v35
    %v366 = vunpack.c.l.b16 %v36
    %v367 = vunpack.c.h.b16 %v36
    %v368 = vunpack.c.l.b16 %v37
    %v369 = vunpack.c.h.b16 %v37
    %v370 = vunpack.c.l.b16 %v38
    %v371 = vunpack.c.h.b16 %v38
    %v372 = vunpack.c.l.b16 %v39
    %v373 = vunpack.c.h.b16 %v39
    %v374 = vunpack.c.l.b16 %v40
    %v375 = vunpack.c.h.b16 %v40
    %v376 = vunpack.c.l.b16 %v41
    %v377 = vunpack.c.h.b16 %v41
    %v378 = vunpack.c.l.b16 %v42
    %v379 = vunpack.c.h.b16 %v42
    %v380 = vunpack.c.l.b16 %v43
    %v381 = vunpack.c.h.b16 %v43
    %v382 = vunpack.c.l.b16 %v44
    %v383 = vunpack.c.h.b16 %v44
    %v384 = vunpack.c.l.b16 %v45
    %v385 = vunpack.c.h.b16 %v45
    %v386 = vunpack.c.l.b16 %v46
    %v387 = vunpack.c.h.b16 %v46
    %v388 = vunpack.c.l.b16 %v47
    %v389 = vunpack.c.h.b16 %v47
    %v390 = vunpack.c.l.b16 %v48
    %v391 = vunpack.c.h.b16 %v48
    %v392 = vunpack.c.l.b16 %v49
    %v393 = vunpack.c.h.b16 %v49
    %v394 = vunpack.c.l.b16 %v50
    %v395 = vunpack.c.h.b16 %v50
    %v396 = vunpack.c.l.b16 %v51
    %v397 = vunpack.c.h.b16 %v51
    %v398 = vunpack.c.l.b16 %v52
    %v399 = vunpack.c.h.b16 %v52
    %v400 = vunpack.c.l.b16 %v53
    %v401 = vunpack.c.h.b16 %v53
    %v402 = vunpack.c.l.b16 %v54
    %v403 = vunpack.c.h.b16 %v54
    %v404 = vunpack.c.l.b16 %v55
    %v405 = vunpack.c.h.b16 %v55
    %v406 = vunpack.c.l.b16 %v56
    %v407 = vunpack.c.h.b16 %v56
    %v408 = vunpack.c.l.b16 %v57
    %v409 = vunpack.c.h.b16 %v57
    %v410 = vunpack.c.l.b16 %v58
    %v411 = vunpack.c.h.b16 %v58
    %v412 = vunpack.c.l.b16 %v59
    %v413 = vunpack.c.h.b16 %v59
    %v414 = vunpack.c.l.b16 %v60
    %v415 = vunpack.c.h.b16 %v60
    %v416 = vunpack.c.l.b16 %v61
    %v417 = vunpack.c.h.b16 %v61
    %v418 = vunpack.c.l.b16 %v62
    %v419 = vunpack.c.h.b16 %v62
    %v420 = vunpack.c.l.b16 %v63
    %v421 = vunpack.c.h.b16 %v63
    %v422 = vunpack.c.l.b16 %v64
    %v423 = vunpack.c.h.b16 %v64
    %v424 = vunpack.c.l.b16 %v65
    %v425 = vunpack.c.h.b16 %v65
    %v426 = vunpack.c.l.b16 %v66
    %v427 = vunpack.c.h.b16 %v66
    %v428 = vunpack.c.l.b16 %v67
    %v429 = vunpack.c.h.b16 %v67
    %v430 = vunpack.c.l.b16 %v68
    %v431 = vunpack.c.h.b16 %v68
    %v432 = vunpack.c.l.b16 %v69
    %v433 = vunpack.c.h.b16 %v69
    %v434 = vunpack.c.l.b16 %v70
    %v435 = vunpack.c.h.b16 %v70
    %v436 = vunpack.c.l.b16 %v71
    %v437 = vunpack.c.h.b16 %v71
    %v438 = vunpack.c.l.b16 %v72
    %v439 = vunpack.c.h.b16 %v72
    %v440 = vunpack.c.l.b16 %v73
    %v441 = vunpack.c.h.b16 %v73
    %v442 = vunpack.c.l.b16 %v74
    %v443 = vunpack.c.h.b16 %v74
    %v444 = vunpack.c.l.b16 %v75
    %v445 = vunpack.c.h.b16 %v75
    %v446 = vunpack.c.l.b16 %v76
    %v447 = vunpack.c.h.b16 %v76
    %v448 = vunpack.c.l.b16 %v77
    %v449 = vunpack.c.h.b16 %v77
    %v450 = vunpack.c.l.b16 %v78
    %v451 = vunpack.c.h.b16 %v78
    %v452 = vunpack.c.l.b16 %v79
    %v453 = vunpack.c.h.b16 %v79
    %v454 = vunpack.c.l.b16 %v80
    %v455 = vunpack.c.h.b16 %v80
    %v456 = vunpack.c.l.b16 %v81
    %v457 = vunpack.c.h.b16 %v81
    %v458 = vunpack.c.l.b16 %v82
    %v459 = vunpack.c.h.b16 %v82
    %v460 = vunpack.c.l.b16 %v83
    %v461 = vunpack.c.h.b16 %v83
    %v462 = vunpack.c.l.b16 %v84
    %v463 = vunpack.c.h.b16 %v84
    %v464 = vunpack.c.l.b16 %v85
    %v465 = vunpack.c.h.b16 %v85
    %v466 = vunpack.c.l.b16 %v86
    %v467 = vunpack.c.h.b16 %v86
    %v468 = vunpack.c.l.b16 %v87
    %v469 = vunpack.c.h.b16 %v87
    %v470 = vunpack.c.l.b16 %v88
    %v471 = vunpack.c.h.b16 %v88
    %v472 = vunpack.c.l.b16 %v89
    %v473 = vunpack.c.h.b16 %v89
    %v474 = vunpack.c.l.b16 %v90
    %v475 = vunpack.c.h.b16 %v90
    %v476 = vunpack.c.l.b16 %v91
    %v477 = vunpack.c.h.b16 %v91
    %v478 = vunpack.c.l.b16 %v92
    %v479 = vunpack.c.h.b16 %v92
    %v480 = vunpack.c.l.b16 %v93
    %v481 = vunpack.c.h.b16 %v93
    %v482 = vunpack.c.l.b16 %v94
    %v483 = vunpack.c.h.b16 %v94
    %v484 = vunpack.c.l.b16 %v95
    %v485 = vunpack.c.h.b16 %v95
    %v486 = vunpack.c.l.b16 %v96
    %v487 = vunpack.c.h.b16 %v96
    %v488 = vunpack.c.l.b16 %v97
    %v489 = vunpack.c.h.b16 %v97
    %v490 = vunpack.c.l.b16 %v98
    %v491 = vunpack.c.h.b16 %v98
    %v492 = vunpack.c.l.b16 %v99
    %v493 = vunpack.c.h.b16 %v99
    %v494 = vunpack.c.l.b16 %v100
    %v495 = vunpack.c.h.b16 %v100
    %v496 = vunpack.c.l.b16 %v101
    %v497 = vunpack.c.h.b16 %v101
    %v498 = vunpack.c.l.b16 %v102
    %v499 = vunpack.c.h.b16 %v102
    %v500 = vunpack.c.l.b16 %v103
    %v501 = vunpack.c.h.b16 %v103
    %v502 = vunpack.c.l.b16 %v104
    %v503 = vunpack.c.h.b16 %v104
    %v504 = vunpack.c.l.b16 %v105
    %v505 = vunpack.c.h.b16 %v105
    %v506 = vunpack.c.l.b16 %v106
    %v507 = vunpack.c.h.b16 %v106
    %v508 = vunpack.c.l.b16 %v107
    %v509 = vunpack.c.h.b16 %v107
    %v510 = vunpack.c.l.b16 %v108
    %v511 = vunpack.c.h.b16 %v108
    %v512 = vunpack.c.l.b16 %v109
    %v513 = vunpack.c.h.b16 %v109
    %v514 = vunpack.c.l.b16 %v110
    %v515 = vunpack.c.h.b16 %v110
    %v516 = vunpack.c.l.b16 %v111
    %v517 = vunpack.c.h.b16 %v111
    %v518 = vunpack.c.l.b16 %v112
    %v519 = vunpack.c.h.b16 %v112
    %v520 = vunpack.c.l.b16 %v113
    %v521 = vunpack.c.h.b16 %v113
    %v522 = vunpack.c.l.b16 %v114
    %v523 = vunpack.c.h.b16 %v114
    %v524 = vunpack.c.l.b16 %v115
    %v525 = vunpack.c.h.b16 %v115
    %v526 = vunpack.c.l.b16 %v116
    %v527 = vunpack.c.h.b16 %v116
    %v528 = vunpack.c.l.b16 %v117
    %v529 = vunpack.c.h.b16 %v117
    %v530 = vunpack.c.l.b16 %v118
    %v531 = vunpack.c.h.b16 %v118
    %v532 = vunpack.c.l.b16 %v119
    %v533 = vunpack.c.h.b16 %v119
    %v534 = vunpack.c.l.b16 %v120
    %v535 = vunpack.c.h.b16 %v120
    %v536 = vunpack.c.l.b16 %v121
    %v537 = vunpack.c.h.b16 %v121
    %v538 = vunpack.c.l.b16 %v122
    %v539 = vunpack.c.h.b16 %v122
    %v540 = vunpack.c.l.b16 %v123
    %v541 = vunpack.c.h.b16 %v123
    %v542 = vunpack.c.l.b16 %v124
    %v543 = vunpack.c.h.b16 %v124
    %v544 = vunpack.c.l.b16 %v125
    %v545 = vunpack.c.h.b16 %v125
    %v546 = vunpack.c.l.b16 %v126
    %v547 = vunpack.c.h.b16 %v126
    %v548 = vunpack.c.l.b16 %v127
    %v549 = vunpack.c.h.b16 %v127
    %v550 = vunpack.c.l.b16 %v128
    %v551 = vunpack.c.h.b16 %v128
    %v552 = vunpack.c.l.b16 %v129
    %v553 = vunpack.c.h.b16 %v129
    %v554 = vunpack.c.l.b16 %v130
    %v555 = vunpack.c.h.b16 %v130
    %v556 = vunpack.c.l.b16 %v131
    %v557 = vunpack.c.h.b16 %v131
    %v558 = vunpack.c.l.b16 %v132
    %v559 = vunpack.c.h.b16 %v132
    %v560 = vunpack.c.l.b16 %v133
    %v561 = vunpack.c.h.b16 %v133
    %v562 = vunpack.c.l.b16 %v134
    %v563 = vunpack.c.h.b16 %v134
    %v564 = vunpack.c.l.b16 %v135
    %v565 = vunpack.c.h.b16 %v135
    %v566 = vunpack.c.l.b16 %v136
    %v567 = vunpack.c.h.b16 %v136
    %v568 = vunpack.c.l.b16 %v137
    %v569 = vunpack.c.h.b16 %v137
    %v570 = vunpack.c.l.b16 %v138
    %v571 = vunpack.c.h.b16 %v138
    %v572 = vunpack.c.l.b16 %v139
    %v573 = vunpack.c.h.b16 %v139
    %v574 = vunpack.c.l.b16 %v140
    %v575 = vunpack.c.h.b16 %v140
    %v576 = vunpack.c.l.b16 %v141
    %v577 = vunpack.c.h.b16 %v141
    %v578 = vunpack.c.l.b16 %v142
    %v579 = vunpack.c.h.b16 %v142
    %v580 = vunpack.c.l.b16 %v143
    %v581 = vunpack.c.h.b16 %v143
    %v582 = vunpack.c.l.b16 %v144
    %v583 = vunpack.c.h.b16 %v144
    %v584 = vunpack.c.l.b16 %v145
    %v585 = vunpack.c.h.b16 %v145
    %v586 = vpack.c.b16 %v334, %v330
    %v587 = vpack.c.b16 %v335, %v331
    %v588 = vpack.c.b16 %v336, %v332
    %v589 = vpack.c.b16 %v337, %v333
    %v590 = vpack.c.b16 %v342, %v338
    %v591 = vpack.c.b16 %v343, %v339
    %v592 = vpack.c.b16 %v344, %v340
    %v593 = vpack.c.b16 %v345, %v341
    %v594 = vpack.c.b16 %v350, %v346
    %v595 = vpack.c.b16 %v351, %v347
    %v596 = vpack.c.b16 %v352, %v348
    %v597 = vpack.c.b16 %v353, %v349
    %v598 = vpack.c.b16 %v358, %v354
    %v599 = vpack.c.b16 %v359, %v355
    %v600 = vpack.c.b16 %v360, %v356
    %v601 = vpack.c.b16 %v361, %v357
    %v602 = vpack.c.b16 %v366, %v362
    %v603 = vpack.c.b16 %v367, %v363
    %v604 = vpack.c.b16 %v368, %v364
    %v605 = vpack.c.b16 %v369, %v365
    %v606 = vpack.c.b16 %v374, %v370
    %v607 = vpack.c.b16 %v375, %v371
    %v608 = vpack.c.b16 %v376, %v372
    %v609 = vpack.c.b16 %v377, %v373
    %v610 = vpack.c.b16 %v382, %v378
    %v611 = vpack.c.b16 %v383, %v379
    %v612 = vpack.c.b16 %v384, %v380
    %v613 = vpack.c.b16 %v385, %v381
    %v614 = vpack.c.b16 %v390, %v386
    %v615 = vpack.c.b16 %v391, %v387
    %v616 = vpack.c.b16 %v392, %v388
    %v617 = vpack.c.b16 %v393, %v389
    %v618 = vpack.c.b16 %v398, %v394
    %v619 = vpack.c.b16 %v399, %v395
    %v620 = vpack.c.b16 %v400, %v396
    %v621 = vpack.c.b16 %v401, %v397
    %v622 = vpack.c.b16 %v406, %v402
    %v623 = vpack.c.b16 %v407, %v403
    %v624 = vpack.c.b16 %v408, %v404
    %v625 = vpack.c.b16 %v409, %v405
    %v626 = vpack.c.b16 %v414, %v410
    %v627 = vpack.c.b16 %v415, %v411
    %v628 = vpack.c.b16 %v416, %v412
    %v629 = vpack.c.b16 %v417, %v413
    %v630 = vpack.c.b16 %v422, %v418
    %v631 = vpack.c.b16 %v423, %v419
    %v632 = vpack.c.b16 %v424, %v420
    %v633 = vpack.c.b16 %v425, %v421
    %v634 = vpack.c.b16 %v430, %v426
    %v635 = vpack.c.b16 %v431, %v427
    %v636 = vpack.c.b16 %v432, %v428
    %v637 = vpack.c.b16 %v433, %v429
    %v638 = vpack.c.b16 %v438, %v434
    %v639 = vpack.c.b16 %v439, %v435
    %v640 = vpack.c.b16 %v440, %v436
    %v641 = vpack.c.b16 %v441, %v437
    %v642 = vpack.c.b16 %v446, %v442
    %v643 = vpack.c.b16 %v447, %v443
    %v644 = vpack.c.b16 %v448, %v444
    %v645 = vpack.c.b16 %v449, %v445
    %v646 = vpack.c.b16 %v454, %v450
    %v647 = vpack.c.b16 %v455, %v451
    %v648 = vpack.c.b16 %v456, %v452
    %v649 = vpack.c.b16 %v457, %v453
    %v650 = vpack.c.b16 %v462, %v458
    %v651 = vpack.c.b16 %v463, %v459
    %v652 = vpack.c.b16 %v464, %v460
    %v653 = vpack.c.b16 %v465, %v461
    %v654 = vpack.c.b16 %v470, %v466
    %v655 = vpack.c.b16 %v471, %v467
    %v656 = vpack.c.b16 %v472, %v468
    %v657 = vpack.c.b16 %v473, %v469
    %v658 = vpack.c.b16 %v478, %v474
    %v659 = vpack.c.b16 %v479, %v475
    %v660 = vpack.c.b16 %v480, %v476
    %v661 = vpack.c.b16 %v481, %v477
    %v662 = vpack.c.b16 %v486, %v482
    %v663 = vpack.c.b16 %v487, %v483
    %v664 = vpack.c.b16 %v488, %v484
    %v665 = vpack.c.b16 %v489, %v485
    %v666 = vpack.c.b16 %v494, %v490
    %v667 = vpack.c.b16 %v495, %v491
    %v668 = vpack.c.b16 %v496, %v492
    %v669 = vpack.c.b16 %v497, %v493
    %v670 = vpack.c.b16 %v502, %v498
    %v671 = vpack.c.b16 %v503, %v499
    %v672 = vpack.c.b16 %v504, %v500
    %v673 = vpack.c.b16 %v505, %v501
    %v674 = vpack.c.b16 %v510, %v506
    %v675 = vpack.c.b16 %v511, %v507
    %v676 = vpack.c.b16 %v512, %v508
    %v677 = vpack.c.b16 %v513, %v509
    %v678 = vpack.c.b16 %v518, %v514
    %v679 = vpack.c.b16 %v519, %v515
    %v680 = vpack.c.b16 %v520, %v516
    %v681 = vpack.c.b16 %v521, %v517
    %v682 = vpack.c.b16 %v526, %v522
    %v683 = vpack.c.b16 %v527, %v523
    %v684 = vpack.c.b16 %v528, %v524
    %v685 = vpack.c.b16 %v529, %v525
    %v686 = vpack.c.b16 %v534, %v530
    %v687 = vpack.c.b16 %v535, %v531
    %v688 = vpack.c.b16 %v536, %v532
    %v689 = vpack.c.b16 %v537, %v533
    %v690 = vpack.c.b16 %v542, %v538
    %v691 = vpack.c.b16 %v543, %v539
    %v692 = vpack.c.b16 %v544, %v540
    %v693 = vpack.c.b16 %v545, %v541
    %v694 = vpack.c.b16 %v550, %v546
    %v695 = vpack.c.b16 %v551, %v547
    %v696 = vpack.c.b16 %v552, %v548
    %v697 = vpack.c.b16 %v553, %v549
    %v698 = vpack.c.b16 %v558, %v554
    %v699 = vpack.c.b16 %v559, %v555
    %v700 = vpack.c.b16 %v560, %v556
    %v701 = vpack.c.b16 %v561, %v557
    %v702 = vpack.c.b16 %v566, %v562
    %v703 = vpack.c.b16 %v567, %v563
    %v704 = vpack.c.b16 %v568, %v564
    %v705 = vpack.c.b16 %v569, %v565
    %v706 = vpack.c.b16 %v574, %v570
    %v707 = vpack.c.b16 %v575, %v571
    %v708 = vpack.c.b16 %v576, %v572
    %v709 = vpack.c.b16 %v577, %v573
    %v710 = vpack.c.b16 %v582, %v578
    %v711 = vpack.c.b16 %v583, %v579
    %v712 = vpack.c.b16 %v584, %v580
    %v713 = vpack.c.b16 %v585, %v581
    %v859 = vunpack.c.l.b16 %v146
    %v860 = vunpack.c.l.b16 %v147
    %v861 = vunpack.c.l.b16 %v148
    %v862 = vunpack.c.l.b16 %v149
    %v863 = vunpack.c.l.b16 %v150
    %v864 = vunpack.c.l.b16 %v151
    %v865 = vunpack.c.l.b16 %v152
    %v866 = vunpack.c.l.b16 %v153
    %v867 = vunpack.c.l.b16 %v154
    %v868 = vunpack.c.l.b16 %v155
    %v869 = vunpack.c.l.b16 %v156
    %v870 = vunpack.c.l.b16 %v157
    %v871 = vunpack.c.l.b16 %v158
    %v872 = vunpack.c.l.b16 %v159
    %v873 = vunpack.c.l.b16 %v160
    %v874 = vunpack.c.l.b16 %v161
    %v875 = vunpack.c.l.b16 %v162
    %v876 = vunpack.c.l.b16 %v163
    %v877 = vunpack.c.l.b16 %v164
    %v878 = vunpack.c.l.b16 %v165
    %v879 = vunpack.c.l.b16 %v166
    %v880 = vunpack.c.l.b16 %v167
    %v881 = vunpack.c.l.b16 %v168
    %v882 = vunpack.c.l.b16 %v169
    %v883 = vunpack.c.l.b16 %v170
    %v884 = vunpack.c.l.b16 %v171
    %v885 = vunpack.c.l.b16 %v172
    %v886 = vunpack.c.l.b16 %v173
    %v887 = vunpack.c.l.b16 %v174
    %v888 = vunpack.c.l.b16 %v175
    %v889 = vunpack.c.l.b16 %v176
    %v890 = vunpack.c.l.b16 %v177
    %v891 = vunpack.c.l.b16 %v178
    %v892 = vunpack.c.l.b16 %v179
    %v893 = vunpack.c.l.b16 %v180
    %v894 = vunpack.c.l.b16 %v181
    %v895 = vunpack.c.l.b16 %v182
    %v896 = vunpack.c.l.b16 %v183
    %v897 = vunpack.c.l.b16 %v184
    %v898 = vunpack.c.l.b16 %v185
    %v899 = vunpack.c.l.b16 %v186
    %v900 = vunpack.c.l.b16 %v187
    %v901 = vunpack.c.l.b16 %v188
    %v902 = vunpack.c.l.b16 %v189
    %v903 = vunpack.c.l.b16 %v190
    %v904 = vunpack.c.l.b16 %v191
    %v905 = vunpack.c.l.b16 %v192
    %v906 = vunpack.c.l.b16 %v193
    %v907 = vunpack.c.l.b16 %v194
    %v908 = vpack.c.b16 %v860, %v859
    %v909 = vpack.c.b16 %v862, %v861
    %v910 = vpack.c.b16 %v864, %v863
    %v911 = vpack.c.b16 %v866, %v865
    %v912 = vpack.c.b16 %v868, %v867
    %v913 = vpack.c.b16 %v870, %v869
    %v914 = vpack.c.b16 %v872, %v871
    %v915 = vpack.c.b16 %v874, %v873
    %v916 = vpack.c.b16 %v876, %v875
    %v917 = vpack.c.b16 %v878, %v877
    %v918 = vpack.c.b16 %v880, %v879
    %v919 = vpack.c.b16 %v882, %v881
    %v920 = vpack.c.b16 %v884, %v883
    %v921 = vpack.c.b16 %v886, %v885
    %v922 = vpack.c.b16 %v888, %v887
    %v923 = vpack.c.b16 %v890, %v889
    %v924 = vpack.c.b16 %v892, %v891
    %v925 = vpack.c.b16 %v894, %v893
    %v926 = vpack.c.b16 %v896, %v895
    %v927 = vpack.c.b16 %v898, %v897
    %v928 = vpack.c.b16 %v900, %v899
    %v929 = vpack.c.b16 %v902, %v901
    %v930 = vpack.c.b16 %v904, %v903
    %v931 = vpack.c.b16 %v906, %v905
    %v932 = vpack.c.b16 %v907, %v907
    %vm957 = vcmask 64512
    %v959 = vsel %vm957, %v589, 0
    %v962 = vsel %vm957, %v593, 0
    %v965 = vsel %vm957, %v597, 0
    %v968 = vsel %vm957, %v601, 0
    %v971 = vsel %vm957, %v605, 0
    %v974 = vsel %vm957, %v609, 0
    %v977 = vsel %vm957, %v613, 0
    %v980 = vsel %vm957, %v617, 0
    %v983 = vsel %vm957, %v621, 0
    %v986 = vsel %vm957, %v625, 0
    %v989 = vsel %vm957, %v629, 0
    %v992 = vsel %vm957, %v633, 0
    %v995 = vsel %vm957, %v637, 0
    %v998 = vsel %vm957, %v641, 0
    %v1001 = vsel %vm957, %v645, 0
    %v1004 = vsel %vm957, %v649, 0
    %v1007 = vsel %vm957, %v653, 0
    %v1010 = vsel %vm957, %v657, 0
    %v1013 = vsel %vm957, %v661, 0
    %v1016 = vsel %vm957, %v665, 0
    %v1019 = vsel %vm957, %v669, 0
    %v1022 = vsel %vm957, %v673, 0
    %v1025 = vsel %vm957, %v677, 0
    %v1028 = vsel %vm957, %v681, 0
    %v1031 = vsel %vm957, %v685, 0
    %v1034 = vsel %vm957, %v689, 0
    %v1037 = vsel %vm957, %v693, 0
    %v1040 = vsel %vm957, %v697, 0
    %v1043 = vsel %vm957, %v701, 0
    %v1046 = vsel %vm957, %v705, 0
    %v1049 = vsel %vm957, %v709, 0
    %v1052 = vsel %vm957, %v713, 0
    %vm1054 = vcmask 1043456
    %v1056 = vsel %vm1054, %v932, 0
    %1058 = vmatprep.subr.bf16.mxu0 0
    %1059 = vmatpush1.bf16.msra.mxu0 %v915
    %1060 = vmatprep.subr.bf16.mxu0 0
    %1061 = vmatpush1.bf16.msra.mxu0 %v914
    %1062 = vmatprep.subr.bf16.mxu0 0
    %1063 = vmatpush1.bf16.msra.mxu0 %v913
    %1064 = vmatprep.subr.bf16.mxu0 0
    %1065 = vmatpush1.bf16.msra.mxu0 %v912
    %1066 = vmatprep.subr.bf16.mxu0 0
    %1067 = vmatpush1.bf16.msra.mxu0 %v911
    %1068 = vmatprep.subr.bf16.mxu0 0
    %1069 = vmatpush1.bf16.msra.mxu0 %v910
    %1070 = vmatprep.subr.bf16.mxu0 0
    %1071 = vmatpush1.bf16.msra.mxu0 %v909
    %1072 = vmatprep.subr.bf16.mxu0 0
    %1073 = vmatpush1.bf16.msra.mxu0 %v908
    %1074 = vmatprep.subr.bf16.mxu0 0
    %1075 = vmatpush2.bf16.msra.mxu0 %v923
    %1076 = vmatprep.subr.bf16.mxu0 0
    %1077 = vmatpush2.bf16.msra.mxu0 %v922
    %1078 = vmatprep.subr.bf16.mxu0 0
    %1079 = vmatpush2.bf16.msra.mxu0 %v921
    %1080 = vmatprep.subr.bf16.mxu0 0
    %1081 = vmatpush2.bf16.msra.mxu0 %v920
    %1082 = vmatprep.subr.bf16.mxu0 0
    %1083 = vmatpush2.bf16.msra.mxu0 %v919
    %1084 = vmatprep.subr.bf16.mxu0 0
    %1085 = vmatpush2.bf16.msra.mxu0 %v918
    %1086 = vmatprep.subr.bf16.mxu0 0
    %1087 = vmatpush2.bf16.msra.mxu0 %v917
    %1088 = vmatprep.subr.bf16.mxu0 0
    %1089 = vmatpush2.bf16.msra.mxu0 %v916
    %1090 = vmatprep.mubr.bf16.mxu0 %v587
    %1091 = vmatmul.mubr.bf16.gmra.mxu0 %v586
    %v1092 = vpop.f32.mrf.mxu0
    %v1093 = vadd.f32 %v200, %v1092
    %v1094 = vpop.f32.mrf.mxu0
    %v1095 = vpop.f32.mrf.mxu0
    %v1096 = vadd.f32 %v200, %v1095
    %v1097 = vpop.f32.mrf.mxu0
    %1098 = vmatprep.mubr.bf16.mxu0 %v591
    %1099 = vmatmul.mubr.bf16.gmra.mxu0 %v590
    %v1100 = vpop.f32.mrf.mxu0
    %v1101 = vadd.f32 %v200, %v1100
    %v1102 = vpop.f32.mrf.mxu0
    %v1103 = vpop.f32.mrf.mxu0
    %v1104 = vadd.f32 %v200, %v1103
    %v1105 = vpop.f32.mrf.mxu0
    %1106 = vmatprep.mubr.bf16.mxu0 %v595
    %1107 = vmatmul.mubr.bf16.gmra.mxu0 %v594
    %v1108 = vpop.f32.mrf.mxu0
    %v1109 = vadd.f32 %v200, %v1108
    %v1110 = vpop.f32.mrf.mxu0
    %v1111 = vpop.f32.mrf.mxu0
    %v1112 = vadd.f32 %v200, %v1111
    %v1113 = vpop.f32.mrf.mxu0
    %1114 = vmatprep.mubr.bf16.mxu0 %v599
    %1115 = vmatmul.mubr.bf16.gmra.mxu0 %v598
    %v1116 = vpop.f32.mrf.mxu0
    %v1117 = vadd.f32 %v200, %v1116
    %v1118 = vpop.f32.mrf.mxu0
    %v1119 = vpop.f32.mrf.mxu0
    %v1120 = vadd.f32 %v200, %v1119
    %v1121 = vpop.f32.mrf.mxu0
    %1122 = vmatprep.mubr.bf16.mxu0 %v603
    %1123 = vmatmul.mubr.bf16.gmra.mxu0 %v602
    %v1124 = vpop.f32.mrf.mxu0
    %v1125 = vadd.f32 %v200, %v1124
    %v1126 = vpop.f32.mrf.mxu0
    %v1127 = vpop.f32.mrf.mxu0
    %v1128 = vadd.f32 %v200, %v1127
    %v1129 = vpop.f32.mrf.mxu0
    %1130 = vmatprep.mubr.bf16.mxu0 %v607
    %1131 = vmatmul.mubr.bf16.gmra.mxu0 %v606
    %v1132 = vpop.f32.mrf.mxu0
    %v1133 = vadd.f32 %v200, %v1132
    %v1134 = vpop.f32.mrf.mxu0
    %v1135 = vpop.f32.mrf.mxu0
    %v1136 = vadd.f32 %v200, %v1135
    %v1137 = vpop.f32.mrf.mxu0
    %1138 = vmatprep.mubr.bf16.mxu0 %v611
    %1139 = vmatmul.mubr.bf16.gmra.mxu0 %v610
    %v1140 = vpop.f32.mrf.mxu0
    %v1141 = vadd.f32 %v200, %v1140
    %v1142 = vpop.f32.mrf.mxu0
    %v1143 = vpop.f32.mrf.mxu0
    %v1144 = vadd.f32 %v200, %v1143
    %v1145 = vpop.f32.mrf.mxu0
    %1146 = vmatprep.mubr.bf16.mxu0 %v615
    %1147 = vmatmul.mubr.bf16.gmra.mxu0 %v614
    %v1148 = vpop.f32.mrf.mxu0
    %v1149 = vadd.f32 %v200, %v1148
    %v1150 = vpop.f32.mrf.mxu0
    %v1151 = vpop.f32.mrf.mxu0
    %v1152 = vadd.f32 %v200, %v1151
    %v1153 = vpop.f32.mrf.mxu0
    %1154 = vmatprep.mubr.bf16.mxu0 %v619
    %1155 = vmatmul.mubr.bf16.gmra.mxu0 %v618
    %v1156 = vpop.f32.mrf.mxu0
    %v1157 = vadd.f32 %v200, %v1156
    %v1158 = vpop.f32.mrf.mxu0
    %v1159 = vpop.f32.mrf.mxu0
    %v1160 = vadd.f32 %v200, %v1159
    %v1161 = vpop.f32.mrf.mxu0
    %1162 = vmatprep.mubr.bf16.mxu0 %v623
    %1163 = vmatmul.mubr.bf16.gmra.mxu0 %v622
    %v1164 = vpop.f32.mrf.mxu0
    %v1165 = vadd.f32 %v200, %v1164
    %v1166 = vpop.f32.mrf.mxu0
    %v1167 = vpop.f32.mrf.mxu0
    %v1168 = vadd.f32 %v200, %v1167
    %v1169 = vpop.f32.mrf.mxu0
    %1170 = vmatprep.mubr.bf16.mxu0 %v627
    %1171 = vmatmul.mubr.bf16.gmra.mxu0 %v626
    %v1172 = vpop.f32.mrf.mxu0
    %v1173 = vadd.f32 %v200, %v1172
    %v1174 = vpop.f32.mrf.mxu0
    %v1175 = vpop.f32.mrf.mxu0
    %v1176 = vadd.f32 %v200, %v1175
    %v1177 = vpop.f32.mrf.mxu0
    %1178 = vmatprep.mubr.bf16.mxu0 %v631
    %1179 = vmatmul.mubr.bf16.gmra.mxu0 %v630
    %v1180 = vpop.f32.mrf.mxu0
    %v1181 = vadd.f32 %v200, %v1180
    %v1182 = vpop.f32.mrf.mxu0
    %v1183 = vpop.f32.mrf.mxu0
    %v1184 = vadd.f32 %v200, %v1183
    %v1185 = vpop.f32.mrf.mxu0
    %1186 = vmatprep.mubr.bf16.mxu0 %v635
    %1187 = vmatmul.mubr.bf16.gmra.mxu0 %v634
    %v1188 = vpop.f32.mrf.mxu0
    %v1189 = vadd.f32 %v200, %v1188
    %v1190 = vpop.f32.mrf.mxu0
    %v1191 = vpop.f32.mrf.mxu0
    %v1192 = vadd.f32 %v200, %v1191
    %v1193 = vpop.f32.mrf.mxu0
    %1194 = vmatprep.mubr.bf16.mxu0 %v639
    %1195 = vmatmul.mubr.bf16.gmra.mxu0 %v638
    %v1196 = vpop.f32.mrf.mxu0
    %v1197 = vadd.f32 %v200, %v1196
    %v1198 = vpop.f32.mrf.mxu0
    %v1199 = vpop.f32.mrf.mxu0
    %v1200 = vadd.f32 %v200, %v1199
    %v1201 = vpop.f32.mrf.mxu0
    %1202 = vmatprep.mubr.bf16.mxu0 %v643
    %1203 = vmatmul.mubr.bf16.gmra.mxu0 %v642
    %v1204 = vpop.f32.mrf.mxu0
    %v1205 = vadd.f32 %v200, %v1204
    %v1206 = vpop.f32.mrf.mxu0
    %v1207 = vpop.f32.mrf.mxu0
    %v1208 = vadd.f32 %v200, %v1207
    %v1209 = vpop.f32.mrf.mxu0
    %1210 = vmatprep.mubr.bf16.mxu0 %v647
    %1211 = vmatmul.mubr.bf16.gmra.mxu0 %v646
    %v1212 = vpop.f32.mrf.mxu0
    %v1213 = vadd.f32 %v200, %v1212
    %v1214 = vpop.f32.mrf.mxu0
    %v1215 = vpop.f32.mrf.mxu0
    %v1216 = vadd.f32 %v200, %v1215
    %v1217 = vpop.f32.mrf.mxu0
    %1218 = vmatprep.mubr.bf16.mxu0 %v651
    %1219 = vmatmul.mubr.bf16.gmra.mxu0 %v650
    %v1220 = vpop.f32.mrf.mxu0
    %v1221 = vadd.f32 %v200, %v1220
    %v1222 = vpop.f32.mrf.mxu0
    %v1223 = vpop.f32.mrf.mxu0
    %v1224 = vadd.f32 %v200, %v1223
    %v1225 = vpop.f32.mrf.mxu0
    %1226 = vmatprep.mubr.bf16.mxu0 %v655
    %1227 = vmatmul.mubr.bf16.gmra.mxu0 %v654
    %v1228 = vpop.f32.mrf.mxu0
    %v1229 = vadd.f32 %v200, %v1228
    %v1230 = vpop.f32.mrf.mxu0
    %v1231 = vpop.f32.mrf.mxu0
    %v1232 = vadd.f32 %v200, %v1231
    %v1233 = vpop.f32.mrf.mxu0
    %1234 = vmatprep.mubr.bf16.mxu0 %v659
    %1235 = vmatmul.mubr.bf16.gmra.mxu0 %v658
    %v1236 = vpop.f32.mrf.mxu0
    %v1237 = vadd.f32 %v200, %v1236
    %v1238 = vpop.f32.mrf.mxu0
    %v1239 = vpop.f32.mrf.mxu0
    %v1240 = vadd.f32 %v200, %v1239
    %v1241 = vpop.f32.mrf.mxu0
    %1242 = vmatprep.mubr.bf16.mxu0 %v663
    %1243 = vmatmul.mubr.bf16.gmra.mxu0 %v662
    %v1244 = vpop.f32.mrf.mxu0
    %v1245 = vadd.f32 %v200, %v1244
    %v1246 = vpop.f32.mrf.mxu0
    %v1247 = vpop.f32.mrf.mxu0
    %v1248 = vadd.f32 %v200, %v1247
    %v1249 = vpop.f32.mrf.mxu0
    %1250 = vmatprep.mubr.bf16.mxu0 %v667
    %1251 = vmatmul.mubr.bf16.gmra.mxu0 %v666
    %v1252 = vpop.f32.mrf.mxu0
    %v1253 = vadd.f32 %v200, %v1252
    %v1254 = vpop.f32.mrf.mxu0
    %v1255 = vpop.f32.mrf.mxu0
    %v1256 = vadd.f32 %v200, %v1255
    %v1257 = vpop.f32.mrf.mxu0
    %1258 = vmatprep.mubr.bf16.mxu0 %v671
    %1259 = vmatmul.mubr.bf16.gmra.mxu0 %v670
    %v1260 = vpop.f32.mrf.mxu0
    %v1261 = vadd.f32 %v200, %v1260
    %v1262 = vpop.f32.mrf.mxu0
    %v1263 = vpop.f32.mrf.mxu0
    %v1264 = vadd.f32 %v200, %v1263
    %v1265 = vpop.f32.mrf.mxu0
    %1266 = vmatprep.mubr.bf16.mxu0 %v675
    %1267 = vmatmul.mubr.bf16.gmra.mxu0 %v674
    %v1268 = vpop.f32.mrf.mxu0
    %v1269 = vadd.f32 %v200, %v1268
    %v1270 = vpop.f32.mrf.mxu0
    %v1271 = vpop.f32.mrf.mxu0
    %v1272 = vadd.f32 %v200, %v1271
    %v1273 = vpop.f32.mrf.mxu0
    %1274 = vmatprep.mubr.bf16.mxu0 %v679
    %1275 = vmatmul.mubr.bf16.gmra.mxu0 %v678
    %v1276 = vpop.f32.mrf.mxu0
    %v1277 = vadd.f32 %v200, %v1276
    %v1278 = vpop.f32.mrf.mxu0
    %v1279 = vpop.f32.mrf.mxu0
    %v1280 = vadd.f32 %v200, %v1279
    %v1281 = vpop.f32.mrf.mxu0
    %1282 = vmatprep.mubr.bf16.mxu0 %v683
    %1283 = vmatmul.mubr.bf16.gmra.mxu0 %v682
    %v1284 = vpop.f32.mrf.mxu0
    %v1285 = vadd.f32 %v200, %v1284
    %v1286 = vpop.f32.mrf.mxu0
    %v1287 = vpop.f32.mrf.mxu0
    %v1288 = vadd.f32 %v200, %v1287
    %v1289 = vpop.f32.mrf.mxu0
    %1290 = vmatprep.mubr.bf16.mxu0 %v687
    %1291 = vmatmul.mubr.bf16.gmra.mxu0 %v686
    %v1292 = vpop.f32.mrf.mxu0
    %v1293 = vadd.f32 %v200, %v1292
    %v1294 = vpop.f32.mrf.mxu0
    %v1295 = vpop.f32.mrf.mxu0
    %v1296 = vadd.f32 %v200, %v1295
    %v1297 = vpop.f32.mrf.mxu0
    %1298 = vmatprep.mubr.bf16.mxu0 %v691
    %1299 = vmatmul.mubr.bf16.gmra.mxu0 %v690
    %v1300 = vpop.f32.mrf.mxu0
    %v1301 = vadd.f32 %v200, %v1300
    %v1302 = vpop.f32.mrf.mxu0
    %v1303 = vpop.f32.mrf.mxu0
    %v1304 = vadd.f32 %v200, %v1303
    %v1305 = vpop.f32.mrf.mxu0
    %1306 = vmatprep.mubr.bf16.mxu0 %v695
    %1307 = vmatmul.mubr.bf16.gmra.mxu0 %v694
    %v1308 = vpop.f32.mrf.mxu0
    %v1309 = vadd.f32 %v200, %v1308
    %v1310 = vpop.f32.mrf.mxu0
    %v1311 = vpop.f32.mrf.mxu0
    %v1312 = vadd.f32 %v200, %v1311
    %v1313 = vpop.f32.mrf.mxu0
    %1314 = vmatprep.mubr.bf16.mxu0 %v699
    %1315 = vmatmul.mubr.bf16.gmra.mxu0 %v698
    %v1316 = vpop.f32.mrf.mxu0
    %v1317 = vadd.f32 %v200, %v1316
    %v1318 = vpop.f32.mrf.mxu0
    %v1319 = vpop.f32.mrf.mxu0
    %v1320 = vadd.f32 %v200, %v1319
    %v1321 = vpop.f32.mrf.mxu0
    %1322 = vmatprep.mubr.bf16.mxu0 %v703
    %1323 = vmatmul.mubr.bf16.gmra.mxu0 %v702
    %v1324 = vpop.f32.mrf.mxu0
    %v1325 = vadd.f32 %v200, %v1324
    %v1326 = vpop.f32.mrf.mxu0
    %v1327 = vpop.f32.mrf.mxu0
    %v1328 = vadd.f32 %v200, %v1327
    %v1329 = vpop.f32.mrf.mxu0
    %1330 = vmatprep.mubr.bf16.mxu0 %v707
    %1331 = vmatmul.mubr.bf16.gmra.mxu0 %v706
    %v1332 = vpop.f32.mrf.mxu0
    %v1333 = vadd.f32 %v200, %v1332
    %v1334 = vpop.f32.mrf.mxu0
    %v1335 = vpop.f32.mrf.mxu0
    %v1336 = vadd.f32 %v200, %v1335
    %v1337 = vpop.f32.mrf.mxu0
    %1338 = vmatprep.mubr.bf16.mxu0 %v711
    %1339 = vmatmul.mubr.bf16.gmra.mxu0 %v710
    %v1340 = vpop.f32.mrf.mxu0
    %v1341 = vadd.f32 %v200, %v1340
    %v1342 = vpop.f32.mrf.mxu0
    %v1343 = vpop.f32.mrf.mxu0
    %v1344 = vadd.f32 %v200, %v1343
    %v1345 = vpop.f32.mrf.mxu0
    %1346 = vdwg.mxu0
    %1347 = vmatprep.subr.bf16.mxu0 0
    %1348 = vmatpush1.bf16.msra.mxu0 %v931
    %1349 = vmatprep.subr.bf16.mxu0 0
    %1350 = vmatpush1.bf16.msra.mxu0 %v930
    %1351 = vmatprep.subr.bf16.mxu0 0
    %1352 = vmatpush1.bf16.msra.mxu0 %v929
    %1353 = vmatprep.subr.bf16.mxu0 0
    %1354 = vmatpush1.bf16.msra.mxu0 %v928
    %1355 = vmatprep.subr.bf16.mxu0 0
    %1356 = vmatpush1.bf16.msra.mxu0 %v927
    %1357 = vmatprep.subr.bf16.mxu0 0
    %1358 = vmatpush1.bf16.msra.mxu0 %v926
    %1359 = vmatprep.subr.bf16.mxu0 0
    %1360 = vmatpush1.bf16.msra.mxu0 %v925
    %1361 = vmatprep.subr.bf16.mxu0 0
    %1362 = vmatpush1.bf16.msra.mxu0 %v924
    %1363 = vmatprep.subr.bf16.mxu0 0
    %1364 = vmatpush2.bf16.msra.mxu0 0
    %1365 = vmatprep.subr.bf16.mxu0 0
    %1366 = vmatpush2.bf16.msra.mxu0 0
    %1367 = vmatprep.subr.bf16.mxu0 0
    %1368 = vmatpush2.bf16.msra.mxu0 0
    %1369 = vmatprep.subr.bf16.mxu0 0
    %1370 = vmatpush2.bf16.msra.mxu0 0
    %1371 = vmatprep.subr.bf16.mxu0 0
    %1372 = vmatpush2.bf16.msra.mxu0 0
    %1373 = vmatprep.subr.bf16.mxu0 0
    %1374 = vmatpush2.bf16.msra.mxu0 0
    %1375 = vmatprep.subr.bf16.mxu0 0
    %1376 = vmatpush2.bf16.msra.mxu0 0
    %1377 = vmatprep.subr.bf16.mxu0 0
    %1378 = vmatpush2.bf16.msra.mxu0 %v1056
    %1379 = vmatprep.mubr.bf16.mxu0 %v959
    %1380 = vmatmul.mubr.bf16.gmra.mxu0 %v588
    %v1381 = vpop.f32.mrf.mxu0
    %v1382 = vadd.f32 %v1093, %v1381
    %v1383 = vpop.f32.mrf.mxu0
    %v1384 = vpop.f32.mrf.mxu0
    %v1385 = vadd.f32 %v1096, %v1384
    %v1386 = vpop.f32.mrf.mxu0
    %1387 = vmatprep.mubr.bf16.mxu0 %v962
    %1388 = vmatmul.mubr.bf16.gmra.mxu0 %v592
    %v1389 = vpop.f32.mrf.mxu0
    %v1390 = vadd.f32 %v1101, %v1389
    %v1391 = vpop.f32.mrf.mxu0
    %v1392 = vpop.f32.mrf.mxu0
    %v1393 = vadd.f32 %v1104, %v1392
    %v1394 = vpop.f32.mrf.mxu0
    %1395 = vmatprep.mubr.bf16.mxu0 %v965
    %1396 = vmatmul.mubr.bf16.gmra.mxu0 %v596
    %v1397 = vpop.f32.mrf.mxu0
    %v1398 = vadd.f32 %v1109, %v1397
    %v1399 = vpop.f32.mrf.mxu0
    %v1400 = vpop.f32.mrf.mxu0
    %v1401 = vadd.f32 %v1112, %v1400
    %v1402 = vpop.f32.mrf.mxu0
    %1403 = vmatprep.mubr.bf16.mxu0 %v968
    %1404 = vmatmul.mubr.bf16.gmra.mxu0 %v600
    %v1405 = vpop.f32.mrf.mxu0
    %v1406 = vadd.f32 %v1117, %v1405
    %v1407 = vpop.f32.mrf.mxu0
    %v1408 = vpop.f32.mrf.mxu0
    %v1409 = vadd.f32 %v1120, %v1408
    %v1410 = vpop.f32.mrf.mxu0
    %1411 = vmatprep.mubr.bf16.mxu0 %v971
    %1412 = vmatmul.mubr.bf16.gmra.mxu0 %v604
    %v1413 = vpop.f32.mrf.mxu0
    %v1414 = vadd.f32 %v1125, %v1413
    %v1415 = vpop.f32.mrf.mxu0
    %v1416 = vpop.f32.mrf.mxu0
    %v1417 = vadd.f32 %v1128, %v1416
    %v1418 = vpop.f32.mrf.mxu0
    %1419 = vmatprep.mubr.bf16.mxu0 %v974
    %1420 = vmatmul.mubr.bf16.gmra.mxu0 %v608
    %v1421 = vpop.f32.mrf.mxu0
    %v1422 = vadd.f32 %v1133, %v1421
    %v1423 = vpop.f32.mrf.mxu0
    %v1424 = vpop.f32.mrf.mxu0
    %v1425 = vadd.f32 %v1136, %v1424
    %v1426 = vpop.f32.mrf.mxu0
    %1427 = vmatprep.mubr.bf16.mxu0 %v977
    %1428 = vmatmul.mubr.bf16.gmra.mxu0 %v612
    %v1429 = vpop.f32.mrf.mxu0
    %v1430 = vadd.f32 %v1141, %v1429
    %v1431 = vpop.f32.mrf.mxu0
    %v1432 = vpop.f32.mrf.mxu0
    %v1433 = vadd.f32 %v1144, %v1432
    %v1434 = vpop.f32.mrf.mxu0
    %1435 = vmatprep.mubr.bf16.mxu0 %v980
    %1436 = vmatmul.mubr.bf16.gmra.mxu0 %v616
    %v1437 = vpop.f32.mrf.mxu0
    %v1438 = vadd.f32 %v1149, %v1437
    %v1439 = vpop.f32.mrf.mxu0
    %v1440 = vpop.f32.mrf.mxu0
    %v1441 = vadd.f32 %v1152, %v1440
    %v1442 = vpop.f32.mrf.mxu0
    %1443 = vmatprep.mubr.bf16.mxu0 %v983
    %1444 = vmatmul.mubr.bf16.gmra.mxu0 %v620
    %v1445 = vpop.f32.mrf.mxu0
    %v1446 = vadd.f32 %v1157, %v1445
    %v1447 = vpop.f32.mrf.mxu0
    %v1448 = vpop.f32.mrf.mxu0
    %v1449 = vadd.f32 %v1160, %v1448
    %v1450 = vpop.f32.mrf.mxu0
    %1451 = vmatprep.mubr.bf16.mxu0 %v986
    %1452 = vmatmul.mubr.bf16.gmra.mxu0 %v624
    %v1453 = vpop.f32.mrf.mxu0
    %v1454 = vadd.f32 %v1165, %v1453
    %v1455 = vpop.f32.mrf.mxu0
    %v1456 = vpop.f32.mrf.mxu0
    %v1457 = vadd.f32 %v1168, %v1456
    %v1458 = vpop.f32.mrf.mxu0
    %1459 = vmatprep.mubr.bf16.mxu0 %v989
    %1460 = vmatmul.mubr.bf16.gmra.mxu0 %v628
    %v1461 = vpop.f32.mrf.mxu0
    %v1462 = vadd.f32 %v1173, %v1461
    %v1463 = vpop.f32.mrf.mxu0
    %v1464 = vpop.f32.mrf.mxu0
    %v1465 = vadd.f32 %v1176, %v1464
    %v1466 = vpop.f32.mrf.mxu0
    %1467 = vmatprep.mubr.bf16.mxu0 %v992
    %1468 = vmatmul.mubr.bf16.gmra.mxu0 %v632
    %v1469 = vpop.f32.mrf.mxu0
    %v1470 = vadd.f32 %v1181, %v1469
    %v1471 = vpop.f32.mrf.mxu0
    %v1472 = vpop.f32.mrf.mxu0
    %v1473 = vadd.f32 %v1184, %v1472
    %v1474 = vpop.f32.mrf.mxu0
    %1475 = vmatprep.mubr.bf16.mxu0 %v995
    %1476 = vmatmul.mubr.bf16.gmra.mxu0 %v636
    %v1477 = vpop.f32.mrf.mxu0
    %v1478 = vadd.f32 %v1189, %v1477
    %v1479 = vpop.f32.mrf.mxu0
    %v1480 = vpop.f32.mrf.mxu0
    %v1481 = vadd.f32 %v1192, %v1480
    %v1482 = vpop.f32.mrf.mxu0
    %1483 = vmatprep.mubr.bf16.mxu0 %v998
    %1484 = vmatmul.mubr.bf16.gmra.mxu0 %v640
    %v1485 = vpop.f32.mrf.mxu0
    %v1486 = vadd.f32 %v1197, %v1485
    %v1487 = vpop.f32.mrf.mxu0
    %v1488 = vpop.f32.mrf.mxu0
    %v1489 = vadd.f32 %v1200, %v1488
    %v1490 = vpop.f32.mrf.mxu0
    %1491 = vmatprep.mubr.bf16.mxu0 %v1001
    %1492 = vmatmul.mubr.bf16.gmra.mxu0 %v644
    %v1493 = vpop.f32.mrf.mxu0
    %v1494 = vadd.f32 %v1205, %v1493
    %v1495 = vpop.f32.mrf.mxu0
    %v1496 = vpop.f32.mrf.mxu0
    %v1497 = vadd.f32 %v1208, %v1496
    %v1498 = vpop.f32.mrf.mxu0
    %1499 = vmatprep.mubr.bf16.mxu0 %v1004
    %1500 = vmatmul.mubr.bf16.gmra.mxu0 %v648
    %v1501 = vpop.f32.mrf.mxu0
    %v1502 = vadd.f32 %v1213, %v1501
    %v1503 = vpop.f32.mrf.mxu0
    %v1504 = vpop.f32.mrf.mxu0
    %v1505 = vadd.f32 %v1216, %v1504
    %v1506 = vpop.f32.mrf.mxu0
    %1507 = vmatprep.mubr.bf16.mxu0 %v1007
    %1508 = vmatmul.mubr.bf16.gmra.mxu0 %v652
    %v1509 = vpop.f32.mrf.mxu0
    %v1510 = vadd.f32 %v1221, %v1509
    %v1511 = vpop.f32.mrf.mxu0
    %v1512 = vpop.f32.mrf.mxu0
    %v1513 = vadd.f32 %v1224, %v1512
    %v1514 = vpop.f32.mrf.mxu0
    %1515 = vmatprep.mubr.bf16.mxu0 %v1010
    %1516 = vmatmul.mubr.bf16.gmra.mxu0 %v656
    %v1517 = vpop.f32.mrf.mxu0
    %v1518 = vadd.f32 %v1229, %v1517
    %v1519 = vpop.f32.mrf.mxu0
    %v1520 = vpop.f32.mrf.mxu0
    %v1521 = vadd.f32 %v1232, %v1520
    %v1522 = vpop.f32.mrf.mxu0
    %1523 = vmatprep.mubr.bf16.mxu0 %v1013
    %1524 = vmatmul.mubr.bf16.gmra.mxu0 %v660
    %v1525 = vpop.f32.mrf.mxu0
    %v1526 = vadd.f32 %v1237, %v1525
    %v1527 = vpop.f32.mrf.mxu0
    %v1528 = vpop.f32.mrf.mxu0
    %v1529 = vadd.f32 %v1240, %v1528
    %v1530 = vpop.f32.mrf.mxu0
    %1531 = vmatprep.mubr.bf16.mxu0 %v1016
    %1532 = vmatmul.mubr.bf16.gmra.mxu0 %v664
    %v1533 = vpop.f32.mrf.mxu0
    %v1534 = vadd.f32 %v1245, %v1533
    %v1535 = vpop.f32.mrf.mxu0
    %v1536 = vpop.f32.mrf.mxu0
    %v1537 = vadd.f32 %v1248, %v1536
    %v1538 = vpop.f32.mrf.mxu0
    %1539 = vmatprep.mubr.bf16.mxu0 %v1019
    %1540 = vmatmul.mubr.bf16.gmra.mxu0 %v668
    %v1541 = vpop.f32.mrf.mxu0
    %v1542 = vadd.f32 %v1253, %v1541
    %v1543 = vpop.f32.mrf.mxu0
    %v1544 = vpop.f32.mrf.mxu0
    %v1545 = vadd.f32 %v1256, %v1544
    %v1546 = vpop.f32.mrf.mxu0
    %1547 = vmatprep.mubr.bf16.mxu0 %v1022
    %1548 = vmatmul.mubr.bf16.gmra.mxu0 %v672
    %v1549 = vpop.f32.mrf.mxu0
    %v1550 = vadd.f32 %v1261, %v1549
    %v1551 = vpop.f32.mrf.mxu0
    %v1552 = vpop.f32.mrf.mxu0
    %v1553 = vadd.f32 %v1264, %v1552
    %v1554 = vpop.f32.mrf.mxu0
    %1555 = vmatprep.mubr.bf16.mxu0 %v1025
    %1556 = vmatmul.mubr.bf16.gmra.mxu0 %v676
    %v1557 = vpop.f32.mrf.mxu0
    %v1558 = vadd.f32 %v1269, %v1557
    %v1559 = vpop.f32.mrf.mxu0
    %v1560 = vpop.f32.mrf.mxu0
    %v1561 = vadd.f32 %v1272, %v1560
    %v1562 = vpop.f32.mrf.mxu0
    %1563 = vmatprep.mubr.bf16.mxu0 %v1028
    %1564 = vmatmul.mubr.bf16.gmra.mxu0 %v680
    %v1565 = vpop.f32.mrf.mxu0
    %v1566 = vadd.f32 %v1277, %v1565
    %v1567 = vpop.f32.mrf.mxu0
    %v1568 = vpop.f32.mrf.mxu0
    %v1569 = vadd.f32 %v1280, %v1568
    %v1570 = vpop.f32.mrf.mxu0
    %1571 = vmatprep.mubr.bf16.mxu0 %v1031
    %1572 = vmatmul.mubr.bf16.gmra.mxu0 %v684
    %v1573 = vpop.f32.mrf.mxu0
    %v1574 = vadd.f32 %v1285, %v1573
    %v1575 = vpop.f32.mrf.mxu0
    %v1576 = vpop.f32.mrf.mxu0
    %v1577 = vadd.f32 %v1288, %v1576
    %v1578 = vpop.f32.mrf.mxu0
    %1579 = vmatprep.mubr.bf16.mxu0 %v1034
    %1580 = vmatmul.mubr.bf16.gmra.mxu0 %v688
    %v1581 = vpop.f32.mrf.mxu0
    %v1582 = vadd.f32 %v1293, %v1581
    %v1583 = vpop.f32.mrf.mxu0
    %v1584 = vpop.f32.mrf.mxu0
    %v1585 = vadd.f32 %v1296, %v1584
    %v1586 = vpop.f32.mrf.mxu0
    %1587 = vmatprep.mubr.bf16.mxu0 %v1037
    %1588 = vmatmul.mubr.bf16.gmra.mxu0 %v692
    %v1589 = vpop.f32.mrf.mxu0
    %v1590 = vadd.f32 %v1301, %v1589
    %v1591 = vpop.f32.mrf.mxu0
    %v1592 = vpop.f32.mrf.mxu0
    %v1593 = vadd.f32 %v1304, %v1592
    %v1594 = vpop.f32.mrf.mxu0
    %1595 = vmatprep.mubr.bf16.mxu0 %v1040
    %1596 = vmatmul.mubr.bf16.gmra.mxu0 %v696
    %v1597 = vpop.f32.mrf.mxu0
    %v1598 = vadd.f32 %v1309, %v1597
    %v1599 = vpop.f32.mrf.mxu0
    %v1600 = vpop.f32.mrf.mxu0
    %v1601 = vadd.f32 %v1312, %v1600
    %v1602 = vpop.f32.mrf.mxu0
    %1603 = vmatprep.mubr.bf16.mxu0 %v1043
    %1604 = vmatmul.mubr.bf16.gmra.mxu0 %v700
    %v1605 = vpop.f32.mrf.mxu0
    %v1606 = vadd.f32 %v1317, %v1605
    %v1607 = vpop.f32.mrf.mxu0
    %v1608 = vpop.f32.mrf.mxu0
    %v1609 = vadd.f32 %v1320, %v1608
    %v1610 = vpop.f32.mrf.mxu0
    %1611 = vmatprep.mubr.bf16.mxu0 %v1046
    %1612 = vmatmul.mubr.bf16.gmra.mxu0 %v704
    %v1613 = vpop.f32.mrf.mxu0
    %v1614 = vadd.f32 %v1325, %v1613
    %v1615 = vpop.f32.mrf.mxu0
    %v1616 = vpop.f32.mrf.mxu0
    %v1617 = vadd.f32 %v1328, %v1616
    %v1618 = vpop.f32.mrf.mxu0
    %1619 = vmatprep.mubr.bf16.mxu0 %v1049
    %1620 = vmatmul.mubr.bf16.gmra.mxu0 %v708
    %v1621 = vpop.f32.mrf.mxu0
    %v1622 = vadd.f32 %v1333, %v1621
    %v1623 = vpop.f32.mrf.mxu0
    %v1624 = vpop.f32.mrf.mxu0
    %v1625 = vadd.f32 %v1336, %v1624
    %v1626 = vpop.f32.mrf.mxu0
    %1627 = vmatprep.mubr.bf16.mxu0 %v1052
    %1628 = vmatmul.mubr.bf16.gmra.mxu0 %v712
    %v1629 = vpop.f32.mrf.mxu0
    %v1630 = vadd.f32 %v1341, %v1629
    %v1631 = vpop.f32.mrf.mxu0
    %v1632 = vpop.f32.mrf.mxu0
    %v1633 = vadd.f32 %v1344, %v1632
    %v1634 = vpop.f32.mrf.mxu0
    %1635 = vdwg.mxu0
    %v1636 = vlaneseq
    %v1637 = vshrl.u32 %v1636, 7
    %v1638 = vadd.s32 %v1637, 8
    %v1639 = vadd.s32 %v1637, 16
    %v1640 = vadd.s32 %v1637, 24
    %v1641 = vadd.s32 %v1637, 32
    %v1642 = vadd.s32 %v1637, 40
    %v1643 = vadd.s32 %v1637, 48
    %v1644 = vadd.s32 %v1637, 56
    %v1645 = vadd.s32 %v1637, 64
    %v1646 = vadd.s32 %v1637, 72
    %v1647 = vadd.s32 %v1637, 80
    %v1648 = vadd.s32 %v1637, 88
    %v1649 = vadd.s32 %v1637, 96
    %v1650 = vadd.s32 %v1637, 104
    %v1651 = vadd.s32 %v1637, 112
    %v1652 = vadd.s32 %v1637, 120
    %v1653 = vadd.s32 %v1637, 128
    %v1654 = vadd.s32 %v1637, 136
    %v1655 = vadd.s32 %v1637, 144
    %v1656 = vadd.s32 %v1637, 152
    %v1657 = vadd.s32 %v1637, 160
    %v1658 = vadd.s32 %v1637, 168
    %v1659 = vadd.s32 %v1637, 176
    %v1660 = vadd.s32 %v1637, 184
    %v1661 = vadd.s32 %v1637, 192
    %v1662 = vadd.s32 %v1637, 200
    %v1663 = vadd.s32 %v1637, 208
    %v1664 = vadd.s32 %v1637, 216
    %v1665 = vadd.s32 %v1637, 224
    %v1666 = vadd.s32 %v1637, 232
    %v1667 = vadd.s32 %v1637, 240
    %v1668 = vadd.s32 %v1637, 248
    %v1669 = vadd.s32 %v1637, 256
    %v1670 = vadd.s32 %v1637, 264
    %v1671 = vadd.s32 %v1637, 272
    %v1672 = vadd.s32 %v1637, 280
    %v1673 = vadd.s32 %v1637, 288
    %v1674 = vadd.s32 %v1637, 296
    %v1675 = vadd.s32 %v1637, 304
    %v1676 = vadd.s32 %v1637, 312
    %v1677 = vadd.s32 %v1637, 320
    %v1678 = vadd.s32 %v1637, 328
    %v1679 = vadd.s32 %v1637, 336
    %v1680 = vadd.s32 %v1637, 344
    %v1681 = vadd.s32 %v1637, 352
    %v1682 = vadd.s32 %v1637, 360
    %v1683 = vadd.s32 %v1637, 368
    %v1684 = vadd.s32 %v1637, 376
    %v1685 = vadd.s32 %v1637, 384
    %v1686 = vadd.s32 %v1637, 392
    %v1687 = vadd.s32 %v1637, 400
    %v1688 = vadd.s32 %v1637, 408
    %v1689 = vadd.s32 %v1637, 416
    %v1690 = vadd.s32 %v1637, 424
    %v1691 = vadd.s32 %v1637, 432
    %v1692 = vadd.s32 %v1637, 440
    %v1693 = vadd.s32 %v1637, 448
    %v1694 = vadd.s32 %v1637, 456
    %v1695 = vadd.s32 %v1637, 464
    %v1696 = vadd.s32 %v1637, 472
    %v1697 = vadd.s32 %v1637, 480
    %v1698 = vadd.s32 %v1637, 488
    %v1699 = vadd.s32 %v1637, 496
    %v1700 = vadd.s32 %v1637, 504
    %s1701 = smul.u32 0, 512
    %v1702 = vstv %s1701
    %v1703 = vadd.s32 %v1637, %v1702
    %v1704 = vadd.s32 %v1638, %v1702
    %v1705 = vadd.s32 %v1639, %v1702
    %v1706 = vadd.s32 %v1640, %v1702
    %v1707 = vadd.s32 %v1641, %v1702
    %v1708 = vadd.s32 %v1642, %v1702
    %v1709 = vadd.s32 %v1643, %v1702
    %v1710 = vadd.s32 %v1644, %v1702
    %v1711 = vadd.s32 %v1645, %v1702
    %v1712 = vadd.s32 %v1646, %v1702
    %v1713 = vadd.s32 %v1647, %v1702
    %v1714 = vadd.s32 %v1648, %v1702
    %v1715 = vadd.s32 %v1649, %v1702
    %v1716 = vadd.s32 %v1650, %v1702
    %v1717 = vadd.s32 %v1651, %v1702
    %v1718 = vadd.s32 %v1652, %v1702
    %v1719 = vadd.s32 %v1653, %v1702
    %v1720 = vadd.s32 %v1654, %v1702
    %v1721 = vadd.s32 %v1655, %v1702
    %v1722 = vadd.s32 %v1656, %v1702
    %v1723 = vadd.s32 %v1657, %v1702
    %v1724 = vadd.s32 %v1658, %v1702
    %v1725 = vadd.s32 %v1659, %v1702
    %v1726 = vadd.s32 %v1660, %v1702
    %v1727 = vadd.s32 %v1661, %v1702
    %v1728 = vadd.s32 %v1662, %v1702
    %v1729 = vadd.s32 %v1663, %v1702
    %v1730 = vadd.s32 %v1664, %v1702
    %v1731 = vadd.s32 %v1665, %v1702
    %v1732 = vadd.s32 %v1666, %v1702
    %v1733 = vadd.s32 %v1667, %v1702
    %v1734 = vadd.s32 %v1668, %v1702
    %v1735 = vadd.s32 %v1669, %v1702
    %v1736 = vadd.s32 %v1670, %v1702
    %v1737 = vadd.s32 %v1671, %v1702
    %v1738 = vadd.s32 %v1672, %v1702
    %v1739 = vadd.s32 %v1673, %v1702
    %v1740 = vadd.s32 %v1674, %v1702
    %v1741 = vadd.s32 %v1675, %v1702
    %v1742 = vadd.s32 %v1676, %v1702
    %v1743 = vadd.s32 %v1677, %v1702
    %v1744 = vadd.s32 %v1678, %v1702
    %v1745 = vadd.s32 %v1679, %v1702
    %v1746 = vadd.s32 %v1680, %v1702
    %v1747 = vadd.s32 %v1681, %v1702
    %v1748 = vadd.s32 %v1682, %v1702
    %v1749 = vadd.s32 %v1683, %v1702
    %v1750 = vadd.s32 %v1684, %v1702
    %v1751 = vadd.s32 %v1685, %v1702
    %v1752 = vadd.s32 %v1686, %v1702
    %v1753 = vadd.s32 %v1687, %v1702
    %v1754 = vadd.s32 %v1688, %v1702
    %v1755 = vadd.s32 %v1689, %v1702
    %v1756 = vadd.s32 %v1690, %v1702
    %v1757 = vadd.s32 %v1691, %v1702
    %v1758 = vadd.s32 %v1692, %v1702
    %v1759 = vadd.s32 %v1693, %v1702
    %v1760 = vadd.s32 %v1694, %v1702
    %v1761 = vadd.s32 %v1695, %v1702
    %v1762 = vadd.s32 %v1696, %v1702
    %v1763 = vadd.s32 %v1697, %v1702
    %v1764 = vadd.s32 %v1698, %v1702
    %v1765 = vadd.s32 %v1699, %v1702
    %v1766 = vadd.s32 %v1700, %v1702
    %vm1767 = vcmp.lt.s32.totalorder %v1703, 512
    %vm1768 = vcmp.lt.s32.totalorder %v1704, 512
    %vm1769 = vcmp.lt.s32.totalorder %v1705, 512
    %vm1770 = vcmp.lt.s32.totalorder %v1706, 512
    %vm1771 = vcmp.lt.s32.totalorder %v1707, 512
    %vm1772 = vcmp.lt.s32.totalorder %v1708, 512
    %vm1773 = vcmp.lt.s32.totalorder %v1709, 512
    %vm1774 = vcmp.lt.s32.totalorder %v1710, 512
    %vm1775 = vcmp.lt.s32.totalorder %v1711, 512
    %vm1776 = vcmp.lt.s32.totalorder %v1712, 512
    %vm1777 = vcmp.lt.s32.totalorder %v1713, 512
    %vm1778 = vcmp.lt.s32.totalorder %v1714, 512
    %vm1779 = vcmp.lt.s32.totalorder %v1715, 512
    %vm1780 = vcmp.lt.s32.totalorder %v1716, 512
    %vm1781 = vcmp.lt.s32.totalorder %v1717, 512
    %vm1782 = vcmp.lt.s32.totalorder %v1718, 512
    %vm1783 = vcmp.lt.s32.totalorder %v1719, 512
    %vm1784 = vcmp.lt.s32.totalorder %v1720, 512
    %vm1785 = vcmp.lt.s32.totalorder %v1721, 512
    %vm1786 = vcmp.lt.s32.totalorder %v1722, 512
    %vm1787 = vcmp.lt.s32.totalorder %v1723, 512
    %vm1788 = vcmp.lt.s32.totalorder %v1724, 512
    %vm1789 = vcmp.lt.s32.totalorder %v1725, 512
    %vm1790 = vcmp.lt.s32.totalorder %v1726, 512
    %vm1791 = vcmp.lt.s32.totalorder %v1727, 512
    %vm1792 = vcmp.lt.s32.totalorder %v1728, 512
    %vm1793 = vcmp.lt.s32.totalorder %v1729, 512
    %vm1794 = vcmp.lt.s32.totalorder %v1730, 512
    %vm1795 = vcmp.lt.s32.totalorder %v1731, 512
    %vm1796 = vcmp.lt.s32.totalorder %v1732, 512
    %vm1797 = vcmp.lt.s32.totalorder %v1733, 512
    %vm1798 = vcmp.lt.s32.totalorder %v1734, 512
    %vm1799 = vcmp.lt.s32.totalorder %v1735, 512
    %vm1800 = vcmp.lt.s32.totalorder %v1736, 512
    %vm1801 = vcmp.lt.s32.totalorder %v1737, 512
    %vm1802 = vcmp.lt.s32.totalorder %v1738, 512
    %vm1803 = vcmp.lt.s32.totalorder %v1739, 512
    %vm1804 = vcmp.lt.s32.totalorder %v1740, 512
    %vm1805 = vcmp.lt.s32.totalorder %v1741, 512
    %vm1806 = vcmp.lt.s32.totalorder %v1742, 512
    %vm1807 = vcmp.lt.s32.totalorder %v1743, 512
    %vm1808 = vcmp.lt.s32.totalorder %v1744, 512
    %vm1809 = vcmp.lt.s32.totalorder %v1745, 512
    %vm1810 = vcmp.lt.s32.totalorder %v1746, 512
    %vm1811 = vcmp.lt.s32.totalorder %v1747, 512
    %vm1812 = vcmp.lt.s32.totalorder %v1748, 512
    %vm1813 = vcmp.lt.s32.totalorder %v1749, 512
    %vm1814 = vcmp.lt.s32.totalorder %v1750, 512
    %vm1815 = vcmp.lt.s32.totalorder %v1751, 512
    %vm1816 = vcmp.lt.s32.totalorder %v1752, 512
    %vm1817 = vcmp.lt.s32.totalorder %v1753, 512
    %vm1818 = vcmp.lt.s32.totalorder %v1754, 512
    %vm1819 = vcmp.lt.s32.totalorder %v1755, 512
    %vm1820 = vcmp.lt.s32.totalorder %v1756, 512
    %vm1821 = vcmp.lt.s32.totalorder %v1757, 512
    %vm1822 = vcmp.lt.s32.totalorder %v1758, 512
    %vm1823 = vcmp.lt.s32.totalorder %v1759, 512
    %vm1824 = vcmp.lt.s32.totalorder %v1760, 512
    %vm1825 = vcmp.lt.s32.totalorder %v1761, 512
    %vm1826 = vcmp.lt.s32.totalorder %v1762, 512
    %vm1827 = vcmp.lt.s32.totalorder %v1763, 512
    %vm1828 = vcmp.lt.s32.totalorder %v1764, 512
    %vm1829 = vcmp.lt.s32.totalorder %v1765, 512
    %vm1830 = vcmp.lt.s32.totalorder %v1766, 512
    %v1831 = vsel %vm1767, %v1382, 0.0
    %v1832 = vsel %vm1768, %v1385, 0.0
    %v1833 = vsel %vm1769, %v1390, 0.0
    %v1834 = vsel %vm1770, %v1393, 0.0
    %v1835 = vsel %vm1771, %v1398, 0.0
    %v1836 = vsel %vm1772, %v1401, 0.0
    %v1837 = vsel %vm1773, %v1406, 0.0
    %v1838 = vsel %vm1774, %v1409, 0.0
    %v1839 = vsel %vm1775, %v1414, 0.0
    %v1840 = vsel %vm1776, %v1417, 0.0
    %v1841 = vsel %vm1777, %v1422, 0.0
    %v1842 = vsel %vm1778, %v1425, 0.0
    %v1843 = vsel %vm1779, %v1430, 0.0
    %v1844 = vsel %vm1780, %v1433, 0.0
    %v1845 = vsel %vm1781, %v1438, 0.0
    %v1846 = vsel %vm1782, %v1441, 0.0
    %v1847 = vsel %vm1783, %v1446, 0.0
    %v1848 = vsel %vm1784, %v1449, 0.0
    %v1849 = vsel %vm1785, %v1454, 0.0
    %v1850 = vsel %vm1786, %v1457, 0.0
    %v1851 = vsel %vm1787, %v1462, 0.0
    %v1852 = vsel %vm1788, %v1465, 0.0
    %v1853 = vsel %vm1789, %v1470, 0.0
    %v1854 = vsel %vm1790, %v1473, 0.0
    %v1855 = vsel %vm1791, %v1478, 0.0
    %v1856 = vsel %vm1792, %v1481, 0.0
    %v1857 = vsel %vm1793, %v1486, 0.0
    %v1858 = vsel %vm1794, %v1489, 0.0
    %v1859 = vsel %vm1795, %v1494, 0.0
    %v1860 = vsel %vm1796, %v1497, 0.0
    %v1861 = vsel %vm1797, %v1502, 0.0
    %v1862 = vsel %vm1798, %v1505, 0.0
    %v1863 = vsel %vm1799, %v1510, 0.0
    %v1864 = vsel %vm1800, %v1513, 0.0
    %v1865 = vsel %vm1801, %v1518, 0.0
    %v1866 = vsel %vm1802, %v1521, 0.0
    %v1867 = vsel %vm1803, %v1526, 0.0
    %v1868 = vsel %vm1804, %v1529, 0.0
    %v1869 = vsel %vm1805, %v1534, 0.0
    %v1870 = vsel %vm1806, %v1537, 0.0
    %v1871 = vsel %vm1807, %v1542, 0.0
    %v1872 = vsel %vm1808, %v1545, 0.0
    %v1873 = vsel %vm1809, %v1550, 0.0
    %v1874 = vsel %vm1810, %v1553, 0.0
    %v1875 = vsel %vm1811, %v1558, 0.0
    %v1876 = vsel %vm1812, %v1561, 0.0
    %v1877 = vsel %vm1813, %v1566, 0.0
    %v1878 = vsel %vm1814, %v1569, 0.0
    %v1879 = vsel %vm1815, %v1574, 0.0
    %v1880 = vsel %vm1816, %v1577, 0.0
    %v1881 = vsel %vm1817, %v1582, 0.0
    %v1882 = vsel %vm1818, %v1585, 0.0
    %v1883 = vsel %vm1819, %v1590, 0.0
    %v1884 = vsel %vm1820, %v1593, 0.0
    %v1885 = vsel %vm1821, %v1598, 0.0
    %v1886 = vsel %vm1822, %v1601, 0.0
    %v1887 = vsel %vm1823, %v1606, 0.0
    %v1888 = vsel %vm1824, %v1609, 0.0
    %v1889 = vsel %vm1825, %v1614, 0.0
    %v1890 = vsel %vm1826, %v1617, 0.0
    %v1891 = vsel %vm1827, %v1622, 0.0
    %v1892 = vsel %vm1828, %v1625, 0.0
    %v1893 = vsel %vm1829, %v1630, 0.0
    %v1894 = vsel %vm1830, %v1633, 0.0
    %vm1895 = vcmask 23552
    %v1896 = vsel %vm1895, %v1831, 0.0
    %v1897 = vsel %vm1895, %v1832, 0.0
    %v1898 = vadd.f32 %v1896, %v1897
    %v1899 = vsel %vm1895, %v1833, 0.0
    %v1900 = vadd.f32 %v1898, %v1899
    %v1901 = vsel %vm1895, %v1834, 0.0
    %v1902 = vadd.f32 %v1900, %v1901
    %v1903 = vsel %vm1895, %v1835, 0.0
    %v1904 = vadd.f32 %v1902, %v1903
    %v1905 = vsel %vm1895, %v1836, 0.0
    %v1906 = vadd.f32 %v1904, %v1905
    %v1907 = vsel %vm1895, %v1837, 0.0
    %v1908 = vadd.f32 %v1906, %v1907
    %v1909 = vsel %vm1895, %v1838, 0.0
    %v1910 = vadd.f32 %v1908, %v1909
    %v1911 = vsel %vm1895, %v1839, 0.0
    %v1912 = vadd.f32 %v1910, %v1911
    %v1913 = vsel %vm1895, %v1840, 0.0
    %v1914 = vadd.f32 %v1912, %v1913
    %v1915 = vsel %vm1895, %v1841, 0.0
    %v1916 = vadd.f32 %v1914, %v1915
    %v1917 = vsel %vm1895, %v1842, 0.0
    %v1918 = vadd.f32 %v1916, %v1917
    %v1919 = vsel %vm1895, %v1843, 0.0
    %v1920 = vadd.f32 %v1918, %v1919
    %v1921 = vsel %vm1895, %v1844, 0.0
    %v1922 = vadd.f32 %v1920, %v1921
    %v1923 = vsel %vm1895, %v1845, 0.0
    %v1924 = vadd.f32 %v1922, %v1923
    %v1925 = vsel %vm1895, %v1846, 0.0
    %v1926 = vadd.f32 %v1924, %v1925
    %v1927 = vsel %vm1895, %v1847, 0.0
    %v1928 = vadd.f32 %v1926, %v1927
    %v1929 = vsel %vm1895, %v1848, 0.0
    %v1930 = vadd.f32 %v1928, %v1929
    %v1931 = vsel %vm1895, %v1849, 0.0
    %v1932 = vadd.f32 %v1930, %v1931
    %v1933 = vsel %vm1895, %v1850, 0.0
    %v1934 = vadd.f32 %v1932, %v1933
    %v1935 = vsel %vm1895, %v1851, 0.0
    %v1936 = vadd.f32 %v1934, %v1935
    %v1937 = vsel %vm1895, %v1852, 0.0
    %v1938 = vadd.f32 %v1936, %v1937
    %v1939 = vsel %vm1895, %v1853, 0.0
    %v1940 = vadd.f32 %v1938, %v1939
    %v1941 = vsel %vm1895, %v1854, 0.0
    %v1942 = vadd.f32 %v1940, %v1941
    %v1943 = vsel %vm1895, %v1855, 0.0
    %v1944 = vadd.f32 %v1942, %v1943
    %v1945 = vsel %vm1895, %v1856, 0.0
    %v1946 = vadd.f32 %v1944, %v1945
    %v1947 = vsel %vm1895, %v1857, 0.0
    %v1948 = vadd.f32 %v1946, %v1947
    %v1949 = vsel %vm1895, %v1858, 0.0
    %v1950 = vadd.f32 %v1948, %v1949
    %v1951 = vsel %vm1895, %v1859, 0.0
    %v1952 = vadd.f32 %v1950, %v1951
    %v1953 = vsel %vm1895, %v1860, 0.0
    %v1954 = vadd.f32 %v1952, %v1953
    %v1955 = vsel %vm1895, %v1861, 0.0
    %v1956 = vadd.f32 %v1954, %v1955
    %v1957 = vsel %vm1895, %v1862, 0.0
    %v1958 = vadd.f32 %v1956, %v1957
    %v1959 = vsel %vm1895, %v1863, 0.0
    %v1960 = vadd.f32 %v1958, %v1959
    %v1961 = vsel %vm1895, %v1864, 0.0
    %v1962 = vadd.f32 %v1960, %v1961
    %v1963 = vsel %vm1895, %v1865, 0.0
    %v1964 = vadd.f32 %v1962, %v1963
    %v1965 = vsel %vm1895, %v1866, 0.0
    %v1966 = vadd.f32 %v1964, %v1965
    %v1967 = vsel %vm1895, %v1867, 0.0
    %v1968 = vadd.f32 %v1966, %v1967
    %v1969 = vsel %vm1895, %v1868, 0.0
    %v1970 = vadd.f32 %v1968, %v1969
    %v1971 = vsel %vm1895, %v1869, 0.0
    %v1972 = vadd.f32 %v1970, %v1971
    %v1973 = vsel %vm1895, %v1870, 0.0
    %v1974 = vadd.f32 %v1972, %v1973
    %v1975 = vsel %vm1895, %v1871, 0.0
    %v1976 = vadd.f32 %v1974, %v1975
    %v1977 = vsel %vm1895, %v1872, 0.0
    %v1978 = vadd.f32 %v1976, %v1977
    %v1979 = vsel %vm1895, %v1873, 0.0
    %v1980 = vadd.f32 %v1978, %v1979
    %v1981 = vsel %vm1895, %v1874, 0.0
    %v1982 = vadd.f32 %v1980, %v1981
    %v1983 = vsel %vm1895, %v1875, 0.0
    %v1984 = vadd.f32 %v1982, %v1983
    %v1985 = vsel %vm1895, %v1876, 0.0
    %v1986 = vadd.f32 %v1984, %v1985
    %v1987 = vsel %vm1895, %v1877, 0.0
    %v1988 = vadd.f32 %v1986, %v1987
    %v1989 = vsel %vm1895, %v1878, 0.0
    %v1990 = vadd.f32 %v1988, %v1989
    %v1991 = vsel %vm1895, %v1879, 0.0
    %v1992 = vadd.f32 %v1990, %v1991
    %v1993 = vsel %vm1895, %v1880, 0.0
    %v1994 = vadd.f32 %v1992, %v1993
    %v1995 = vsel %vm1895, %v1881, 0.0
    %v1996 = vadd.f32 %v1994, %v1995
    %v1997 = vsel %vm1895, %v1882, 0.0
    %v1998 = vadd.f32 %v1996, %v1997
    %v1999 = vsel %vm1895, %v1883, 0.0
    %v2000 = vadd.f32 %v1998, %v1999
    %v2001 = vsel %vm1895, %v1884, 0.0
    %v2002 = vadd.f32 %v2000, %v2001
    %v2003 = vsel %vm1895, %v1885, 0.0
    %v2004 = vadd.f32 %v2002, %v2003
    %v2005 = vsel %vm1895, %v1886, 0.0
    %v2006 = vadd.f32 %v2004, %v2005
    %v2007 = vsel %vm1895, %v1887, 0.0
    %v2008 = vadd.f32 %v2006, %v2007
    %v2009 = vsel %vm1895, %v1888, 0.0
    %v2010 = vadd.f32 %v2008, %v2009
    %v2011 = vsel %vm1895, %v1889, 0.0
    %v2012 = vadd.f32 %v2010, %v2011
    %v2013 = vsel %vm1895, %v1890, 0.0
    %v2014 = vadd.f32 %v2012, %v2013
    %v2015 = vsel %vm1895, %v1891, 0.0
    %v2016 = vadd.f32 %v2014, %v2015
    %v2017 = vsel %vm1895, %v1892, 0.0
    %v2018 = vadd.f32 %v2016, %v2017
    %v2019 = vsel %vm1895, %v1893, 0.0
    %v2020 = vadd.f32 %v2018, %v2019
    %v2021 = vsel %vm1895, %v1894, 0.0
    %v2022 = vadd.f32 %v2020, %v2021
    %v2023 = vrot.slane %v2022, 4
    %v2024 = vadd.f32 %v2022, %v2023
    %v2025 = vrot.slane %v2024, 2
    %v2026 = vadd.f32 %v2024, %v2025
    %v2027 = vrot.slane %v2026, 1
    %v2028 = vadd.f32 %v2026, %v2027
    %v2029 = vmul.f32 %v1831, %v1831
    %v2030 = vmul.f32 %v1832, %v1832
    %v2031 = vmul.f32 %v1833, %v1833
    %v2032 = vmul.f32 %v1834, %v1834
    %v2033 = vmul.f32 %v1835, %v1835
    %v2034 = vmul.f32 %v1836, %v1836
    %v2035 = vmul.f32 %v1837, %v1837
    %v2036 = vmul.f32 %v1838, %v1838
    %v2037 = vmul.f32 %v1839, %v1839
    %v2038 = vmul.f32 %v1840, %v1840
    %v2039 = vmul.f32 %v1841, %v1841
    %v2040 = vmul.f32 %v1842, %v1842
    %v2041 = vmul.f32 %v1843, %v1843
    %v2042 = vmul.f32 %v1844, %v1844
    %v2043 = vmul.f32 %v1845, %v1845
    %v2044 = vmul.f32 %v1846, %v1846
    %v2045 = vmul.f32 %v1847, %v1847
    %v2046 = vmul.f32 %v1848, %v1848
    %v2047 = vmul.f32 %v1849, %v1849
    %v2048 = vmul.f32 %v1850, %v1850
    %v2049 = vmul.f32 %v1851, %v1851
    %v2050 = vmul.f32 %v1852, %v1852
    %v2051 = vmul.f32 %v1853, %v1853
    %v2052 = vmul.f32 %v1854, %v1854
    %v2053 = vmul.f32 %v1855, %v1855
    %v2054 = vmul.f32 %v1856, %v1856
    %v2055 = vmul.f32 %v1857, %v1857
    %v2056 = vmul.f32 %v1858, %v1858
    %v2057 = vmul.f32 %v1859, %v1859
    %v2058 = vmul.f32 %v1860, %v1860
    %v2059 = vmul.f32 %v1861, %v1861
    %v2060 = vmul.f32 %v1862, %v1862
    %v2061 = vmul.f32 %v1863, %v1863
    %v2062 = vmul.f32 %v1864, %v1864
    %v2063 = vmul.f32 %v1865, %v1865
    %v2064 = vmul.f32 %v1866, %v1866
    %v2065 = vmul.f32 %v1867, %v1867
    %v2066 = vmul.f32 %v1868, %v1868
    %v2067 = vmul.f32 %v1869, %v1869
    %v2068 = vmul.f32 %v1870, %v1870
    %v2069 = vmul.f32 %v1871, %v1871
    %v2070 = vmul.f32 %v1872, %v1872
    %v2071 = vmul.f32 %v1873, %v1873
    %v2072 = vmul.f32 %v1874, %v1874
    %v2073 = vmul.f32 %v1875, %v1875
    %v2074 = vmul.f32 %v1876, %v1876
    %v2075 = vmul.f32 %v1877, %v1877
    %v2076 = vmul.f32 %v1878, %v1878
    %v2077 = vmul.f32 %v1879, %v1879
    %v2078 = vmul.f32 %v1880, %v1880
    %v2079 = vmul.f32 %v1881, %v1881
    %v2080 = vmul.f32 %v1882, %v1882
    %v2081 = vmul.f32 %v1883, %v1883
    %v2082 = vmul.f32 %v1884, %v1884
    %v2083 = vmul.f32 %v1885, %v1885
    %v2084 = vmul.f32 %v1886, %v1886
    %v2085 = vmul.f32 %v1887, %v1887
    %v2086 = vmul.f32 %v1888, %v1888
    %v2087 = vmul.f32 %v1889, %v1889
    %v2088 = vmul.f32 %v1890, %v1890
    %v2089 = vmul.f32 %v1891, %v1891
    %v2090 = vmul.f32 %v1892, %v1892
    %v2091 = vmul.f32 %v1893, %v1893
    %v2092 = vmul.f32 %v1894, %v1894
    %v2093 = vsel %vm1895, %v2029, 0.0
    %v2094 = vsel %vm1895, %v2030, 0.0
    %v2095 = vadd.f32 %v2093, %v2094
    %v2096 = vsel %vm1895, %v2031, 0.0
    %v2097 = vadd.f32 %v2095, %v2096
    %v2098 = vsel %vm1895, %v2032, 0.0
    %v2099 = vadd.f32 %v2097, %v2098
    %v2100 = vsel %vm1895, %v2033, 0.0
    %v2101 = vadd.f32 %v2099, %v2100
    %v2102 = vsel %vm1895, %v2034, 0.0
    %v2103 = vadd.f32 %v2101, %v2102
    %v2104 = vsel %vm1895, %v2035, 0.0
    %v2105 = vadd.f32 %v2103, %v2104
    %v2106 = vsel %vm1895, %v2036, 0.0
    %v2107 = vadd.f32 %v2105, %v2106
    %v2108 = vsel %vm1895, %v2037, 0.0
    %v2109 = vadd.f32 %v2107, %v2108
    %v2110 = vsel %vm1895, %v2038, 0.0
    %v2111 = vadd.f32 %v2109, %v2110
    %v2112 = vsel %vm1895, %v2039, 0.0
    %v2113 = vadd.f32 %v2111, %v2112
    %v2114 = vsel %vm1895, %v2040, 0.0
    %v2115 = vadd.f32 %v2113, %v2114
    %v2116 = vsel %vm1895, %v2041, 0.0
    %v2117 = vadd.f32 %v2115, %v2116
    %v2118 = vsel %vm1895, %v2042, 0.0
    %v2119 = vadd.f32 %v2117, %v2118
    %v2120 = vsel %vm1895, %v2043, 0.0
    %v2121 = vadd.f32 %v2119, %v2120
    %v2122 = vsel %vm1895, %v2044, 0.0
    %v2123 = vadd.f32 %v2121, %v2122
    %v2124 = vsel %vm1895, %v2045, 0.0
    %v2125 = vadd.f32 %v2123, %v2124
    %v2126 = vsel %vm1895, %v2046, 0.0
    %v2127 = vadd.f32 %v2125, %v2126
    %v2128 = vsel %vm1895, %v2047, 0.0
    %v2129 = vadd.f32 %v2127, %v2128
    %v2130 = vsel %vm1895, %v2048, 0.0
    %v2131 = vadd.f32 %v2129, %v2130
    %v2132 = vsel %vm1895, %v2049, 0.0
    %v2133 = vadd.f32 %v2131, %v2132
    %v2134 = vsel %vm1895, %v2050, 0.0
    %v2135 = vadd.f32 %v2133, %v2134
    %v2136 = vsel %vm1895, %v2051, 0.0
    %v2137 = vadd.f32 %v2135, %v2136
    %v2138 = vsel %vm1895, %v2052, 0.0
    %v2139 = vadd.f32 %v2137, %v2138
    %v2140 = vsel %vm1895, %v2053, 0.0
    %v2141 = vadd.f32 %v2139, %v2140
    %v2142 = vsel %vm1895, %v2054, 0.0
    %v2143 = vadd.f32 %v2141, %v2142
    %v2144 = vsel %vm1895, %v2055, 0.0
    %v2145 = vadd.f32 %v2143, %v2144
    %v2146 = vsel %vm1895, %v2056, 0.0
    %v2147 = vadd.f32 %v2145, %v2146
    %v2148 = vsel %vm1895, %v2057, 0.0
    %v2149 = vadd.f32 %v2147, %v2148
    %v2150 = vsel %vm1895, %v2058, 0.0
    %v2151 = vadd.f32 %v2149, %v2150
    %v2152 = vsel %vm1895, %v2059, 0.0
    %v2153 = vadd.f32 %v2151, %v2152
    %v2154 = vsel %vm1895, %v2060, 0.0
    %v2155 = vadd.f32 %v2153, %v2154
    %v2156 = vsel %vm1895, %v2061, 0.0
    %v2157 = vadd.f32 %v2155, %v2156
    %v2158 = vsel %vm1895, %v2062, 0.0
    %v2159 = vadd.f32 %v2157, %v2158
    %v2160 = vsel %vm1895, %v2063, 0.0
    %v2161 = vadd.f32 %v2159, %v2160
    %v2162 = vsel %vm1895, %v2064, 0.0
    %v2163 = vadd.f32 %v2161, %v2162
    %v2164 = vsel %vm1895, %v2065, 0.0
    %v2165 = vadd.f32 %v2163, %v2164
    %v2166 = vsel %vm1895, %v2066, 0.0
    %v2167 = vadd.f32 %v2165, %v2166
    %v2168 = vsel %vm1895, %v2067, 0.0
    %v2169 = vadd.f32 %v2167, %v2168
    %v2170 = vsel %vm1895, %v2068, 0.0
    %v2171 = vadd.f32 %v2169, %v2170
    %v2172 = vsel %vm1895, %v2069, 0.0
    %v2173 = vadd.f32 %v2171, %v2172
    %v2174 = vsel %vm1895, %v2070, 0.0
    %v2175 = vadd.f32 %v2173, %v2174
    %v2176 = vsel %vm1895, %v2071, 0.0
    %v2177 = vadd.f32 %v2175, %v2176
    %v2178 = vsel %vm1895, %v2072, 0.0
    %v2179 = vadd.f32 %v2177, %v2178
    %v2180 = vsel %vm1895, %v2073, 0.0
    %v2181 = vadd.f32 %v2179, %v2180
    %v2182 = vsel %vm1895, %v2074, 0.0
    %v2183 = vadd.f32 %v2181, %v2182
    %v2184 = vsel %vm1895, %v2075, 0.0
    %v2185 = vadd.f32 %v2183, %v2184
    %v2186 = vsel %vm1895, %v2076, 0.0
    %v2187 = vadd.f32 %v2185, %v2186
    %v2188 = vsel %vm1895, %v2077, 0.0
    %v2189 = vadd.f32 %v2187, %v2188
    %v2190 = vsel %vm1895, %v2078, 0.0
    %v2191 = vadd.f32 %v2189, %v2190
    %v2192 = vsel %vm1895, %v2079, 0.0
    %v2193 = vadd.f32 %v2191, %v2192
    %v2194 = vsel %vm1895, %v2080, 0.0
    %v2195 = vadd.f32 %v2193, %v2194
    %v2196 = vsel %vm1895, %v2081, 0.0
    %v2197 = vadd.f32 %v2195, %v2196
    %v2198 = vsel %vm1895, %v2082, 0.0
    %v2199 = vadd.f32 %v2197, %v2198
    %v2200 = vsel %vm1895, %v2083, 0.0
    %v2201 = vadd.f32 %v2199, %v2200
    %v2202 = vsel %vm1895, %v2084, 0.0
    %v2203 = vadd.f32 %v2201, %v2202
    %v2204 = vsel %vm1895, %v2085, 0.0
    %v2205 = vadd.f32 %v2203, %v2204
    %v2206 = vsel %vm1895, %v2086, 0.0
    %v2207 = vadd.f32 %v2205, %v2206
    %v2208 = vsel %vm1895, %v2087, 0.0
    %v2209 = vadd.f32 %v2207, %v2208
    %v2210 = vsel %vm1895, %v2088, 0.0
    %v2211 = vadd.f32 %v2209, %v2210
    %v2212 = vsel %vm1895, %v2089, 0.0
    %v2213 = vadd.f32 %v2211, %v2212
    %v2214 = vsel %vm1895, %v2090, 0.0
    %v2215 = vadd.f32 %v2213, %v2214
    %v2216 = vsel %vm1895, %v2091, 0.0
    %v2217 = vadd.f32 %v2215, %v2216
    %v2218 = vsel %vm1895, %v2092, 0.0
    %v2219 = vadd.f32 %v2217, %v2218
    %v2220 = vrot.slane %v2219, 4
    %v2221 = vadd.f32 %v2219, %v2220
    %v2222 = vrot.slane %v2221, 2
    %v2223 = vadd.f32 %v2221, %v2222
    %v2224 = vrot.slane %v2223, 1
    %v2225 = vadd.f32 %v2223, %v2224
    %vm2226 = vcmask 1040384
    %v2227 = vsel %vm2226, %v2028, %v2225
    %vm2228 = vcmask 17408
    %2229 = vst.msk [vmem:[#allocation2] sm:$0x3] %vm2228, %v2227
    %v2230 = vtanh.pop %v1382
    %v2231 = vtanh.pop %v1385
    %v2232 = vtanh.pop %v1390
    %v2233 = vtanh.pop %v1393
    %v2234 = vtanh.pop %v1398
    %v2235 = vtanh.pop %v1401
    %v2236 = vtanh.pop %v1406
    %v2237 = vtanh.pop %v1409
    %v2238 = vtanh.pop %v1414
    %v2239 = vtanh.pop %v1417
    %v2240 = vtanh.pop %v1422
    %v2241 = vtanh.pop %v1425
    %v2242 = vtanh.pop %v1430
    %v2243 = vtanh.pop %v1433
    %v2244 = vtanh.pop %v1438
    %v2245 = vtanh.pop %v1441
    %v2246 = vtanh.pop %v1446
    %v2247 = vtanh.pop %v1449
    %v2248 = vtanh.pop %v1454
    %v2249 = vtanh.pop %v1457
    %v2250 = vtanh.pop %v1462
    %v2251 = vtanh.pop %v1465
    %v2252 = vtanh.pop %v1470
    %v2253 = vtanh.pop %v1473
    %v2254 = vtanh.pop %v1478
    %v2255 = vtanh.pop %v1481
    %v2256 = vtanh.pop %v1486
    %v2257 = vtanh.pop %v1489
    %v2258 = vtanh.pop %v1494
    %v2259 = vtanh.pop %v1497
    %v2260 = vtanh.pop %v1502
    %v2261 = vtanh.pop %v1505
    %v2262 = vtanh.pop %v1510
    %v2263 = vtanh.pop %v1513
    %v2264 = vtanh.pop %v1518
    %v2265 = vtanh.pop %v1521
    %v2266 = vtanh.pop %v1526
    %v2267 = vtanh.pop %v1529
    %v2268 = vtanh.pop %v1534
    %v2269 = vtanh.pop %v1537
    %v2270 = vtanh.pop %v1542
    %v2271 = vtanh.pop %v1545
    %v2272 = vtanh.pop %v1550
    %v2273 = vtanh.pop %v1553
    %v2274 = vtanh.pop %v1558
    %v2275 = vtanh.pop %v1561
    %v2276 = vtanh.pop %v1566
    %v2277 = vtanh.pop %v1569
    %v2278 = vtanh.pop %v1574
    %v2279 = vtanh.pop %v1577
    %v2280 = vtanh.pop %v1582
    %v2281 = vtanh.pop %v1585
    %v2282 = vtanh.pop %v1590
    %v2283 = vtanh.pop %v1593
    %v2284 = vtanh.pop %v1598
    %v2285 = vtanh.pop %v1601
    %v2286 = vtanh.pop %v1606
    %v2287 = vtanh.pop %v1609
    %v2288 = vtanh.pop %v1614
    %v2289 = vtanh.pop %v1617
    %v2290 = vtanh.pop %v1622
    %v2291 = vtanh.pop %v1625
    %v2292 = vtanh.pop %v1630
    %v2293 = vtanh.pop %v1633
    %2294 = vst.msk [vmem:[%s3] sm:$0xff] %vm1895, %v2230
    %2295 = vst.msk [vmem:[%s3 + $0x8] sm:$0xff] %vm1895, %v2231
    %2296 = vst.msk [vmem:[%s3 + $0x10] sm:$0xff] %vm1895, %v2232
    %2297 = vst.msk [vmem:[%s3 + $0x18] sm:$0xff] %vm1895, %v2233
    %2298 = vst.msk [vmem:[%s3 + $0x20] sm:$0xff] %vm1895, %v2234
    %2299 = vst.msk [vmem:[%s3 + $0x28] sm:$0xff] %vm1895, %v2235
    %2300 = vst.msk [vmem:[%s3 + $0x30] sm:$0xff] %vm1895, %v2236
    %2301 = vst.msk [vmem:[%s3 + $0x38] sm:$0xff] %vm1895, %v2237
    %2302 = vst.msk [vmem:[%s3 + $0x40] sm:$0xff] %vm1895, %v2238
    %2303 = vst.msk [vmem:[%s3 + $0x48] sm:$0xff] %vm1895, %v2239
    %2304 = vst.msk [vmem:[%s3 + $0x50] sm:$0xff] %vm1895, %v2240
    %2305 = vst.msk [vmem:[%s3 + $0x58] sm:$0xff] %vm1895, %v2241
    %2306 = vst.msk [vmem:[%s3 + $0x60] sm:$0xff] %vm1895, %v2242
    %2307 = vst.msk [vmem:[%s3 + $0x68] sm:$0xff] %vm1895, %v2243
    %2308 = vst.msk [vmem:[%s3 + $0x70] sm:$0xff] %vm1895, %v2244
    %2309 = vst.msk [vmem:[%s3 + $0x78] sm:$0xff] %vm1895, %v2245
    %2310 = vst.msk [vmem:[%s3 + $0x80] sm:$0xff] %vm1895, %v2246
    %2311 = vst.msk [vmem:[%s3 + $0x88] sm:$0xff] %vm1895, %v2247
    %2312 = vst.msk [vmem:[%s3 + $0x90] sm:$0xff] %vm1895, %v2248
    %2313 = vst.msk [vmem:[%s3 + $0x98] sm:$0xff] %vm1895, %v2249
    %2314 = vst.msk [vmem:[%s3 + $0xa0] sm:$0xff] %vm1895, %v2250
    %2315 = vst.msk [vmem:[%s3 + $0xa8] sm:$0xff] %vm1895, %v2251
    %2316 = vst.msk [vmem:[%s3 + $0xb0] sm:$0xff] %vm1895, %v2252
    %2317 = vst.msk [vmem:[%s3 + $0xb8] sm:$0xff] %vm1895, %v2253
    %2318 = vst.msk [vmem:[%s3 + $0xc0] sm:$0xff] %vm1895, %v2254
    %2319 = vst.msk [vmem:[%s3 + $0xc8] sm:$0xff] %vm1895, %v2255
    %2320 = vst.msk [vmem:[%s3 + $0xd0] sm:$0xff] %vm1895, %v2256
    %2321 = vst.msk [vmem:[%s3 + $0xd8] sm:$0xff] %vm1895, %v2257
    %2322 = vst.msk [vmem:[%s3 + $0xe0] sm:$0xff] %vm1895, %v2258
    %2323 = vst.msk [vmem:[%s3 + $0xe8] sm:$0xff] %vm1895, %v2259
    %2324 = vst.msk [vmem:[%s3 + $0xf0] sm:$0xff] %vm1895, %v2260
    %2325 = vst.msk [vmem:[%s3 + $0xf8] sm:$0xff] %vm1895, %v2261
    %2326 = vst.msk [vmem:[%s3 + $0x100] sm:$0xff] %vm1895, %v2262
    %2327 = vst.msk [vmem:[%s3 + $0x108] sm:$0xff] %vm1895, %v2263
    %2328 = vst.msk [vmem:[%s3 + $0x110] sm:$0xff] %vm1895, %v2264
    %2329 = vst.msk [vmem:[%s3 + $0x118] sm:$0xff] %vm1895, %v2265
    %2330 = vst.msk [vmem:[%s3 + $0x120] sm:$0xff] %vm1895, %v2266
    %2331 = vst.msk [vmem:[%s3 + $0x128] sm:$0xff] %vm1895, %v2267
    %2332 = vst.msk [vmem:[%s3 + $0x130] sm:$0xff] %vm1895, %v2268
    %2333 = vst.msk [vmem:[%s3 + $0x138] sm:$0xff] %vm1895, %v2269
    %2334 = vst.msk [vmem:[%s3 + $0x140] sm:$0xff] %vm1895, %v2270
    %2335 = vst.msk [vmem:[%s3 + $0x148] sm:$0xff] %vm1895, %v2271
    %2336 = vst.msk [vmem:[%s3 + $0x150] sm:$0xff] %vm1895, %v2272
    %2337 = vst.msk [vmem:[%s3 + $0x158] sm:$0xff] %vm1895, %v2273
    %2338 = vst.msk [vmem:[%s3 + $0x160] sm:$0xff] %vm1895, %v2274
    %2339 = vst.msk [vmem:[%s3 + $0x168] sm:$0xff] %vm1895, %v2275
    %2340 = vst.msk [vmem:[%s3 + $0x170] sm:$0xff] %vm1895, %v2276
    %2341 = vst.msk [vmem:[%s3 + $0x178] sm:$0xff] %vm1895, %v2277
    %2342 = vst.msk [vmem:[%s3 + $0x180] sm:$0xff] %vm1895, %v2278
    %2343 = vst.msk [vmem:[%s3 + $0x188] sm:$0xff] %vm1895, %v2279
    %2344 = vst.msk [vmem:[%s3 + $0x190] sm:$0xff] %vm1895, %v2280
    %2345 = vst.msk [vmem:[%s3 + $0x198] sm:$0xff] %vm1895, %v2281
    %2346 = vst.msk [vmem:[%s3 + $0x1a0] sm:$0xff] %vm1895, %v2282
    %2347 = vst.msk [vmem:[%s3 + $0x1a8] sm:$0xff] %vm1895, %v2283
    %2348 = vst.msk [vmem:[%s3 + $0x1b0] sm:$0xff] %vm1895, %v2284
    %2349 = vst.msk [vmem:[%s3 + $0x1b8] sm:$0xff] %vm1895, %v2285
    %2350 = vst.msk [vmem:[%s3 + $0x1c0] sm:$0xff] %vm1895, %v2286
    %2351 = vst.msk [vmem:[%s3 + $0x1c8] sm:$0xff] %vm1895, %v2287
    %2352 = vst.msk [vmem:[%s3 + $0x1d0] sm:$0xff] %vm1895, %v2288
    %2353 = vst.msk [vmem:[%s3 + $0x1d8] sm:$0xff] %vm1895, %v2289
    %2354 = vst.msk [vmem:[%s3 + $0x1e0] sm:$0xff] %vm1895, %v2290
    %2355 = vst.msk [vmem:[%s3 + $0x1e8] sm:$0xff] %vm1895, %v2291
    %2356 = vst.msk [vmem:[%s3 + $0x1f0] sm:$0xff] %vm1895, %v2292
    %2357 = vst.msk [vmem:[%s3 + $0x1f8] sm:$0xff] %vm1895, %v2293
    // Predicated region
    $region14: #{global_generator_forward.49} parent=1 // pred_check
      _
    $region15: #{global_generator_forward.49} parent=1 // pred_check_branch
      %2359 = sbr.rel (0) target = $region17
    $region16: #{global_generator_forward.49} parent=1 // pred_region
      _
    $region17: #{global_generator_forward.49} parent=1 // pred_fallthru
      _
    // Predicated region
    $region18: #{global_generator_forward.49} parent=1 // pred_check
      _
    $region19: #{global_generator_forward.49} parent=1 // pred_check_branch
      %2361 = sbr.rel (0) target = $region21
    $region20: #{global_generator_forward.49} parent=1 // pred_region
      %s2363 = ssub.s32 32, 32
      %2364 = vsyncadd [#allocation3], %s2363
      %s2366 = sshll.u32 [#allocation2], 4
      %s2367 = int_to_ptr.vmem [resolvable:$true] %s2366
      %2369 = dma.vmem_to_hbm [thread:$0]  %s2367, 32, %s4, [#allocation3]
    $region21: #{global_generator_forward.49} parent=1 // pred_fallthru
      _
    // Predicated region
    $region22: #{global_generator_forward.49} parent=1 // pred_check
      _
    $region23: #{global_generator_forward.49} parent=1 // pred_check_branch
      %2371 = sbr.rel (0) target = $region25
    $region24: #{global_generator_forward.49} parent=1 // pred_region
      _
    $region25: #{global_generator_forward.49} parent=1 // pred_fallthru
      _
    // Predicated region
    $region26: #{global_generator_forward.49} parent=1 // pred_check
      _
    $region27: #{global_generator_forward.49} parent=1 // pred_check_branch
      %2373 = sbr.rel (0) target = $region29
    $region28: #{global_generator_forward.49} parent=1 // pred_region
      %2374 = dma.done [#allocation3], 32
    $region29: #{global_generator_forward.49} parent=1 // pred_fallthru
      _
    %2375 = vsyncpa [#allocation3], 1

</llo_original>
